<compile_context>
chip_gen: v6e
topology: v6e:2x2x1
jax: 0.10.0
libtpu: 0.0.40
codegen_flags: <defaults>
</compile_context>

<pallas_src>
import math
from functools import partial

import jax
import jax.numpy as jnp
from jax.experimental import pallas as pl
from jax.experimental.pallas import tpu as pltpu  # noqa: F401  (TPU backend)


# ----------------------------- in-kernel helpers -----------------------------

def _layernorm(x, w, b, eps=1e-5):
    mu = jnp.mean(x, axis=-1, keepdims=True)
    var = jnp.mean((x - mu) ** 2, axis=-1, keepdims=True)
    return (x - mu) * jax.lax.rsqrt(var + eps) * w + b


def _softmax_last(x):
    x = x - jnp.max(x, axis=-1, keepdims=True)
    e = jnp.exp(x)
    return e / jnp.sum(e, axis=-1, keepdims=True)


# --------------------------------- fused kernel -------------------------------

def predictor_kernel(xraw_ref, xtab_ref,
                     proj_w_ref, proj_b_ref,
                     wqkv_ref, bqkv_ref, wo_ref, bo_ref,
                     ln1w_ref, ln1b_ref, w1_ref, b1_ref, w2_ref, b2_ref,
                     ln2w_ref, ln2b_ref,
                     pool_w_ref, pool_b_ref,
                     rw1z_ref, rw1t_ref, rb1_ref, rw2_ref, rb2_ref,
                     rw3_ref, rb3_ref,
                     o_ref, *, num_heads):
    B, S, n_haps = xraw_ref.shape
    E = proj_b_ref.shape[1]
    L = wqkv_ref.shape[0]
    N = B * S
    Dh = E // num_heads
    scale = 1.0 / math.sqrt(Dh)
    bf16 = jnp.bfloat16

    # ---- input projection, batch folded into M: (B*S, n_haps) @ (n_haps, E) ----
    x = xraw_ref[...].reshape(N, n_haps).astype(bf16)
    z = jnp.dot(x, proj_w_ref[...], preferred_element_type=jnp.float32) + proj_b_ref[...]

    # ---- transformer encoder layers (PyTorch post-norm, ReLU FFN) ---------------
    for l in range(L):
        wqkv, bqkv = wqkv_ref[l], bqkv_ref[l]
        wo, bo = wo_ref[l], bo_ref[l]
        ln1w, ln1b = ln1w_ref[l], ln1b_ref[l]
        w1, b1 = w1_ref[l], b1_ref[l]
        w2, b2 = w2_ref[l], b2_ref[l]
        ln2w, ln2b = ln2w_ref[l], ln2b_ref[l]

        zb = z.astype(bf16)
        qkv = jnp.dot(zb, wqkv, preferred_element_type=jnp.float32) + bqkv      # (N, 3E)
        q = qkv[:, :E].reshape(B, S, E)
        k = qkv[:, E:2 * E].reshape(B, S, E)
        v = qkv[:, 2 * E:].reshape(B, S, E)

        # multi-head self-attention; the per-head output projection is accumulated
        # using the corresponding row block of Wo, so no lane-axis concat is needed.
        attn = jnp.zeros((N, E), jnp.float32)
        for h in range(num_heads):
            sl = slice(h * Dh, (h + 1) * Dh)
            qh = q[:, :, sl].astype(bf16)                                        # (B,S,Dh)
            kh = k[:, :, sl].astype(bf16)
            vh = v[:, :, sl].astype(bf16)
            s = jnp.einsum("bqd,bkd->bqk", qh, kh,
                           preferred_element_type=jnp.float32) * scale          # (B,S,S)
            p = _softmax_last(s)
            oh = jnp.einsum("bqk,bkd->bqd", p.astype(bf16), vh,
                            preferred_element_type=jnp.float32)                 # (B,S,Dh)
            attn = attn + jnp.dot(oh.reshape(N, Dh).astype(bf16), wo[sl, :],
                                  preferred_element_type=jnp.float32)
        attn = attn + bo

        # residual + LayerNorm1
        y = _layernorm(z + attn, ln1w, ln1b)

        # feed-forward (ReLU), residual + LayerNorm2
        f1 = jnp.maximum(
            jnp.dot(y.astype(bf16), w1, preferred_element_type=jnp.float32) + b1, 0.0)
        f2 = jnp.dot(f1.astype(bf16), w2, preferred_element_type=jnp.float32) + b2
        z = _layernorm(y + f2, ln2w, ln2b)

    # ---- softmax attention pooling over the sequence (dim=1) --------------------
    z3 = z.reshape(B, S, E)
    pw = pool_w_ref[...].reshape(1, 1, E)
    pb = pool_b_ref[...].reshape(1, 1, 1)
    logits = jnp.sum(z3 * pw, axis=-1, keepdims=True) + pb                       # (B,S,1)
    logits = logits - jnp.max(logits, axis=1, keepdims=True)
    wseq = jnp.exp(logits)
    wseq = wseq / jnp.sum(wseq, axis=1, keepdims=True)
    pooled = jnp.sum(wseq * z3, axis=1)                                          # (B,E)

    # ---- tabular regressor (torch.cat avoided: W1 split into [z | tab] blocks) --
    xt = xtab_ref[...].astype(bf16)
    r1 = jnp.maximum(
        jnp.dot(pooled.astype(bf16), rw1z_ref[...], preferred_element_type=jnp.float32)
        + jnp.dot(xt, rw1t_ref[...], preferred_element_type=jnp.float32)
        + rb1_ref[...], 0.0)
    r2 = jnp.maximum(
        jnp.dot(r1.astype(bf16), rw2_ref[...], preferred_element_type=jnp.float32)
        + rb2_ref[...], 0.0)
    # final Linear(128, 1) as VPU multiply + lane reduce (no width-1 matmul / store)
    o_ref[...] = jnp.sum(r2 * rw3_ref[...], axis=-1, keepdims=True) + rb3_ref[...]


# ------------------------------ parameter setup -------------------------------

def init_params(key, n_haps, n_tab, embed=64, heads=4, layers=3, ffn=2048,
                hidden=(256, 128)):
    keys = iter(jax.random.split(key, 16 + 4 * layers))

    def lin_w(out_d, in_d, dtype=jnp.bfloat16):
        # PyTorch-like uniform(-1/sqrt(in), 1/sqrt(in)); stored (In, Out) pre-transposed.
        bound = 1.0 / math.sqrt(in_d)
        w = jax.random.uniform(next(keys), (in_d, out_d), jnp.float32, -bound, bound)
        return w.astype(dtype)

    def zeros_b(out_d):
        return jnp.zeros((1, out_d), jnp.float32)

    params = {"heads": heads}
    params["proj_w"] = lin_w(embed, n_haps)                       # (n_haps, E) bf16
    params["proj_b"] = zeros_b(embed)

    wqkv, wo, w1, w2 = [], [], [], []
    for _ in range(layers):
        wqkv.append(lin_w(3 * embed, embed))
        wo.append(lin_w(embed, embed))
        w1.append(lin_w(ffn, embed))
        w2.append(lin_w(embed, ffn))
    params["wqkv"] = jnp.stack(wqkv)                              # (L, E, 3E) bf16
    params["wo"] = jnp.stack(wo)                                  # (L, E, E)  bf16
    params["w1"] = jnp.stack(w1)                                  # (L, E, F)  bf16
    params["w2"] = jnp.stack(w2)                                  # (L, F, E)  bf16
    params["bqkv"] = jnp.zeros((layers, 1, 3 * embed), jnp.float32)
    params["bo"] = jnp.zeros((layers, 1, embed), jnp.float32)
    params["b1"] = jnp.zeros((layers, 1, ffn), jnp.float32)
    params["b2"] = jnp.zeros((layers, 1, embed), jnp.float32)
    params["ln1w"] = jnp.ones((layers, 1, embed), jnp.float32)
    params["ln1b"] = jnp.zeros((layers, 1, embed), jnp.float32)
    params["ln2w"] = jnp.ones((layers, 1, embed), jnp.float32)
    params["ln2b"] = jnp.zeros((layers, 1, embed), jnp.float32)

    # pooling head Linear(E, 1): kept f32 (used as VPU multiply + reduce in kernel)
    bnd = 1.0 / math.sqrt(embed)
    params["pool_w"] = jax.random.uniform(next(keys), (1, embed), jnp.float32, -bnd, bnd)
    params["pool_b"] = jnp.zeros((1, 1), jnp.float32)

    # tabular regressor; first-layer weight split into [pooled-z | tab] input blocks
    d0 = embed + n_tab
    b0 = 1.0 / math.sqrt(d0)
    rw1 = jax.random.uniform(next(keys), (d0, hidden[0]), jnp.float32, -b0, b0)
    params["rw1z"] = rw1[:embed].astype(jnp.bfloat16)             # (E, 256)
    params["rw1t"] = rw1[embed:].astype(jnp.bfloat16)             # (n_tab, 256)
    params["rb1"] = zeros_b(hidden[0])
    params["rw2"] = lin_w(hidden[1], hidden[0])                   # (256, 128) bf16
    params["rb2"] = zeros_b(hidden[1])
    b3 = 1.0 / math.sqrt(hidden[1])
    params["rw3"] = jax.random.uniform(next(keys), (1, hidden[1]), jnp.float32, -b3, b3)
    params["rb3"] = jnp.zeros((1, 1), jnp.float32)
    return params


# --------------------------------- forward ------------------------------------

def predictor_forward(params, Xraw, Xtab):
    B = Xraw.shape[0]
    out = pl.pallas_call(
        partial(predictor_kernel, num_heads=params["heads"]),
        out_shape=jax.ShapeDtypeStruct((B, 1), jnp.float32),
    )(Xraw, Xtab,
      params["proj_w"], params["proj_b"],
      params["wqkv"], params["bqkv"], params["wo"], params["bo"],
      params["ln1w"], params["ln1b"], params["w1"], params["b1"],
      params["w2"], params["b2"], params["ln2w"], params["ln2b"],
      params["pool_w"], params["pool_b"],
      params["rw1z"], params["rw1t"], params["rb1"],
      params["rw2"], params["rb2"], params["rw3"], params["rb3"])
    return out[:, 0]                                              # (B,) == .squeeze(1)


# ----------------------------------- main --------------------------------------

if __name__ == "__main__":
    key = jax.random.PRNGKey(0)
    pkey, xkey, tkey = jax.random.split(key, 3)

    B, S, n_haps, n_tab = 2, 8, 16, 8
    params = init_params(pkey, n_haps=n_haps, n_tab=n_tab, embed=64, heads=4, layers=3)

    Xraw = jax.random.normal(xkey, (B, S, n_haps), jnp.float32)   # (batch, seq, n_haps)
    Xtab = jax.random.normal(tkey, (B, n_tab), jnp.float32)       # (batch, n_tab)

    out = predictor_forward(params, Xraw, Xtab)
    jax.block_until_ready(out)
    assert out.shape == (B,) and out.dtype == jnp.float32
    print("KERNEL_OK")
</pallas_src>

<mosaic_0001>
module attributes {stable_mosaic.version = 11 : i64} {
  func.func @predictor_kernel(%arg0: memref<2x8x16xf32, #tpu.memory_space<vmem>>, %arg1: memref<2x8xf32, #tpu.memory_space<vmem>>, %arg2: memref<16x64xbf16, #tpu.memory_space<vmem>>, %arg3: memref<1x64xf32, #tpu.memory_space<vmem>>, %arg4: memref<3x64x192xbf16, #tpu.memory_space<vmem>>, %arg5: memref<3x1x192xf32, #tpu.memory_space<vmem>>, %arg6: memref<3x64x64xbf16, #tpu.memory_space<vmem>>, %arg7: memref<3x1x64xf32, #tpu.memory_space<vmem>>, %arg8: memref<3x1x64xf32, #tpu.memory_space<vmem>>, %arg9: memref<3x1x64xf32, #tpu.memory_space<vmem>>, %arg10: memref<3x64x2048xbf16, #tpu.memory_space<vmem>>, %arg11: memref<3x1x2048xf32, #tpu.memory_space<vmem>>, %arg12: memref<3x2048x64xbf16, #tpu.memory_space<vmem>>, %arg13: memref<3x1x64xf32, #tpu.memory_space<vmem>>, %arg14: memref<3x1x64xf32, #tpu.memory_space<vmem>>, %arg15: memref<3x1x64xf32, #tpu.memory_space<vmem>>, %arg16: memref<1x64xf32, #tpu.memory_space<vmem>>, %arg17: memref<1x1xf32, #tpu.memory_space<vmem>>, %arg18: memref<64x256xbf16, #tpu.memory_space<vmem>>, %arg19: memref<8x256xbf16, #tpu.memory_space<vmem>>, %arg20: memref<1x256xf32, #tpu.memory_space<vmem>>, %arg21: memref<256x128xbf16, #tpu.memory_space<vmem>>, %arg22: memref<1x128xf32, #tpu.memory_space<vmem>>, %arg23: memref<1x128xf32, #tpu.memory_space<vmem>>, %arg24: memref<1x1xf32, #tpu.memory_space<vmem>>, %arg25: memref<2x1xf32, #tpu.memory_space<vmem>>) attributes {dimension_semantics = [], scalar_prefetch = 0 : i64, scratch_operands = 0 : i64, tpu.core_type = #tpu.core_type<tc>} {
    %c0 = arith.constant 0 : index
    %c0_0 = arith.constant 0 : index
    %c0_1 = arith.constant 0 : index
    %0 = vector.load %arg0[%c0, %c0_0, %c0_1] : memref<2x8x16xf32, #tpu.memory_space<vmem>>, vector<2x8x16xf32>
    %1 = vector.shape_cast %0 : vector<2x8x16xf32> to vector<16x16xf32>
    %2 = arith.truncf %1 : vector<16x16xf32> to vector<16x16xbf16>
    %c0_2 = arith.constant 0 : index
    %c0_3 = arith.constant 0 : index
    %3 = vector.load %arg2[%c0_2, %c0_3] : memref<16x64xbf16, #tpu.memory_space<vmem>>, vector<16x64xbf16>
    %cst = arith.constant dense<0.000000e+00> : vector<16x64xf32>
    %4 = tpu.matmul %2, %3, %cst {dimension_numbers = #tpu.dot_dimension_numbers<[1], [0], [0], [1], [0, 0, 1, 1], [], []>} : vector<16x16xbf16>, vector<16x64xbf16>, vector<16x64xf32> -> vector<16x64xf32>
    %c0_4 = arith.constant 0 : index
    %c0_5 = arith.constant 0 : index
    %5 = vector.load %arg3[%c0_4, %c0_5] : memref<1x64xf32, #tpu.memory_space<vmem>>, vector<1x64xf32>
    %6 = vector.broadcast %5 : vector<1x64xf32> to vector<16x64xf32>
    %7 = arith.addf %4, %6 : vector<16x64xf32>
    %c0_6 = arith.constant 0 : index
    %c0_7 = arith.constant 0 : index
    %c0_8 = arith.constant 0 : index
    %8 = vector.load %arg4[%c0_6, %c0_7, %c0_8] : memref<3x64x192xbf16, #tpu.memory_space<vmem>>, vector<1x64x192xbf16>
    %9 = vector.shape_cast %8 : vector<1x64x192xbf16> to vector<64x192xbf16>
    %c0_9 = arith.constant 0 : index
    %c0_10 = arith.constant 0 : index
    %c0_11 = arith.constant 0 : index
    %10 = vector.load %arg5[%c0_9, %c0_10, %c0_11] : memref<3x1x192xf32, #tpu.memory_space<vmem>>, vector<1x1x192xf32>
    %11 = vector.shape_cast %10 : vector<1x1x192xf32> to vector<1x192xf32>
    %c0_12 = arith.constant 0 : index
    %c0_13 = arith.constant 0 : index
    %c0_14 = arith.constant 0 : index
    %12 = vector.load %arg6[%c0_12, %c0_13, %c0_14] : memref<3x64x64xbf16, #tpu.memory_space<vmem>>, vector<1x64x64xbf16>
    %13 = vector.shape_cast %12 : vector<1x64x64xbf16> to vector<64x64xbf16>
    %c0_15 = arith.constant 0 : index
    %c0_16 = arith.constant 0 : index
    %c0_17 = arith.constant 0 : index
    %14 = vector.load %arg7[%c0_15, %c0_16, %c0_17] : memref<3x1x64xf32, #tpu.memory_space<vmem>>, vector<1x1x64xf32>
    %15 = vector.shape_cast %14 : vector<1x1x64xf32> to vector<1x64xf32>
    %c0_18 = arith.constant 0 : index
    %c0_19 = arith.constant 0 : index
    %c0_20 = arith.constant 0 : index
    %16 = vector.load %arg8[%c0_18, %c0_19, %c0_20] : memref<3x1x64xf32, #tpu.memory_space<vmem>>, vector<1x1x64xf32>
    %17 = vector.shape_cast %16 : vector<1x1x64xf32> to vector<1x64xf32>
    %c0_21 = arith.constant 0 : index
    %c0_22 = arith.constant 0 : index
    %c0_23 = arith.constant 0 : index
    %18 = vector.load %arg9[%c0_21, %c0_22, %c0_23] : memref<3x1x64xf32, #tpu.memory_space<vmem>>, vector<1x1x64xf32>
    %19 = vector.shape_cast %18 : vector<1x1x64xf32> to vector<1x64xf32>
    %c0_24 = arith.constant 0 : index
    %c0_25 = arith.constant 0 : index
    %c0_26 = arith.constant 0 : index
    %20 = vector.load %arg10[%c0_24, %c0_25, %c0_26] : memref<3x64x2048xbf16, #tpu.memory_space<vmem>>, vector<1x64x2048xbf16>
    %21 = vector.shape_cast %20 : vector<1x64x2048xbf16> to vector<64x2048xbf16>
    %c0_27 = arith.constant 0 : index
    %c0_28 = arith.constant 0 : index
    %c0_29 = arith.constant 0 : index
    %22 = vector.load %arg11[%c0_27, %c0_28, %c0_29] : memref<3x1x2048xf32, #tpu.memory_space<vmem>>, vector<1x1x2048xf32>
    %23 = vector.shape_cast %22 : vector<1x1x2048xf32> to vector<1x2048xf32>
    %c0_30 = arith.constant 0 : index
    %c0_31 = arith.constant 0 : index
    %c0_32 = arith.constant 0 : index
    %24 = vector.load %arg12[%c0_30, %c0_31, %c0_32] : memref<3x2048x64xbf16, #tpu.memory_space<vmem>>, vector<1x2048x64xbf16>
    %25 = vector.shape_cast %24 : vector<1x2048x64xbf16> to vector<2048x64xbf16>
    %c0_33 = arith.constant 0 : index
    %c0_34 = arith.constant 0 : index
    %c0_35 = arith.constant 0 : index
    %26 = vector.load %arg13[%c0_33, %c0_34, %c0_35] : memref<3x1x64xf32, #tpu.memory_space<vmem>>, vector<1x1x64xf32>
    %27 = vector.shape_cast %26 : vector<1x1x64xf32> to vector<1x64xf32>
    %c0_36 = arith.constant 0 : index
    %c0_37 = arith.constant 0 : index
    %c0_38 = arith.constant 0 : index
    %28 = vector.load %arg14[%c0_36, %c0_37, %c0_38] : memref<3x1x64xf32, #tpu.memory_space<vmem>>, vector<1x1x64xf32>
    %29 = vector.shape_cast %28 : vector<1x1x64xf32> to vector<1x64xf32>
    %c0_39 = arith.constant 0 : index
    %c0_40 = arith.constant 0 : index
    %c0_41 = arith.constant 0 : index
    %30 = vector.load %arg15[%c0_39, %c0_40, %c0_41] : memref<3x1x64xf32, #tpu.memory_space<vmem>>, vector<1x1x64xf32>
    %31 = vector.shape_cast %30 : vector<1x1x64xf32> to vector<1x64xf32>
    %32 = arith.truncf %7 : vector<16x64xf32> to vector<16x64xbf16>
    %cst_42 = arith.constant dense<0.000000e+00> : vector<16x192xf32>
    %33 = tpu.matmul %32, %9, %cst_42 {dimension_numbers = #tpu.dot_dimension_numbers<[1], [0], [0], [1], [0, 0, 1, 1], [], []>} : vector<16x64xbf16>, vector<64x192xbf16>, vector<16x192xf32> -> vector<16x192xf32>
    %34 = vector.broadcast %11 : vector<1x192xf32> to vector<16x192xf32>
    %35 = arith.addf %33, %34 : vector<16x192xf32>
    %36 = vector.extract_strided_slice %35 {offsets = [0, 0], sizes = [16, 64], strides = [1, 1]} : vector<16x192xf32> to vector<16x64xf32>
    %37 = vector.shape_cast %36 : vector<16x64xf32> to vector<2x8x64xf32>
    %38 = vector.extract_strided_slice %35 {offsets = [0, 64], sizes = [16, 64], strides = [1, 1]} : vector<16x192xf32> to vector<16x64xf32>
    %39 = vector.shape_cast %38 : vector<16x64xf32> to vector<2x8x64xf32>
    %40 = vector.extract_strided_slice %35 {offsets = [0, 128], sizes = [16, 64], strides = [1, 1]} : vector<16x192xf32> to vector<16x64xf32>
    %41 = vector.shape_cast %40 : vector<16x64xf32> to vector<2x8x64xf32>
    %cst_43 = arith.constant 0.000000e+00 : f32
    %42 = vector.broadcast %cst_43 : f32 to vector<16x64xf32>
    %43 = vector.extract_strided_slice %37 {offsets = [0, 0, 0], sizes = [2, 8, 16], strides = [1, 1, 1]} : vector<2x8x64xf32> to vector<2x8x16xf32>
    %44 = arith.truncf %43 : vector<2x8x16xf32> to vector<2x8x16xbf16>
    %45 = vector.extract_strided_slice %39 {offsets = [0, 0, 0], sizes = [2, 8, 16], strides = [1, 1, 1]} : vector<2x8x64xf32> to vector<2x8x16xf32>
    %46 = arith.truncf %45 : vector<2x8x16xf32> to vector<2x8x16xbf16>
    %47 = vector.extract_strided_slice %41 {offsets = [0, 0, 0], sizes = [2, 8, 16], strides = [1, 1, 1]} : vector<2x8x64xf32> to vector<2x8x16xf32>
    %48 = arith.truncf %47 : vector<2x8x16xf32> to vector<2x8x16xbf16>
    "tpu.trace_start"() <{level = 10 : i32, message = "bqd,bkd->bqk"}> : () -> ()
    %cst_44 = arith.constant dense<0.000000e+00> : vector<2x8x8xf32>
    %49 = tpu.matmul %44, %46, %cst_44 {dimension_numbers = #tpu.dot_dimension_numbers<[2], [2], [1], [1], [0, 0, 0, 1, 1, 1], [0], [0]>} : vector<2x8x16xbf16>, vector<2x8x16xbf16>, vector<2x8x8xf32> -> vector<2x8x8xf32>
    "tpu.trace_stop"() : () -> ()
    %cst_45 = arith.constant 2.500000e-01 : f32
    %50 = vector.broadcast %cst_45 : f32 to vector<2x8x8xf32>
    %51 = arith.mulf %49, %50 : vector<2x8x8xf32>
    %cst_46 = arith.constant dense<0xFF800000> : vector<2x8xf32>
    %52 = vector.multi_reduction <maximumf>, %51, %cst_46 [2] : vector<2x8x8xf32> to vector<2x8xf32>
    %53 = vector.shape_cast %52 : vector<2x8xf32> to vector<2x8x1xf32>
    %54 = vector.broadcast %53 : vector<2x8x1xf32> to vector<2x8x8xf32>
    %55 = arith.subf %51, %54 : vector<2x8x8xf32>
    %56 = math.exp %55 : vector<2x8x8xf32>
    %cst_47 = arith.constant dense<0.000000e+00> : vector<2x8xf32>
    %57 = vector.multi_reduction <add>, %56, %cst_47 [2] : vector<2x8x8xf32> to vector<2x8xf32>
    %58 = vector.shape_cast %57 : vector<2x8xf32> to vector<2x8x1xf32>
    %59 = vector.broadcast %58 : vector<2x8x1xf32> to vector<2x8x8xf32>
    %60 = arith.divf %56, %59 : vector<2x8x8xf32>
    %61 = arith.truncf %60 : vector<2x8x8xf32> to vector<2x8x8xbf16>
    "tpu.trace_start"() <{level = 10 : i32, message = "bqk,bkd->bqd"}> : () -> ()
    %cst_48 = arith.constant dense<0.000000e+00> : vector<2x8x16xf32>
    %62 = tpu.matmul %61, %48, %cst_48 {dimension_numbers = #tpu.dot_dimension_numbers<[2], [1], [1], [2], [0, 0, 0, 1, 1, 2], [0], [0]>} : vector<2x8x8xbf16>, vector<2x8x16xbf16>, vector<2x8x16xf32> -> vector<2x8x16xf32>
    "tpu.trace_stop"() : () -> ()
    %63 = vector.shape_cast %62 : vector<2x8x16xf32> to vector<16x16xf32>
    %64 = arith.truncf %63 : vector<16x16xf32> to vector<16x16xbf16>
    %65 = vector.extract_strided_slice %13 {offsets = [0, 0], sizes = [16, 64], strides = [1, 1]} : vector<64x64xbf16> to vector<16x64xbf16>
    %cst_49 = arith.constant dense<0.000000e+00> : vector<16x64xf32>
    %66 = tpu.matmul %64, %65, %cst_49 {dimension_numbers = #tpu.dot_dimension_numbers<[1], [0], [0], [1], [0, 0, 1, 1], [], []>} : vector<16x16xbf16>, vector<16x64xbf16>, vector<16x64xf32> -> vector<16x64xf32>
    %67 = arith.addf %42, %66 : vector<16x64xf32>
    %68 = vector.extract_strided_slice %37 {offsets = [0, 0, 16], sizes = [2, 8, 16], strides = [1, 1, 1]} : vector<2x8x64xf32> to vector<2x8x16xf32>
    %69 = arith.truncf %68 : vector<2x8x16xf32> to vector<2x8x16xbf16>
    %70 = vector.extract_strided_slice %39 {offsets = [0, 0, 16], sizes = [2, 8, 16], strides = [1, 1, 1]} : vector<2x8x64xf32> to vector<2x8x16xf32>
    %71 = arith.truncf %70 : vector<2x8x16xf32> to vector<2x8x16xbf16>
    %72 = vector.extract_strided_slice %41 {offsets = [0, 0, 16], sizes = [2, 8, 16], strides = [1, 1, 1]} : vector<2x8x64xf32> to vector<2x8x16xf32>
    %73 = arith.truncf %72 : vector<2x8x16xf32> to vector<2x8x16xbf16>
    "tpu.trace_start"() <{level = 10 : i32, message = "bqd,bkd->bqk"}> : () -> ()
    %cst_50 = arith.constant dense<0.000000e+00> : vector<2x8x8xf32>
    %74 = tpu.matmul %69, %71, %cst_50 {dimension_numbers = #tpu.dot_dimension_numbers<[2], [2], [1], [1], [0, 0, 0, 1, 1, 1], [0], [0]>} : vector<2x8x16xbf16>, vector<2x8x16xbf16>, vector<2x8x8xf32> -> vector<2x8x8xf32>
    "tpu.trace_stop"() : () -> ()
    %cst_51 = arith.constant 2.500000e-01 : f32
    %75 = vector.broadcast %cst_51 : f32 to vector<2x8x8xf32>
    %76 = arith.mulf %74, %75 : vector<2x8x8xf32>
    %cst_52 = arith.constant dense<0xFF800000> : vector<2x8xf32>
    %77 = vector.multi_reduction <maximumf>, %76, %cst_52 [2] : vector<2x8x8xf32> to vector<2x8xf32>
    %78 = vector.shape_cast %77 : vector<2x8xf32> to vector<2x8x1xf32>
    %79 = vector.broadcast %78 : vector<2x8x1xf32> to vector<2x8x8xf32>
    %80 = arith.subf %76, %79 : vector<2x8x8xf32>
    %81 = math.exp %80 : vector<2x8x8xf32>
    %cst_53 = arith.constant dense<0.000000e+00> : vector<2x8xf32>
    %82 = vector.multi_reduction <add>, %81, %cst_53 [2] : vector<2x8x8xf32> to vector<2x8xf32>
    %83 = vector.shape_cast %82 : vector<2x8xf32> to vector<2x8x1xf32>
    %84 = vector.broadcast %83 : vector<2x8x1xf32> to vector<2x8x8xf32>
    %85 = arith.divf %81, %84 : vector<2x8x8xf32>
    %86 = arith.truncf %85 : vector<2x8x8xf32> to vector<2x8x8xbf16>
    "tpu.trace_start"() <{level = 10 : i32, message = "bqk,bkd->bqd"}> : () -> ()
    %cst_54 = arith.constant dense<0.000000e+00> : vector<2x8x16xf32>
    %87 = tpu.matmul %86, %73, %cst_54 {dimension_numbers = #tpu.dot_dimension_numbers<[2], [1], [1], [2], [0, 0, 0, 1, 1, 2], [0], [0]>} : vector<2x8x8xbf16>, vector<2x8x16xbf16>, vector<2x8x16xf32> -> vector<2x8x16xf32>
    "tpu.trace_stop"() : () -> ()
    %88 = vector.shape_cast %87 : vector<2x8x16xf32> to vector<16x16xf32>
    %89 = arith.truncf %88 : vector<16x16xf32> to vector<16x16xbf16>
    %90 = vector.extract_strided_slice %13 {offsets = [16, 0], sizes = [16, 64], strides = [1, 1]} : vector<64x64xbf16> to vector<16x64xbf16>
    %cst_55 = arith.constant dense<0.000000e+00> : vector<16x64xf32>
    %91 = tpu.matmul %89, %90, %cst_55 {dimension_numbers = #tpu.dot_dimension_numbers<[1], [0], [0], [1], [0, 0, 1, 1], [], []>} : vector<16x16xbf16>, vector<16x64xbf16>, vector<16x64xf32> -> vector<16x64xf32>
    %92 = arith.addf %67, %91 : vector<16x64xf32>
    %93 = vector.extract_strided_slice %37 {offsets = [0, 0, 32], sizes = [2, 8, 16], strides = [1, 1, 1]} : vector<2x8x64xf32> to vector<2x8x16xf32>
    %94 = arith.truncf %93 : vector<2x8x16xf32> to vector<2x8x16xbf16>
    %95 = vector.extract_strided_slice %39 {offsets = [0, 0, 32], sizes = [2, 8, 16], strides = [1, 1, 1]} : vector<2x8x64xf32> to vector<2x8x16xf32>
    %96 = arith.truncf %95 : vector<2x8x16xf32> to vector<2x8x16xbf16>
    %97 = vector.extract_strided_slice %41 {offsets = [0, 0, 32], sizes = [2, 8, 16], strides = [1, 1, 1]} : vector<2x8x64xf32> to vector<2x8x16xf32>
    %98 = arith.truncf %97 : vector<2x8x16xf32> to vector<2x8x16xbf16>
    "tpu.trace_start"() <{level = 10 : i32, message = "bqd,bkd->bqk"}> : () -> ()
    %cst_56 = arith.constant dense<0.000000e+00> : vector<2x8x8xf32>
    %99 = tpu.matmul %94, %96, %cst_56 {dimension_numbers = #tpu.dot_dimension_numbers<[2], [2], [1], [1], [0, 0, 0, 1, 1, 1], [0], [0]>} : vector<2x8x16xbf16>, vector<2x8x16xbf16>, vector<2x8x8xf32> -> vector<2x8x8xf32>
    "tpu.trace_stop"() : () -> ()
    %cst_57 = arith.constant 2.500000e-01 : f32
    %100 = vector.broadcast %cst_57 : f32 to vector<2x8x8xf32>
    %101 = arith.mulf %99, %100 : vector<2x8x8xf32>
    %cst_58 = arith.constant dense<0xFF800000> : vector<2x8xf32>
    %102 = vector.multi_reduction <maximumf>, %101, %cst_58 [2] : vector<2x8x8xf32> to vector<2x8xf32>
    %103 = vector.shape_cast %102 : vector<2x8xf32> to vector<2x8x1xf32>
    %104 = vector.broadcast %103 : vector<2x8x1xf32> to vector<2x8x8xf32>
    %105 = arith.subf %101, %104 : vector<2x8x8xf32>
    %106 = math.exp %105 : vector<2x8x8xf32>
    %cst_59 = arith.constant dense<0.000000e+00> : vector<2x8xf32>
    %107 = vector.multi_reduction <add>, %106, %cst_59 [2] : vector<2x8x8xf32> to vector<2x8xf32>
    %108 = vector.shape_cast %107 : vector<2x8xf32> to vector<2x8x1xf32>
    %109 = vector.broadcast %108 : vector<2x8x1xf32> to vector<2x8x8xf32>
    %110 = arith.divf %106, %109 : vector<2x8x8xf32>
    %111 = arith.truncf %110 : vector<2x8x8xf32> to vector<2x8x8xbf16>
    "tpu.trace_start"() <{level = 10 : i32, message = "bqk,bkd->bqd"}> : () -> ()
    %cst_60 = arith.constant dense<0.000000e+00> : vector<2x8x16xf32>
    %112 = tpu.matmul %111, %98, %cst_60 {dimension_numbers = #tpu.dot_dimension_numbers<[2], [1], [1], [2], [0, 0, 0, 1, 1, 2], [0], [0]>} : vector<2x8x8xbf16>, vector<2x8x16xbf16>, vector<2x8x16xf32> -> vector<2x8x16xf32>
    "tpu.trace_stop"() : () -> ()
    %113 = vector.shape_cast %112 : vector<2x8x16xf32> to vector<16x16xf32>
    %114 = arith.truncf %113 : vector<16x16xf32> to vector<16x16xbf16>
    %115 = vector.extract_strided_slice %13 {offsets = [32, 0], sizes = [16, 64], strides = [1, 1]} : vector<64x64xbf16> to vector<16x64xbf16>
    %cst_61 = arith.constant dense<0.000000e+00> : vector<16x64xf32>
    %116 = tpu.matmul %114, %115, %cst_61 {dimension_numbers = #tpu.dot_dimension_numbers<[1], [0], [0], [1], [0, 0, 1, 1], [], []>} : vector<16x16xbf16>, vector<16x64xbf16>, vector<16x64xf32> -> vector<16x64xf32>
    %117 = arith.addf %92, %116 : vector<16x64xf32>
    %118 = vector.extract_strided_slice %37 {offsets = [0, 0, 48], sizes = [2, 8, 16], strides = [1, 1, 1]} : vector<2x8x64xf32> to vector<2x8x16xf32>
    %119 = arith.truncf %118 : vector<2x8x16xf32> to vector<2x8x16xbf16>
    %120 = vector.extract_strided_slice %39 {offsets = [0, 0, 48], sizes = [2, 8, 16], strides = [1, 1, 1]} : vector<2x8x64xf32> to vector<2x8x16xf32>
    %121 = arith.truncf %120 : vector<2x8x16xf32> to vector<2x8x16xbf16>
    %122 = vector.extract_strided_slice %41 {offsets = [0, 0, 48], sizes = [2, 8, 16], strides = [1, 1, 1]} : vector<2x8x64xf32> to vector<2x8x16xf32>
    %123 = arith.truncf %122 : vector<2x8x16xf32> to vector<2x8x16xbf16>
    "tpu.trace_start"() <{level = 10 : i32, message = "bqd,bkd->bqk"}> : () -> ()
    %cst_62 = arith.constant dense<0.000000e+00> : vector<2x8x8xf32>
    %124 = tpu.matmul %119, %121, %cst_62 {dimension_numbers = #tpu.dot_dimension_numbers<[2], [2], [1], [1], [0, 0, 0, 1, 1, 1], [0], [0]>} : vector<2x8x16xbf16>, vector<2x8x16xbf16>, vector<2x8x8xf32> -> vector<2x8x8xf32>
    "tpu.trace_stop"() : () -> ()
    %cst_63 = arith.constant 2.500000e-01 : f32
    %125 = vector.broadcast %cst_63 : f32 to vector<2x8x8xf32>
    %126 = arith.mulf %124, %125 : vector<2x8x8xf32>
    %cst_64 = arith.constant dense<0xFF800000> : vector<2x8xf32>
    %127 = vector.multi_reduction <maximumf>, %126, %cst_64 [2] : vector<2x8x8xf32> to vector<2x8xf32>
    %128 = vector.shape_cast %127 : vector<2x8xf32> to vector<2x8x1xf32>
    %129 = vector.broadcast %128 : vector<2x8x1xf32> to vector<2x8x8xf32>
    %130 = arith.subf %126, %129 : vector<2x8x8xf32>
    %131 = math.exp %130 : vector<2x8x8xf32>
    %cst_65 = arith.constant dense<0.000000e+00> : vector<2x8xf32>
    %132 = vector.multi_reduction <add>, %131, %cst_65 [2] : vector<2x8x8xf32> to vector<2x8xf32>
    %133 = vector.shape_cast %132 : vector<2x8xf32> to vector<2x8x1xf32>
    %134 = vector.broadcast %133 : vector<2x8x1xf32> to vector<2x8x8xf32>
    %135 = arith.divf %131, %134 : vector<2x8x8xf32>
    %136 = arith.truncf %135 : vector<2x8x8xf32> to vector<2x8x8xbf16>
    "tpu.trace_start"() <{level = 10 : i32, message = "bqk,bkd->bqd"}> : () -> ()
    %cst_66 = arith.constant dense<0.000000e+00> : vector<2x8x16xf32>
    %137 = tpu.matmul %136, %123, %cst_66 {dimension_numbers = #tpu.dot_dimension_numbers<[2], [1], [1], [2], [0, 0, 0, 1, 1, 2], [0], [0]>} : vector<2x8x8xbf16>, vector<2x8x16xbf16>, vector<2x8x16xf32> -> vector<2x8x16xf32>
    "tpu.trace_stop"() : () -> ()
    %138 = vector.shape_cast %137 : vector<2x8x16xf32> to vector<16x16xf32>
    %139 = arith.truncf %138 : vector<16x16xf32> to vector<16x16xbf16>
    %140 = vector.extract_strided_slice %13 {offsets = [48, 0], sizes = [16, 64], strides = [1, 1]} : vector<64x64xbf16> to vector<16x64xbf16>
    %cst_67 = arith.constant dense<0.000000e+00> : vector<16x64xf32>
    %141 = tpu.matmul %139, %140, %cst_67 {dimension_numbers = #tpu.dot_dimension_numbers<[1], [0], [0], [1], [0, 0, 1, 1], [], []>} : vector<16x16xbf16>, vector<16x64xbf16>, vector<16x64xf32> -> vector<16x64xf32>
    %142 = arith.addf %117, %141 : vector<16x64xf32>
    %143 = vector.broadcast %15 : vector<1x64xf32> to vector<16x64xf32>
    %144 = arith.addf %142, %143 : vector<16x64xf32>
    %145 = arith.addf %7, %144 : vector<16x64xf32>
    %cst_68 = arith.constant dense<0.000000e+00> : vector<16xf32>
    %146 = vector.multi_reduction <add>, %145, %cst_68 [1] : vector<16x64xf32> to vector<16xf32>
    %147 = vector.shape_cast %146 : vector<16xf32> to vector<16x1xf32>
    %cst_69 = arith.constant 6.400000e+01 : f32
    %148 = vector.broadcast %cst_69 : f32 to vector<16x1xf32>
    %149 = arith.divf %147, %148 : vector<16x1xf32>
    %150 = vector.broadcast %149 : vector<16x1xf32> to vector<16x64xf32>
    %151 = arith.subf %145, %150 : vector<16x64xf32>
    %152 = arith.mulf %151, %151 : vector<16x64xf32>
    %cst_70 = arith.constant dense<0.000000e+00> : vector<16xf32>
    %153 = vector.multi_reduction <add>, %152, %cst_70 [1] : vector<16x64xf32> to vector<16xf32>
    %154 = vector.shape_cast %153 : vector<16xf32> to vector<16x1xf32>
    %cst_71 = arith.constant 6.400000e+01 : f32
    %155 = vector.broadcast %cst_71 : f32 to vector<16x1xf32>
    %156 = arith.divf %154, %155 : vector<16x1xf32>
    %157 = vector.broadcast %149 : vector<16x1xf32> to vector<16x64xf32>
    %158 = arith.subf %145, %157 : vector<16x64xf32>
    %cst_72 = arith.constant 9.99999974E-6 : f32
    %159 = vector.broadcast %cst_72 : f32 to vector<16x1xf32>
    %160 = arith.addf %156, %159 : vector<16x1xf32>
    %161 = math.rsqrt %160 : vector<16x1xf32>
    %162 = vector.broadcast %161 : vector<16x1xf32> to vector<16x64xf32>
    %163 = arith.mulf %158, %162 : vector<16x64xf32>
    %164 = vector.broadcast %17 : vector<1x64xf32> to vector<16x64xf32>
    %165 = arith.mulf %163, %164 : vector<16x64xf32>
    %166 = vector.broadcast %19 : vector<1x64xf32> to vector<16x64xf32>
    %167 = arith.addf %165, %166 : vector<16x64xf32>
    %168 = arith.truncf %167 : vector<16x64xf32> to vector<16x64xbf16>
    %cst_73 = arith.constant dense<0.000000e+00> : vector<16x2048xf32>
    %169 = tpu.matmul %168, %21, %cst_73 {dimension_numbers = #tpu.dot_dimension_numbers<[1], [0], [0], [1], [0, 0, 1, 1], [], []>} : vector<16x64xbf16>, vector<64x2048xbf16>, vector<16x2048xf32> -> vector<16x2048xf32>
    %170 = vector.broadcast %23 : vector<1x2048xf32> to vector<16x2048xf32>
    %171 = arith.addf %169, %170 : vector<16x2048xf32>
    %cst_74 = arith.constant 0.000000e+00 : f32
    %172 = vector.broadcast %cst_74 : f32 to vector<16x2048xf32>
    %173 = arith.maximumf %171, %172 : vector<16x2048xf32>
    %174 = arith.truncf %173 : vector<16x2048xf32> to vector<16x2048xbf16>
    %cst_75 = arith.constant dense<0.000000e+00> : vector<16x64xf32>
    %175 = tpu.matmul %174, %25, %cst_75 {dimension_numbers = #tpu.dot_dimension_numbers<[1], [0], [0], [1], [0, 0, 1, 1], [], []>} : vector<16x2048xbf16>, vector<2048x64xbf16>, vector<16x64xf32> -> vector<16x64xf32>
    %176 = vector.broadcast %27 : vector<1x64xf32> to vector<16x64xf32>
    %177 = arith.addf %175, %176 : vector<16x64xf32>
    %178 = arith.addf %167, %177 : vector<16x64xf32>
    %cst_76 = arith.constant dense<0.000000e+00> : vector<16xf32>
    %179 = vector.multi_reduction <add>, %178, %cst_76 [1] : vector<16x64xf32> to vector<16xf32>
    %180 = vector.shape_cast %179 : vector<16xf32> to vector<16x1xf32>
    %cst_77 = arith.constant 6.400000e+01 : f32
    %181 = vector.broadcast %cst_77 : f32 to vector<16x1xf32>
    %182 = arith.divf %180, %181 : vector<16x1xf32>
    %183 = vector.broadcast %182 : vector<16x1xf32> to vector<16x64xf32>
    %184 = arith.subf %178, %183 : vector<16x64xf32>
    %185 = arith.mulf %184, %184 : vector<16x64xf32>
    %cst_78 = arith.constant dense<0.000000e+00> : vector<16xf32>
    %186 = vector.multi_reduction <add>, %185, %cst_78 [1] : vector<16x64xf32> to vector<16xf32>
    %187 = vector.shape_cast %186 : vector<16xf32> to vector<16x1xf32>
    %cst_79 = arith.constant 6.400000e+01 : f32
    %188 = vector.broadcast %cst_79 : f32 to vector<16x1xf32>
    %189 = arith.divf %187, %188 : vector<16x1xf32>
    %190 = vector.broadcast %182 : vector<16x1xf32> to vector<16x64xf32>
    %191 = arith.subf %178, %190 : vector<16x64xf32>
    %cst_80 = arith.constant 9.99999974E-6 : f32
    %192 = vector.broadcast %cst_80 : f32 to vector<16x1xf32>
    %193 = arith.addf %189, %192 : vector<16x1xf32>
    %194 = math.rsqrt %193 : vector<16x1xf32>
    %195 = vector.broadcast %194 : vector<16x1xf32> to vector<16x64xf32>
    %196 = arith.mulf %191, %195 : vector<16x64xf32>
    %197 = vector.broadcast %29 : vector<1x64xf32> to vector<16x64xf32>
    %198 = arith.mulf %196, %197 : vector<16x64xf32>
    %199 = vector.broadcast %31 : vector<1x64xf32> to vector<16x64xf32>
    %200 = arith.addf %198, %199 : vector<16x64xf32>
    %c1 = arith.constant 1 : index
    %c0_81 = arith.constant 0 : index
    %c0_82 = arith.constant 0 : index
    %201 = vector.load %arg4[%c1, %c0_81, %c0_82] : memref<3x64x192xbf16, #tpu.memory_space<vmem>>, vector<1x64x192xbf16>
    %202 = vector.shape_cast %201 : vector<1x64x192xbf16> to vector<64x192xbf16>
    %c1_83 = arith.constant 1 : index
    %c0_84 = arith.constant 0 : index
    %c0_85 = arith.constant 0 : index
    %203 = vector.load %arg5[%c1_83, %c0_84, %c0_85] : memref<3x1x192xf32, #tpu.memory_space<vmem>>, vector<1x1x192xf32>
    %204 = vector.shape_cast %203 : vector<1x1x192xf32> to vector<1x192xf32>
    %c1_86 = arith.constant 1 : index
    %c0_87 = arith.constant 0 : index
    %c0_88 = arith.constant 0 : index
    %205 = vector.load %arg6[%c1_86, %c0_87, %c0_88] : memref<3x64x64xbf16, #tpu.memory_space<vmem>>, vector<1x64x64xbf16>
    %206 = vector.shape_cast %205 : vector<1x64x64xbf16> to vector<64x64xbf16>
    %c1_89 = arith.constant 1 : index
    %c0_90 = arith.constant 0 : index
    %c0_91 = arith.constant 0 : index
    %207 = vector.load %arg7[%c1_89, %c0_90, %c0_91] : memref<3x1x64xf32, #tpu.memory_space<vmem>>, vector<1x1x64xf32>
    %208 = vector.shape_cast %207 : vector<1x1x64xf32> to vector<1x64xf32>
    %c1_92 = arith.constant 1 : index
    %c0_93 = arith.constant 0 : index
    %c0_94 = arith.constant 0 : index
    %209 = vector.load %arg8[%c1_92, %c0_93, %c0_94] : memref<3x1x64xf32, #tpu.memory_space<vmem>>, vector<1x1x64xf32>
    %210 = vector.shape_cast %209 : vector<1x1x64xf32> to vector<1x64xf32>
    %c1_95 = arith.constant 1 : index
    %c0_96 = arith.constant 0 : index
    %c0_97 = arith.constant 0 : index
    %211 = vector.load %arg9[%c1_95, %c0_96, %c0_97] : memref<3x1x64xf32, #tpu.memory_space<vmem>>, vector<1x1x64xf32>
    %212 = vector.shape_cast %211 : vector<1x1x64xf32> to vector<1x64xf32>
    %c1_98 = arith.constant 1 : index
    %c0_99 = arith.constant 0 : index
    %c0_100 = arith.constant 0 : index
    %213 = vector.load %arg10[%c1_98, %c0_99, %c0_100] : memref<3x64x2048xbf16, #tpu.memory_space<vmem>>, vector<1x64x2048xbf16>
    %214 = vector.shape_cast %213 : vector<1x64x2048xbf16> to vector<64x2048xbf16>
    %c1_101 = arith.constant 1 : index
    %c0_102 = arith.constant 0 : index
    %c0_103 = arith.constant 0 : index
    %215 = vector.load %arg11[%c1_101, %c0_102, %c0_103] : memref<3x1x2048xf32, #tpu.memory_space<vmem>>, vector<1x1x2048xf32>
    %216 = vector.shape_cast %215 : vector<1x1x2048xf32> to vector<1x2048xf32>
    %c1_104 = arith.constant 1 : index
    %c0_105 = arith.constant 0 : index
    %c0_106 = arith.constant 0 : index
    %217 = vector.load %arg12[%c1_104, %c0_105, %c0_106] : memref<3x2048x64xbf16, #tpu.memory_space<vmem>>, vector<1x2048x64xbf16>
    %218 = vector.shape_cast %217 : vector<1x2048x64xbf16> to vector<2048x64xbf16>
    %c1_107 = arith.constant 1 : index
    %c0_108 = arith.constant 0 : index
    %c0_109 = arith.constant 0 : index
    %219 = vector.load %arg13[%c1_107, %c0_108, %c0_109] : memref<3x1x64xf32, #tpu.memory_space<vmem>>, vector<1x1x64xf32>
    %220 = vector.shape_cast %219 : vector<1x1x64xf32> to vector<1x64xf32>
    %c1_110 = arith.constant 1 : index
    %c0_111 = arith.constant 0 : index
    %c0_112 = arith.constant 0 : index
    %221 = vector.load %arg14[%c1_110, %c0_111, %c0_112] : memref<3x1x64xf32, #tpu.memory_space<vmem>>, vector<1x1x64xf32>
    %222 = vector.shape_cast %221 : vector<1x1x64xf32> to vector<1x64xf32>
    %c1_113 = arith.constant 1 : index
    %c0_114 = arith.constant 0 : index
    %c0_115 = arith.constant 0 : index
    %223 = vector.load %arg15[%c1_113, %c0_114, %c0_115] : memref<3x1x64xf32, #tpu.memory_space<vmem>>, vector<1x1x64xf32>
    %224 = vector.shape_cast %223 : vector<1x1x64xf32> to vector<1x64xf32>
    %225 = arith.truncf %200 : vector<16x64xf32> to vector<16x64xbf16>
    %cst_116 = arith.constant dense<0.000000e+00> : vector<16x192xf32>
    %226 = tpu.matmul %225, %202, %cst_116 {dimension_numbers = #tpu.dot_dimension_numbers<[1], [0], [0], [1], [0, 0, 1, 1], [], []>} : vector<16x64xbf16>, vector<64x192xbf16>, vector<16x192xf32> -> vector<16x192xf32>
    %227 = vector.broadcast %204 : vector<1x192xf32> to vector<16x192xf32>
    %228 = arith.addf %226, %227 : vector<16x192xf32>
    %229 = vector.extract_strided_slice %228 {offsets = [0, 0], sizes = [16, 64], strides = [1, 1]} : vector<16x192xf32> to vector<16x64xf32>
    %230 = vector.shape_cast %229 : vector<16x64xf32> to vector<2x8x64xf32>
    %231 = vector.extract_strided_slice %228 {offsets = [0, 64], sizes = [16, 64], strides = [1, 1]} : vector<16x192xf32> to vector<16x64xf32>
    %232 = vector.shape_cast %231 : vector<16x64xf32> to vector<2x8x64xf32>
    %233 = vector.extract_strided_slice %228 {offsets = [0, 128], sizes = [16, 64], strides = [1, 1]} : vector<16x192xf32> to vector<16x64xf32>
    %234 = vector.shape_cast %233 : vector<16x64xf32> to vector<2x8x64xf32>
    %cst_117 = arith.constant 0.000000e+00 : f32
    %235 = vector.broadcast %cst_117 : f32 to vector<16x64xf32>
    %236 = vector.extract_strided_slice %230 {offsets = [0, 0, 0], sizes = [2, 8, 16], strides = [1, 1, 1]} : vector<2x8x64xf32> to vector<2x8x16xf32>
    %237 = arith.truncf %236 : vector<2x8x16xf32> to vector<2x8x16xbf16>
    %238 = vector.extract_strided_slice %232 {offsets = [0, 0, 0], sizes = [2, 8, 16], strides = [1, 1, 1]} : vector<2x8x64xf32> to vector<2x8x16xf32>
    %239 = arith.truncf %238 : vector<2x8x16xf32> to vector<2x8x16xbf16>
    %240 = vector.extract_strided_slice %234 {offsets = [0, 0, 0], sizes = [2, 8, 16], strides = [1, 1, 1]} : vector<2x8x64xf32> to vector<2x8x16xf32>
    %241 = arith.truncf %240 : vector<2x8x16xf32> to vector<2x8x16xbf16>
    "tpu.trace_start"() <{level = 10 : i32, message = "bqd,bkd->bqk"}> : () -> ()
    %cst_118 = arith.constant dense<0.000000e+00> : vector<2x8x8xf32>
    %242 = tpu.matmul %237, %239, %cst_118 {dimension_numbers = #tpu.dot_dimension_numbers<[2], [2], [1], [1], [0, 0, 0, 1, 1, 1], [0], [0]>} : vector<2x8x16xbf16>, vector<2x8x16xbf16>, vector<2x8x8xf32> -> vector<2x8x8xf32>
    "tpu.trace_stop"() : () -> ()
    %cst_119 = arith.constant 2.500000e-01 : f32
    %243 = vector.broadcast %cst_119 : f32 to vector<2x8x8xf32>
    %244 = arith.mulf %242, %243 : vector<2x8x8xf32>
    %cst_120 = arith.constant dense<0xFF800000> : vector<2x8xf32>
    %245 = vector.multi_reduction <maximumf>, %244, %cst_120 [2] : vector<2x8x8xf32> to vector<2x8xf32>
    %246 = vector.shape_cast %245 : vector<2x8xf32> to vector<2x8x1xf32>
    %247 = vector.broadcast %246 : vector<2x8x1xf32> to vector<2x8x8xf32>
    %248 = arith.subf %244, %247 : vector<2x8x8xf32>
    %249 = math.exp %248 : vector<2x8x8xf32>
    %cst_121 = arith.constant dense<0.000000e+00> : vector<2x8xf32>
    %250 = vector.multi_reduction <add>, %249, %cst_121 [2] : vector<2x8x8xf32> to vector<2x8xf32>
    %251 = vector.shape_cast %250 : vector<2x8xf32> to vector<2x8x1xf32>
    %252 = vector.broadcast %251 : vector<2x8x1xf32> to vector<2x8x8xf32>
    %253 = arith.divf %249, %252 : vector<2x8x8xf32>
    %254 = arith.truncf %253 : vector<2x8x8xf32> to vector<2x8x8xbf16>
    "tpu.trace_start"() <{level = 10 : i32, message = "bqk,bkd->bqd"}> : () -> ()
    %cst_122 = arith.constant dense<0.000000e+00> : vector<2x8x16xf32>
    %255 = tpu.matmul %254, %241, %cst_122 {dimension_numbers = #tpu.dot_dimension_numbers<[2], [1], [1], [2], [0, 0, 0, 1, 1, 2], [0], [0]>} : vector<2x8x8xbf16>, vector<2x8x16xbf16>, vector<2x8x16xf32> -> vector<2x8x16xf32>
    "tpu.trace_stop"() : () -> ()
    %256 = vector.shape_cast %255 : vector<2x8x16xf32> to vector<16x16xf32>
    %257 = arith.truncf %256 : vector<16x16xf32> to vector<16x16xbf16>
    %258 = vector.extract_strided_slice %206 {offsets = [0, 0], sizes = [16, 64], strides = [1, 1]} : vector<64x64xbf16> to vector<16x64xbf16>
    %cst_123 = arith.constant dense<0.000000e+00> : vector<16x64xf32>
    %259 = tpu.matmul %257, %258, %cst_123 {dimension_numbers = #tpu.dot_dimension_numbers<[1], [0], [0], [1], [0, 0, 1, 1], [], []>} : vector<16x16xbf16>, vector<16x64xbf16>, vector<16x64xf32> -> vector<16x64xf32>
    %260 = arith.addf %235, %259 : vector<16x64xf32>
    %261 = vector.extract_strided_slice %230 {offsets = [0, 0, 16], sizes = [2, 8, 16], strides = [1, 1, 1]} : vector<2x8x64xf32> to vector<2x8x16xf32>
    %262 = arith.truncf %261 : vector<2x8x16xf32> to vector<2x8x16xbf16>
    %263 = vector.extract_strided_slice %232 {offsets = [0, 0, 16], sizes = [2, 8, 16], strides = [1, 1, 1]} : vector<2x8x64xf32> to vector<2x8x16xf32>
    %264 = arith.truncf %263 : vector<2x8x16xf32> to vector<2x8x16xbf16>
    %265 = vector.extract_strided_slice %234 {offsets = [0, 0, 16], sizes = [2, 8, 16], strides = [1, 1, 1]} : vector<2x8x64xf32> to vector<2x8x16xf32>
    %266 = arith.truncf %265 : vector<2x8x16xf32> to vector<2x8x16xbf16>
    "tpu.trace_start"() <{level = 10 : i32, message = "bqd,bkd->bqk"}> : () -> ()
    %cst_124 = arith.constant dense<0.000000e+00> : vector<2x8x8xf32>
    %267 = tpu.matmul %262, %264, %cst_124 {dimension_numbers = #tpu.dot_dimension_numbers<[2], [2], [1], [1], [0, 0, 0, 1, 1, 1], [0], [0]>} : vector<2x8x16xbf16>, vector<2x8x16xbf16>, vector<2x8x8xf32> -> vector<2x8x8xf32>
    "tpu.trace_stop"() : () -> ()
    %cst_125 = arith.constant 2.500000e-01 : f32
    %268 = vector.broadcast %cst_125 : f32 to vector<2x8x8xf32>
    %269 = arith.mulf %267, %268 : vector<2x8x8xf32>
    %cst_126 = arith.constant dense<0xFF800000> : vector<2x8xf32>
    %270 = vector.multi_reduction <maximumf>, %269, %cst_126 [2] : vector<2x8x8xf32> to vector<2x8xf32>
    %271 = vector.shape_cast %270 : vector<2x8xf32> to vector<2x8x1xf32>
    %272 = vector.broadcast %271 : vector<2x8x1xf32> to vector<2x8x8xf32>
    %273 = arith.subf %269, %272 : vector<2x8x8xf32>
    %274 = math.exp %273 : vector<2x8x8xf32>
    %cst_127 = arith.constant dense<0.000000e+00> : vector<2x8xf32>
    %275 = vector.multi_reduction <add>, %274, %cst_127 [2] : vector<2x8x8xf32> to vector<2x8xf32>
    %276 = vector.shape_cast %275 : vector<2x8xf32> to vector<2x8x1xf32>
    %277 = vector.broadcast %276 : vector<2x8x1xf32> to vector<2x8x8xf32>
    %278 = arith.divf %274, %277 : vector<2x8x8xf32>
    %279 = arith.truncf %278 : vector<2x8x8xf32> to vector<2x8x8xbf16>
    "tpu.trace_start"() <{level = 10 : i32, message = "bqk,bkd->bqd"}> : () -> ()
    %cst_128 = arith.constant dense<0.000000e+00> : vector<2x8x16xf32>
    %280 = tpu.matmul %279, %266, %cst_128 {dimension_numbers = #tpu.dot_dimension_numbers<[2], [1], [1], [2], [0, 0, 0, 1, 1, 2], [0], [0]>} : vector<2x8x8xbf16>, vector<2x8x16xbf16>, vector<2x8x16xf32> -> vector<2x8x16xf32>
    "tpu.trace_stop"() : () -> ()
    %281 = vector.shape_cast %280 : vector<2x8x16xf32> to vector<16x16xf32>
    %282 = arith.truncf %281 : vector<16x16xf32> to vector<16x16xbf16>
    %283 = vector.extract_strided_slice %206 {offsets = [16, 0], sizes = [16, 64], strides = [1, 1]} : vector<64x64xbf16> to vector<16x64xbf16>
    %cst_129 = arith.constant dense<0.000000e+00> : vector<16x64xf32>
    %284 = tpu.matmul %282, %283, %cst_129 {dimension_numbers = #tpu.dot_dimension_numbers<[1], [0], [0], [1], [0, 0, 1, 1], [], []>} : vector<16x16xbf16>, vector<16x64xbf16>, vector<16x64xf32> -> vector<16x64xf32>
    %285 = arith.addf %260, %284 : vector<16x64xf32>
    %286 = vector.extract_strided_slice %230 {offsets = [0, 0, 32], sizes = [2, 8, 16], strides = [1, 1, 1]} : vector<2x8x64xf32> to vector<2x8x16xf32>
    %287 = arith.truncf %286 : vector<2x8x16xf32> to vector<2x8x16xbf16>
    %288 = vector.extract_strided_slice %232 {offsets = [0, 0, 32], sizes = [2, 8, 16], strides = [1, 1, 1]} : vector<2x8x64xf32> to vector<2x8x16xf32>
    %289 = arith.truncf %288 : vector<2x8x16xf32> to vector<2x8x16xbf16>
    %290 = vector.extract_strided_slice %234 {offsets = [0, 0, 32], sizes = [2, 8, 16], strides = [1, 1, 1]} : vector<2x8x64xf32> to vector<2x8x16xf32>
    %291 = arith.truncf %290 : vector<2x8x16xf32> to vector<2x8x16xbf16>
    "tpu.trace_start"() <{level = 10 : i32, message = "bqd,bkd->bqk"}> : () -> ()
    %cst_130 = arith.constant dense<0.000000e+00> : vector<2x8x8xf32>
    %292 = tpu.matmul %287, %289, %cst_130 {dimension_numbers = #tpu.dot_dimension_numbers<[2], [2], [1], [1], [0, 0, 0, 1, 1, 1], [0], [0]>} : vector<2x8x16xbf16>, vector<2x8x16xbf16>, vector<2x8x8xf32> -> vector<2x8x8xf32>
    "tpu.trace_stop"() : () -> ()
    %cst_131 = arith.constant 2.500000e-01 : f32
    %293 = vector.broadcast %cst_131 : f32 to vector<2x8x8xf32>
    %294 = arith.mulf %292, %293 : vector<2x8x8xf32>
    %cst_132 = arith.constant dense<0xFF800000> : vector<2x8xf32>
    %295 = vector.multi_reduction <maximumf>, %294, %cst_132 [2] : vector<2x8x8xf32> to vector<2x8xf32>
    %296 = vector.shape_cast %295 : vector<2x8xf32> to vector<2x8x1xf32>
    %297 = vector.broadcast %296 : vector<2x8x1xf32> to vector<2x8x8xf32>
    %298 = arith.subf %294, %297 : vector<2x8x8xf32>
    %299 = math.exp %298 : vector<2x8x8xf32>
    %cst_133 = arith.constant dense<0.000000e+00> : vector<2x8xf32>
    %300 = vector.multi_reduction <add>, %299, %cst_133 [2] : vector<2x8x8xf32> to vector<2x8xf32>
    %301 = vector.shape_cast %300 : vector<2x8xf32> to vector<2x8x1xf32>
    %302 = vector.broadcast %301 : vector<2x8x1xf32> to vector<2x8x8xf32>
    %303 = arith.divf %299, %302 : vector<2x8x8xf32>
    %304 = arith.truncf %303 : vector<2x8x8xf32> to vector<2x8x8xbf16>
    "tpu.trace_start"() <{level = 10 : i32, message = "bqk,bkd->bqd"}> : () -> ()
    %cst_134 = arith.constant dense<0.000000e+00> : vector<2x8x16xf32>
    %305 = tpu.matmul %304, %291, %cst_134 {dimension_numbers = #tpu.dot_dimension_numbers<[2], [1], [1], [2], [0, 0, 0, 1, 1, 2], [0], [0]>} : vector<2x8x8xbf16>, vector<2x8x16xbf16>, vector<2x8x16xf32> -> vector<2x8x16xf32>
    "tpu.trace_stop"() : () -> ()
    %306 = vector.shape_cast %305 : vector<2x8x16xf32> to vector<16x16xf32>
    %307 = arith.truncf %306 : vector<16x16xf32> to vector<16x16xbf16>
    %308 = vector.extract_strided_slice %206 {offsets = [32, 0], sizes = [16, 64], strides = [1, 1]} : vector<64x64xbf16> to vector<16x64xbf16>
    %cst_135 = arith.constant dense<0.000000e+00> : vector<16x64xf32>
    %309 = tpu.matmul %307, %308, %cst_135 {dimension_numbers = #tpu.dot_dimension_numbers<[1], [0], [0], [1], [0, 0, 1, 1], [], []>} : vector<16x16xbf16>, vector<16x64xbf16>, vector<16x64xf32> -> vector<16x64xf32>
    %310 = arith.addf %285, %309 : vector<16x64xf32>
    %311 = vector.extract_strided_slice %230 {offsets = [0, 0, 48], sizes = [2, 8, 16], strides = [1, 1, 1]} : vector<2x8x64xf32> to vector<2x8x16xf32>
    %312 = arith.truncf %311 : vector<2x8x16xf32> to vector<2x8x16xbf16>
    %313 = vector.extract_strided_slice %232 {offsets = [0, 0, 48], sizes = [2, 8, 16], strides = [1, 1, 1]} : vector<2x8x64xf32> to vector<2x8x16xf32>
    %314 = arith.truncf %313 : vector<2x8x16xf32> to vector<2x8x16xbf16>
    %315 = vector.extract_strided_slice %234 {offsets = [0, 0, 48], sizes = [2, 8, 16], strides = [1, 1, 1]} : vector<2x8x64xf32> to vector<2x8x16xf32>
    %316 = arith.truncf %315 : vector<2x8x16xf32> to vector<2x8x16xbf16>
    "tpu.trace_start"() <{level = 10 : i32, message = "bqd,bkd->bqk"}> : () -> ()
    %cst_136 = arith.constant dense<0.000000e+00> : vector<2x8x8xf32>
    %317 = tpu.matmul %312, %314, %cst_136 {dimension_numbers = #tpu.dot_dimension_numbers<[2], [2], [1], [1], [0, 0, 0, 1, 1, 1], [0], [0]>} : vector<2x8x16xbf16>, vector<2x8x16xbf16>, vector<2x8x8xf32> -> vector<2x8x8xf32>
    "tpu.trace_stop"() : () -> ()
    %cst_137 = arith.constant 2.500000e-01 : f32
    %318 = vector.broadcast %cst_137 : f32 to vector<2x8x8xf32>
    %319 = arith.mulf %317, %318 : vector<2x8x8xf32>
    %cst_138 = arith.constant dense<0xFF800000> : vector<2x8xf32>
    %320 = vector.multi_reduction <maximumf>, %319, %cst_138 [2] : vector<2x8x8xf32> to vector<2x8xf32>
    %321 = vector.shape_cast %320 : vector<2x8xf32> to vector<2x8x1xf32>
    %322 = vector.broadcast %321 : vector<2x8x1xf32> to vector<2x8x8xf32>
    %323 = arith.subf %319, %322 : vector<2x8x8xf32>
    %324 = math.exp %323 : vector<2x8x8xf32>
    %cst_139 = arith.constant dense<0.000000e+00> : vector<2x8xf32>
    %325 = vector.multi_reduction <add>, %324, %cst_139 [2] : vector<2x8x8xf32> to vector<2x8xf32>
    %326 = vector.shape_cast %325 : vector<2x8xf32> to vector<2x8x1xf32>
    %327 = vector.broadcast %326 : vector<2x8x1xf32> to vector<2x8x8xf32>
    %328 = arith.divf %324, %327 : vector<2x8x8xf32>
    %329 = arith.truncf %328 : vector<2x8x8xf32> to vector<2x8x8xbf16>
    "tpu.trace_start"() <{level = 10 : i32, message = "bqk,bkd->bqd"}> : () -> ()
    %cst_140 = arith.constant dense<0.000000e+00> : vector<2x8x16xf32>
    %330 = tpu.matmul %329, %316, %cst_140 {dimension_numbers = #tpu.dot_dimension_numbers<[2], [1], [1], [2], [0, 0, 0, 1, 1, 2], [0], [0]>} : vector<2x8x8xbf16>, vector<2x8x16xbf16>, vector<2x8x16xf32> -> vector<2x8x16xf32>
    "tpu.trace_stop"() : () -> ()
    %331 = vector.shape_cast %330 : vector<2x8x16xf32> to vector<16x16xf32>
    %332 = arith.truncf %331 : vector<16x16xf32> to vector<16x16xbf16>
    %333 = vector.extract_strided_slice %206 {offsets = [48, 0], sizes = [16, 64], strides = [1, 1]} : vector<64x64xbf16> to vector<16x64xbf16>
    %cst_141 = arith.constant dense<0.000000e+00> : vector<16x64xf32>
    %334 = tpu.matmul %332, %333, %cst_141 {dimension_numbers = #tpu.dot_dimension_numbers<[1], [0], [0], [1], [0, 0, 1, 1], [], []>} : vector<16x16xbf16>, vector<16x64xbf16>, vector<16x64xf32> -> vector<16x64xf32>
    %335 = arith.addf %310, %334 : vector<16x64xf32>
    %336 = vector.broadcast %208 : vector<1x64xf32> to vector<16x64xf32>
    %337 = arith.addf %335, %336 : vector<16x64xf32>
    %338 = arith.addf %200, %337 : vector<16x64xf32>
    %cst_142 = arith.constant dense<0.000000e+00> : vector<16xf32>
    %339 = vector.multi_reduction <add>, %338, %cst_142 [1] : vector<16x64xf32> to vector<16xf32>
    %340 = vector.shape_cast %339 : vector<16xf32> to vector<16x1xf32>
    %cst_143 = arith.constant 6.400000e+01 : f32
    %341 = vector.broadcast %cst_143 : f32 to vector<16x1xf32>
    %342 = arith.divf %340, %341 : vector<16x1xf32>
    %343 = vector.broadcast %342 : vector<16x1xf32> to vector<16x64xf32>
    %344 = arith.subf %338, %343 : vector<16x64xf32>
    %345 = arith.mulf %344, %344 : vector<16x64xf32>
    %cst_144 = arith.constant dense<0.000000e+00> : vector<16xf32>
    %346 = vector.multi_reduction <add>, %345, %cst_144 [1] : vector<16x64xf32> to vector<16xf32>
    %347 = vector.shape_cast %346 : vector<16xf32> to vector<16x1xf32>
    %cst_145 = arith.constant 6.400000e+01 : f32
    %348 = vector.broadcast %cst_145 : f32 to vector<16x1xf32>
    %349 = arith.divf %347, %348 : vector<16x1xf32>
    %350 = vector.broadcast %342 : vector<16x1xf32> to vector<16x64xf32>
    %351 = arith.subf %338, %350 : vector<16x64xf32>
    %cst_146 = arith.constant 9.99999974E-6 : f32
    %352 = vector.broadcast %cst_146 : f32 to vector<16x1xf32>
    %353 = arith.addf %349, %352 : vector<16x1xf32>
    %354 = math.rsqrt %353 : vector<16x1xf32>
    %355 = vector.broadcast %354 : vector<16x1xf32> to vector<16x64xf32>
    %356 = arith.mulf %351, %355 : vector<16x64xf32>
    %357 = vector.broadcast %210 : vector<1x64xf32> to vector<16x64xf32>
    %358 = arith.mulf %356, %357 : vector<16x64xf32>
    %359 = vector.broadcast %212 : vector<1x64xf32> to vector<16x64xf32>
    %360 = arith.addf %358, %359 : vector<16x64xf32>
    %361 = arith.truncf %360 : vector<16x64xf32> to vector<16x64xbf16>
    %cst_147 = arith.constant dense<0.000000e+00> : vector<16x2048xf32>
    %362 = tpu.matmul %361, %214, %cst_147 {dimension_numbers = #tpu.dot_dimension_numbers<[1], [0], [0], [1], [0, 0, 1, 1], [], []>} : vector<16x64xbf16>, vector<64x2048xbf16>, vector<16x2048xf32> -> vector<16x2048xf32>
    %363 = vector.broadcast %216 : vector<1x2048xf32> to vector<16x2048xf32>
    %364 = arith.addf %362, %363 : vector<16x2048xf32>
    %cst_148 = arith.constant 0.000000e+00 : f32
    %365 = vector.broadcast %cst_148 : f32 to vector<16x2048xf32>
    %366 = arith.maximumf %364, %365 : vector<16x2048xf32>
    %367 = arith.truncf %366 : vector<16x2048xf32> to vector<16x2048xbf16>
    %cst_149 = arith.constant dense<0.000000e+00> : vector<16x64xf32>
    %368 = tpu.matmul %367, %218, %cst_149 {dimension_numbers = #tpu.dot_dimension_numbers<[1], [0], [0], [1], [0, 0, 1, 1], [], []>} : vector<16x2048xbf16>, vector<2048x64xbf16>, vector<16x64xf32> -> vector<16x64xf32>
    %369 = vector.broadcast %220 : vector<1x64xf32> to vector<16x64xf32>
    %370 = arith.addf %368, %369 : vector<16x64xf32>
    %371 = arith.addf %360, %370 : vector<16x64xf32>
    %cst_150 = arith.constant dense<0.000000e+00> : vector<16xf32>
    %372 = vector.multi_reduction <add>, %371, %cst_150 [1] : vector<16x64xf32> to vector<16xf32>
    %373 = vector.shape_cast %372 : vector<16xf32> to vector<16x1xf32>
    %cst_151 = arith.constant 6.400000e+01 : f32
    %374 = vector.broadcast %cst_151 : f32 to vector<16x1xf32>
    %375 = arith.divf %373, %374 : vector<16x1xf32>
    %376 = vector.broadcast %375 : vector<16x1xf32> to vector<16x64xf32>
    %377 = arith.subf %371, %376 : vector<16x64xf32>
    %378 = arith.mulf %377, %377 : vector<16x64xf32>
    %cst_152 = arith.constant dense<0.000000e+00> : vector<16xf32>
    %379 = vector.multi_reduction <add>, %378, %cst_152 [1] : vector<16x64xf32> to vector<16xf32>
    %380 = vector.shape_cast %379 : vector<16xf32> to vector<16x1xf32>
    %cst_153 = arith.constant 6.400000e+01 : f32
    %381 = vector.broadcast %cst_153 : f32 to vector<16x1xf32>
    %382 = arith.divf %380, %381 : vector<16x1xf32>
    %383 = vector.broadcast %375 : vector<16x1xf32> to vector<16x64xf32>
    %384 = arith.subf %371, %383 : vector<16x64xf32>
    %cst_154 = arith.constant 9.99999974E-6 : f32
    %385 = vector.broadcast %cst_154 : f32 to vector<16x1xf32>
    %386 = arith.addf %382, %385 : vector<16x1xf32>
    %387 = math.rsqrt %386 : vector<16x1xf32>
    %388 = vector.broadcast %387 : vector<16x1xf32> to vector<16x64xf32>
    %389 = arith.mulf %384, %388 : vector<16x64xf32>
    %390 = vector.broadcast %222 : vector<1x64xf32> to vector<16x64xf32>
    %391 = arith.mulf %389, %390 : vector<16x64xf32>
    %392 = vector.broadcast %224 : vector<1x64xf32> to vector<16x64xf32>
    %393 = arith.addf %391, %392 : vector<16x64xf32>
    %c2 = arith.constant 2 : index
    %c0_155 = arith.constant 0 : index
    %c0_156 = arith.constant 0 : index
    %394 = vector.load %arg4[%c2, %c0_155, %c0_156] : memref<3x64x192xbf16, #tpu.memory_space<vmem>>, vector<1x64x192xbf16>
    %395 = vector.shape_cast %394 : vector<1x64x192xbf16> to vector<64x192xbf16>
    %c2_157 = arith.constant 2 : index
    %c0_158 = arith.constant 0 : index
    %c0_159 = arith.constant 0 : index
    %396 = vector.load %arg5[%c2_157, %c0_158, %c0_159] : memref<3x1x192xf32, #tpu.memory_space<vmem>>, vector<1x1x192xf32>
    %397 = vector.shape_cast %396 : vector<1x1x192xf32> to vector<1x192xf32>
    %c2_160 = arith.constant 2 : index
    %c0_161 = arith.constant 0 : index
    %c0_162 = arith.constant 0 : index
    %398 = vector.load %arg6[%c2_160, %c0_161, %c0_162] : memref<3x64x64xbf16, #tpu.memory_space<vmem>>, vector<1x64x64xbf16>
    %399 = vector.shape_cast %398 : vector<1x64x64xbf16> to vector<64x64xbf16>
    %c2_163 = arith.constant 2 : index
    %c0_164 = arith.constant 0 : index
    %c0_165 = arith.constant 0 : index
    %400 = vector.load %arg7[%c2_163, %c0_164, %c0_165] : memref<3x1x64xf32, #tpu.memory_space<vmem>>, vector<1x1x64xf32>
    %401 = vector.shape_cast %400 : vector<1x1x64xf32> to vector<1x64xf32>
    %c2_166 = arith.constant 2 : index
    %c0_167 = arith.constant 0 : index
    %c0_168 = arith.constant 0 : index
    %402 = vector.load %arg8[%c2_166, %c0_167, %c0_168] : memref<3x1x64xf32, #tpu.memory_space<vmem>>, vector<1x1x64xf32>
    %403 = vector.shape_cast %402 : vector<1x1x64xf32> to vector<1x64xf32>
    %c2_169 = arith.constant 2 : index
    %c0_170 = arith.constant 0 : index
    %c0_171 = arith.constant 0 : index
    %404 = vector.load %arg9[%c2_169, %c0_170, %c0_171] : memref<3x1x64xf32, #tpu.memory_space<vmem>>, vector<1x1x64xf32>
    %405 = vector.shape_cast %404 : vector<1x1x64xf32> to vector<1x64xf32>
    %c2_172 = arith.constant 2 : index
    %c0_173 = arith.constant 0 : index
    %c0_174 = arith.constant 0 : index
    %406 = vector.load %arg10[%c2_172, %c0_173, %c0_174] : memref<3x64x2048xbf16, #tpu.memory_space<vmem>>, vector<1x64x2048xbf16>
    %407 = vector.shape_cast %406 : vector<1x64x2048xbf16> to vector<64x2048xbf16>
    %c2_175 = arith.constant 2 : index
    %c0_176 = arith.constant 0 : index
    %c0_177 = arith.constant 0 : index
    %408 = vector.load %arg11[%c2_175, %c0_176, %c0_177] : memref<3x1x2048xf32, #tpu.memory_space<vmem>>, vector<1x1x2048xf32>
    %409 = vector.shape_cast %408 : vector<1x1x2048xf32> to vector<1x2048xf32>
    %c2_178 = arith.constant 2 : index
    %c0_179 = arith.constant 0 : index
    %c0_180 = arith.constant 0 : index
    %410 = vector.load %arg12[%c2_178, %c0_179, %c0_180] : memref<3x2048x64xbf16, #tpu.memory_space<vmem>>, vector<1x2048x64xbf16>
    %411 = vector.shape_cast %410 : vector<1x2048x64xbf16> to vector<2048x64xbf16>
    %c2_181 = arith.constant 2 : index
    %c0_182 = arith.constant 0 : index
    %c0_183 = arith.constant 0 : index
    %412 = vector.load %arg13[%c2_181, %c0_182, %c0_183] : memref<3x1x64xf32, #tpu.memory_space<vmem>>, vector<1x1x64xf32>
    %413 = vector.shape_cast %412 : vector<1x1x64xf32> to vector<1x64xf32>
    %c2_184 = arith.constant 2 : index
    %c0_185 = arith.constant 0 : index
    %c0_186 = arith.constant 0 : index
    %414 = vector.load %arg14[%c2_184, %c0_185, %c0_186] : memref<3x1x64xf32, #tpu.memory_space<vmem>>, vector<1x1x64xf32>
    %415 = vector.shape_cast %414 : vector<1x1x64xf32> to vector<1x64xf32>
    %c2_187 = arith.constant 2 : index
    %c0_188 = arith.constant 0 : index
    %c0_189 = arith.constant 0 : index
    %416 = vector.load %arg15[%c2_187, %c0_188, %c0_189] : memref<3x1x64xf32, #tpu.memory_space<vmem>>, vector<1x1x64xf32>
    %417 = vector.shape_cast %416 : vector<1x1x64xf32> to vector<1x64xf32>
    %418 = arith.truncf %393 : vector<16x64xf32> to vector<16x64xbf16>
    %cst_190 = arith.constant dense<0.000000e+00> : vector<16x192xf32>
    %419 = tpu.matmul %418, %395, %cst_190 {dimension_numbers = #tpu.dot_dimension_numbers<[1], [0], [0], [1], [0, 0, 1, 1], [], []>} : vector<16x64xbf16>, vector<64x192xbf16>, vector<16x192xf32> -> vector<16x192xf32>
    %420 = vector.broadcast %397 : vector<1x192xf32> to vector<16x192xf32>
    %421 = arith.addf %419, %420 : vector<16x192xf32>
    %422 = vector.extract_strided_slice %421 {offsets = [0, 0], sizes = [16, 64], strides = [1, 1]} : vector<16x192xf32> to vector<16x64xf32>
    %423 = vector.shape_cast %422 : vector<16x64xf32> to vector<2x8x64xf32>
    %424 = vector.extract_strided_slice %421 {offsets = [0, 64], sizes = [16, 64], strides = [1, 1]} : vector<16x192xf32> to vector<16x64xf32>
    %425 = vector.shape_cast %424 : vector<16x64xf32> to vector<2x8x64xf32>
    %426 = vector.extract_strided_slice %421 {offsets = [0, 128], sizes = [16, 64], strides = [1, 1]} : vector<16x192xf32> to vector<16x64xf32>
    %427 = vector.shape_cast %426 : vector<16x64xf32> to vector<2x8x64xf32>
    %cst_191 = arith.constant 0.000000e+00 : f32
    %428 = vector.broadcast %cst_191 : f32 to vector<16x64xf32>
    %429 = vector.extract_strided_slice %423 {offsets = [0, 0, 0], sizes = [2, 8, 16], strides = [1, 1, 1]} : vector<2x8x64xf32> to vector<2x8x16xf32>
    %430 = arith.truncf %429 : vector<2x8x16xf32> to vector<2x8x16xbf16>
    %431 = vector.extract_strided_slice %425 {offsets = [0, 0, 0], sizes = [2, 8, 16], strides = [1, 1, 1]} : vector<2x8x64xf32> to vector<2x8x16xf32>
    %432 = arith.truncf %431 : vector<2x8x16xf32> to vector<2x8x16xbf16>
    %433 = vector.extract_strided_slice %427 {offsets = [0, 0, 0], sizes = [2, 8, 16], strides = [1, 1, 1]} : vector<2x8x64xf32> to vector<2x8x16xf32>
    %434 = arith.truncf %433 : vector<2x8x16xf32> to vector<2x8x16xbf16>
    "tpu.trace_start"() <{level = 10 : i32, message = "bqd,bkd->bqk"}> : () -> ()
    %cst_192 = arith.constant dense<0.000000e+00> : vector<2x8x8xf32>
    %435 = tpu.matmul %430, %432, %cst_192 {dimension_numbers = #tpu.dot_dimension_numbers<[2], [2], [1], [1], [0, 0, 0, 1, 1, 1], [0], [0]>} : vector<2x8x16xbf16>, vector<2x8x16xbf16>, vector<2x8x8xf32> -> vector<2x8x8xf32>
    "tpu.trace_stop"() : () -> ()
    %cst_193 = arith.constant 2.500000e-01 : f32
    %436 = vector.broadcast %cst_193 : f32 to vector<2x8x8xf32>
    %437 = arith.mulf %435, %436 : vector<2x8x8xf32>
    %cst_194 = arith.constant dense<0xFF800000> : vector<2x8xf32>
    %438 = vector.multi_reduction <maximumf>, %437, %cst_194 [2] : vector<2x8x8xf32> to vector<2x8xf32>
    %439 = vector.shape_cast %438 : vector<2x8xf32> to vector<2x8x1xf32>
    %440 = vector.broadcast %439 : vector<2x8x1xf32> to vector<2x8x8xf32>
    %441 = arith.subf %437, %440 : vector<2x8x8xf32>
    %442 = math.exp %441 : vector<2x8x8xf32>
    %cst_195 = arith.constant dense<0.000000e+00> : vector<2x8xf32>
    %443 = vector.multi_reduction <add>, %442, %cst_195 [2] : vector<2x8x8xf32> to vector<2x8xf32>
    %444 = vector.shape_cast %443 : vector<2x8xf32> to vector<2x8x1xf32>
    %445 = vector.broadcast %444 : vector<2x8x1xf32> to vector<2x8x8xf32>
    %446 = arith.divf %442, %445 : vector<2x8x8xf32>
    %447 = arith.truncf %446 : vector<2x8x8xf32> to vector<2x8x8xbf16>
    "tpu.trace_start"() <{level = 10 : i32, message = "bqk,bkd->bqd"}> : () -> ()
    %cst_196 = arith.constant dense<0.000000e+00> : vector<2x8x16xf32>
    %448 = tpu.matmul %447, %434, %cst_196 {dimension_numbers = #tpu.dot_dimension_numbers<[2], [1], [1], [2], [0, 0, 0, 1, 1, 2], [0], [0]>} : vector<2x8x8xbf16>, vector<2x8x16xbf16>, vector<2x8x16xf32> -> vector<2x8x16xf32>
    "tpu.trace_stop"() : () -> ()
    %449 = vector.shape_cast %448 : vector<2x8x16xf32> to vector<16x16xf32>
    %450 = arith.truncf %449 : vector<16x16xf32> to vector<16x16xbf16>
    %451 = vector.extract_strided_slice %399 {offsets = [0, 0], sizes = [16, 64], strides = [1, 1]} : vector<64x64xbf16> to vector<16x64xbf16>
    %cst_197 = arith.constant dense<0.000000e+00> : vector<16x64xf32>
    %452 = tpu.matmul %450, %451, %cst_197 {dimension_numbers = #tpu.dot_dimension_numbers<[1], [0], [0], [1], [0, 0, 1, 1], [], []>} : vector<16x16xbf16>, vector<16x64xbf16>, vector<16x64xf32> -> vector<16x64xf32>
    %453 = arith.addf %428, %452 : vector<16x64xf32>
    %454 = vector.extract_strided_slice %423 {offsets = [0, 0, 16], sizes = [2, 8, 16], strides = [1, 1, 1]} : vector<2x8x64xf32> to vector<2x8x16xf32>
    %455 = arith.truncf %454 : vector<2x8x16xf32> to vector<2x8x16xbf16>
    %456 = vector.extract_strided_slice %425 {offsets = [0, 0, 16], sizes = [2, 8, 16], strides = [1, 1, 1]} : vector<2x8x64xf32> to vector<2x8x16xf32>
    %457 = arith.truncf %456 : vector<2x8x16xf32> to vector<2x8x16xbf16>
    %458 = vector.extract_strided_slice %427 {offsets = [0, 0, 16], sizes = [2, 8, 16], strides = [1, 1, 1]} : vector<2x8x64xf32> to vector<2x8x16xf32>
    %459 = arith.truncf %458 : vector<2x8x16xf32> to vector<2x8x16xbf16>
    "tpu.trace_start"() <{level = 10 : i32, message = "bqd,bkd->bqk"}> : () -> ()
    %cst_198 = arith.constant dense<0.000000e+00> : vector<2x8x8xf32>
    %460 = tpu.matmul %455, %457, %cst_198 {dimension_numbers = #tpu.dot_dimension_numbers<[2], [2], [1], [1], [0, 0, 0, 1, 1, 1], [0], [0]>} : vector<2x8x16xbf16>, vector<2x8x16xbf16>, vector<2x8x8xf32> -> vector<2x8x8xf32>
    "tpu.trace_stop"() : () -> ()
    %cst_199 = arith.constant 2.500000e-01 : f32
    %461 = vector.broadcast %cst_199 : f32 to vector<2x8x8xf32>
    %462 = arith.mulf %460, %461 : vector<2x8x8xf32>
    %cst_200 = arith.constant dense<0xFF800000> : vector<2x8xf32>
    %463 = vector.multi_reduction <maximumf>, %462, %cst_200 [2] : vector<2x8x8xf32> to vector<2x8xf32>
    %464 = vector.shape_cast %463 : vector<2x8xf32> to vector<2x8x1xf32>
    %465 = vector.broadcast %464 : vector<2x8x1xf32> to vector<2x8x8xf32>
    %466 = arith.subf %462, %465 : vector<2x8x8xf32>
    %467 = math.exp %466 : vector<2x8x8xf32>
    %cst_201 = arith.constant dense<0.000000e+00> : vector<2x8xf32>
    %468 = vector.multi_reduction <add>, %467, %cst_201 [2] : vector<2x8x8xf32> to vector<2x8xf32>
    %469 = vector.shape_cast %468 : vector<2x8xf32> to vector<2x8x1xf32>
    %470 = vector.broadcast %469 : vector<2x8x1xf32> to vector<2x8x8xf32>
    %471 = arith.divf %467, %470 : vector<2x8x8xf32>
    %472 = arith.truncf %471 : vector<2x8x8xf32> to vector<2x8x8xbf16>
    "tpu.trace_start"() <{level = 10 : i32, message = "bqk,bkd->bqd"}> : () -> ()
    %cst_202 = arith.constant dense<0.000000e+00> : vector<2x8x16xf32>
    %473 = tpu.matmul %472, %459, %cst_202 {dimension_numbers = #tpu.dot_dimension_numbers<[2], [1], [1], [2], [0, 0, 0, 1, 1, 2], [0], [0]>} : vector<2x8x8xbf16>, vector<2x8x16xbf16>, vector<2x8x16xf32> -> vector<2x8x16xf32>
    "tpu.trace_stop"() : () -> ()
    %474 = vector.shape_cast %473 : vector<2x8x16xf32> to vector<16x16xf32>
    %475 = arith.truncf %474 : vector<16x16xf32> to vector<16x16xbf16>
    %476 = vector.extract_strided_slice %399 {offsets = [16, 0], sizes = [16, 64], strides = [1, 1]} : vector<64x64xbf16> to vector<16x64xbf16>
    %cst_203 = arith.constant dense<0.000000e+00> : vector<16x64xf32>
    %477 = tpu.matmul %475, %476, %cst_203 {dimension_numbers = #tpu.dot_dimension_numbers<[1], [0], [0], [1], [0, 0, 1, 1], [], []>} : vector<16x16xbf16>, vector<16x64xbf16>, vector<16x64xf32> -> vector<16x64xf32>
    %478 = arith.addf %453, %477 : vector<16x64xf32>
    %479 = vector.extract_strided_slice %423 {offsets = [0, 0, 32], sizes = [2, 8, 16], strides = [1, 1, 1]} : vector<2x8x64xf32> to vector<2x8x16xf32>
    %480 = arith.truncf %479 : vector<2x8x16xf32> to vector<2x8x16xbf16>
    %481 = vector.extract_strided_slice %425 {offsets = [0, 0, 32], sizes = [2, 8, 16], strides = [1, 1, 1]} : vector<2x8x64xf32> to vector<2x8x16xf32>
    %482 = arith.truncf %481 : vector<2x8x16xf32> to vector<2x8x16xbf16>
    %483 = vector.extract_strided_slice %427 {offsets = [0, 0, 32], sizes = [2, 8, 16], strides = [1, 1, 1]} : vector<2x8x64xf32> to vector<2x8x16xf32>
    %484 = arith.truncf %483 : vector<2x8x16xf32> to vector<2x8x16xbf16>
    "tpu.trace_start"() <{level = 10 : i32, message = "bqd,bkd->bqk"}> : () -> ()
    %cst_204 = arith.constant dense<0.000000e+00> : vector<2x8x8xf32>
    %485 = tpu.matmul %480, %482, %cst_204 {dimension_numbers = #tpu.dot_dimension_numbers<[2], [2], [1], [1], [0, 0, 0, 1, 1, 1], [0], [0]>} : vector<2x8x16xbf16>, vector<2x8x16xbf16>, vector<2x8x8xf32> -> vector<2x8x8xf32>
    "tpu.trace_stop"() : () -> ()
    %cst_205 = arith.constant 2.500000e-01 : f32
    %486 = vector.broadcast %cst_205 : f32 to vector<2x8x8xf32>
    %487 = arith.mulf %485, %486 : vector<2x8x8xf32>
    %cst_206 = arith.constant dense<0xFF800000> : vector<2x8xf32>
    %488 = vector.multi_reduction <maximumf>, %487, %cst_206 [2] : vector<2x8x8xf32> to vector<2x8xf32>
    %489 = vector.shape_cast %488 : vector<2x8xf32> to vector<2x8x1xf32>
    %490 = vector.broadcast %489 : vector<2x8x1xf32> to vector<2x8x8xf32>
    %491 = arith.subf %487, %490 : vector<2x8x8xf32>
    %492 = math.exp %491 : vector<2x8x8xf32>
    %cst_207 = arith.constant dense<0.000000e+00> : vector<2x8xf32>
    %493 = vector.multi_reduction <add>, %492, %cst_207 [2] : vector<2x8x8xf32> to vector<2x8xf32>
    %494 = vector.shape_cast %493 : vector<2x8xf32> to vector<2x8x1xf32>
    %495 = vector.broadcast %494 : vector<2x8x1xf32> to vector<2x8x8xf32>
    %496 = arith.divf %492, %495 : vector<2x8x8xf32>
    %497 = arith.truncf %496 : vector<2x8x8xf32> to vector<2x8x8xbf16>
    "tpu.trace_start"() <{level = 10 : i32, message = "bqk,bkd->bqd"}> : () -> ()
    %cst_208 = arith.constant dense<0.000000e+00> : vector<2x8x16xf32>
    %498 = tpu.matmul %497, %484, %cst_208 {dimension_numbers = #tpu.dot_dimension_numbers<[2], [1], [1], [2], [0, 0, 0, 1, 1, 2], [0], [0]>} : vector<2x8x8xbf16>, vector<2x8x16xbf16>, vector<2x8x16xf32> -> vector<2x8x16xf32>
    "tpu.trace_stop"() : () -> ()
    %499 = vector.shape_cast %498 : vector<2x8x16xf32> to vector<16x16xf32>
    %500 = arith.truncf %499 : vector<16x16xf32> to vector<16x16xbf16>
    %501 = vector.extract_strided_slice %399 {offsets = [32, 0], sizes = [16, 64], strides = [1, 1]} : vector<64x64xbf16> to vector<16x64xbf16>
    %cst_209 = arith.constant dense<0.000000e+00> : vector<16x64xf32>
    %502 = tpu.matmul %500, %501, %cst_209 {dimension_numbers = #tpu.dot_dimension_numbers<[1], [0], [0], [1], [0, 0, 1, 1], [], []>} : vector<16x16xbf16>, vector<16x64xbf16>, vector<16x64xf32> -> vector<16x64xf32>
    %503 = arith.addf %478, %502 : vector<16x64xf32>
    %504 = vector.extract_strided_slice %423 {offsets = [0, 0, 48], sizes = [2, 8, 16], strides = [1, 1, 1]} : vector<2x8x64xf32> to vector<2x8x16xf32>
    %505 = arith.truncf %504 : vector<2x8x16xf32> to vector<2x8x16xbf16>
    %506 = vector.extract_strided_slice %425 {offsets = [0, 0, 48], sizes = [2, 8, 16], strides = [1, 1, 1]} : vector<2x8x64xf32> to vector<2x8x16xf32>
    %507 = arith.truncf %506 : vector<2x8x16xf32> to vector<2x8x16xbf16>
    %508 = vector.extract_strided_slice %427 {offsets = [0, 0, 48], sizes = [2, 8, 16], strides = [1, 1, 1]} : vector<2x8x64xf32> to vector<2x8x16xf32>
    %509 = arith.truncf %508 : vector<2x8x16xf32> to vector<2x8x16xbf16>
    "tpu.trace_start"() <{level = 10 : i32, message = "bqd,bkd->bqk"}> : () -> ()
    %cst_210 = arith.constant dense<0.000000e+00> : vector<2x8x8xf32>
    %510 = tpu.matmul %505, %507, %cst_210 {dimension_numbers = #tpu.dot_dimension_numbers<[2], [2], [1], [1], [0, 0, 0, 1, 1, 1], [0], [0]>} : vector<2x8x16xbf16>, vector<2x8x16xbf16>, vector<2x8x8xf32> -> vector<2x8x8xf32>
    "tpu.trace_stop"() : () -> ()
    %cst_211 = arith.constant 2.500000e-01 : f32
    %511 = vector.broadcast %cst_211 : f32 to vector<2x8x8xf32>
    %512 = arith.mulf %510, %511 : vector<2x8x8xf32>
    %cst_212 = arith.constant dense<0xFF800000> : vector<2x8xf32>
    %513 = vector.multi_reduction <maximumf>, %512, %cst_212 [2] : vector<2x8x8xf32> to vector<2x8xf32>
    %514 = vector.shape_cast %513 : vector<2x8xf32> to vector<2x8x1xf32>
    %515 = vector.broadcast %514 : vector<2x8x1xf32> to vector<2x8x8xf32>
    %516 = arith.subf %512, %515 : vector<2x8x8xf32>
    %517 = math.exp %516 : vector<2x8x8xf32>
    %cst_213 = arith.constant dense<0.000000e+00> : vector<2x8xf32>
    %518 = vector.multi_reduction <add>, %517, %cst_213 [2] : vector<2x8x8xf32> to vector<2x8xf32>
    %519 = vector.shape_cast %518 : vector<2x8xf32> to vector<2x8x1xf32>
    %520 = vector.broadcast %519 : vector<2x8x1xf32> to vector<2x8x8xf32>
    %521 = arith.divf %517, %520 : vector<2x8x8xf32>
    %522 = arith.truncf %521 : vector<2x8x8xf32> to vector<2x8x8xbf16>
    "tpu.trace_start"() <{level = 10 : i32, message = "bqk,bkd->bqd"}> : () -> ()
    %cst_214 = arith.constant dense<0.000000e+00> : vector<2x8x16xf32>
    %523 = tpu.matmul %522, %509, %cst_214 {dimension_numbers = #tpu.dot_dimension_numbers<[2], [1], [1], [2], [0, 0, 0, 1, 1, 2], [0], [0]>} : vector<2x8x8xbf16>, vector<2x8x16xbf16>, vector<2x8x16xf32> -> vector<2x8x16xf32>
    "tpu.trace_stop"() : () -> ()
    %524 = vector.shape_cast %523 : vector<2x8x16xf32> to vector<16x16xf32>
    %525 = arith.truncf %524 : vector<16x16xf32> to vector<16x16xbf16>
    %526 = vector.extract_strided_slice %399 {offsets = [48, 0], sizes = [16, 64], strides = [1, 1]} : vector<64x64xbf16> to vector<16x64xbf16>
    %cst_215 = arith.constant dense<0.000000e+00> : vector<16x64xf32>
    %527 = tpu.matmul %525, %526, %cst_215 {dimension_numbers = #tpu.dot_dimension_numbers<[1], [0], [0], [1], [0, 0, 1, 1], [], []>} : vector<16x16xbf16>, vector<16x64xbf16>, vector<16x64xf32> -> vector<16x64xf32>
    %528 = arith.addf %503, %527 : vector<16x64xf32>
    %529 = vector.broadcast %401 : vector<1x64xf32> to vector<16x64xf32>
    %530 = arith.addf %528, %529 : vector<16x64xf32>
    %531 = arith.addf %393, %530 : vector<16x64xf32>
    %cst_216 = arith.constant dense<0.000000e+00> : vector<16xf32>
    %532 = vector.multi_reduction <add>, %531, %cst_216 [1] : vector<16x64xf32> to vector<16xf32>
    %533 = vector.shape_cast %532 : vector<16xf32> to vector<16x1xf32>
    %cst_217 = arith.constant 6.400000e+01 : f32
    %534 = vector.broadcast %cst_217 : f32 to vector<16x1xf32>
    %535 = arith.divf %533, %534 : vector<16x1xf32>
    %536 = vector.broadcast %535 : vector<16x1xf32> to vector<16x64xf32>
    %537 = arith.subf %531, %536 : vector<16x64xf32>
    %538 = arith.mulf %537, %537 : vector<16x64xf32>
    %cst_218 = arith.constant dense<0.000000e+00> : vector<16xf32>
    %539 = vector.multi_reduction <add>, %538, %cst_218 [1] : vector<16x64xf32> to vector<16xf32>
    %540 = vector.shape_cast %539 : vector<16xf32> to vector<16x1xf32>
    %cst_219 = arith.constant 6.400000e+01 : f32
    %541 = vector.broadcast %cst_219 : f32 to vector<16x1xf32>
    %542 = arith.divf %540, %541 : vector<16x1xf32>
    %543 = vector.broadcast %535 : vector<16x1xf32> to vector<16x64xf32>
    %544 = arith.subf %531, %543 : vector<16x64xf32>
    %cst_220 = arith.constant 9.99999974E-6 : f32
    %545 = vector.broadcast %cst_220 : f32 to vector<16x1xf32>
    %546 = arith.addf %542, %545 : vector<16x1xf32>
    %547 = math.rsqrt %546 : vector<16x1xf32>
    %548 = vector.broadcast %547 : vector<16x1xf32> to vector<16x64xf32>
    %549 = arith.mulf %544, %548 : vector<16x64xf32>
    %550 = vector.broadcast %403 : vector<1x64xf32> to vector<16x64xf32>
    %551 = arith.mulf %549, %550 : vector<16x64xf32>
    %552 = vector.broadcast %405 : vector<1x64xf32> to vector<16x64xf32>
    %553 = arith.addf %551, %552 : vector<16x64xf32>
    %554 = arith.truncf %553 : vector<16x64xf32> to vector<16x64xbf16>
    %cst_221 = arith.constant dense<0.000000e+00> : vector<16x2048xf32>
    %555 = tpu.matmul %554, %407, %cst_221 {dimension_numbers = #tpu.dot_dimension_numbers<[1], [0], [0], [1], [0, 0, 1, 1], [], []>} : vector<16x64xbf16>, vector<64x2048xbf16>, vector<16x2048xf32> -> vector<16x2048xf32>
    %556 = vector.broadcast %409 : vector<1x2048xf32> to vector<16x2048xf32>
    %557 = arith.addf %555, %556 : vector<16x2048xf32>
    %cst_222 = arith.constant 0.000000e+00 : f32
    %558 = vector.broadcast %cst_222 : f32 to vector<16x2048xf32>
    %559 = arith.maximumf %557, %558 : vector<16x2048xf32>
    %560 = arith.truncf %559 : vector<16x2048xf32> to vector<16x2048xbf16>
    %cst_223 = arith.constant dense<0.000000e+00> : vector<16x64xf32>
    %561 = tpu.matmul %560, %411, %cst_223 {dimension_numbers = #tpu.dot_dimension_numbers<[1], [0], [0], [1], [0, 0, 1, 1], [], []>} : vector<16x2048xbf16>, vector<2048x64xbf16>, vector<16x64xf32> -> vector<16x64xf32>
    %562 = vector.broadcast %413 : vector<1x64xf32> to vector<16x64xf32>
    %563 = arith.addf %561, %562 : vector<16x64xf32>
    %564 = arith.addf %553, %563 : vector<16x64xf32>
    %cst_224 = arith.constant dense<0.000000e+00> : vector<16xf32>
    %565 = vector.multi_reduction <add>, %564, %cst_224 [1] : vector<16x64xf32> to vector<16xf32>
    %566 = vector.shape_cast %565 : vector<16xf32> to vector<16x1xf32>
    %cst_225 = arith.constant 6.400000e+01 : f32
    %567 = vector.broadcast %cst_225 : f32 to vector<16x1xf32>
    %568 = arith.divf %566, %567 : vector<16x1xf32>
    %569 = vector.broadcast %568 : vector<16x1xf32> to vector<16x64xf32>
    %570 = arith.subf %564, %569 : vector<16x64xf32>
    %571 = arith.mulf %570, %570 : vector<16x64xf32>
    %cst_226 = arith.constant dense<0.000000e+00> : vector<16xf32>
    %572 = vector.multi_reduction <add>, %571, %cst_226 [1] : vector<16x64xf32> to vector<16xf32>
    %573 = vector.shape_cast %572 : vector<16xf32> to vector<16x1xf32>
    %cst_227 = arith.constant 6.400000e+01 : f32
    %574 = vector.broadcast %cst_227 : f32 to vector<16x1xf32>
    %575 = arith.divf %573, %574 : vector<16x1xf32>
    %576 = vector.broadcast %568 : vector<16x1xf32> to vector<16x64xf32>
    %577 = arith.subf %564, %576 : vector<16x64xf32>
    %cst_228 = arith.constant 9.99999974E-6 : f32
    %578 = vector.broadcast %cst_228 : f32 to vector<16x1xf32>
    %579 = arith.addf %575, %578 : vector<16x1xf32>
    %580 = math.rsqrt %579 : vector<16x1xf32>
    %581 = vector.broadcast %580 : vector<16x1xf32> to vector<16x64xf32>
    %582 = arith.mulf %577, %581 : vector<16x64xf32>
    %583 = vector.broadcast %415 : vector<1x64xf32> to vector<16x64xf32>
    %584 = arith.mulf %582, %583 : vector<16x64xf32>
    %585 = vector.broadcast %417 : vector<1x64xf32> to vector<16x64xf32>
    %586 = arith.addf %584, %585 : vector<16x64xf32>
    %587 = vector.shape_cast %586 : vector<16x64xf32> to vector<2x8x64xf32>
    %c0_229 = arith.constant 0 : index
    %c0_230 = arith.constant 0 : index
    %588 = vector.load %arg16[%c0_229, %c0_230] : memref<1x64xf32, #tpu.memory_space<vmem>>, vector<1x64xf32>
    %589 = vector.shape_cast %588 : vector<1x64xf32> to vector<1x1x64xf32>
    %c0_231 = arith.constant 0 : index
    %c0_232 = arith.constant 0 : index
    %590 = vector.load %arg17[%c0_231, %c0_232] : memref<1x1xf32, #tpu.memory_space<vmem>>, vector<1x1xf32>
    %591 = vector.shape_cast %590 : vector<1x1xf32> to vector<1x1x1xf32>
    %592 = vector.broadcast %589 : vector<1x1x64xf32> to vector<2x8x64xf32>
    %593 = arith.mulf %587, %592 : vector<2x8x64xf32>
    %cst_233 = arith.constant dense<0.000000e+00> : vector<2x8xf32>
    %594 = vector.multi_reduction <add>, %593, %cst_233 [2] : vector<2x8x64xf32> to vector<2x8xf32>
    %595 = vector.shape_cast %594 : vector<2x8xf32> to vector<2x8x1xf32>
    %596 = vector.broadcast %591 : vector<1x1x1xf32> to vector<2x8x1xf32>
    %597 = arith.addf %595, %596 : vector<2x8x1xf32>
    %cst_234 = arith.constant dense<0xFF800000> : vector<2x1xf32>
    %598 = vector.multi_reduction <maximumf>, %597, %cst_234 [1] : vector<2x8x1xf32> to vector<2x1xf32>
    %599 = vector.shape_cast %598 : vector<2x1xf32> to vector<2x1x1xf32>
    %600 = vector.broadcast %599 : vector<2x1x1xf32> to vector<2x8x1xf32>
    %601 = arith.subf %597, %600 : vector<2x8x1xf32>
    %602 = math.exp %601 : vector<2x8x1xf32>
    %cst_235 = arith.constant dense<0.000000e+00> : vector<2x1xf32>
    %603 = vector.multi_reduction <add>, %602, %cst_235 [1] : vector<2x8x1xf32> to vector<2x1xf32>
    %604 = vector.shape_cast %603 : vector<2x1xf32> to vector<2x1x1xf32>
    %605 = vector.broadcast %604 : vector<2x1x1xf32> to vector<2x8x1xf32>
    %606 = arith.divf %602, %605 : vector<2x8x1xf32>
    %607 = vector.broadcast %606 : vector<2x8x1xf32> to vector<2x8x64xf32>
    %608 = arith.mulf %607, %587 : vector<2x8x64xf32>
    %cst_236 = arith.constant dense<0.000000e+00> : vector<2x64xf32>
    %609 = vector.multi_reduction <add>, %608, %cst_236 [1] : vector<2x8x64xf32> to vector<2x64xf32>
    %c0_237 = arith.constant 0 : index
    %c0_238 = arith.constant 0 : index
    %610 = vector.load %arg1[%c0_237, %c0_238] : memref<2x8xf32, #tpu.memory_space<vmem>>, vector<2x8xf32>
    %611 = arith.truncf %610 : vector<2x8xf32> to vector<2x8xbf16>
    %612 = arith.truncf %609 : vector<2x64xf32> to vector<2x64xbf16>
    %c0_239 = arith.constant 0 : index
    %c0_240 = arith.constant 0 : index
    %613 = vector.load %arg18[%c0_239, %c0_240] : memref<64x256xbf16, #tpu.memory_space<vmem>>, vector<64x256xbf16>
    %cst_241 = arith.constant dense<0.000000e+00> : vector<2x256xf32>
    %614 = tpu.matmul %612, %613, %cst_241 {dimension_numbers = #tpu.dot_dimension_numbers<[1], [0], [0], [1], [0, 0, 1, 1], [], []>} : vector<2x64xbf16>, vector<64x256xbf16>, vector<2x256xf32> -> vector<2x256xf32>
    %c0_242 = arith.constant 0 : index
    %c0_243 = arith.constant 0 : index
    %615 = vector.load %arg19[%c0_242, %c0_243] : memref<8x256xbf16, #tpu.memory_space<vmem>>, vector<8x256xbf16>
    %cst_244 = arith.constant dense<0.000000e+00> : vector<2x256xf32>
    %616 = tpu.matmul %611, %615, %cst_244 {dimension_numbers = #tpu.dot_dimension_numbers<[1], [0], [0], [1], [0, 0, 1, 1], [], []>} : vector<2x8xbf16>, vector<8x256xbf16>, vector<2x256xf32> -> vector<2x256xf32>
    %617 = arith.addf %614, %616 : vector<2x256xf32>
    %c0_245 = arith.constant 0 : index
    %c0_246 = arith.constant 0 : index
    %618 = vector.load %arg20[%c0_245, %c0_246] : memref<1x256xf32, #tpu.memory_space<vmem>>, vector<1x256xf32>
    %619 = vector.broadcast %618 : vector<1x256xf32> to vector<2x256xf32>
    %620 = arith.addf %617, %619 : vector<2x256xf32>
    %cst_247 = arith.constant 0.000000e+00 : f32
    %621 = vector.broadcast %cst_247 : f32 to vector<2x256xf32>
    %622 = arith.maximumf %620, %621 : vector<2x256xf32>
    %623 = arith.truncf %622 : vector<2x256xf32> to vector<2x256xbf16>
    %c0_248 = arith.constant 0 : index
    %c0_249 = arith.constant 0 : index
    %624 = vector.load %arg21[%c0_248, %c0_249] : memref<256x128xbf16, #tpu.memory_space<vmem>>, vector<256x128xbf16>
    %cst_250 = arith.constant dense<0.000000e+00> : vector<2x128xf32>
    %625 = tpu.matmul %623, %624, %cst_250 {dimension_numbers = #tpu.dot_dimension_numbers<[1], [0], [0], [1], [0, 0, 1, 1], [], []>} : vector<2x256xbf16>, vector<256x128xbf16>, vector<2x128xf32> -> vector<2x128xf32>
    %c0_251 = arith.constant 0 : index
    %c0_252 = arith.constant 0 : index
    %626 = vector.load %arg22[%c0_251, %c0_252] : memref<1x128xf32, #tpu.memory_space<vmem>>, vector<1x128xf32>
    %627 = vector.broadcast %626 : vector<1x128xf32> to vector<2x128xf32>
    %628 = arith.addf %625, %627 : vector<2x128xf32>
    %cst_253 = arith.constant 0.000000e+00 : f32
    %629 = vector.broadcast %cst_253 : f32 to vector<2x128xf32>
    %630 = arith.maximumf %628, %629 : vector<2x128xf32>
    %c0_254 = arith.constant 0 : index
    %c0_255 = arith.constant 0 : index
    %631 = vector.load %arg23[%c0_254, %c0_255] : memref<1x128xf32, #tpu.memory_space<vmem>>, vector<1x128xf32>
    %632 = vector.broadcast %631 : vector<1x128xf32> to vector<2x128xf32>
    %633 = arith.mulf %630, %632 : vector<2x128xf32>
    %cst_256 = arith.constant dense<0.000000e+00> : vector<2xf32>
    %634 = vector.multi_reduction <add>, %633, %cst_256 [1] : vector<2x128xf32> to vector<2xf32>
    %635 = vector.shape_cast %634 : vector<2xf32> to vector<2x1xf32>
    %c0_257 = arith.constant 0 : index
    %c0_258 = arith.constant 0 : index
    %636 = vector.load %arg24[%c0_257, %c0_258] : memref<1x1xf32, #tpu.memory_space<vmem>>, vector<1x1xf32>
    %637 = vector.broadcast %636 : vector<1x1xf32> to vector<2x1xf32>
    %638 = arith.addf %635, %637 : vector<2x1xf32>
    %c0_259 = arith.constant 0 : index
    %c0_260 = arith.constant 0 : index
    %639 = vector.load %arg25[%c0_259, %c0_260] : memref<2x1xf32, #tpu.memory_space<vmem>>, vector<2x1xf32>
    tpu.vector_store %arg25[%c0_259, %c0_260], %638 {strides = array<i32>} : memref<2x1xf32, #tpu.memory_space<vmem>>, vector<2x1xf32>,
    return
  }
}

</mosaic_0001>

<llo_original>
// kernel: tpu_custom_call.1
$region0: #{tpu_custom_call.1}
  #allocation0 [shape = 'u32[]', space=smem, size = 0x4, offset = 0x4, fixed_abs, tag = 'smem constant byte address 0x4 - core index']
  #allocation1 [shape = 'u32[144,128]{1,0:T(1,128)}', space=vmem, size = 0x12000, scoped, tag = 'internal scratch']
  #allocation2 [shape = 'f32[1,1]{1,0:T(1,128)S(1)}', space=vmem, size = 0x200, scoped, tag = 'scoped memory for tpu_custom_call.1']
  #allocation3 [shape = 'f32[1,1]{1,0:T(1,128)S(1)}', space=vmem, size = 0x200, scoped, tag = 'scoped memory for tpu_custom_call.1']
  %s0 = inlined_call_operand.vmem [shape: f32[2,8,16], index: 0, kind: input, shape index: {}]
  %s1 = inlined_call_operand.vmem [shape: f32[2,8], index: 1, kind: input, shape index: {}]
  %s2 = inlined_call_operand.vmem [shape: bf16[16,64], index: 2, kind: input, shape index: {}]
  %s3 = inlined_call_operand.vmem [shape: f32[1,64], index: 3, kind: input, shape index: {}]
  %s4 = inlined_call_operand.vmem [shape: bf16[3,64,192], index: 4, kind: input, shape index: {}]
  %s5 = inlined_call_operand.vmem [shape: f32[3,1,192], index: 5, kind: input, shape index: {}]
  %s6 = inlined_call_operand.vmem [shape: bf16[3,64,64], index: 6, kind: input, shape index: {}]
  %s7 = inlined_call_operand.vmem [shape: f32[3,1,64], index: 7, kind: input, shape index: {}]
  %s8 = inlined_call_operand.vmem [shape: f32[3,1,64], index: 8, kind: input, shape index: {}]
  %s9 = inlined_call_operand.vmem [shape: f32[3,1,64], index: 9, kind: input, shape index: {}]
  %s10 = inlined_call_operand.vmem [shape: bf16[3,64,2048], index: 10, kind: input, shape index: {}]
  %s11 = inlined_call_operand.vmem [shape: f32[3,1,2048], index: 11, kind: input, shape index: {}]
  %s12 = inlined_call_operand.vmem [shape: bf16[3,2048,64], index: 12, kind: input, shape index: {}]
  %s13 = inlined_call_operand.vmem [shape: f32[3,1,64], index: 13, kind: input, shape index: {}]
  %s14 = inlined_call_operand.vmem [shape: f32[3,1,64], index: 14, kind: input, shape index: {}]
  %s15 = inlined_call_operand.vmem [shape: f32[3,1,64], index: 15, kind: input, shape index: {}]
  %s16 = inlined_call_operand.vmem [shape: f32[1,64], index: 16, kind: input, shape index: {}]
  %s17 = inlined_call_operand.<no memory space> [shape: f32[1,1], index: 17, kind: input, shape index: {}]
  %s18 = inlined_call_operand.vmem [shape: bf16[64,256], index: 18, kind: input, shape index: {}]
  %s19 = inlined_call_operand.vmem [shape: bf16[8,256], index: 19, kind: input, shape index: {}]
  %s20 = inlined_call_operand.vmem [shape: f32[1,256], index: 20, kind: input, shape index: {}]
  %s21 = inlined_call_operand.vmem [shape: bf16[256,128], index: 21, kind: input, shape index: {}]
  %s22 = inlined_call_operand.vmem [shape: f32[1,128], index: 22, kind: input, shape index: {}]
  %s23 = inlined_call_operand.vmem [shape: f32[1,128], index: 23, kind: input, shape index: {}]
  %s24 = inlined_call_operand.<no memory space> [shape: f32[1,1], index: 24, kind: input, shape index: {}]
  %s25 = inlined_call_operand.vmem [shape: f32[2,1], index: 25, kind: output, shape index: {}]
  %s26 = sld [smem:[#allocation0]]
  $region110: #{tpu_custom_call.1} parent=0
    _
  %s28 = ssub.s32 1, %s26
  %s29 = scalar_select 0, %s28, %s26
  %v30 = vstv %s17
  %31 = vst [vmem:[#allocation2] sm:$0x1] %v30
  %v32 = vstv %s24
  %33 = vst [vmem:[#allocation3] sm:$0x1] %v32
  // Predicated region
  $region2: #{tpu_custom_call.1} parent=0 // pred_check
    _
  $region3: #{tpu_custom_call.1} parent=0 // pred_check_branch
    %35 = sbr.rel (0) target = $region5
  $region4: #{tpu_custom_call.1} parent=0 // pred_region
    _
  $region5: #{tpu_custom_call.1} parent=0 // pred_fallthru
    _
  // Predicated region
  $region6: #{tpu_custom_call.1} parent=0 // pred_check
    _
  $region7: #{tpu_custom_call.1} parent=0 // pred_check_branch
    %37 = sbr.rel (0) target = $region9
  $region8: #{tpu_custom_call.1} parent=0 // pred_region
    _
  $region9: #{tpu_custom_call.1} parent=0 // pred_fallthru
    _
  // Predicated region
  $region10: #{tpu_custom_call.1} parent=0 // pred_check
    _
  $region11: #{tpu_custom_call.1} parent=0 // pred_check_branch
    %39 = sbr.rel (0) target = $region13
  $region12: #{tpu_custom_call.1} parent=0 // pred_region
    _
  $region13: #{tpu_custom_call.1} parent=0 // pred_fallthru
    _
  // Predicated region
  $region14: #{tpu_custom_call.1} parent=0 // pred_check
    _
  $region15: #{tpu_custom_call.1} parent=0 // pred_check_branch
    %41 = sbr.rel (0) target = $region17
  $region16: #{tpu_custom_call.1} parent=0 // pred_region
    _
  $region17: #{tpu_custom_call.1} parent=0 // pred_fallthru
    _
  // Predicated region
  $region18: #{tpu_custom_call.1} parent=0 // pred_check
    _
  $region19: #{tpu_custom_call.1} parent=0 // pred_check_branch
    %43 = sbr.rel (0) target = $region21
  $region20: #{tpu_custom_call.1} parent=0 // pred_region
    _
  $region21: #{tpu_custom_call.1} parent=0 // pred_fallthru
    _
  // Predicated region
  $region22: #{tpu_custom_call.1} parent=0 // pred_check
    _
  $region23: #{tpu_custom_call.1} parent=0 // pred_check_branch
    %45 = sbr.rel (0) target = $region25
  $region24: #{tpu_custom_call.1} parent=0 // pred_region
    _
  $region25: #{tpu_custom_call.1} parent=0 // pred_fallthru
    _
  // Predicated region
  $region26: #{tpu_custom_call.1} parent=0 // pred_check
    _
  $region27: #{tpu_custom_call.1} parent=0 // pred_check_branch
    %47 = sbr.rel (0) target = $region29
  $region28: #{tpu_custom_call.1} parent=0 // pred_region
    _
  $region29: #{tpu_custom_call.1} parent=0 // pred_fallthru
    _
  // Predicated region
  $region30: #{tpu_custom_call.1} parent=0 // pred_check
    _
  $region31: #{tpu_custom_call.1} parent=0 // pred_check_branch
    %49 = sbr.rel (0) target = $region33
  $region32: #{tpu_custom_call.1} parent=0 // pred_region
    _
  $region33: #{tpu_custom_call.1} parent=0 // pred_fallthru
    _
  // Predicated region
  $region34: #{tpu_custom_call.1} parent=0 // pred_check
    _
  $region35: #{tpu_custom_call.1} parent=0 // pred_check_branch
    %51 = sbr.rel (0) target = $region37
  $region36: #{tpu_custom_call.1} parent=0 // pred_region
    _
  $region37: #{tpu_custom_call.1} parent=0 // pred_fallthru
    _
  // Predicated region
  $region38: #{tpu_custom_call.1} parent=0 // pred_check
    _
  $region39: #{tpu_custom_call.1} parent=0 // pred_check_branch
    %53 = sbr.rel (0) target = $region41
  $region40: #{tpu_custom_call.1} parent=0 // pred_region
    _
  $region41: #{tpu_custom_call.1} parent=0 // pred_fallthru
    _
  // Predicated region
  $region42: #{tpu_custom_call.1} parent=0 // pred_check
    _
  $region43: #{tpu_custom_call.1} parent=0 // pred_check_branch
    %55 = sbr.rel (0) target = $region45
  $region44: #{tpu_custom_call.1} parent=0 // pred_region
    _
  $region45: #{tpu_custom_call.1} parent=0 // pred_fallthru
    _
  // Predicated region
  $region46: #{tpu_custom_call.1} parent=0 // pred_check
    _
  $region47: #{tpu_custom_call.1} parent=0 // pred_check_branch
    %57 = sbr.rel (0) target = $region49
  $region48: #{tpu_custom_call.1} parent=0 // pred_region
    _
  $region49: #{tpu_custom_call.1} parent=0 // pred_fallthru
    _
  // Predicated region
  $region50: #{tpu_custom_call.1} parent=0 // pred_check
    _
  $region51: #{tpu_custom_call.1} parent=0 // pred_check_branch
    %59 = sbr.rel (0) target = $region53
  $region52: #{tpu_custom_call.1} parent=0 // pred_region
    _
  $region53: #{tpu_custom_call.1} parent=0 // pred_fallthru
    _
  // Predicated region
  $region54: #{tpu_custom_call.1} parent=0 // pred_check
    _
  $region55: #{tpu_custom_call.1} parent=0 // pred_check_branch
    %61 = sbr.rel (0) target = $region57
  $region56: #{tpu_custom_call.1} parent=0 // pred_region
    _
  $region57: #{tpu_custom_call.1} parent=0 // pred_fallthru
    _
  // Predicated region
  $region58: #{tpu_custom_call.1} parent=0 // pred_check
    _
  $region59: #{tpu_custom_call.1} parent=0 // pred_check_branch
    %63 = sbr.rel (0) target = $region61
  $region60: #{tpu_custom_call.1} parent=0 // pred_region
    _
  $region61: #{tpu_custom_call.1} parent=0 // pred_fallthru
    _
  // Predicated region
  $region62: #{tpu_custom_call.1} parent=0 // pred_check
    _
  $region63: #{tpu_custom_call.1} parent=0 // pred_check_branch
    %65 = sbr.rel (0) target = $region65
  $region64: #{tpu_custom_call.1} parent=0 // pred_region
    _
  $region65: #{tpu_custom_call.1} parent=0 // pred_fallthru
    _
  // Predicated region
  $region66: #{tpu_custom_call.1} parent=0 // pred_check
    _
  $region67: #{tpu_custom_call.1} parent=0 // pred_check_branch
    %67 = sbr.rel (0) target = $region69
  $region68: #{tpu_custom_call.1} parent=0 // pred_region
    _
  $region69: #{tpu_custom_call.1} parent=0 // pred_fallthru
    _
  // Predicated region
  $region70: #{tpu_custom_call.1} parent=0 // pred_check
    _
  $region71: #{tpu_custom_call.1} parent=0 // pred_check_branch
    %69 = sbr.rel (0) target = $region73
  $region72: #{tpu_custom_call.1} parent=0 // pred_region
    _
  $region73: #{tpu_custom_call.1} parent=0 // pred_fallthru
    _
  // Predicated region
  $region74: #{tpu_custom_call.1} parent=0 // pred_check
    _
  $region75: #{tpu_custom_call.1} parent=0 // pred_check_branch
    %71 = sbr.rel (0) target = $region77
  $region76: #{tpu_custom_call.1} parent=0 // pred_region
    _
  $region77: #{tpu_custom_call.1} parent=0 // pred_fallthru
    _
  // Predicated region
  $region78: #{tpu_custom_call.1} parent=0 // pred_check
    _
  $region79: #{tpu_custom_call.1} parent=0 // pred_check_branch
    %73 = sbr.rel (0) target = $region81
  $region80: #{tpu_custom_call.1} parent=0 // pred_region
    _
  $region81: #{tpu_custom_call.1} parent=0 // pred_fallthru
    _
  // Predicated region
  $region82: #{tpu_custom_call.1} parent=0 // pred_check
    _
  $region83: #{tpu_custom_call.1} parent=0 // pred_check_branch
    %75 = sbr.rel (0) target = $region85
  $region84: #{tpu_custom_call.1} parent=0 // pred_region
    _
  $region85: #{tpu_custom_call.1} parent=0 // pred_fallthru
    _
  // Predicated region
  $region86: #{tpu_custom_call.1} parent=0 // pred_check
    _
  $region87: #{tpu_custom_call.1} parent=0 // pred_check_branch
    %77 = sbr.rel (0) target = $region89
  $region88: #{tpu_custom_call.1} parent=0 // pred_region
    _
  $region89: #{tpu_custom_call.1} parent=0 // pred_fallthru
    _
  // Predicated region
  $region90: #{tpu_custom_call.1} parent=0 // pred_check
    _
  $region91: #{tpu_custom_call.1} parent=0 // pred_check_branch
    %79 = sbr.rel (0) target = $region93
  $region92: #{tpu_custom_call.1} parent=0 // pred_region
    _
  $region93: #{tpu_custom_call.1} parent=0 // pred_fallthru
    _
  // Predicated region
  $region94: #{tpu_custom_call.1} parent=0 // pred_check
    _
  $region95: #{tpu_custom_call.1} parent=0 // pred_check_branch
    %81 = sbr.rel (0) target = $region97
  $region96: #{tpu_custom_call.1} parent=0 // pred_region
    _
  $region97: #{tpu_custom_call.1} parent=0 // pred_fallthru
    _
  // Predicated region
  $region98: #{tpu_custom_call.1} parent=0 // pred_check
    _
  $region99: #{tpu_custom_call.1} parent=0 // pred_check_branch
    %83 = sbr.rel (0) target = $region101
  $region100: #{tpu_custom_call.1} parent=0 // pred_region
    _
  $region101: #{tpu_custom_call.1} parent=0 // pred_fallthru
    _
  %v85 = vld [vmem:[%s0] sm:$0xff]
  %v86 = vld [vmem:[%s0 + $0x8] sm:$0xff]
  %v87 = vpack.c.bf16 %v86, %v85
  %v88 = vld [vmem:[%s2] sm:$0xf]
  %v89 = vld [vmem:[%s2 + $0x4] sm:$0xf]
  %v90 = vld [vmem:[%s3] sm:$0x1]
  %v92 = vlaneseq
  %v93 = vshrl.u32 %v92, 7
  %v94 = vsub.s32 0, %v93
  %v95 = vrot.slane %v90, %v94
  %v99 = vunpack.c.l.b16 %v88
  %v100 = vunpack.c.l.b16 %v89
  %v101 = vpack.c.b16 %v100, %v99
  %vm103 = vcmask 130048
  %v105 = vsel %vm103, %v87, 0
  %107 = vmatprep.subr.bf16.mxu0 0
  %108 = vmatpush1.bf16.msra.mxu0 0
  %109 = vmatprep.subr.bf16.mxu0 0
  %110 = vmatpush1.bf16.msra.mxu0 0
  %111 = vmatprep.subr.bf16.mxu0 0
  %112 = vmatpush1.bf16.msra.mxu0 0
  %113 = vmatprep.subr.bf16.mxu0 0
  %114 = vmatpush1.bf16.msra.mxu0 0
  %115 = vmatprep.subr.bf16.mxu0 0
  %116 = vmatpush1.bf16.msra.mxu0 0
  %117 = vmatprep.subr.bf16.mxu0 0
  %118 = vmatpush1.bf16.msra.mxu0 0
  %119 = vmatprep.subr.bf16.mxu0 0
  %120 = vmatpush1.bf16.msra.mxu0 0
  %121 = vmatprep.subr.bf16.mxu0 0
  %122 = vmatpush1.bf16.msra.mxu0 %v101
  %123 = vmatprep.subr.bf16.mxu0 0
  %124 = vmatpush2.bf16.msra.mxu0 0
  %125 = vmatprep.subr.bf16.mxu0 0
  %126 = vmatpush2.bf16.msra.mxu0 0
  %127 = vmatprep.subr.bf16.mxu0 0
  %128 = vmatpush2.bf16.msra.mxu0 0
  %129 = vmatprep.subr.bf16.mxu0 0
  %130 = vmatpush2.bf16.msra.mxu0 0
  %131 = vmatprep.subr.bf16.mxu0 0
  %132 = vmatpush2.bf16.msra.mxu0 0
  %133 = vmatprep.subr.bf16.mxu0 0
  %134 = vmatpush2.bf16.msra.mxu0 0
  %135 = vmatprep.subr.bf16.mxu0 0
  %136 = vmatpush2.bf16.msra.mxu0 0
  %137 = vmatprep.subr.bf16.mxu0 0
  %138 = vmatpush2.bf16.msra.mxu0 0
  %139 = vmatprep.mubr.bf16.mxu0 0
  %140 = vmatmul.mubr.bf16.gmra.mxu0 %v105
  %v141 = vpop.f32.mrf.mxu0
  %v142 = vadd.f32 %v95, %v141
  %v143 = vpop.f32.mrf.mxu0
  %v144 = vpop.f32.mrf.mxu0
  %v145 = vadd.f32 %v95, %v144
  %v146 = vpop.f32.mrf.mxu0
  %147 = vdwg.mxu0
  %v148 = vld [vmem:[%s4] sm:$0xff]
  %v149 = vld [vmem:[%s4 + $0x8] sm:$0xff]
  %v150 = vld [vmem:[%s4 + $0x10] sm:$0xff]
  %v151 = vld [vmem:[%s4 + $0x18] sm:$0xff]
  %v152 = vld [vmem:[%s4 + $0x20] sm:$0xff]
  %v153 = vld [vmem:[%s4 + $0x28] sm:$0xff]
  %v154 = vld [vmem:[%s4 + $0x30] sm:$0xff]
  %v155 = vld [vmem:[%s4 + $0x38] sm:$0xff]
  %v156 = vld [vmem:[%s5] sm:$0x3]
  %v157 = vld [vmem:[%s6] sm:$0xf]
  %v158 = vld [vmem:[%s6 + $0x4] sm:$0xf]
  %v159 = vld [vmem:[%s6 + $0x8] sm:$0xf]
  %v160 = vld [vmem:[%s6 + $0xc] sm:$0xf]
  %v161 = vld [vmem:[%s6 + $0x10] sm:$0xf]
  %v162 = vld [vmem:[%s6 + $0x14] sm:$0xf]
  %v163 = vld [vmem:[%s6 + $0x18] sm:$0xf]
  %v164 = vld [vmem:[%s6 + $0x1c] sm:$0xf]
  %v165 = vld [vmem:[%s7] sm:$0x1]
  %v166 = vld [vmem:[%s8] sm:$0x1]
  %v167 = vld [vmem:[%s9] sm:$0x1]
  %v168 = vld [vmem:[%s10] sm:$0xff]
  %v169 = vld [vmem:[%s10 + $0x8] sm:$0xff]
  %v170 = vld [vmem:[%s10 + $0x10] sm:$0xff]
  %v171 = vld [vmem:[%s10 + $0x18] sm:$0xff]
  %v172 = vld [vmem:[%s10 + $0x20] sm:$0xff]
  %v173 = vld [vmem:[%s10 + $0x28] sm:$0xff]
  %v174 = vld [vmem:[%s10 + $0x30] sm:$0xff]
  %v175 = vld [vmem:[%s10 + $0x38] sm:$0xff]
  %v176 = vld [vmem:[%s10 + $0x40] sm:$0xff]
  %v177 = vld [vmem:[%s10 + $0x48] sm:$0xff]
  %v178 = vld [vmem:[%s10 + $0x50] sm:$0xff]
  %v179 = vld [vmem:[%s10 + $0x58] sm:$0xff]
  %v180 = vld [vmem:[%s10 + $0x60] sm:$0xff]
  %v181 = vld [vmem:[%s10 + $0x68] sm:$0xff]
  %v182 = vld [vmem:[%s10 + $0x70] sm:$0xff]
  %v183 = vld [vmem:[%s10 + $0x78] sm:$0xff]
  %v184 = vld [vmem:[%s10 + $0x80] sm:$0xff]
  %v185 = vld [vmem:[%s10 + $0x88] sm:$0xff]
  %v186 = vld [vmem:[%s10 + $0x90] sm:$0xff]
  %v187 = vld [vmem:[%s10 + $0x98] sm:$0xff]
  %v188 = vld [vmem:[%s10 + $0xa0] sm:$0xff]
  %v189 = vld [vmem:[%s10 + $0xa8] sm:$0xff]
  %v190 = vld [vmem:[%s10 + $0xb0] sm:$0xff]
  %v191 = vld [vmem:[%s10 + $0xb8] sm:$0xff]
  %v192 = vld [vmem:[%s10 + $0xc0] sm:$0xff]
  %v193 = vld [vmem:[%s10 + $0xc8] sm:$0xff]
  %v194 = vld [vmem:[%s10 + $0xd0] sm:$0xff]
  %v195 = vld [vmem:[%s10 + $0xd8] sm:$0xff]
  %v196 = vld [vmem:[%s10 + $0xe0] sm:$0xff]
  %v197 = vld [vmem:[%s10 + $0xe8] sm:$0xff]
  %v198 = vld [vmem:[%s10 + $0xf0] sm:$0xff]
  %v199 = vld [vmem:[%s10 + $0xf8] sm:$0xff]
  %v200 = vld [vmem:[%s10 + $0x100] sm:$0xff]
  %v201 = vld [vmem:[%s10 + $0x108] sm:$0xff]
  %v202 = vld [vmem:[%s10 + $0x110] sm:$0xff]
  %v203 = vld [vmem:[%s10 + $0x118] sm:$0xff]
  %v204 = vld [vmem:[%s10 + $0x120] sm:$0xff]
  %v205 = vld [vmem:[%s10 + $0x128] sm:$0xff]
  %v206 = vld [vmem:[%s10 + $0x130] sm:$0xff]
  %v207 = vld [vmem:[%s10 + $0x138] sm:$0xff]
  %v208 = vld [vmem:[%s10 + $0x140] sm:$0xff]
  %v209 = vld [vmem:[%s10 + $0x148] sm:$0xff]
  %v210 = vld [vmem:[%s10 + $0x150] sm:$0xff]
  %v211 = vld [vmem:[%s10 + $0x158] sm:$0xff]
  %v212 = vld [vmem:[%s10 + $0x160] sm:$0xff]
  %v213 = vld [vmem:[%s10 + $0x168] sm:$0xff]
  %v214 = vld [vmem:[%s10 + $0x170] sm:$0xff]
  %v215 = vld [vmem:[%s10 + $0x178] sm:$0xff]
  %v216 = vld [vmem:[%s10 + $0x180] sm:$0xff]
  %v217 = vld [vmem:[%s10 + $0x188] sm:$0xff]
  %v218 = vld [vmem:[%s10 + $0x190] sm:$0xff]
  %v219 = vld [vmem:[%s10 + $0x198] sm:$0xff]
  %v220 = vld [vmem:[%s10 + $0x1a0] sm:$0xff]
  %v221 = vld [vmem:[%s10 + $0x1a8] sm:$0xff]
  %v222 = vld [vmem:[%s10 + $0x1b0] sm:$0xff]
  %v223 = vld [vmem:[%s10 + $0x1b8] sm:$0xff]
  %v224 = vld [vmem:[%s10 + $0x1c0] sm:$0xff]
  %v225 = vld [vmem:[%s10 + $0x1c8] sm:$0xff]
  %v226 = vld [vmem:[%s10 + $0x1d0] sm:$0xff]
  %v227 = vld [vmem:[%s10 + $0x1d8] sm:$0xff]
  %v228 = vld [vmem:[%s10 + $0x1e0] sm:$0xff]
  %v229 = vld [vmem:[%s10 + $0x1e8] sm:$0xff]
  %v230 = vld [vmem:[%s10 + $0x1f0] sm:$0xff]
  %v231 = vld [vmem:[%s10 + $0x1f8] sm:$0xff]
  %v232 = vld [vmem:[%s11] sm:$0xff]
  %v233 = vld [vmem:[%s11 + $0x8] sm:$0xff]
  %v234 = vld [vmem:[%s12] sm:$0xf]
  %v235 = vld [vmem:[%s12 + $0x4] sm:$0xf]
  %v236 = vld [vmem:[%s12 + $0x8] sm:$0xf]
  %v237 = vld [vmem:[%s12 + $0xc] sm:$0xf]
  %v238 = vld [vmem:[%s12 + $0x10] sm:$0xf]
  %v239 = vld [vmem:[%s12 + $0x14] sm:$0xf]
  %v240 = vld [vmem:[%s12 + $0x18] sm:$0xf]
  %v241 = vld [vmem:[%s12 + $0x1c] sm:$0xf]
  %v242 = vld [vmem:[%s12 + $0x20] sm:$0xf]
  %v243 = vld [vmem:[%s12 + $0x24] sm:$0xf]
  %v244 = vld [vmem:[%s12 + $0x28] sm:$0xf]
  %v245 = vld [vmem:[%s12 + $0x2c] sm:$0xf]
  %v246 = vld [vmem:[%s12 + $0x30] sm:$0xf]
  %v247 = vld [vmem:[%s12 + $0x34] sm:$0xf]
  %v248 = vld [vmem:[%s12 + $0x38] sm:$0xf]
  %v249 = vld [vmem:[%s12 + $0x3c] sm:$0xf]
  %v250 = vld [vmem:[%s12 + $0x40] sm:$0xf]
  %v251 = vld [vmem:[%s12 + $0x44] sm:$0xf]
  %v252 = vld [vmem:[%s12 + $0x48] sm:$0xf]
  %v253 = vld [vmem:[%s12 + $0x4c] sm:$0xf]
  %v254 = vld [vmem:[%s12 + $0x50] sm:$0xf]
  %v255 = vld [vmem:[%s12 + $0x54] sm:$0xf]
  %v256 = vld [vmem:[%s12 + $0x58] sm:$0xf]
  %v257 = vld [vmem:[%s12 + $0x5c] sm:$0xf]
  %v258 = vld [vmem:[%s12 + $0x60] sm:$0xf]
  %v259 = vld [vmem:[%s12 + $0x64] sm:$0xf]
  %v260 = vld [vmem:[%s12 + $0x68] sm:$0xf]
  %v261 = vld [vmem:[%s12 + $0x6c] sm:$0xf]
  %v262 = vld [vmem:[%s12 + $0x70] sm:$0xf]
  %v263 = vld [vmem:[%s12 + $0x74] sm:$0xf]
  %v264 = vld [vmem:[%s12 + $0x78] sm:$0xf]
  %v265 = vld [vmem:[%s12 + $0x7c] sm:$0xf]
  %v266 = vld [vmem:[%s12 + $0x80] sm:$0xf]
  %v267 = vld [vmem:[%s12 + $0x84] sm:$0xf]
  %v268 = vld [vmem:[%s12 + $0x88] sm:$0xf]
  %v269 = vld [vmem:[%s12 + $0x8c] sm:$0xf]
  %v270 = vld [vmem:[%s12 + $0x90] sm:$0xf]
  %v271 = vld [vmem:[%s12 + $0x94] sm:$0xf]
  %v272 = vld [vmem:[%s12 + $0x98] sm:$0xf]
  %v273 = vld [vmem:[%s12 + $0x9c] sm:$0xf]
  %v274 = vld [vmem:[%s12 + $0xa0] sm:$0xf]
  %v275 = vld [vmem:[%s12 + $0xa4] sm:$0xf]
  %v276 = vld [vmem:[%s12 + $0xa8] sm:$0xf]
  %v277 = vld [vmem:[%s12 + $0xac] sm:$0xf]
  %v278 = vld [vmem:[%s12 + $0xb0] sm:$0xf]
  %v279 = vld [vmem:[%s12 + $0xb4] sm:$0xf]
  %v280 = vld [vmem:[%s12 + $0xb8] sm:$0xf]
  %v281 = vld [vmem:[%s12 + $0xbc] sm:$0xf]
  %v282 = vld [vmem:[%s12 + $0xc0] sm:$0xf]
  %v283 = vld [vmem:[%s12 + $0xc4] sm:$0xf]
  %v284 = vld [vmem:[%s12 + $0xc8] sm:$0xf]
  %v285 = vld [vmem:[%s12 + $0xcc] sm:$0xf]
  %v286 = vld [vmem:[%s12 + $0xd0] sm:$0xf]
  %v287 = vld [vmem:[%s12 + $0xd4] sm:$0xf]
  %v288 = vld [vmem:[%s12 + $0xd8] sm:$0xf]
  %v289 = vld [vmem:[%s12 + $0xdc] sm:$0xf]
  %v290 = vld [vmem:[%s12 + $0xe0] sm:$0xf]
  %v291 = vld [vmem:[%s12 + $0xe4] sm:$0xf]
  %v292 = vld [vmem:[%s12 + $0xe8] sm:$0xf]
  %v293 = vld [vmem:[%s12 + $0xec] sm:$0xf]
  %v294 = vld [vmem:[%s12 + $0xf0] sm:$0xf]
  %v295 = vld [vmem:[%s12 + $0xf4] sm:$0xf]
  %v296 = vld [vmem:[%s12 + $0xf8] sm:$0xf]
  %v297 = vld [vmem:[%s12 + $0xfc] sm:$0xf]
  %v298 = vld [vmem:[%s12 + $0x100] sm:$0xf]
  %v299 = vld [vmem:[%s12 + $0x104] sm:$0xf]
  %v300 = vld [vmem:[%s12 + $0x108] sm:$0xf]
  %v301 = vld [vmem:[%s12 + $0x10c] sm:$0xf]
  %v302 = vld [vmem:[%s12 + $0x110] sm:$0xf]
  %v303 = vld [vmem:[%s12 + $0x114] sm:$0xf]
  %v304 = vld [vmem:[%s12 + $0x118] sm:$0xf]
  %v305 = vld [vmem:[%s12 + $0x11c] sm:$0xf]
  %v306 = vld [vmem:[%s12 + $0x120] sm:$0xf]
  %v307 = vld [vmem:[%s12 + $0x124] sm:$0xf]
  %v308 = vld [vmem:[%s12 + $0x128] sm:$0xf]
  %v309 = vld [vmem:[%s12 + $0x12c] sm:$0xf]
  %v310 = vld [vmem:[%s12 + $0x130] sm:$0xf]
  %v311 = vld [vmem:[%s12 + $0x134] sm:$0xf]
  %v312 = vld [vmem:[%s12 + $0x138] sm:$0xf]
  %v313 = vld [vmem:[%s12 + $0x13c] sm:$0xf]
  %v314 = vld [vmem:[%s12 + $0x140] sm:$0xf]
  %v315 = vld [vmem:[%s12 + $0x144] sm:$0xf]
  %v316 = vld [vmem:[%s12 + $0x148] sm:$0xf]
  %v317 = vld [vmem:[%s12 + $0x14c] sm:$0xf]
  %v318 = vld [vmem:[%s12 + $0x150] sm:$0xf]
  %v319 = vld [vmem:[%s12 + $0x154] sm:$0xf]
  %v320 = vld [vmem:[%s12 + $0x158] sm:$0xf]
  %v321 = vld [vmem:[%s12 + $0x15c] sm:$0xf]
  %v322 = vld [vmem:[%s12 + $0x160] sm:$0xf]
  %v323 = vld [vmem:[%s12 + $0x164] sm:$0xf]
  %v324 = vld [vmem:[%s12 + $0x168] sm:$0xf]
  %v325 = vld [vmem:[%s12 + $0x16c] sm:$0xf]
  %v326 = vld [vmem:[%s12 + $0x170] sm:$0xf]
  %v327 = vld [vmem:[%s12 + $0x174] sm:$0xf]
  %v328 = vld [vmem:[%s12 + $0x178] sm:$0xf]
  %v329 = vld [vmem:[%s12 + $0x17c] sm:$0xf]
  %v330 = vld [vmem:[%s12 + $0x180] sm:$0xf]
  %v331 = vld [vmem:[%s12 + $0x184] sm:$0xf]
  %v332 = vld [vmem:[%s12 + $0x188] sm:$0xf]
  %v333 = vld [vmem:[%s12 + $0x18c] sm:$0xf]
  %v334 = vld [vmem:[%s12 + $0x190] sm:$0xf]
  %v335 = vld [vmem:[%s12 + $0x194] sm:$0xf]
  %v336 = vld [vmem:[%s12 + $0x198] sm:$0xf]
  %v337 = vld [vmem:[%s12 + $0x19c] sm:$0xf]
  %v338 = vld [vmem:[%s12 + $0x1a0] sm:$0xf]
  %v339 = vld [vmem:[%s12 + $0x1a4] sm:$0xf]
  %v340 = vld [vmem:[%s12 + $0x1a8] sm:$0xf]
  %v341 = vld [vmem:[%s12 + $0x1ac] sm:$0xf]
  %v342 = vld [vmem:[%s12 + $0x1b0] sm:$0xf]
  %v343 = vld [vmem:[%s12 + $0x1b4] sm:$0xf]
  %v344 = vld [vmem:[%s12 + $0x1b8] sm:$0xf]
  %v345 = vld [vmem:[%s12 + $0x1bc] sm:$0xf]
  %v346 = vld [vmem:[%s12 + $0x1c0] sm:$0xf]
  %v347 = vld [vmem:[%s12 + $0x1c4] sm:$0xf]
  %v348 = vld [vmem:[%s12 + $0x1c8] sm:$0xf]
  %v349 = vld [vmem:[%s12 + $0x1cc] sm:$0xf]
  %v350 = vld [vmem:[%s12 + $0x1d0] sm:$0xf]
  %v351 = vld [vmem:[%s12 + $0x1d4] sm:$0xf]
  %v352 = vld [vmem:[%s12 + $0x1d8] sm:$0xf]
  %v353 = vld [vmem:[%s12 + $0x1dc] sm:$0xf]
  %v354 = vld [vmem:[%s12 + $0x1e0] sm:$0xf]
  %v355 = vld [vmem:[%s12 + $0x1e4] sm:$0xf]
  %v356 = vld [vmem:[%s12 + $0x1e8] sm:$0xf]
  %v357 = vld [vmem:[%s12 + $0x1ec] sm:$0xf]
  %v358 = vld [vmem:[%s12 + $0x1f0] sm:$0xf]
  %v359 = vld [vmem:[%s12 + $0x1f4] sm:$0xf]
  %v360 = vld [vmem:[%s12 + $0x1f8] sm:$0xf]
  %v361 = vld [vmem:[%s12 + $0x1fc] sm:$0xf]
  %v362 = vld [vmem:[%s12 + $0x200] sm:$0xf]
  %v363 = vld [vmem:[%s12 + $0x204] sm:$0xf]
  %v364 = vld [vmem:[%s12 + $0x208] sm:$0xf]
  %v365 = vld [vmem:[%s12 + $0x20c] sm:$0xf]
  %v366 = vld [vmem:[%s12 + $0x210] sm:$0xf]
  %v367 = vld [vmem:[%s12 + $0x214] sm:$0xf]
  %v368 = vld [vmem:[%s12 + $0x218] sm:$0xf]
  %v369 = vld [vmem:[%s12 + $0x21c] sm:$0xf]
  %v370 = vld [vmem:[%s12 + $0x220] sm:$0xf]
  %v371 = vld [vmem:[%s12 + $0x224] sm:$0xf]
  %v372 = vld [vmem:[%s12 + $0x228] sm:$0xf]
  %v373 = vld [vmem:[%s12 + $0x22c] sm:$0xf]
  %v374 = vld [vmem:[%s12 + $0x230] sm:$0xf]
  %v375 = vld [vmem:[%s12 + $0x234] sm:$0xf]
  %v376 = vld [vmem:[%s12 + $0x238] sm:$0xf]
  %v377 = vld [vmem:[%s12 + $0x23c] sm:$0xf]
  %v378 = vld [vmem:[%s12 + $0x240] sm:$0xf]
  %v379 = vld [vmem:[%s12 + $0x244] sm:$0xf]
  %v380 = vld [vmem:[%s12 + $0x248] sm:$0xf]
  %v381 = vld [vmem:[%s12 + $0x24c] sm:$0xf]
  %v382 = vld [vmem:[%s12 + $0x250] sm:$0xf]
  %v383 = vld [vmem:[%s12 + $0x254] sm:$0xf]
  %v384 = vld [vmem:[%s12 + $0x258] sm:$0xf]
  %v385 = vld [vmem:[%s12 + $0x25c] sm:$0xf]
  %v386 = vld [vmem:[%s12 + $0x260] sm:$0xf]
  %v387 = vld [vmem:[%s12 + $0x264] sm:$0xf]
  %v388 = vld [vmem:[%s12 + $0x268] sm:$0xf]
  %v389 = vld [vmem:[%s12 + $0x26c] sm:$0xf]
  %v390 = vld [vmem:[%s12 + $0x270] sm:$0xf]
  %v391 = vld [vmem:[%s12 + $0x274] sm:$0xf]
  %v392 = vld [vmem:[%s12 + $0x278] sm:$0xf]
  %v393 = vld [vmem:[%s12 + $0x27c] sm:$0xf]
  %v394 = vld [vmem:[%s12 + $0x280] sm:$0xf]
  %v395 = vld [vmem:[%s12 + $0x284] sm:$0xf]
  %v396 = vld [vmem:[%s12 + $0x288] sm:$0xf]
  %v397 = vld [vmem:[%s12 + $0x28c] sm:$0xf]
  %v398 = vld [vmem:[%s12 + $0x290] sm:$0xf]
  %v399 = vld [vmem:[%s12 + $0x294] sm:$0xf]
  %v400 = vld [vmem:[%s12 + $0x298] sm:$0xf]
  %v401 = vld [vmem:[%s12 + $0x29c] sm:$0xf]
  %v402 = vld [vmem:[%s12 + $0x2a0] sm:$0xf]
  %v403 = vld [vmem:[%s12 + $0x2a4] sm:$0xf]
  %v404 = vld [vmem:[%s12 + $0x2a8] sm:$0xf]
  %v405 = vld [vmem:[%s12 + $0x2ac] sm:$0xf]
  %v406 = vld [vmem:[%s12 + $0x2b0] sm:$0xf]
  %v407 = vld [vmem:[%s12 + $0x2b4] sm:$0xf]
  %v408 = vld [vmem:[%s12 + $0x2b8] sm:$0xf]
  %v409 = vld [vmem:[%s12 + $0x2bc] sm:$0xf]
  %v410 = vld [vmem:[%s12 + $0x2c0] sm:$0xf]
  %v411 = vld [vmem:[%s12 + $0x2c4] sm:$0xf]
  %v412 = vld [vmem:[%s12 + $0x2c8] sm:$0xf]
  %v413 = vld [vmem:[%s12 + $0x2cc] sm:$0xf]
  %v414 = vld [vmem:[%s12 + $0x2d0] sm:$0xf]
  %v415 = vld [vmem:[%s12 + $0x2d4] sm:$0xf]
  %v416 = vld [vmem:[%s12 + $0x2d8] sm:$0xf]
  %v417 = vld [vmem:[%s12 + $0x2dc] sm:$0xf]
  %v418 = vld [vmem:[%s12 + $0x2e0] sm:$0xf]
  %v419 = vld [vmem:[%s12 + $0x2e4] sm:$0xf]
  %v420 = vld [vmem:[%s12 + $0x2e8] sm:$0xf]
  %v421 = vld [vmem:[%s12 + $0x2ec] sm:$0xf]
  %v422 = vld [vmem:[%s12 + $0x2f0] sm:$0xf]
  %v423 = vld [vmem:[%s12 + $0x2f4] sm:$0xf]
  %v424 = vld [vmem:[%s12 + $0x2f8] sm:$0xf]
  %v425 = vld [vmem:[%s12 + $0x2fc] sm:$0xf]
  %v426 = vld [vmem:[%s12 + $0x300] sm:$0xf]
  %v427 = vld [vmem:[%s12 + $0x304] sm:$0xf]
  %v428 = vld [vmem:[%s12 + $0x308] sm:$0xf]
  %v429 = vld [vmem:[%s12 + $0x30c] sm:$0xf]
  %v430 = vld [vmem:[%s12 + $0x310] sm:$0xf]
  %v431 = vld [vmem:[%s12 + $0x314] sm:$0xf]
  %v432 = vld [vmem:[%s12 + $0x318] sm:$0xf]
  %v433 = vld [vmem:[%s12 + $0x31c] sm:$0xf]
  %v434 = vld [vmem:[%s12 + $0x320] sm:$0xf]
  %v435 = vld [vmem:[%s12 + $0x324] sm:$0xf]
  %v436 = vld [vmem:[%s12 + $0x328] sm:$0xf]
  %v437 = vld [vmem:[%s12 + $0x32c] sm:$0xf]
  %v438 = vld [vmem:[%s12 + $0x330] sm:$0xf]
  %v439 = vld [vmem:[%s12 + $0x334] sm:$0xf]
  %v440 = vld [vmem:[%s12 + $0x338] sm:$0xf]
  %v441 = vld [vmem:[%s12 + $0x33c] sm:$0xf]
  %v442 = vld [vmem:[%s12 + $0x340] sm:$0xf]
  %v443 = vld [vmem:[%s12 + $0x344] sm:$0xf]
  %v444 = vld [vmem:[%s12 + $0x348] sm:$0xf]
  %v445 = vld [vmem:[%s12 + $0x34c] sm:$0xf]
  %v446 = vld [vmem:[%s12 + $0x350] sm:$0xf]
  %v447 = vld [vmem:[%s12 + $0x354] sm:$0xf]
  %v448 = vld [vmem:[%s12 + $0x358] sm:$0xf]
  %v449 = vld [vmem:[%s12 + $0x35c] sm:$0xf]
  %v450 = vld [vmem:[%s12 + $0x360] sm:$0xf]
  %v451 = vld [vmem:[%s12 + $0x364] sm:$0xf]
  %v452 = vld [vmem:[%s12 + $0x368] sm:$0xf]
  %v453 = vld [vmem:[%s12 + $0x36c] sm:$0xf]
  %v454 = vld [vmem:[%s12 + $0x370] sm:$0xf]
  %v455 = vld [vmem:[%s12 + $0x374] sm:$0xf]
  %v456 = vld [vmem:[%s12 + $0x378] sm:$0xf]
  %v457 = vld [vmem:[%s12 + $0x37c] sm:$0xf]
  %v458 = vld [vmem:[%s12 + $0x380] sm:$0xf]
  %v459 = vld [vmem:[%s12 + $0x384] sm:$0xf]
  %v460 = vld [vmem:[%s12 + $0x388] sm:$0xf]
  %v461 = vld [vmem:[%s12 + $0x38c] sm:$0xf]
  %v462 = vld [vmem:[%s12 + $0x390] sm:$0xf]
  %v463 = vld [vmem:[%s12 + $0x394] sm:$0xf]
  %v464 = vld [vmem:[%s12 + $0x398] sm:$0xf]
  %v465 = vld [vmem:[%s12 + $0x39c] sm:$0xf]
  %v466 = vld [vmem:[%s12 + $0x3a0] sm:$0xf]
  %v467 = vld [vmem:[%s12 + $0x3a4] sm:$0xf]
  %v468 = vld [vmem:[%s12 + $0x3a8] sm:$0xf]
  %v469 = vld [vmem:[%s12 + $0x3ac] sm:$0xf]
  %v470 = vld [vmem:[%s12 + $0x3b0] sm:$0xf]
  %v471 = vld [vmem:[%s12 + $0x3b4] sm:$0xf]
  %v472 = vld [vmem:[%s12 + $0x3b8] sm:$0xf]
  %v473 = vld [vmem:[%s12 + $0x3bc] sm:$0xf]
  %v474 = vld [vmem:[%s12 + $0x3c0] sm:$0xf]
  %v475 = vld [vmem:[%s12 + $0x3c4] sm:$0xf]
  %v476 = vld [vmem:[%s12 + $0x3c8] sm:$0xf]
  %v477 = vld [vmem:[%s12 + $0x3cc] sm:$0xf]
  %v478 = vld [vmem:[%s12 + $0x3d0] sm:$0xf]
  %v479 = vld [vmem:[%s12 + $0x3d4] sm:$0xf]
  %v480 = vld [vmem:[%s12 + $0x3d8] sm:$0xf]
  %v481 = vld [vmem:[%s12 + $0x3dc] sm:$0xf]
  %v482 = vld [vmem:[%s12 + $0x3e0] sm:$0xf]
  %v483 = vld [vmem:[%s12 + $0x3e4] sm:$0xf]
  %v484 = vld [vmem:[%s12 + $0x3e8] sm:$0xf]
  %v485 = vld [vmem:[%s12 + $0x3ec] sm:$0xf]
  %v486 = vld [vmem:[%s12 + $0x3f0] sm:$0xf]
  %v487 = vld [vmem:[%s12 + $0x3f4] sm:$0xf]
  %v488 = vld [vmem:[%s12 + $0x3f8] sm:$0xf]
  %v489 = vld [vmem:[%s12 + $0x3fc] sm:$0xf]
  %v490 = vld [vmem:[%s13] sm:$0x1]
  %v491 = vld [vmem:[%s14] sm:$0x1]
  %v492 = vld [vmem:[%s15] sm:$0x1]
  %v493 = vpack.c.bf16 %v145, %v142
  %v495 = vlaneseq
  %v496 = vshrl.u32 %v495, 7
  %v497 = vsub.s32 0, %v496
  %v498 = vrot.slane %v156, %v497
  %v499 = vlaneseq
  %v500 = vshrl.u32 %v499, 7
  %v501 = vsub.s32 1, %v500
  %v502 = vrot.slane %v156, %v501
  %v513 = vunpack.c.l.b16 %v148
  %v514 = vunpack.c.h.b16 %v148
  %v515 = vunpack.c.l.b16 %v149
  %v516 = vunpack.c.h.b16 %v149
  %v517 = vunpack.c.l.b16 %v150
  %v518 = vunpack.c.h.b16 %v150
  %v519 = vunpack.c.l.b16 %v151
  %v520 = vunpack.c.h.b16 %v151
  %v521 = vunpack.c.l.b16 %v152
  %v522 = vunpack.c.h.b16 %v152
  %v523 = vunpack.c.l.b16 %v153
  %v524 = vunpack.c.h.b16 %v153
  %v525 = vunpack.c.l.b16 %v154
  %v526 = vunpack.c.h.b16 %v154
  %v527 = vunpack.c.l.b16 %v155
  %v528 = vunpack.c.h.b16 %v155
  %v529 = vpack.c.b16 %v515, %v513
  %v530 = vpack.c.b16 %v516, %v514
  %v531 = vpack.c.b16 %v519, %v517
  %v532 = vpack.c.b16 %v520, %v518
  %v533 = vpack.c.b16 %v523, %v521
  %v534 = vpack.c.b16 %v524, %v522
  %v535 = vpack.c.b16 %v527, %v525
  %v536 = vpack.c.b16 %v528, %v526
  %vm545 = vcmask 523264
  %v547 = vsel %vm545, %v493, 0
  %549 = vmatprep.subr.bf16.mxu0 0
  %550 = vmatpush1.bf16.msra.mxu0 0
  %551 = vmatprep.subr.bf16.mxu0 0
  %552 = vmatpush1.bf16.msra.mxu0 0
  %553 = vmatprep.subr.bf16.mxu0 0
  %554 = vmatpush1.bf16.msra.mxu0 0
  %555 = vmatprep.subr.bf16.mxu0 0
  %556 = vmatpush1.bf16.msra.mxu0 0
  %557 = vmatprep.subr.bf16.mxu0 %v536
  %558 = vmatpush1.bf16.msra.mxu0 %v535
  %559 = vmatprep.subr.bf16.mxu0 %v534
  %560 = vmatpush1.bf16.msra.mxu0 %v533
  %561 = vmatprep.subr.bf16.mxu0 %v532
  %562 = vmatpush1.bf16.msra.mxu0 %v531
  %563 = vmatprep.subr.bf16.mxu0 %v530
  %564 = vmatpush1.bf16.msra.mxu0 %v529
  %565 = vmatprep.subr.bf16.mxu0 0
  %566 = vmatpush2.bf16.msra.mxu0 0
  %567 = vmatprep.subr.bf16.mxu0 0
  %568 = vmatpush2.bf16.msra.mxu0 0
  %569 = vmatprep.subr.bf16.mxu0 0
  %570 = vmatpush2.bf16.msra.mxu0 0
  %571 = vmatprep.subr.bf16.mxu0 0
  %572 = vmatpush2.bf16.msra.mxu0 0
  %573 = vmatprep.subr.bf16.mxu0 0
  %574 = vmatpush2.bf16.msra.mxu0 0
  %575 = vmatprep.subr.bf16.mxu0 0
  %576 = vmatpush2.bf16.msra.mxu0 0
  %577 = vmatprep.subr.bf16.mxu0 0
  %578 = vmatpush2.bf16.msra.mxu0 0
  %579 = vmatprep.subr.bf16.mxu0 0
  %580 = vmatpush2.bf16.msra.mxu0 0
  %581 = vmatprep.mubr.bf16.mxu0 0
  %582 = vmatmul.mubr.bf16.gmra.mxu0 %v547
  %v583 = vpop.f32.mrf.mxu0
  %v584 = vadd.f32 %v498, %v583
  %v585 = vpop.f32.mrf.mxu0
  %v586 = vadd.f32 %v502, %v585
  %v587 = vpop.f32.mrf.mxu0
  %v588 = vadd.f32 %v498, %v587
  %v589 = vpop.f32.mrf.mxu0
  %v590 = vadd.f32 %v502, %v589
  %591 = vdwg.mxu0
  %v592 = vpack.c.bf16 %v584, %v584
  %v593 = vpack.c.bf16 %v588, %v588
  %v594 = vpack.c.bf16 %v586, %v586
  %v595 = vpack.c.bf16 %v590, %v590
  %597 = vrot.lane.b32.xlu0 %v592, 64
  %v598 = vpop.permute.xlu0 %597
  %v600 = vsel %vm103, %v592, 0
  %v603 = vsel %vm103, %v598, 0
  %605 = vmatprep.subr.bf16.mxu0 0
  %606 = vmatpush1.bf16.xpose.msra.mxu0 0
  %607 = vmatprep.subr.bf16.mxu0 0
  %608 = vmatpush1.bf16.xpose.msra.mxu0 0
  %609 = vmatprep.subr.bf16.mxu0 0
  %610 = vmatpush1.bf16.xpose.msra.mxu0 0
  %611 = vmatprep.subr.bf16.mxu0 0
  %612 = vmatpush1.bf16.xpose.msra.mxu0 0
  %613 = vmatprep.subr.bf16.mxu0 0
  %614 = vmatpush1.bf16.xpose.msra.mxu0 0
  %615 = vmatprep.subr.bf16.mxu0 0
  %616 = vmatpush1.bf16.xpose.msra.mxu0 0
  %617 = vmatprep.subr.bf16.mxu0 0
  %618 = vmatpush1.bf16.xpose.msra.mxu0 0
  %619 = vmatprep.subr.bf16.mxu0 0
  %620 = vmatpush1.bf16.xpose.msra.mxu0 %v603
  %621 = vmatprep.subr.bf16.mxu0 0
  %622 = vmatpush2.bf16.xpose.msra.mxu0 0
  %623 = vmatprep.subr.bf16.mxu0 0
  %624 = vmatpush2.bf16.xpose.msra.mxu0 0
  %625 = vmatprep.subr.bf16.mxu0 0
  %626 = vmatpush2.bf16.xpose.msra.mxu0 0
  %627 = vmatprep.subr.bf16.mxu0 0
  %628 = vmatpush2.bf16.xpose.msra.mxu0 0
  %629 = vmatprep.subr.bf16.mxu0 0
  %630 = vmatpush2.bf16.xpose.msra.mxu0 0
  %631 = vmatprep.subr.bf16.mxu0 0
  %632 = vmatpush2.bf16.xpose.msra.mxu0 0
  %633 = vmatprep.subr.bf16.mxu0 0
  %634 = vmatpush2.bf16.xpose.msra.mxu0 0
  %635 = vmatprep.subr.bf16.mxu0 0
  %636 = vmatpush2.bf16.xpose.msra.mxu0 0
  %637 = vmatprep.mubr.bf16.mxu0 0
  %638 = vmatmul.mubr.bf16.gmra.mxu0 %v600
  %v639 = vpop.f32.mrf.mxu0
  %v640 = vadd.f32 0.0, %v639
  %v641 = vpop.f32.mrf.mxu0
  %v642 = vpop.f32.mrf.mxu0
  %v643 = vpop.f32.mrf.mxu0
  %644 = vdwg.mxu0
  %646 = vrot.lane.b32.xlu0 %v593, 64
  %v647 = vpop.permute.xlu0 %646
  %v649 = vsel %vm103, %v593, 0
  %v652 = vsel %vm103, %v647, 0
  %654 = vmatprep.subr.bf16.mxu0 0
  %655 = vmatpush1.bf16.xpose.msra.mxu0 0
  %656 = vmatprep.subr.bf16.mxu0 0
  %657 = vmatpush1.bf16.xpose.msra.mxu0 0
  %658 = vmatprep.subr.bf16.mxu0 0
  %659 = vmatpush1.bf16.xpose.msra.mxu0 0
  %660 = vmatprep.subr.bf16.mxu0 0
  %661 = vmatpush1.bf16.xpose.msra.mxu0 0
  %662 = vmatprep.subr.bf16.mxu0 0
  %663 = vmatpush1.bf16.xpose.msra.mxu0 0
  %664 = vmatprep.subr.bf16.mxu0 0
  %665 = vmatpush1.bf16.xpose.msra.mxu0 0
  %666 = vmatprep.subr.bf16.mxu0 0
  %667 = vmatpush1.bf16.xpose.msra.mxu0 0
  %668 = vmatprep.subr.bf16.mxu0 0
  %669 = vmatpush1.bf16.xpose.msra.mxu0 %v652
  %670 = vmatprep.subr.bf16.mxu0 0
  %671 = vmatpush2.bf16.xpose.msra.mxu0 0
  %672 = vmatprep.subr.bf16.mxu0 0
  %673 = vmatpush2.bf16.xpose.msra.mxu0 0
  %674 = vmatprep.subr.bf16.mxu0 0
  %675 = vmatpush2.bf16.xpose.msra.mxu0 0
  %676 = vmatprep.subr.bf16.mxu0 0
  %677 = vmatpush2.bf16.xpose.msra.mxu0 0
  %678 = vmatprep.subr.bf16.mxu0 0
  %679 = vmatpush2.bf16.xpose.msra.mxu0 0
  %680 = vmatprep.subr.bf16.mxu0 0
  %681 = vmatpush2.bf16.xpose.msra.mxu0 0
  %682 = vmatprep.subr.bf16.mxu0 0
  %683 = vmatpush2.bf16.xpose.msra.mxu0 0
  %684 = vmatprep.subr.bf16.mxu0 0
  %685 = vmatpush2.bf16.xpose.msra.mxu0 0
  %686 = vmatprep.mubr.bf16.mxu0 0
  %687 = vmatmul.mubr.bf16.gmra.mxu0 %v649
  %v688 = vpop.f32.mrf.mxu0
  %v689 = vadd.f32 0.0, %v688
  %v690 = vpop.f32.mrf.mxu0
  %v691 = vpop.f32.mrf.mxu0
  %v692 = vpop.f32.mrf.mxu0
  %693 = vdwg.mxu0
  %v694 = vmul.f32 %v640, 0.25
  %v695 = vmul.f32 %v689, 0.25
  %vm696 = vcmask 64512
  %v697 = vsel %vm696, %v694, -inf
  %698 = vmax.xlane.f32.xlu0 %v697
  %v699 = vpop.xlane.xlu0 %698
  %v700 = vsel %vm696, %v695, -inf
  %701 = vmax.xlane.f32.xlu0 %v700
  %v702 = vpop.xlane.xlu0 %701
  %v703 = vsub.f32 %v694, %v699
  %v704 = vsub.f32 %v695, %v702
  %v705 = vmul.f32 %v703, 1.442695
  %v706 = vpow.pop %v705
  %v707 = vmul.f32 %v704, 1.442695
  %v708 = vpow.pop %v707
  %v709 = vsel %vm696, %v706, 0.0
  %710 = vadd.xlane.f32.xlu0 %v709
  %v711 = vpop.xlane.xlu0 %710
  %v712 = vsel %vm696, %v708, 0.0
  %713 = vadd.xlane.f32.xlu0 %v712
  %v714 = vpop.xlane.xlu0 %713
  %v715 = vrcp.pop %v711
  %v716 = vmul.f32 %v706, %v715
  %v717 = vrcp.pop %v714
  %v718 = vmul.f32 %v708, %v717
  %v719 = vpack.c.bf16 %v716, %v716
  %v720 = vpack.c.bf16 %v718, %v718
  %v722 = vsel %vm696, %v719, 0
  %vm724 = vcmask 1043456
  %v726 = vsel %vm724, %v594, 0
  %728 = vmatprep.subr.bf16.mxu0 0
  %729 = vmatpush1.bf16.msra.mxu0 0
  %730 = vmatprep.subr.bf16.mxu0 0
  %731 = vmatpush1.bf16.msra.mxu0 0
  %732 = vmatprep.subr.bf16.mxu0 0
  %733 = vmatpush1.bf16.msra.mxu0 0
  %734 = vmatprep.subr.bf16.mxu0 0
  %735 = vmatpush1.bf16.msra.mxu0 0
  %736 = vmatprep.subr.bf16.mxu0 0
  %737 = vmatpush1.bf16.msra.mxu0 0
  %738 = vmatprep.subr.bf16.mxu0 0
  %739 = vmatpush1.bf16.msra.mxu0 0
  %740 = vmatprep.subr.bf16.mxu0 0
  %741 = vmatpush1.bf16.msra.mxu0 0
  %742 = vmatprep.subr.bf16.mxu0 0
  %743 = vmatpush1.bf16.msra.mxu0 %v726
  %744 = vmatprep.subr.bf16.mxu0 0
  %745 = vmatpush2.bf16.msra.mxu0 0
  %746 = vmatprep.subr.bf16.mxu0 0
  %747 = vmatpush2.bf16.msra.mxu0 0
  %748 = vmatprep.subr.bf16.mxu0 0
  %749 = vmatpush2.bf16.msra.mxu0 0
  %750 = vmatprep.subr.bf16.mxu0 0
  %751 = vmatpush2.bf16.msra.mxu0 0
  %752 = vmatprep.subr.bf16.mxu0 0
  %753 = vmatpush2.bf16.msra.mxu0 0
  %754 = vmatprep.subr.bf16.mxu0 0
  %755 = vmatpush2.bf16.msra.mxu0 0
  %756 = vmatprep.subr.bf16.mxu0 0
  %757 = vmatpush2.bf16.msra.mxu0 0
  %758 = vmatprep.subr.bf16.mxu0 0
  %759 = vmatpush2.bf16.msra.mxu0 0
  %760 = vmatprep.mubr.bf16.mxu0 0
  %761 = vmatmul.mubr.bf16.gmra.mxu0 %v722
  %v762 = vpop.f32.mrf.mxu0
  %v763 = vadd.f32 0.0, %v762
  %v764 = vpop.f32.mrf.mxu0
  %v765 = vpop.f32.mrf.mxu0
  %v766 = vpop.f32.mrf.mxu0
  %767 = vdwg.mxu0
  %v769 = vsel %vm696, %v720, 0
  %v772 = vsel %vm724, %v595, 0
  %774 = vmatprep.subr.bf16.mxu0 0
  %775 = vmatpush1.bf16.msra.mxu0 0
  %776 = vmatprep.subr.bf16.mxu0 0
  %777 = vmatpush1.bf16.msra.mxu0 0
  %778 = vmatprep.subr.bf16.mxu0 0
  %779 = vmatpush1.bf16.msra.mxu0 0
  %780 = vmatprep.subr.bf16.mxu0 0
  %781 = vmatpush1.bf16.msra.mxu0 0
  %782 = vmatprep.subr.bf16.mxu0 0
  %783 = vmatpush1.bf16.msra.mxu0 0
  %784 = vmatprep.subr.bf16.mxu0 0
  %785 = vmatpush1.bf16.msra.mxu0 0
  %786 = vmatprep.subr.bf16.mxu0 0
  %787 = vmatpush1.bf16.msra.mxu0 0
  %788 = vmatprep.subr.bf16.mxu0 0
  %789 = vmatpush1.bf16.msra.mxu0 %v772
  %790 = vmatprep.subr.bf16.mxu0 0
  %791 = vmatpush2.bf16.msra.mxu0 0
  %792 = vmatprep.subr.bf16.mxu0 0
  %793 = vmatpush2.bf16.msra.mxu0 0
  %794 = vmatprep.subr.bf16.mxu0 0
  %795 = vmatpush2.bf16.msra.mxu0 0
  %796 = vmatprep.subr.bf16.mxu0 0
  %797 = vmatpush2.bf16.msra.mxu0 0
  %798 = vmatprep.subr.bf16.mxu0 0
  %799 = vmatpush2.bf16.msra.mxu0 0
  %800 = vmatprep.subr.bf16.mxu0 0
  %801 = vmatpush2.bf16.msra.mxu0 0
  %802 = vmatprep.subr.bf16.mxu0 0
  %803 = vmatpush2.bf16.msra.mxu0 0
  %804 = vmatprep.subr.bf16.mxu0 0
  %805 = vmatpush2.bf16.msra.mxu0 0
  %806 = vmatprep.mubr.bf16.mxu0 0
  %807 = vmatmul.mubr.bf16.gmra.mxu0 %v769
  %v808 = vpop.f32.mrf.mxu0
  %v809 = vadd.f32 0.0, %v808
  %v810 = vpop.f32.mrf.mxu0
  %v811 = vpop.f32.mrf.mxu0
  %v812 = vpop.f32.mrf.mxu0
  %813 = vdwg.mxu0
  %v814 = vpack.c.bf16 %v809, %v763
  %815 = vrot.lane.b32.xlu0 %v592, 112
  %v816 = vpop.permute.xlu0 %815
  %817 = vrot.lane.b32.xlu0 %v592, 48
  %v818 = vpop.permute.xlu0 %817
  %v820 = vsel %vm103, %v816, 0
  %v823 = vsel %vm103, %v818, 0
  %825 = vmatprep.subr.bf16.mxu0 0
  %826 = vmatpush1.bf16.xpose.msra.mxu0 0
  %827 = vmatprep.subr.bf16.mxu0 0
  %828 = vmatpush1.bf16.xpose.msra.mxu0 0
  %829 = vmatprep.subr.bf16.mxu0 0
  %830 = vmatpush1.bf16.xpose.msra.mxu0 0
  %831 = vmatprep.subr.bf16.mxu0 0
  %832 = vmatpush1.bf16.xpose.msra.mxu0 0
  %833 = vmatprep.subr.bf16.mxu0 0
  %834 = vmatpush1.bf16.xpose.msra.mxu0 0
  %835 = vmatprep.subr.bf16.mxu0 0
  %836 = vmatpush1.bf16.xpose.msra.mxu0 0
  %837 = vmatprep.subr.bf16.mxu0 0
  %838 = vmatpush1.bf16.xpose.msra.mxu0 0
  %839 = vmatprep.subr.bf16.mxu0 0
  %840 = vmatpush1.bf16.xpose.msra.mxu0 %v823
  %841 = vmatprep.subr.bf16.mxu0 0
  %842 = vmatpush2.bf16.xpose.msra.mxu0 0
  %843 = vmatprep.subr.bf16.mxu0 0
  %844 = vmatpush2.bf16.xpose.msra.mxu0 0
  %845 = vmatprep.subr.bf16.mxu0 0
  %846 = vmatpush2.bf16.xpose.msra.mxu0 0
  %847 = vmatprep.subr.bf16.mxu0 0
  %848 = vmatpush2.bf16.xpose.msra.mxu0 0
  %849 = vmatprep.subr.bf16.mxu0 0
  %850 = vmatpush2.bf16.xpose.msra.mxu0 0
  %851 = vmatprep.subr.bf16.mxu0 0
  %852 = vmatpush2.bf16.xpose.msra.mxu0 0
  %853 = vmatprep.subr.bf16.mxu0 0
  %854 = vmatpush2.bf16.xpose.msra.mxu0 0
  %855 = vmatprep.subr.bf16.mxu0 0
  %856 = vmatpush2.bf16.xpose.msra.mxu0 0
  %857 = vmatprep.mubr.bf16.mxu0 0
  %858 = vmatmul.mubr.bf16.gmra.mxu0 %v820
  %v859 = vpop.f32.mrf.mxu0
  %v860 = vadd.f32 0.0, %v859
  %v861 = vpop.f32.mrf.mxu0
  %v862 = vpop.f32.mrf.mxu0
  %v863 = vpop.f32.mrf.mxu0
  %864 = vdwg.mxu0
  %865 = vrot.lane.b32.xlu0 %v593, 112
  %v866 = vpop.permute.xlu0 %865
  %867 = vrot.lane.b32.xlu0 %v593, 48
  %v868 = vpop.permute.xlu0 %867
  %v870 = vsel %vm103, %v866, 0
  %v873 = vsel %vm103, %v868, 0
  %875 = vmatprep.subr.bf16.mxu0 0
  %876 = vmatpush1.bf16.xpose.msra.mxu0 0
  %877 = vmatprep.subr.bf16.mxu0 0
  %878 = vmatpush1.bf16.xpose.msra.mxu0 0
  %879 = vmatprep.subr.bf16.mxu0 0
  %880 = vmatpush1.bf16.xpose.msra.mxu0 0
  %881 = vmatprep.subr.bf16.mxu0 0
  %882 = vmatpush1.bf16.xpose.msra.mxu0 0
  %883 = vmatprep.subr.bf16.mxu0 0
  %884 = vmatpush1.bf16.xpose.msra.mxu0 0
  %885 = vmatprep.subr.bf16.mxu0 0
  %886 = vmatpush1.bf16.xpose.msra.mxu0 0
  %887 = vmatprep.subr.bf16.mxu0 0
  %888 = vmatpush1.bf16.xpose.msra.mxu0 0
  %889 = vmatprep.subr.bf16.mxu0 0
  %890 = vmatpush1.bf16.xpose.msra.mxu0 %v873
  %891 = vmatprep.subr.bf16.mxu0 0
  %892 = vmatpush2.bf16.xpose.msra.mxu0 0
  %893 = vmatprep.subr.bf16.mxu0 0
  %894 = vmatpush2.bf16.xpose.msra.mxu0 0
  %895 = vmatprep.subr.bf16.mxu0 0
  %896 = vmatpush2.bf16.xpose.msra.mxu0 0
  %897 = vmatprep.subr.bf16.mxu0 0
  %898 = vmatpush2.bf16.xpose.msra.mxu0 0
  %899 = vmatprep.subr.bf16.mxu0 0
  %900 = vmatpush2.bf16.xpose.msra.mxu0 0
  %901 = vmatprep.subr.bf16.mxu0 0
  %902 = vmatpush2.bf16.xpose.msra.mxu0 0
  %903 = vmatprep.subr.bf16.mxu0 0
  %904 = vmatpush2.bf16.xpose.msra.mxu0 0
  %905 = vmatprep.subr.bf16.mxu0 0
  %906 = vmatpush2.bf16.xpose.msra.mxu0 0
  %907 = vmatprep.mubr.bf16.mxu0 0
  %908 = vmatmul.mubr.bf16.gmra.mxu0 %v870
  %v909 = vpop.f32.mrf.mxu0
  %v910 = vadd.f32 0.0, %v909
  %v911 = vpop.f32.mrf.mxu0
  %v912 = vpop.f32.mrf.mxu0
  %v913 = vpop.f32.mrf.mxu0
  %914 = vdwg.mxu0
  %v915 = vmul.f32 %v860, 0.25
  %v916 = vmul.f32 %v910, 0.25
  %v917 = vsel %vm696, %v915, -inf
  %918 = vmax.xlane.f32.xlu0 %v917
  %v919 = vpop.xlane.xlu0 %918
  %v920 = vsel %vm696, %v916, -inf
  %921 = vmax.xlane.f32.xlu0 %v920
  %v922 = vpop.xlane.xlu0 %921
  %v923 = vsub.f32 %v915, %v919
  %v924 = vsub.f32 %v916, %v922
  %v925 = vmul.f32 %v923, 1.442695
  %v926 = vpow.pop %v925
  %v927 = vmul.f32 %v924, 1.442695
  %v928 = vpow.pop %v927
  %v929 = vsel %vm696, %v926, 0.0
  %930 = vadd.xlane.f32.xlu0 %v929
  %v931 = vpop.xlane.xlu0 %930
  %v932 = vsel %vm696, %v928, 0.0
  %933 = vadd.xlane.f32.xlu0 %v932
  %v934 = vpop.xlane.xlu0 %933
  %v935 = vrcp.pop %v931
  %v936 = vmul.f32 %v926, %v935
  %v937 = vrcp.pop %v934
  %v938 = vmul.f32 %v928, %v937
  %v939 = vpack.c.bf16 %v936, %v936
  %v940 = vpack.c.bf16 %v938, %v938
  %942 = vrot.lane.b32.xlu0 %v594, 112
  %v943 = vpop.permute.xlu0 %942
  %v945 = vsel %vm696, %v939, 0
  %v948 = vsel %vm724, %v943, 0
  %950 = vmatprep.subr.bf16.mxu0 0
  %951 = vmatpush1.bf16.msra.mxu0 0
  %952 = vmatprep.subr.bf16.mxu0 0
  %953 = vmatpush1.bf16.msra.mxu0 0
  %954 = vmatprep.subr.bf16.mxu0 0
  %955 = vmatpush1.bf16.msra.mxu0 0
  %956 = vmatprep.subr.bf16.mxu0 0
  %957 = vmatpush1.bf16.msra.mxu0 0
  %958 = vmatprep.subr.bf16.mxu0 0
  %959 = vmatpush1.bf16.msra.mxu0 0
  %960 = vmatprep.subr.bf16.mxu0 0
  %961 = vmatpush1.bf16.msra.mxu0 0
  %962 = vmatprep.subr.bf16.mxu0 0
  %963 = vmatpush1.bf16.msra.mxu0 0
  %964 = vmatprep.subr.bf16.mxu0 0
  %965 = vmatpush1.bf16.msra.mxu0 %v948
  %966 = vmatprep.subr.bf16.mxu0 0
  %967 = vmatpush2.bf16.msra.mxu0 0
  %968 = vmatprep.subr.bf16.mxu0 0
  %969 = vmatpush2.bf16.msra.mxu0 0
  %970 = vmatprep.subr.bf16.mxu0 0
  %971 = vmatpush2.bf16.msra.mxu0 0
  %972 = vmatprep.subr.bf16.mxu0 0
  %973 = vmatpush2.bf16.msra.mxu0 0
  %974 = vmatprep.subr.bf16.mxu0 0
  %975 = vmatpush2.bf16.msra.mxu0 0
  %976 = vmatprep.subr.bf16.mxu0 0
  %977 = vmatpush2.bf16.msra.mxu0 0
  %978 = vmatprep.subr.bf16.mxu0 0
  %979 = vmatpush2.bf16.msra.mxu0 0
  %980 = vmatprep.subr.bf16.mxu0 0
  %981 = vmatpush2.bf16.msra.mxu0 0
  %982 = vmatprep.mubr.bf16.mxu0 0
  %983 = vmatmul.mubr.bf16.gmra.mxu0 %v945
  %v984 = vpop.f32.mrf.mxu0
  %v985 = vadd.f32 0.0, %v984
  %v986 = vpop.f32.mrf.mxu0
  %v987 = vpop.f32.mrf.mxu0
  %v988 = vpop.f32.mrf.mxu0
  %989 = vdwg.mxu0
  %991 = vrot.lane.b32.xlu0 %v595, 112
  %v992 = vpop.permute.xlu0 %991
  %v994 = vsel %vm696, %v940, 0
  %v997 = vsel %vm724, %v992, 0
  %999 = vmatprep.subr.bf16.mxu0 0
  %1000 = vmatpush1.bf16.msra.mxu0 0
  %1001 = vmatprep.subr.bf16.mxu0 0
  %1002 = vmatpush1.bf16.msra.mxu0 0
  %1003 = vmatprep.subr.bf16.mxu0 0
  %1004 = vmatpush1.bf16.msra.mxu0 0
  %1005 = vmatprep.subr.bf16.mxu0 0
  %1006 = vmatpush1.bf16.msra.mxu0 0
  %1007 = vmatprep.subr.bf16.mxu0 0
  %1008 = vmatpush1.bf16.msra.mxu0 0
  %1009 = vmatprep.subr.bf16.mxu0 0
  %1010 = vmatpush1.bf16.msra.mxu0 0
  %1011 = vmatprep.subr.bf16.mxu0 0
  %1012 = vmatpush1.bf16.msra.mxu0 0
  %1013 = vmatprep.subr.bf16.mxu0 0
  %1014 = vmatpush1.bf16.msra.mxu0 %v997
  %1015 = vmatprep.subr.bf16.mxu0 0
  %1016 = vmatpush2.bf16.msra.mxu0 0
  %1017 = vmatprep.subr.bf16.mxu0 0
  %1018 = vmatpush2.bf16.msra.mxu0 0
  %1019 = vmatprep.subr.bf16.mxu0 0
  %1020 = vmatpush2.bf16.msra.mxu0 0
  %1021 = vmatprep.subr.bf16.mxu0 0
  %1022 = vmatpush2.bf16.msra.mxu0 0
  %1023 = vmatprep.subr.bf16.mxu0 0
  %1024 = vmatpush2.bf16.msra.mxu0 0
  %1025 = vmatprep.subr.bf16.mxu0 0
  %1026 = vmatpush2.bf16.msra.mxu0 0
  %1027 = vmatprep.subr.bf16.mxu0 0
  %1028 = vmatpush2.bf16.msra.mxu0 0
  %1029 = vmatprep.subr.bf16.mxu0 0
  %1030 = vmatpush2.bf16.msra.mxu0 0
  %1031 = vmatprep.mubr.bf16.mxu0 0
  %1032 = vmatmul.mubr.bf16.gmra.mxu0 %v994
  %v1033 = vpop.f32.mrf.mxu0
  %v1034 = vadd.f32 0.0, %v1033
  %v1035 = vpop.f32.mrf.mxu0
  %v1036 = vpop.f32.mrf.mxu0
  %v1037 = vpop.f32.mrf.mxu0
  %1038 = vdwg.mxu0
  %v1039 = vpack.c.bf16 %v1034, %v985
  %v1042 = vunpack.c.l.b16 %v159
  %v1043 = vunpack.c.l.b16 %v160
  %v1044 = vpack.c.b16 %v1043, %v1042
  %v1047 = vsel %vm103, %v1039, 0
  %1049 = vmatprep.subr.bf16.mxu0 0
  %1050 = vmatpush1.bf16.msra.mxu0 0
  %1051 = vmatprep.subr.bf16.mxu0 0
  %1052 = vmatpush1.bf16.msra.mxu0 0
  %1053 = vmatprep.subr.bf16.mxu0 0
  %1054 = vmatpush1.bf16.msra.mxu0 0
  %1055 = vmatprep.subr.bf16.mxu0 0
  %1056 = vmatpush1.bf16.msra.mxu0 0
  %1057 = vmatprep.subr.bf16.mxu0 0
  %1058 = vmatpush1.bf16.msra.mxu0 0
  %1059 = vmatprep.subr.bf16.mxu0 0
  %1060 = vmatpush1.bf16.msra.mxu0 0
  %1061 = vmatprep.subr.bf16.mxu0 0
  %1062 = vmatpush1.bf16.msra.mxu0 0
  %1063 = vmatprep.subr.bf16.mxu0 0
  %1064 = vmatpush1.bf16.msra.mxu0 %v1044
  %1065 = vmatprep.subr.bf16.mxu0 0
  %1066 = vmatpush2.bf16.msra.mxu0 0
  %1067 = vmatprep.subr.bf16.mxu0 0
  %1068 = vmatpush2.bf16.msra.mxu0 0
  %1069 = vmatprep.subr.bf16.mxu0 0
  %1070 = vmatpush2.bf16.msra.mxu0 0
  %1071 = vmatprep.subr.bf16.mxu0 0
  %1072 = vmatpush2.bf16.msra.mxu0 0
  %1073 = vmatprep.subr.bf16.mxu0 0
  %1074 = vmatpush2.bf16.msra.mxu0 0
  %1075 = vmatprep.subr.bf16.mxu0 0
  %1076 = vmatpush2.bf16.msra.mxu0 0
  %1077 = vmatprep.subr.bf16.mxu0 0
  %1078 = vmatpush2.bf16.msra.mxu0 0
  %1079 = vmatprep.subr.bf16.mxu0 0
  %1080 = vmatpush2.bf16.msra.mxu0 0
  %1081 = vmatprep.mubr.bf16.mxu0 0
  %1082 = vmatmul.mubr.bf16.gmra.mxu0 %v1047
  %v1083 = vpop.f32.mrf.mxu0
  %v1084 = vadd.f32 0.0, %v1083
  %v1085 = vpop.f32.mrf.mxu0
  %v1086 = vpop.f32.mrf.mxu0
  %v1087 = vadd.f32 0.0, %v1086
  %v1088 = vpop.f32.mrf.mxu0
  %1089 = vdwg.mxu0
  %v1092 = vunpack.c.l.b16 %v157
  %v1093 = vunpack.c.l.b16 %v158
  %v1094 = vpack.c.b16 %v1093, %v1092
  %v1097 = vsel %vm103, %v814, 0
  %1099 = vmatprep.subr.bf16.mxu0 0
  %1100 = vmatpush1.bf16.msra.mxu0 0
  %1101 = vmatprep.subr.bf16.mxu0 0
  %1102 = vmatpush1.bf16.msra.mxu0 0
  %1103 = vmatprep.subr.bf16.mxu0 0
  %1104 = vmatpush1.bf16.msra.mxu0 0
  %1105 = vmatprep.subr.bf16.mxu0 0
  %1106 = vmatpush1.bf16.msra.mxu0 0
  %1107 = vmatprep.subr.bf16.mxu0 0
  %1108 = vmatpush1.bf16.msra.mxu0 0
  %1109 = vmatprep.subr.bf16.mxu0 0
  %1110 = vmatpush1.bf16.msra.mxu0 0
  %1111 = vmatprep.subr.bf16.mxu0 0
  %1112 = vmatpush1.bf16.msra.mxu0 0
  %1113 = vmatprep.subr.bf16.mxu0 0
  %1114 = vmatpush1.bf16.msra.mxu0 %v1094
  %1115 = vmatprep.subr.bf16.mxu0 0
  %1116 = vmatpush2.bf16.msra.mxu0 0
  %1117 = vmatprep.subr.bf16.mxu0 0
  %1118 = vmatpush2.bf16.msra.mxu0 0
  %1119 = vmatprep.subr.bf16.mxu0 0
  %1120 = vmatpush2.bf16.msra.mxu0 0
  %1121 = vmatprep.subr.bf16.mxu0 0
  %1122 = vmatpush2.bf16.msra.mxu0 0
  %1123 = vmatprep.subr.bf16.mxu0 0
  %1124 = vmatpush2.bf16.msra.mxu0 0
  %1125 = vmatprep.subr.bf16.mxu0 0
  %1126 = vmatpush2.bf16.msra.mxu0 0
  %1127 = vmatprep.subr.bf16.mxu0 0
  %1128 = vmatpush2.bf16.msra.mxu0 0
  %1129 = vmatprep.subr.bf16.mxu0 0
  %1130 = vmatpush2.bf16.msra.mxu0 0
  %1131 = vmatprep.mubr.bf16.mxu0 0
  %1132 = vmatmul.mubr.bf16.gmra.mxu0 %v1097
  %v1133 = vpop.f32.mrf.mxu0
  %v1134 = vadd.f32 %v1084, %v1133
  %v1135 = vpop.f32.mrf.mxu0
  %v1136 = vpop.f32.mrf.mxu0
  %v1137 = vadd.f32 %v1087, %v1136
  %v1138 = vpop.f32.mrf.mxu0
  %1139 = vdwg.mxu0
  %1140 = vrot.lane.b32.xlu0 %v592, 96
  %v1141 = vpop.permute.xlu0 %1140
  %1142 = vrot.lane.b32.xlu0 %v592, 32
  %v1143 = vpop.permute.xlu0 %1142
  %v1145 = vsel %vm103, %v1141, 0
  %v1148 = vsel %vm103, %v1143, 0
  %1150 = vmatprep.subr.bf16.mxu0 0
  %1151 = vmatpush1.bf16.xpose.msra.mxu0 0
  %1152 = vmatprep.subr.bf16.mxu0 0
  %1153 = vmatpush1.bf16.xpose.msra.mxu0 0
  %1154 = vmatprep.subr.bf16.mxu0 0
  %1155 = vmatpush1.bf16.xpose.msra.mxu0 0
  %1156 = vmatprep.subr.bf16.mxu0 0
  %1157 = vmatpush1.bf16.xpose.msra.mxu0 0
  %1158 = vmatprep.subr.bf16.mxu0 0
  %1159 = vmatpush1.bf16.xpose.msra.mxu0 0
  %1160 = vmatprep.subr.bf16.mxu0 0
  %1161 = vmatpush1.bf16.xpose.msra.mxu0 0
  %1162 = vmatprep.subr.bf16.mxu0 0
  %1163 = vmatpush1.bf16.xpose.msra.mxu0 0
  %1164 = vmatprep.subr.bf16.mxu0 0
  %1165 = vmatpush1.bf16.xpose.msra.mxu0 %v1148
  %1166 = vmatprep.subr.bf16.mxu0 0
  %1167 = vmatpush2.bf16.xpose.msra.mxu0 0
  %1168 = vmatprep.subr.bf16.mxu0 0
  %1169 = vmatpush2.bf16.xpose.msra.mxu0 0
  %1170 = vmatprep.subr.bf16.mxu0 0
  %1171 = vmatpush2.bf16.xpose.msra.mxu0 0
  %1172 = vmatprep.subr.bf16.mxu0 0
  %1173 = vmatpush2.bf16.xpose.msra.mxu0 0
  %1174 = vmatprep.subr.bf16.mxu0 0
  %1175 = vmatpush2.bf16.xpose.msra.mxu0 0
  %1176 = vmatprep.subr.bf16.mxu0 0
  %1177 = vmatpush2.bf16.xpose.msra.mxu0 0
  %1178 = vmatprep.subr.bf16.mxu0 0
  %1179 = vmatpush2.bf16.xpose.msra.mxu0 0
  %1180 = vmatprep.subr.bf16.mxu0 0
  %1181 = vmatpush2.bf16.xpose.msra.mxu0 0
  %1182 = vmatprep.mubr.bf16.mxu0 0
  %1183 = vmatmul.mubr.bf16.gmra.mxu0 %v1145
  %v1184 = vpop.f32.mrf.mxu0
  %v1185 = vadd.f32 0.0, %v1184
  %v1186 = vpop.f32.mrf.mxu0
  %v1187 = vpop.f32.mrf.mxu0
  %v1188 = vpop.f32.mrf.mxu0
  %1189 = vdwg.mxu0
  %1190 = vrot.lane.b32.xlu0 %v593, 96
  %v1191 = vpop.permute.xlu0 %1190
  %1192 = vrot.lane.b32.xlu0 %v593, 32
  %v1193 = vpop.permute.xlu0 %1192
  %v1195 = vsel %vm103, %v1191, 0
  %v1198 = vsel %vm103, %v1193, 0
  %1200 = vmatprep.subr.bf16.mxu0 0
  %1201 = vmatpush1.bf16.xpose.msra.mxu0 0
  %1202 = vmatprep.subr.bf16.mxu0 0
  %1203 = vmatpush1.bf16.xpose.msra.mxu0 0
  %1204 = vmatprep.subr.bf16.mxu0 0
  %1205 = vmatpush1.bf16.xpose.msra.mxu0 0
  %1206 = vmatprep.subr.bf16.mxu0 0
  %1207 = vmatpush1.bf16.xpose.msra.mxu0 0
  %1208 = vmatprep.subr.bf16.mxu0 0
  %1209 = vmatpush1.bf16.xpose.msra.mxu0 0
  %1210 = vmatprep.subr.bf16.mxu0 0
  %1211 = vmatpush1.bf16.xpose.msra.mxu0 0
  %1212 = vmatprep.subr.bf16.mxu0 0
  %1213 = vmatpush1.bf16.xpose.msra.mxu0 0
  %1214 = vmatprep.subr.bf16.mxu0 0
  %1215 = vmatpush1.bf16.xpose.msra.mxu0 %v1198
  %1216 = vmatprep.subr.bf16.mxu0 0
  %1217 = vmatpush2.bf16.xpose.msra.mxu0 0
  %1218 = vmatprep.subr.bf16.mxu0 0
  %1219 = vmatpush2.bf16.xpose.msra.mxu0 0
  %1220 = vmatprep.subr.bf16.mxu0 0
  %1221 = vmatpush2.bf16.xpose.msra.mxu0 0
  %1222 = vmatprep.subr.bf16.mxu0 0
  %1223 = vmatpush2.bf16.xpose.msra.mxu0 0
  %1224 = vmatprep.subr.bf16.mxu0 0
  %1225 = vmatpush2.bf16.xpose.msra.mxu0 0
  %1226 = vmatprep.subr.bf16.mxu0 0
  %1227 = vmatpush2.bf16.xpose.msra.mxu0 0
  %1228 = vmatprep.subr.bf16.mxu0 0
  %1229 = vmatpush2.bf16.xpose.msra.mxu0 0
  %1230 = vmatprep.subr.bf16.mxu0 0
  %1231 = vmatpush2.bf16.xpose.msra.mxu0 0
  %1232 = vmatprep.mubr.bf16.mxu0 0
  %1233 = vmatmul.mubr.bf16.gmra.mxu0 %v1195
  %v1234 = vpop.f32.mrf.mxu0
  %v1235 = vadd.f32 0.0, %v1234
  %v1236 = vpop.f32.mrf.mxu0
  %v1237 = vpop.f32.mrf.mxu0
  %v1238 = vpop.f32.mrf.mxu0
  %1239 = vdwg.mxu0
  %v1240 = vmul.f32 %v1185, 0.25
  %v1241 = vmul.f32 %v1235, 0.25
  %v1242 = vsel %vm696, %v1240, -inf
  %1243 = vmax.xlane.f32.xlu0 %v1242
  %v1244 = vpop.xlane.xlu0 %1243
  %v1245 = vsel %vm696, %v1241, -inf
  %1246 = vmax.xlane.f32.xlu0 %v1245
  %v1247 = vpop.xlane.xlu0 %1246
  %v1248 = vsub.f32 %v1240, %v1244
  %v1249 = vsub.f32 %v1241, %v1247
  %v1250 = vmul.f32 %v1248, 1.442695
  %v1251 = vpow.pop %v1250
  %v1252 = vmul.f32 %v1249, 1.442695
  %v1253 = vpow.pop %v1252
  %v1254 = vsel %vm696, %v1251, 0.0
  %1255 = vadd.xlane.f32.xlu0 %v1254
  %v1256 = vpop.xlane.xlu0 %1255
  %v1257 = vsel %vm696, %v1253, 0.0
  %1258 = vadd.xlane.f32.xlu0 %v1257
  %v1259 = vpop.xlane.xlu0 %1258
  %v1260 = vrcp.pop %v1256
  %v1261 = vmul.f32 %v1251, %v1260
  %v1262 = vrcp.pop %v1259
  %v1263 = vmul.f32 %v1253, %v1262
  %v1264 = vpack.c.bf16 %v1261, %v1261
  %v1265 = vpack.c.bf16 %v1263, %v1263
  %1266 = vrot.lane.b32.xlu0 %v594, 96
  %v1267 = vpop.permute.xlu0 %1266
  %v1269 = vsel %vm696, %v1264, 0
  %v1272 = vsel %vm724, %v1267, 0
  %1274 = vmatprep.subr.bf16.mxu0 0
  %1275 = vmatpush1.bf16.msra.mxu0 0
  %1276 = vmatprep.subr.bf16.mxu0 0
  %1277 = vmatpush1.bf16.msra.mxu0 0
  %1278 = vmatprep.subr.bf16.mxu0 0
  %1279 = vmatpush1.bf16.msra.mxu0 0
  %1280 = vmatprep.subr.bf16.mxu0 0
  %1281 = vmatpush1.bf16.msra.mxu0 0
  %1282 = vmatprep.subr.bf16.mxu0 0
  %1283 = vmatpush1.bf16.msra.mxu0 0
  %1284 = vmatprep.subr.bf16.mxu0 0
  %1285 = vmatpush1.bf16.msra.mxu0 0
  %1286 = vmatprep.subr.bf16.mxu0 0
  %1287 = vmatpush1.bf16.msra.mxu0 0
  %1288 = vmatprep.subr.bf16.mxu0 0
  %1289 = vmatpush1.bf16.msra.mxu0 %v1272
  %1290 = vmatprep.subr.bf16.mxu0 0
  %1291 = vmatpush2.bf16.msra.mxu0 0
  %1292 = vmatprep.subr.bf16.mxu0 0
  %1293 = vmatpush2.bf16.msra.mxu0 0
  %1294 = vmatprep.subr.bf16.mxu0 0
  %1295 = vmatpush2.bf16.msra.mxu0 0
  %1296 = vmatprep.subr.bf16.mxu0 0
  %1297 = vmatpush2.bf16.msra.mxu0 0
  %1298 = vmatprep.subr.bf16.mxu0 0
  %1299 = vmatpush2.bf16.msra.mxu0 0
  %1300 = vmatprep.subr.bf16.mxu0 0
  %1301 = vmatpush2.bf16.msra.mxu0 0
  %1302 = vmatprep.subr.bf16.mxu0 0
  %1303 = vmatpush2.bf16.msra.mxu0 0
  %1304 = vmatprep.subr.bf16.mxu0 0
  %1305 = vmatpush2.bf16.msra.mxu0 0
  %1306 = vmatprep.mubr.bf16.mxu0 0
  %1307 = vmatmul.mubr.bf16.gmra.mxu0 %v1269
  %v1308 = vpop.f32.mrf.mxu0
  %v1309 = vadd.f32 0.0, %v1308
  %v1310 = vpop.f32.mrf.mxu0
  %v1311 = vpop.f32.mrf.mxu0
  %v1312 = vpop.f32.mrf.mxu0
  %1313 = vdwg.mxu0
  %1314 = vrot.lane.b32.xlu0 %v595, 96
  %v1315 = vpop.permute.xlu0 %1314
  %v1317 = vsel %vm696, %v1265, 0
  %v1320 = vsel %vm724, %v1315, 0
  %1322 = vmatprep.subr.bf16.mxu0 0
  %1323 = vmatpush1.bf16.msra.mxu0 0
  %1324 = vmatprep.subr.bf16.mxu0 0
  %1325 = vmatpush1.bf16.msra.mxu0 0
  %1326 = vmatprep.subr.bf16.mxu0 0
  %1327 = vmatpush1.bf16.msra.mxu0 0
  %1328 = vmatprep.subr.bf16.mxu0 0
  %1329 = vmatpush1.bf16.msra.mxu0 0
  %1330 = vmatprep.subr.bf16.mxu0 0
  %1331 = vmatpush1.bf16.msra.mxu0 0
  %1332 = vmatprep.subr.bf16.mxu0 0
  %1333 = vmatpush1.bf16.msra.mxu0 0
  %1334 = vmatprep.subr.bf16.mxu0 0
  %1335 = vmatpush1.bf16.msra.mxu0 0
  %1336 = vmatprep.subr.bf16.mxu0 0
  %1337 = vmatpush1.bf16.msra.mxu0 %v1320
  %1338 = vmatprep.subr.bf16.mxu0 0
  %1339 = vmatpush2.bf16.msra.mxu0 0
  %1340 = vmatprep.subr.bf16.mxu0 0
  %1341 = vmatpush2.bf16.msra.mxu0 0
  %1342 = vmatprep.subr.bf16.mxu0 0
  %1343 = vmatpush2.bf16.msra.mxu0 0
  %1344 = vmatprep.subr.bf16.mxu0 0
  %1345 = vmatpush2.bf16.msra.mxu0 0
  %1346 = vmatprep.subr.bf16.mxu0 0
  %1347 = vmatpush2.bf16.msra.mxu0 0
  %1348 = vmatprep.subr.bf16.mxu0 0
  %1349 = vmatpush2.bf16.msra.mxu0 0
  %1350 = vmatprep.subr.bf16.mxu0 0
  %1351 = vmatpush2.bf16.msra.mxu0 0
  %1352 = vmatprep.subr.bf16.mxu0 0
  %1353 = vmatpush2.bf16.msra.mxu0 0
  %1354 = vmatprep.mubr.bf16.mxu0 0
  %1355 = vmatmul.mubr.bf16.gmra.mxu0 %v1317
  %v1356 = vpop.f32.mrf.mxu0
  %v1357 = vadd.f32 0.0, %v1356
  %v1358 = vpop.f32.mrf.mxu0
  %v1359 = vpop.f32.mrf.mxu0
  %v1360 = vpop.f32.mrf.mxu0
  %1361 = vdwg.mxu0
  %v1362 = vpack.c.bf16 %v1357, %v1309
  %v1365 = vunpack.c.l.b16 %v161
  %v1366 = vunpack.c.l.b16 %v162
  %v1367 = vpack.c.b16 %v1366, %v1365
  %v1370 = vsel %vm103, %v1362, 0
  %1372 = vmatprep.subr.bf16.mxu0 0
  %1373 = vmatpush1.bf16.msra.mxu0 0
  %1374 = vmatprep.subr.bf16.mxu0 0
  %1375 = vmatpush1.bf16.msra.mxu0 0
  %1376 = vmatprep.subr.bf16.mxu0 0
  %1377 = vmatpush1.bf16.msra.mxu0 0
  %1378 = vmatprep.subr.bf16.mxu0 0
  %1379 = vmatpush1.bf16.msra.mxu0 0
  %1380 = vmatprep.subr.bf16.mxu0 0
  %1381 = vmatpush1.bf16.msra.mxu0 0
  %1382 = vmatprep.subr.bf16.mxu0 0
  %1383 = vmatpush1.bf16.msra.mxu0 0
  %1384 = vmatprep.subr.bf16.mxu0 0
  %1385 = vmatpush1.bf16.msra.mxu0 0
  %1386 = vmatprep.subr.bf16.mxu0 0
  %1387 = vmatpush1.bf16.msra.mxu0 %v1367
  %1388 = vmatprep.subr.bf16.mxu0 0
  %1389 = vmatpush2.bf16.msra.mxu0 0
  %1390 = vmatprep.subr.bf16.mxu0 0
  %1391 = vmatpush2.bf16.msra.mxu0 0
  %1392 = vmatprep.subr.bf16.mxu0 0
  %1393 = vmatpush2.bf16.msra.mxu0 0
  %1394 = vmatprep.subr.bf16.mxu0 0
  %1395 = vmatpush2.bf16.msra.mxu0 0
  %1396 = vmatprep.subr.bf16.mxu0 0
  %1397 = vmatpush2.bf16.msra.mxu0 0
  %1398 = vmatprep.subr.bf16.mxu0 0
  %1399 = vmatpush2.bf16.msra.mxu0 0
  %1400 = vmatprep.subr.bf16.mxu0 0
  %1401 = vmatpush2.bf16.msra.mxu0 0
  %1402 = vmatprep.subr.bf16.mxu0 0
  %1403 = vmatpush2.bf16.msra.mxu0 0
  %1404 = vmatprep.mubr.bf16.mxu0 0
  %1405 = vmatmul.mubr.bf16.gmra.mxu0 %v1370
  %v1406 = vpop.f32.mrf.mxu0
  %v1407 = vadd.f32 0.0, %v1406
  %v1408 = vpop.f32.mrf.mxu0
  %v1409 = vpop.f32.mrf.mxu0
  %v1410 = vadd.f32 0.0, %v1409
  %v1411 = vpop.f32.mrf.mxu0
  %1412 = vdwg.mxu0
  %v1413 = vadd.f32 %v1134, %v1407
  %v1414 = vadd.f32 %v1137, %v1410
  %1415 = vrot.lane.b32.xlu0 %v592, 80
  %v1416 = vpop.permute.xlu0 %1415
  %1417 = vrot.lane.b32.xlu0 %v592, 16
  %v1418 = vpop.permute.xlu0 %1417
  %v1420 = vsel %vm103, %v1416, 0
  %v1423 = vsel %vm103, %v1418, 0
  %1425 = vmatprep.subr.bf16.mxu0 0
  %1426 = vmatpush1.bf16.xpose.msra.mxu0 0
  %1427 = vmatprep.subr.bf16.mxu0 0
  %1428 = vmatpush1.bf16.xpose.msra.mxu0 0
  %1429 = vmatprep.subr.bf16.mxu0 0
  %1430 = vmatpush1.bf16.xpose.msra.mxu0 0
  %1431 = vmatprep.subr.bf16.mxu0 0
  %1432 = vmatpush1.bf16.xpose.msra.mxu0 0
  %1433 = vmatprep.subr.bf16.mxu0 0
  %1434 = vmatpush1.bf16.xpose.msra.mxu0 0
  %1435 = vmatprep.subr.bf16.mxu0 0
  %1436 = vmatpush1.bf16.xpose.msra.mxu0 0
  %1437 = vmatprep.subr.bf16.mxu0 0
  %1438 = vmatpush1.bf16.xpose.msra.mxu0 0
  %1439 = vmatprep.subr.bf16.mxu0 0
  %1440 = vmatpush1.bf16.xpose.msra.mxu0 %v1423
  %1441 = vmatprep.subr.bf16.mxu0 0
  %1442 = vmatpush2.bf16.xpose.msra.mxu0 0
  %1443 = vmatprep.subr.bf16.mxu0 0
  %1444 = vmatpush2.bf16.xpose.msra.mxu0 0
  %1445 = vmatprep.subr.bf16.mxu0 0
  %1446 = vmatpush2.bf16.xpose.msra.mxu0 0
  %1447 = vmatprep.subr.bf16.mxu0 0
  %1448 = vmatpush2.bf16.xpose.msra.mxu0 0
  %1449 = vmatprep.subr.bf16.mxu0 0
  %1450 = vmatpush2.bf16.xpose.msra.mxu0 0
  %1451 = vmatprep.subr.bf16.mxu0 0
  %1452 = vmatpush2.bf16.xpose.msra.mxu0 0
  %1453 = vmatprep.subr.bf16.mxu0 0
  %1454 = vmatpush2.bf16.xpose.msra.mxu0 0
  %1455 = vmatprep.subr.bf16.mxu0 0
  %1456 = vmatpush2.bf16.xpose.msra.mxu0 0
  %1457 = vmatprep.mubr.bf16.mxu0 0
  %1458 = vmatmul.mubr.bf16.gmra.mxu0 %v1420
  %v1459 = vpop.f32.mrf.mxu0
  %v1460 = vadd.f32 0.0, %v1459
  %v1461 = vpop.f32.mrf.mxu0
  %v1462 = vpop.f32.mrf.mxu0
  %v1463 = vpop.f32.mrf.mxu0
  %1464 = vdwg.mxu0
  %1465 = vrot.lane.b32.xlu0 %v593, 80
  %v1466 = vpop.permute.xlu0 %1465
  %1467 = vrot.lane.b32.xlu0 %v593, 16
  %v1468 = vpop.permute.xlu0 %1467
  %v1470 = vsel %vm103, %v1466, 0
  %v1473 = vsel %vm103, %v1468, 0
  %1475 = vmatprep.subr.bf16.mxu0 0
  %1476 = vmatpush1.bf16.xpose.msra.mxu0 0
  %1477 = vmatprep.subr.bf16.mxu0 0
  %1478 = vmatpush1.bf16.xpose.msra.mxu0 0
  %1479 = vmatprep.subr.bf16.mxu0 0
  %1480 = vmatpush1.bf16.xpose.msra.mxu0 0
  %1481 = vmatprep.subr.bf16.mxu0 0
  %1482 = vmatpush1.bf16.xpose.msra.mxu0 0
  %1483 = vmatprep.subr.bf16.mxu0 0
  %1484 = vmatpush1.bf16.xpose.msra.mxu0 0
  %1485 = vmatprep.subr.bf16.mxu0 0
  %1486 = vmatpush1.bf16.xpose.msra.mxu0 0
  %1487 = vmatprep.subr.bf16.mxu0 0
  %1488 = vmatpush1.bf16.xpose.msra.mxu0 0
  %1489 = vmatprep.subr.bf16.mxu0 0
  %1490 = vmatpush1.bf16.xpose.msra.mxu0 %v1473
  %1491 = vmatprep.subr.bf16.mxu0 0
  %1492 = vmatpush2.bf16.xpose.msra.mxu0 0
  %1493 = vmatprep.subr.bf16.mxu0 0
  %1494 = vmatpush2.bf16.xpose.msra.mxu0 0
  %1495 = vmatprep.subr.bf16.mxu0 0
  %1496 = vmatpush2.bf16.xpose.msra.mxu0 0
  %1497 = vmatprep.subr.bf16.mxu0 0
  %1498 = vmatpush2.bf16.xpose.msra.mxu0 0
  %1499 = vmatprep.subr.bf16.mxu0 0
  %1500 = vmatpush2.bf16.xpose.msra.mxu0 0
  %1501 = vmatprep.subr.bf16.mxu0 0
  %1502 = vmatpush2.bf16.xpose.msra.mxu0 0
  %1503 = vmatprep.subr.bf16.mxu0 0
  %1504 = vmatpush2.bf16.xpose.msra.mxu0 0
  %1505 = vmatprep.subr.bf16.mxu0 0
  %1506 = vmatpush2.bf16.xpose.msra.mxu0 0
  %1507 = vmatprep.mubr.bf16.mxu0 0
  %1508 = vmatmul.mubr.bf16.gmra.mxu0 %v1470
  %v1509 = vpop.f32.mrf.mxu0
  %v1510 = vadd.f32 0.0, %v1509
  %v1511 = vpop.f32.mrf.mxu0
  %v1512 = vpop.f32.mrf.mxu0
  %v1513 = vpop.f32.mrf.mxu0
  %1514 = vdwg.mxu0
  %v1515 = vmul.f32 %v1460, 0.25
  %v1516 = vmul.f32 %v1510, 0.25
  %v1517 = vsel %vm696, %v1515, -inf
  %1518 = vmax.xlane.f32.xlu0 %v1517
  %v1519 = vpop.xlane.xlu0 %1518
  %v1520 = vsel %vm696, %v1516, -inf
  %1521 = vmax.xlane.f32.xlu0 %v1520
  %v1522 = vpop.xlane.xlu0 %1521
  %v1523 = vsub.f32 %v1515, %v1519
  %v1524 = vsub.f32 %v1516, %v1522
  %v1525 = vmul.f32 %v1523, 1.442695
  %v1526 = vpow.pop %v1525
  %v1527 = vmul.f32 %v1524, 1.442695
  %v1528 = vpow.pop %v1527
  %v1529 = vsel %vm696, %v1526, 0.0
  %1530 = vadd.xlane.f32.xlu0 %v1529
  %v1531 = vpop.xlane.xlu0 %1530
  %v1532 = vsel %vm696, %v1528, 0.0
  %1533 = vadd.xlane.f32.xlu0 %v1532
  %v1534 = vpop.xlane.xlu0 %1533
  %v1535 = vrcp.pop %v1531
  %v1536 = vmul.f32 %v1526, %v1535
  %v1537 = vrcp.pop %v1534
  %v1538 = vmul.f32 %v1528, %v1537
  %v1539 = vpack.c.bf16 %v1536, %v1536
  %v1540 = vpack.c.bf16 %v1538, %v1538
  %1541 = vrot.lane.b32.xlu0 %v594, 80
  %v1542 = vpop.permute.xlu0 %1541
  %v1544 = vsel %vm696, %v1539, 0
  %v1547 = vsel %vm724, %v1542, 0
  %1549 = vmatprep.subr.bf16.mxu0 0
  %1550 = vmatpush1.bf16.msra.mxu0 0
  %1551 = vmatprep.subr.bf16.mxu0 0
  %1552 = vmatpush1.bf16.msra.mxu0 0
  %1553 = vmatprep.subr.bf16.mxu0 0
  %1554 = vmatpush1.bf16.msra.mxu0 0
  %1555 = vmatprep.subr.bf16.mxu0 0
  %1556 = vmatpush1.bf16.msra.mxu0 0
  %1557 = vmatprep.subr.bf16.mxu0 0
  %1558 = vmatpush1.bf16.msra.mxu0 0
  %1559 = vmatprep.subr.bf16.mxu0 0
  %1560 = vmatpush1.bf16.msra.mxu0 0
  %1561 = vmatprep.subr.bf16.mxu0 0
  %1562 = vmatpush1.bf16.msra.mxu0 0
  %1563 = vmatprep.subr.bf16.mxu0 0
  %1564 = vmatpush1.bf16.msra.mxu0 %v1547
  %1565 = vmatprep.subr.bf16.mxu0 0
  %1566 = vmatpush2.bf16.msra.mxu0 0
  %1567 = vmatprep.subr.bf16.mxu0 0
  %1568 = vmatpush2.bf16.msra.mxu0 0
  %1569 = vmatprep.subr.bf16.mxu0 0
  %1570 = vmatpush2.bf16.msra.mxu0 0
  %1571 = vmatprep.subr.bf16.mxu0 0
  %1572 = vmatpush2.bf16.msra.mxu0 0
  %1573 = vmatprep.subr.bf16.mxu0 0
  %1574 = vmatpush2.bf16.msra.mxu0 0
  %1575 = vmatprep.subr.bf16.mxu0 0
  %1576 = vmatpush2.bf16.msra.mxu0 0
  %1577 = vmatprep.subr.bf16.mxu0 0
  %1578 = vmatpush2.bf16.msra.mxu0 0
  %1579 = vmatprep.subr.bf16.mxu0 0
  %1580 = vmatpush2.bf16.msra.mxu0 0
  %1581 = vmatprep.mubr.bf16.mxu0 0
  %1582 = vmatmul.mubr.bf16.gmra.mxu0 %v1544
  %v1583 = vpop.f32.mrf.mxu0
  %v1584 = vadd.f32 0.0, %v1583
  %v1585 = vpop.f32.mrf.mxu0
  %v1586 = vpop.f32.mrf.mxu0
  %v1587 = vpop.f32.mrf.mxu0
  %1588 = vdwg.mxu0
  %1589 = vrot.lane.b32.xlu0 %v595, 80
  %v1590 = vpop.permute.xlu0 %1589
  %v1592 = vsel %vm696, %v1540, 0
  %v1595 = vsel %vm724, %v1590, 0
  %1597 = vmatprep.subr.bf16.mxu0 0
  %1598 = vmatpush1.bf16.msra.mxu0 0
  %1599 = vmatprep.subr.bf16.mxu0 0
  %1600 = vmatpush1.bf16.msra.mxu0 0
  %1601 = vmatprep.subr.bf16.mxu0 0
  %1602 = vmatpush1.bf16.msra.mxu0 0
  %1603 = vmatprep.subr.bf16.mxu0 0
  %1604 = vmatpush1.bf16.msra.mxu0 0
  %1605 = vmatprep.subr.bf16.mxu0 0
  %1606 = vmatpush1.bf16.msra.mxu0 0
  %1607 = vmatprep.subr.bf16.mxu0 0
  %1608 = vmatpush1.bf16.msra.mxu0 0
  %1609 = vmatprep.subr.bf16.mxu0 0
  %1610 = vmatpush1.bf16.msra.mxu0 0
  %1611 = vmatprep.subr.bf16.mxu0 0
  %1612 = vmatpush1.bf16.msra.mxu0 %v1595
  %1613 = vmatprep.subr.bf16.mxu0 0
  %1614 = vmatpush2.bf16.msra.mxu0 0
  %1615 = vmatprep.subr.bf16.mxu0 0
  %1616 = vmatpush2.bf16.msra.mxu0 0
  %1617 = vmatprep.subr.bf16.mxu0 0
  %1618 = vmatpush2.bf16.msra.mxu0 0
  %1619 = vmatprep.subr.bf16.mxu0 0
  %1620 = vmatpush2.bf16.msra.mxu0 0
  %1621 = vmatprep.subr.bf16.mxu0 0
  %1622 = vmatpush2.bf16.msra.mxu0 0
  %1623 = vmatprep.subr.bf16.mxu0 0
  %1624 = vmatpush2.bf16.msra.mxu0 0
  %1625 = vmatprep.subr.bf16.mxu0 0
  %1626 = vmatpush2.bf16.msra.mxu0 0
  %1627 = vmatprep.subr.bf16.mxu0 0
  %1628 = vmatpush2.bf16.msra.mxu0 0
  %1629 = vmatprep.mubr.bf16.mxu0 0
  %1630 = vmatmul.mubr.bf16.gmra.mxu0 %v1592
  %v1631 = vpop.f32.mrf.mxu0
  %v1632 = vadd.f32 0.0, %v1631
  %v1633 = vpop.f32.mrf.mxu0
  %v1634 = vpop.f32.mrf.mxu0
  %v1635 = vpop.f32.mrf.mxu0
  %1636 = vdwg.mxu0
  %v1637 = vpack.c.bf16 %v1632, %v1584
  %v1640 = vunpack.c.l.b16 %v163
  %v1641 = vunpack.c.l.b16 %v164
  %v1642 = vpack.c.b16 %v1641, %v1640
  %v1645 = vsel %vm103, %v1637, 0
  %1647 = vmatprep.subr.bf16.mxu0 0
  %1648 = vmatpush1.bf16.msra.mxu0 0
  %1649 = vmatprep.subr.bf16.mxu0 0
  %1650 = vmatpush1.bf16.msra.mxu0 0
  %1651 = vmatprep.subr.bf16.mxu0 0
  %1652 = vmatpush1.bf16.msra.mxu0 0
  %1653 = vmatprep.subr.bf16.mxu0 0
  %1654 = vmatpush1.bf16.msra.mxu0 0
  %1655 = vmatprep.subr.bf16.mxu0 0
  %1656 = vmatpush1.bf16.msra.mxu0 0
  %1657 = vmatprep.subr.bf16.mxu0 0
  %1658 = vmatpush1.bf16.msra.mxu0 0
  %1659 = vmatprep.subr.bf16.mxu0 0
  %1660 = vmatpush1.bf16.msra.mxu0 0
  %1661 = vmatprep.subr.bf16.mxu0 0
  %1662 = vmatpush1.bf16.msra.mxu0 %v1642
  %1663 = vmatprep.subr.bf16.mxu0 0
  %1664 = vmatpush2.bf16.msra.mxu0 0
  %1665 = vmatprep.subr.bf16.mxu0 0
  %1666 = vmatpush2.bf16.msra.mxu0 0
  %1667 = vmatprep.subr.bf16.mxu0 0
  %1668 = vmatpush2.bf16.msra.mxu0 0
  %1669 = vmatprep.subr.bf16.mxu0 0
  %1670 = vmatpush2.bf16.msra.mxu0 0
  %1671 = vmatprep.subr.bf16.mxu0 0
  %1672 = vmatpush2.bf16.msra.mxu0 0
  %1673 = vmatprep.subr.bf16.mxu0 0
  %1674 = vmatpush2.bf16.msra.mxu0 0
  %1675 = vmatprep.subr.bf16.mxu0 0
  %1676 = vmatpush2.bf16.msra.mxu0 0
  %1677 = vmatprep.subr.bf16.mxu0 0
  %1678 = vmatpush2.bf16.msra.mxu0 0
  %1679 = vmatprep.mubr.bf16.mxu0 0
  %1680 = vmatmul.mubr.bf16.gmra.mxu0 %v1645
  %v1681 = vpop.f32.mrf.mxu0
  %v1682 = vadd.f32 0.0, %v1681
  %v1683 = vpop.f32.mrf.mxu0
  %v1684 = vpop.f32.mrf.mxu0
  %v1685 = vadd.f32 0.0, %v1684
  %v1686 = vpop.f32.mrf.mxu0
  %1687 = vdwg.mxu0
  %v1688 = vadd.f32 %v1413, %v1682
  %v1689 = vadd.f32 %v1414, %v1685
  %v1691 = vlaneseq
  %v1692 = vshrl.u32 %v1691, 7
  %v1693 = vsub.s32 0, %v1692
  %v1694 = vrot.slane %v165, %v1693
  %v1696 = vadd.f32 %v1688, %v1694
  %v1697 = vadd.f32 %v1689, %v1694
  %v1698 = vadd.f32 %v142, %v1696
  %v1699 = vadd.f32 %v145, %v1697
  %v1700 = vsel %vm545, %v1698, 0.0
  %1701 = vadd.xlane.f32.xlu0 %v1700
  %v1702 = vpop.xlane.xlu0 %1701
  %v1703 = vsel %vm545, %v1699, 0.0
  %1704 = vadd.xlane.f32.xlu0 %v1703
  %v1705 = vpop.xlane.xlu0 %1704
  %v1706 = vrcp.pop 64.0
  %v1707 = vmul.f32 %v1702, %v1706
  %v1708 = vmul.f32 %v1705, %v1706
  %v1709 = vsub.f32 %v1698, %v1707
  %v1710 = vsub.f32 %v1699, %v1708
  %v1711 = vmul.f32 %v1709, %v1709
  %v1712 = vmul.f32 %v1710, %v1710
  %v1713 = vsel %vm545, %v1711, 0.0
  %1714 = vadd.xlane.f32.xlu0 %v1713
  %v1715 = vpop.xlane.xlu0 %1714
  %v1716 = vsel %vm545, %v1712, 0.0
  %1717 = vadd.xlane.f32.xlu0 %v1716
  %v1718 = vpop.xlane.xlu0 %1717
  %v1719 = vmul.f32 %v1715, %v1706
  %v1720 = vmul.f32 %v1718, %v1706
  %v1721 = vadd.f32 %v1719, 1e-05
  %v1722 = vadd.f32 %v1720, 1e-05
  %v1723 = vrsqrt.pop %v1721
  %v1724 = vrsqrt.pop %v1722
  %v1725 = vmul.f32 %v1709, %v1723
  %v1726 = vmul.f32 %v1710, %v1724
  %v1728 = vlaneseq
  %v1729 = vshrl.u32 %v1728, 7
  %v1730 = vsub.s32 0, %v1729
  %v1731 = vrot.slane %v166, %v1730
  %v1733 = vmul.f32 %v1725, %v1731
  %v1734 = vmul.f32 %v1726, %v1731
  %v1736 = vlaneseq
  %v1737 = vshrl.u32 %v1736, 7
  %v1738 = vsub.s32 0, %v1737
  %v1739 = vrot.slane %v167, %v1738
  %v1741 = vadd.f32 %v1733, %v1739
  %v1742 = vadd.f32 %v1734, %v1739
  %v1743 = vpack.c.bf16 %v1742, %v1741
  %v1746 = vlaneseq
  %v1747 = vshrl.u32 %v1746, 7
  %v1748 = vsub.s32 0, %v1747
  %v1749 = vrot.slane %v232, %v1748
  %v1750 = vlaneseq
  %v1751 = vshrl.u32 %v1750, 7
  %v1752 = vsub.s32 1, %v1751
  %v1753 = vrot.slane %v232, %v1752
  %v1754 = vlaneseq
  %v1755 = vshrl.u32 %v1754, 7
  %v1756 = vsub.s32 2, %v1755
  %v1757 = vrot.slane %v232, %v1756
  %v1758 = vlaneseq
  %v1759 = vshrl.u32 %v1758, 7
  %v1760 = vsub.s32 3, %v1759
  %v1761 = vrot.slane %v232, %v1760
  %v1762 = vlaneseq
  %v1763 = vshrl.u32 %v1762, 7
  %v1764 = vsub.s32 4, %v1763
  %v1765 = vrot.slane %v232, %v1764
  %v1766 = vlaneseq
  %v1767 = vshrl.u32 %v1766, 7
  %v1768 = vsub.s32 5, %v1767
  %v1769 = vrot.slane %v232, %v1768
  %v1770 = vlaneseq
  %v1771 = vshrl.u32 %v1770, 7
  %v1772 = vsub.s32 6, %v1771
  %v1773 = vrot.slane %v232, %v1772
  %v1774 = vlaneseq
  %v1775 = vshrl.u32 %v1774, 7
  %v1776 = vsub.s32 7, %v1775
  %v1777 = vrot.slane %v232, %v1776
  %v1778 = vlaneseq
  %v1779 = vshrl.u32 %v1778, 7
  %v1780 = vsub.s32 0, %v1779
  %v1781 = vrot.slane %v233, %v1780
  %v1782 = vlaneseq
  %v1783 = vshrl.u32 %v1782, 7
  %v1784 = vsub.s32 1, %v1783
  %v1785 = vrot.slane %v233, %v1784
  %v1786 = vlaneseq
  %v1787 = vshrl.u32 %v1786, 7
  %v1788 = vsub.s32 2, %v1787
  %v1789 = vrot.slane %v233, %v1788
  %v1790 = vlaneseq
  %v1791 = vshrl.u32 %v1790, 7
  %v1792 = vsub.s32 3, %v1791
  %v1793 = vrot.slane %v233, %v1792
  %v1794 = vlaneseq
  %v1795 = vshrl.u32 %v1794, 7
  %v1796 = vsub.s32 4, %v1795
  %v1797 = vrot.slane %v233, %v1796
  %v1798 = vlaneseq
  %v1799 = vshrl.u32 %v1798, 7
  %v1800 = vsub.s32 5, %v1799
  %v1801 = vrot.slane %v233, %v1800
  %v1802 = vlaneseq
  %v1803 = vshrl.u32 %v1802, 7
  %v1804 = vsub.s32 6, %v1803
  %v1805 = vrot.slane %v233, %v1804
  %v1806 = vlaneseq
  %v1807 = vshrl.u32 %v1806, 7
  %v1808 = vsub.s32 7, %v1807
  %v1809 = vrot.slane %v233, %v1808
  %v1890 = vunpack.c.l.b16 %v168
  %v1891 = vunpack.c.h.b16 %v168
  %v1892 = vunpack.c.l.b16 %v169
  %v1893 = vunpack.c.h.b16 %v169
  %v1894 = vunpack.c.l.b16 %v170
  %v1895 = vunpack.c.h.b16 %v170
  %v1896 = vunpack.c.l.b16 %v171
  %v1897 = vunpack.c.h.b16 %v171
  %v1898 = vunpack.c.l.b16 %v172
  %v1899 = vunpack.c.h.b16 %v172
  %v1900 = vunpack.c.l.b16 %v173
  %v1901 = vunpack.c.h.b16 %v173
  %v1902 = vunpack.c.l.b16 %v174
  %v1903 = vunpack.c.h.b16 %v174
  %v1904 = vunpack.c.l.b16 %v175
  %v1905 = vunpack.c.h.b16 %v175
  %v1906 = vunpack.c.l.b16 %v176
  %v1907 = vunpack.c.h.b16 %v176
  %v1908 = vunpack.c.l.b16 %v177
  %v1909 = vunpack.c.h.b16 %v177
  %v1910 = vunpack.c.l.b16 %v178
  %v1911 = vunpack.c.h.b16 %v178
  %v1912 = vunpack.c.l.b16 %v179
  %v1913 = vunpack.c.h.b16 %v179
  %v1914 = vunpack.c.l.b16 %v180
  %v1915 = vunpack.c.h.b16 %v180
  %v1916 = vunpack.c.l.b16 %v181
  %v1917 = vunpack.c.h.b16 %v181
  %v1918 = vunpack.c.l.b16 %v182
  %v1919 = vunpack.c.h.b16 %v182
  %v1920 = vunpack.c.l.b16 %v183
  %v1921 = vunpack.c.h.b16 %v183
  %v1922 = vunpack.c.l.b16 %v184
  %v1923 = vunpack.c.h.b16 %v184
  %v1924 = vunpack.c.l.b16 %v185
  %v1925 = vunpack.c.h.b16 %v185
  %v1926 = vunpack.c.l.b16 %v186
  %v1927 = vunpack.c.h.b16 %v186
  %v1928 = vunpack.c.l.b16 %v187
  %v1929 = vunpack.c.h.b16 %v187
  %v1930 = vunpack.c.l.b16 %v188
  %v1931 = vunpack.c.h.b16 %v188
  %v1932 = vunpack.c.l.b16 %v189
  %v1933 = vunpack.c.h.b16 %v189
  %v1934 = vunpack.c.l.b16 %v190
  %v1935 = vunpack.c.h.b16 %v190
  %v1936 = vunpack.c.l.b16 %v191
  %v1937 = vunpack.c.h.b16 %v191
  %v1938 = vunpack.c.l.b16 %v192
  %v1939 = vunpack.c.h.b16 %v192
  %v1940 = vunpack.c.l.b16 %v193
  %v1941 = vunpack.c.h.b16 %v193
  %v1942 = vunpack.c.l.b16 %v194
  %v1943 = vunpack.c.h.b16 %v194
  %v1944 = vunpack.c.l.b16 %v195
  %v1945 = vunpack.c.h.b16 %v195
  %v1946 = vunpack.c.l.b16 %v196
  %v1947 = vunpack.c.h.b16 %v196
  %v1948 = vunpack.c.l.b16 %v197
  %v1949 = vunpack.c.h.b16 %v197
  %v1950 = vunpack.c.l.b16 %v198
  %v1951 = vunpack.c.h.b16 %v198
  %v1952 = vunpack.c.l.b16 %v199
  %v1953 = vunpack.c.h.b16 %v199
  %v1954 = vunpack.c.l.b16 %v200
  %v1955 = vunpack.c.h.b16 %v200
  %v1956 = vunpack.c.l.b16 %v201
  %v1957 = vunpack.c.h.b16 %v201
  %v1958 = vunpack.c.l.b16 %v202
  %v1959 = vunpack.c.h.b16 %v202
  %v1960 = vunpack.c.l.b16 %v203
  %v1961 = vunpack.c.h.b16 %v203
  %v1962 = vunpack.c.l.b16 %v204
  %v1963 = vunpack.c.h.b16 %v204
  %v1964 = vunpack.c.l.b16 %v205
  %v1965 = vunpack.c.h.b16 %v205
  %v1966 = vunpack.c.l.b16 %v206
  %v1967 = vunpack.c.h.b16 %v206
  %v1968 = vunpack.c.l.b16 %v207
  %v1969 = vunpack.c.h.b16 %v207
  %v1970 = vunpack.c.l.b16 %v208
  %v1971 = vunpack.c.h.b16 %v208
  %v1972 = vunpack.c.l.b16 %v209
  %v1973 = vunpack.c.h.b16 %v209
  %v1974 = vunpack.c.l.b16 %v210
  %v1975 = vunpack.c.h.b16 %v210
  %v1976 = vunpack.c.l.b16 %v211
  %v1977 = vunpack.c.h.b16 %v211
  %v1978 = vunpack.c.l.b16 %v212
  %v1979 = vunpack.c.h.b16 %v212
  %v1980 = vunpack.c.l.b16 %v213
  %v1981 = vunpack.c.h.b16 %v213
  %v1982 = vunpack.c.l.b16 %v214
  %v1983 = vunpack.c.h.b16 %v214
  %v1984 = vunpack.c.l.b16 %v215
  %v1985 = vunpack.c.h.b16 %v215
  %v1986 = vunpack.c.l.b16 %v216
  %v1987 = vunpack.c.h.b16 %v216
  %v1988 = vunpack.c.l.b16 %v217
  %v1989 = vunpack.c.h.b16 %v217
  %v1990 = vunpack.c.l.b16 %v218
  %v1991 = vunpack.c.h.b16 %v218
  %v1992 = vunpack.c.l.b16 %v219
  %v1993 = vunpack.c.h.b16 %v219
  %v1994 = vunpack.c.l.b16 %v220
  %v1995 = vunpack.c.h.b16 %v220
  %v1996 = vunpack.c.l.b16 %v221
  %v1997 = vunpack.c.h.b16 %v221
  %v1998 = vunpack.c.l.b16 %v222
  %v1999 = vunpack.c.h.b16 %v222
  %v2000 = vunpack.c.l.b16 %v223
  %v2001 = vunpack.c.h.b16 %v223
  %v2002 = vunpack.c.l.b16 %v224
  %v2003 = vunpack.c.h.b16 %v224
  %v2004 = vunpack.c.l.b16 %v225
  %v2005 = vunpack.c.h.b16 %v225
  %v2006 = vunpack.c.l.b16 %v226
  %v2007 = vunpack.c.h.b16 %v226
  %v2008 = vunpack.c.l.b16 %v227
  %v2009 = vunpack.c.h.b16 %v227
  %v2010 = vunpack.c.l.b16 %v228
  %v2011 = vunpack.c.h.b16 %v228
  %v2012 = vunpack.c.l.b16 %v229
  %v2013 = vunpack.c.h.b16 %v229
  %v2014 = vunpack.c.l.b16 %v230
  %v2015 = vunpack.c.h.b16 %v230
  %v2016 = vunpack.c.l.b16 %v231
  %v2017 = vunpack.c.h.b16 %v231
  %v2018 = vpack.c.b16 %v1906, %v1890
  %v2019 = vpack.c.b16 %v1907, %v1891
  %v2020 = vpack.c.b16 %v1908, %v1892
  %v2021 = vpack.c.b16 %v1909, %v1893
  %v2022 = vpack.c.b16 %v1910, %v1894
  %v2023 = vpack.c.b16 %v1911, %v1895
  %v2024 = vpack.c.b16 %v1912, %v1896
  %v2025 = vpack.c.b16 %v1913, %v1897
  %v2026 = vpack.c.b16 %v1914, %v1898
  %v2027 = vpack.c.b16 %v1915, %v1899
  %v2028 = vpack.c.b16 %v1916, %v1900
  %v2029 = vpack.c.b16 %v1917, %v1901
  %v2030 = vpack.c.b16 %v1918, %v1902
  %v2031 = vpack.c.b16 %v1919, %v1903
  %v2032 = vpack.c.b16 %v1920, %v1904
  %v2033 = vpack.c.b16 %v1921, %v1905
  %v2034 = vpack.c.b16 %v1938, %v1922
  %v2035 = vpack.c.b16 %v1939, %v1923
  %v2036 = vpack.c.b16 %v1940, %v1924
  %v2037 = vpack.c.b16 %v1941, %v1925
  %v2038 = vpack.c.b16 %v1942, %v1926
  %v2039 = vpack.c.b16 %v1943, %v1927
  %v2040 = vpack.c.b16 %v1944, %v1928
  %v2041 = vpack.c.b16 %v1945, %v1929
  %v2042 = vpack.c.b16 %v1946, %v1930
  %v2043 = vpack.c.b16 %v1947, %v1931
  %v2044 = vpack.c.b16 %v1948, %v1932
  %v2045 = vpack.c.b16 %v1949, %v1933
  %v2046 = vpack.c.b16 %v1950, %v1934
  %v2047 = vpack.c.b16 %v1951, %v1935
  %v2048 = vpack.c.b16 %v1952, %v1936
  %v2049 = vpack.c.b16 %v1953, %v1937
  %v2050 = vpack.c.b16 %v1970, %v1954
  %v2051 = vpack.c.b16 %v1971, %v1955
  %v2052 = vpack.c.b16 %v1972, %v1956
  %v2053 = vpack.c.b16 %v1973, %v1957
  %v2054 = vpack.c.b16 %v1974, %v1958
  %v2055 = vpack.c.b16 %v1975, %v1959
  %v2056 = vpack.c.b16 %v1976, %v1960
  %v2057 = vpack.c.b16 %v1977, %v1961
  %v2058 = vpack.c.b16 %v1978, %v1962
  %v2059 = vpack.c.b16 %v1979, %v1963
  %v2060 = vpack.c.b16 %v1980, %v1964
  %v2061 = vpack.c.b16 %v1981, %v1965
  %v2062 = vpack.c.b16 %v1982, %v1966
  %v2063 = vpack.c.b16 %v1983, %v1967
  %v2064 = vpack.c.b16 %v1984, %v1968
  %v2065 = vpack.c.b16 %v1985, %v1969
  %v2066 = vpack.c.b16 %v2002, %v1986
  %v2067 = vpack.c.b16 %v2003, %v1987
  %v2068 = vpack.c.b16 %v2004, %v1988
  %v2069 = vpack.c.b16 %v2005, %v1989
  %v2070 = vpack.c.b16 %v2006, %v1990
  %v2071 = vpack.c.b16 %v2007, %v1991
  %v2072 = vpack.c.b16 %v2008, %v1992
  %v2073 = vpack.c.b16 %v2009, %v1993
  %v2074 = vpack.c.b16 %v2010, %v1994
  %v2075 = vpack.c.b16 %v2011, %v1995
  %v2076 = vpack.c.b16 %v2012, %v1996
  %v2077 = vpack.c.b16 %v2013, %v1997
  %v2078 = vpack.c.b16 %v2014, %v1998
  %v2079 = vpack.c.b16 %v2015, %v1999
  %v2080 = vpack.c.b16 %v2016, %v2000
  %v2081 = vpack.c.b16 %v2017, %v2001
  %v2147 = vsel %vm545, %v1743, 0
  %2149 = vmatprep.subr.bf16.mxu0 0
  %2150 = vmatpush1.bf16.msra.mxu0 0
  %2151 = vmatprep.subr.bf16.mxu0 0
  %2152 = vmatpush1.bf16.msra.mxu0 0
  %2153 = vmatprep.subr.bf16.mxu0 0
  %2154 = vmatpush1.bf16.msra.mxu0 0
  %2155 = vmatprep.subr.bf16.mxu0 0
  %2156 = vmatpush1.bf16.msra.mxu0 0
  %2157 = vmatprep.subr.bf16.mxu0 %v2067
  %2158 = vmatpush1.bf16.msra.mxu0 %v2066
  %2159 = vmatprep.subr.bf16.mxu0 %v2051
  %2160 = vmatpush1.bf16.msra.mxu0 %v2050
  %2161 = vmatprep.subr.bf16.mxu0 %v2035
  %2162 = vmatpush1.bf16.msra.mxu0 %v2034
  %2163 = vmatprep.subr.bf16.mxu0 %v2019
  %2164 = vmatpush1.bf16.msra.mxu0 %v2018
  %2165 = vmatprep.subr.bf16.mxu0 0
  %2166 = vmatpush2.bf16.msra.mxu0 0
  %2167 = vmatprep.subr.bf16.mxu0 0
  %2168 = vmatpush2.bf16.msra.mxu0 0
  %2169 = vmatprep.subr.bf16.mxu0 0
  %2170 = vmatpush2.bf16.msra.mxu0 0
  %2171 = vmatprep.subr.bf16.mxu0 0
  %2172 = vmatpush2.bf16.msra.mxu0 0
  %2173 = vmatprep.subr.bf16.mxu0 0
  %2174 = vmatpush2.bf16.msra.mxu0 0
  %2175 = vmatprep.subr.bf16.mxu0 0
  %2176 = vmatpush2.bf16.msra.mxu0 0
  %2177 = vmatprep.subr.bf16.mxu0 0
  %2178 = vmatpush2.bf16.msra.mxu0 0
  %2179 = vmatprep.subr.bf16.mxu0 0
  %2180 = vmatpush2.bf16.msra.mxu0 0
  %2181 = vmatprep.mubr.bf16.mxu0 0
  %2182 = vmatmul.mubr.bf16.gmra.mxu0 %v2147
  %v2183 = vpop.f32.mrf.mxu0
  %v2184 = vadd.f32 %v1749, %v2183
  %v2185 = vpop.f32.mrf.mxu0
  %v2186 = vadd.f32 %v1753, %v2185
  %v2187 = vpop.f32.mrf.mxu0
  %v2188 = vadd.f32 %v1749, %v2187
  %v2189 = vpop.f32.mrf.mxu0
  %v2190 = vadd.f32 %v1753, %v2189
  %2191 = vdwg.mxu0
  %2192 = vmatprep.subr.bf16.mxu0 0
  %2193 = vmatpush1.bf16.msra.mxu0 0
  %2194 = vmatprep.subr.bf16.mxu0 0
  %2195 = vmatpush1.bf16.msra.mxu0 0
  %2196 = vmatprep.subr.bf16.mxu0 0
  %2197 = vmatpush1.bf16.msra.mxu0 0
  %2198 = vmatprep.subr.bf16.mxu0 0
  %2199 = vmatpush1.bf16.msra.mxu0 0
  %2200 = vmatprep.subr.bf16.mxu0 %v2069
  %2201 = vmatpush1.bf16.msra.mxu0 %v2068
  %2202 = vmatprep.subr.bf16.mxu0 %v2053
  %2203 = vmatpush1.bf16.msra.mxu0 %v2052
  %2204 = vmatprep.subr.bf16.mxu0 %v2037
  %2205 = vmatpush1.bf16.msra.mxu0 %v2036
  %2206 = vmatprep.subr.bf16.mxu0 %v2021
  %2207 = vmatpush1.bf16.msra.mxu0 %v2020
  %2208 = vmatprep.subr.bf16.mxu0 0
  %2209 = vmatpush2.bf16.msra.mxu0 0
  %2210 = vmatprep.subr.bf16.mxu0 0
  %2211 = vmatpush2.bf16.msra.mxu0 0
  %2212 = vmatprep.subr.bf16.mxu0 0
  %2213 = vmatpush2.bf16.msra.mxu0 0
  %2214 = vmatprep.subr.bf16.mxu0 0
  %2215 = vmatpush2.bf16.msra.mxu0 0
  %2216 = vmatprep.subr.bf16.mxu0 0
  %2217 = vmatpush2.bf16.msra.mxu0 0
  %2218 = vmatprep.subr.bf16.mxu0 0
  %2219 = vmatpush2.bf16.msra.mxu0 0
  %2220 = vmatprep.subr.bf16.mxu0 0
  %2221 = vmatpush2.bf16.msra.mxu0 0
  %2222 = vmatprep.subr.bf16.mxu0 0
  %2223 = vmatpush2.bf16.msra.mxu0 0
  %2224 = vmatprep.mubr.bf16.mxu0 0
  %2225 = vmatmul.mubr.bf16.gmra.mxu0 %v2147
  %v2226 = vpop.f32.mrf.mxu0
  %v2227 = vadd.f32 %v1757, %v2226
  %v2228 = vpop.f32.mrf.mxu0
  %v2229 = vadd.f32 %v1761, %v2228
  %v2230 = vpop.f32.mrf.mxu0
  %v2231 = vadd.f32 %v1757, %v2230
  %v2232 = vpop.f32.mrf.mxu0
  %v2233 = vadd.f32 %v1761, %v2232
  %2234 = vdwg.mxu0
  %2235 = vmatprep.subr.bf16.mxu0 0
  %2236 = vmatpush1.bf16.msra.mxu0 0
  %2237 = vmatprep.subr.bf16.mxu0 0
  %2238 = vmatpush1.bf16.msra.mxu0 0
  %2239 = vmatprep.subr.bf16.mxu0 0
  %2240 = vmatpush1.bf16.msra.mxu0 0
  %2241 = vmatprep.subr.bf16.mxu0 0
  %2242 = vmatpush1.bf16.msra.mxu0 0
  %2243 = vmatprep.subr.bf16.mxu0 %v2071
  %2244 = vmatpush1.bf16.msra.mxu0 %v2070
  %2245 = vmatprep.subr.bf16.mxu0 %v2055
  %2246 = vmatpush1.bf16.msra.mxu0 %v2054
  %2247 = vmatprep.subr.bf16.mxu0 %v2039
  %2248 = vmatpush1.bf16.msra.mxu0 %v2038
  %2249 = vmatprep.subr.bf16.mxu0 %v2023
  %2250 = vmatpush1.bf16.msra.mxu0 %v2022
  %2251 = vmatprep.subr.bf16.mxu0 0
  %2252 = vmatpush2.bf16.msra.mxu0 0
  %2253 = vmatprep.subr.bf16.mxu0 0
  %2254 = vmatpush2.bf16.msra.mxu0 0
  %2255 = vmatprep.subr.bf16.mxu0 0
  %2256 = vmatpush2.bf16.msra.mxu0 0
  %2257 = vmatprep.subr.bf16.mxu0 0
  %2258 = vmatpush2.bf16.msra.mxu0 0
  %2259 = vmatprep.subr.bf16.mxu0 0
  %2260 = vmatpush2.bf16.msra.mxu0 0
  %2261 = vmatprep.subr.bf16.mxu0 0
  %2262 = vmatpush2.bf16.msra.mxu0 0
  %2263 = vmatprep.subr.bf16.mxu0 0
  %2264 = vmatpush2.bf16.msra.mxu0 0
  %2265 = vmatprep.subr.bf16.mxu0 0
  %2266 = vmatpush2.bf16.msra.mxu0 0
  %2267 = vmatprep.mubr.bf16.mxu0 0
  %2268 = vmatmul.mubr.bf16.gmra.mxu0 %v2147
  %v2269 = vpop.f32.mrf.mxu0
  %v2270 = vadd.f32 %v1765, %v2269
  %v2271 = vpop.f32.mrf.mxu0
  %v2272 = vadd.f32 %v1769, %v2271
  %v2273 = vpop.f32.mrf.mxu0
  %v2274 = vadd.f32 %v1765, %v2273
  %v2275 = vpop.f32.mrf.mxu0
  %v2276 = vadd.f32 %v1769, %v2275
  %2277 = vdwg.mxu0
  %2278 = vmatprep.subr.bf16.mxu0 0
  %2279 = vmatpush1.bf16.msra.mxu0 0
  %2280 = vmatprep.subr.bf16.mxu0 0
  %2281 = vmatpush1.bf16.msra.mxu0 0
  %2282 = vmatprep.subr.bf16.mxu0 0
  %2283 = vmatpush1.bf16.msra.mxu0 0
  %2284 = vmatprep.subr.bf16.mxu0 0
  %2285 = vmatpush1.bf16.msra.mxu0 0
  %2286 = vmatprep.subr.bf16.mxu0 %v2073
  %2287 = vmatpush1.bf16.msra.mxu0 %v2072
  %2288 = vmatprep.subr.bf16.mxu0 %v2057
  %2289 = vmatpush1.bf16.msra.mxu0 %v2056
  %2290 = vmatprep.subr.bf16.mxu0 %v2041
  %2291 = vmatpush1.bf16.msra.mxu0 %v2040
  %2292 = vmatprep.subr.bf16.mxu0 %v2025
  %2293 = vmatpush1.bf16.msra.mxu0 %v2024
  %2294 = vmatprep.subr.bf16.mxu0 0
  %2295 = vmatpush2.bf16.msra.mxu0 0
  %2296 = vmatprep.subr.bf16.mxu0 0
  %2297 = vmatpush2.bf16.msra.mxu0 0
  %2298 = vmatprep.subr.bf16.mxu0 0
  %2299 = vmatpush2.bf16.msra.mxu0 0
  %2300 = vmatprep.subr.bf16.mxu0 0
  %2301 = vmatpush2.bf16.msra.mxu0 0
  %2302 = vmatprep.subr.bf16.mxu0 0
  %2303 = vmatpush2.bf16.msra.mxu0 0
  %2304 = vmatprep.subr.bf16.mxu0 0
  %2305 = vmatpush2.bf16.msra.mxu0 0
  %2306 = vmatprep.subr.bf16.mxu0 0
  %2307 = vmatpush2.bf16.msra.mxu0 0
  %2308 = vmatprep.subr.bf16.mxu0 0
  %2309 = vmatpush2.bf16.msra.mxu0 0
  %2310 = vmatprep.mubr.bf16.mxu0 0
  %2311 = vmatmul.mubr.bf16.gmra.mxu0 %v2147
  %v2312 = vpop.f32.mrf.mxu0
  %v2313 = vadd.f32 %v1773, %v2312
  %v2314 = vpop.f32.mrf.mxu0
  %v2315 = vadd.f32 %v1777, %v2314
  %v2316 = vpop.f32.mrf.mxu0
  %v2317 = vadd.f32 %v1773, %v2316
  %v2318 = vpop.f32.mrf.mxu0
  %v2319 = vadd.f32 %v1777, %v2318
  %2320 = vdwg.mxu0
  %2321 = vmatprep.subr.bf16.mxu0 0
  %2322 = vmatpush1.bf16.msra.mxu0 0
  %2323 = vmatprep.subr.bf16.mxu0 0
  %2324 = vmatpush1.bf16.msra.mxu0 0
  %2325 = vmatprep.subr.bf16.mxu0 0
  %2326 = vmatpush1.bf16.msra.mxu0 0
  %2327 = vmatprep.subr.bf16.mxu0 0
  %2328 = vmatpush1.bf16.msra.mxu0 0
  %2329 = vmatprep.subr.bf16.mxu0 %v2075
  %2330 = vmatpush1.bf16.msra.mxu0 %v2074
  %2331 = vmatprep.subr.bf16.mxu0 %v2059
  %2332 = vmatpush1.bf16.msra.mxu0 %v2058
  %2333 = vmatprep.subr.bf16.mxu0 %v2043
  %2334 = vmatpush1.bf16.msra.mxu0 %v2042
  %2335 = vmatprep.subr.bf16.mxu0 %v2027
  %2336 = vmatpush1.bf16.msra.mxu0 %v2026
  %2337 = vmatprep.subr.bf16.mxu0 0
  %2338 = vmatpush2.bf16.msra.mxu0 0
  %2339 = vmatprep.subr.bf16.mxu0 0
  %2340 = vmatpush2.bf16.msra.mxu0 0
  %2341 = vmatprep.subr.bf16.mxu0 0
  %2342 = vmatpush2.bf16.msra.mxu0 0
  %2343 = vmatprep.subr.bf16.mxu0 0
  %2344 = vmatpush2.bf16.msra.mxu0 0
  %2345 = vmatprep.subr.bf16.mxu0 0
  %2346 = vmatpush2.bf16.msra.mxu0 0
  %2347 = vmatprep.subr.bf16.mxu0 0
  %2348 = vmatpush2.bf16.msra.mxu0 0
  %2349 = vmatprep.subr.bf16.mxu0 0
  %2350 = vmatpush2.bf16.msra.mxu0 0
  %2351 = vmatprep.subr.bf16.mxu0 0
  %2352 = vmatpush2.bf16.msra.mxu0 0
  %2353 = vmatprep.mubr.bf16.mxu0 0
  %2354 = vmatmul.mubr.bf16.gmra.mxu0 %v2147
  %v2355 = vpop.f32.mrf.mxu0
  %v2356 = vadd.f32 %v1781, %v2355
  %v2357 = vpop.f32.mrf.mxu0
  %v2358 = vadd.f32 %v1785, %v2357
  %v2359 = vpop.f32.mrf.mxu0
  %v2360 = vadd.f32 %v1781, %v2359
  %v2361 = vpop.f32.mrf.mxu0
  %v2362 = vadd.f32 %v1785, %v2361
  %2363 = vdwg.mxu0
  %2364 = vmatprep.subr.bf16.mxu0 0
  %2365 = vmatpush1.bf16.msra.mxu0 0
  %2366 = vmatprep.subr.bf16.mxu0 0
  %2367 = vmatpush1.bf16.msra.mxu0 0
  %2368 = vmatprep.subr.bf16.mxu0 0
  %2369 = vmatpush1.bf16.msra.mxu0 0
  %2370 = vmatprep.subr.bf16.mxu0 0
  %2371 = vmatpush1.bf16.msra.mxu0 0
  %2372 = vmatprep.subr.bf16.mxu0 %v2077
  %2373 = vmatpush1.bf16.msra.mxu0 %v2076
  %2374 = vmatprep.subr.bf16.mxu0 %v2061
  %2375 = vmatpush1.bf16.msra.mxu0 %v2060
  %2376 = vmatprep.subr.bf16.mxu0 %v2045
  %2377 = vmatpush1.bf16.msra.mxu0 %v2044
  %2378 = vmatprep.subr.bf16.mxu0 %v2029
  %2379 = vmatpush1.bf16.msra.mxu0 %v2028
  %2380 = vmatprep.subr.bf16.mxu0 0
  %2381 = vmatpush2.bf16.msra.mxu0 0
  %2382 = vmatprep.subr.bf16.mxu0 0
  %2383 = vmatpush2.bf16.msra.mxu0 0
  %2384 = vmatprep.subr.bf16.mxu0 0
  %2385 = vmatpush2.bf16.msra.mxu0 0
  %2386 = vmatprep.subr.bf16.mxu0 0
  %2387 = vmatpush2.bf16.msra.mxu0 0
  %2388 = vmatprep.subr.bf16.mxu0 0
  %2389 = vmatpush2.bf16.msra.mxu0 0
  %2390 = vmatprep.subr.bf16.mxu0 0
  %2391 = vmatpush2.bf16.msra.mxu0 0
  %2392 = vmatprep.subr.bf16.mxu0 0
  %2393 = vmatpush2.bf16.msra.mxu0 0
  %2394 = vmatprep.subr.bf16.mxu0 0
  %2395 = vmatpush2.bf16.msra.mxu0 0
  %2396 = vmatprep.mubr.bf16.mxu0 0
  %2397 = vmatmul.mubr.bf16.gmra.mxu0 %v2147
  %v2398 = vpop.f32.mrf.mxu0
  %v2399 = vadd.f32 %v1789, %v2398
  %v2400 = vpop.f32.mrf.mxu0
  %v2401 = vadd.f32 %v1793, %v2400
  %v2402 = vpop.f32.mrf.mxu0
  %v2403 = vadd.f32 %v1789, %v2402
  %v2404 = vpop.f32.mrf.mxu0
  %v2405 = vadd.f32 %v1793, %v2404
  %2406 = vdwg.mxu0
  %2407 = vmatprep.subr.bf16.mxu0 0
  %2408 = vmatpush1.bf16.msra.mxu0 0
  %2409 = vmatprep.subr.bf16.mxu0 0
  %2410 = vmatpush1.bf16.msra.mxu0 0
  %2411 = vmatprep.subr.bf16.mxu0 0
  %2412 = vmatpush1.bf16.msra.mxu0 0
  %2413 = vmatprep.subr.bf16.mxu0 0
  %2414 = vmatpush1.bf16.msra.mxu0 0
  %2415 = vmatprep.subr.bf16.mxu0 %v2079
  %2416 = vmatpush1.bf16.msra.mxu0 %v2078
  %2417 = vmatprep.subr.bf16.mxu0 %v2063
  %2418 = vmatpush1.bf16.msra.mxu0 %v2062
  %2419 = vmatprep.subr.bf16.mxu0 %v2047
  %2420 = vmatpush1.bf16.msra.mxu0 %v2046
  %2421 = vmatprep.subr.bf16.mxu0 %v2031
  %2422 = vmatpush1.bf16.msra.mxu0 %v2030
  %2423 = vmatprep.subr.bf16.mxu0 0
  %2424 = vmatpush2.bf16.msra.mxu0 0
  %2425 = vmatprep.subr.bf16.mxu0 0
  %2426 = vmatpush2.bf16.msra.mxu0 0
  %2427 = vmatprep.subr.bf16.mxu0 0
  %2428 = vmatpush2.bf16.msra.mxu0 0
  %2429 = vmatprep.subr.bf16.mxu0 0
  %2430 = vmatpush2.bf16.msra.mxu0 0
  %2431 = vmatprep.subr.bf16.mxu0 0
  %2432 = vmatpush2.bf16.msra.mxu0 0
  %2433 = vmatprep.subr.bf16.mxu0 0
  %2434 = vmatpush2.bf16.msra.mxu0 0
  %2435 = vmatprep.subr.bf16.mxu0 0
  %2436 = vmatpush2.bf16.msra.mxu0 0
  %2437 = vmatprep.subr.bf16.mxu0 0
  %2438 = vmatpush2.bf16.msra.mxu0 0
  %2439 = vmatprep.mubr.bf16.mxu0 0
  %2440 = vmatmul.mubr.bf16.gmra.mxu0 %v2147
  %v2441 = vpop.f32.mrf.mxu0
  %v2442 = vadd.f32 %v1797, %v2441
  %v2443 = vpop.f32.mrf.mxu0
  %v2444 = vadd.f32 %v1801, %v2443
  %v2445 = vpop.f32.mrf.mxu0
  %v2446 = vadd.f32 %v1797, %v2445
  %v2447 = vpop.f32.mrf.mxu0
  %v2448 = vadd.f32 %v1801, %v2447
  %2449 = vdwg.mxu0
  %2450 = vmatprep.subr.bf16.mxu0 0
  %2451 = vmatpush1.bf16.msra.mxu0 0
  %2452 = vmatprep.subr.bf16.mxu0 0
  %2453 = vmatpush1.bf16.msra.mxu0 0
  %2454 = vmatprep.subr.bf16.mxu0 0
  %2455 = vmatpush1.bf16.msra.mxu0 0
  %2456 = vmatprep.subr.bf16.mxu0 0
  %2457 = vmatpush1.bf16.msra.mxu0 0
  %2458 = vmatprep.subr.bf16.mxu0 %v2081
  %2459 = vmatpush1.bf16.msra.mxu0 %v2080
  %2460 = vmatprep.subr.bf16.mxu0 %v2065
  %2461 = vmatpush1.bf16.msra.mxu0 %v2064
  %2462 = vmatprep.subr.bf16.mxu0 %v2049
  %2463 = vmatpush1.bf16.msra.mxu0 %v2048
  %2464 = vmatprep.subr.bf16.mxu0 %v2033
  %2465 = vmatpush1.bf16.msra.mxu0 %v2032
  %2466 = vmatprep.subr.bf16.mxu0 0
  %2467 = vmatpush2.bf16.msra.mxu0 0
  %2468 = vmatprep.subr.bf16.mxu0 0
  %2469 = vmatpush2.bf16.msra.mxu0 0
  %2470 = vmatprep.subr.bf16.mxu0 0
  %2471 = vmatpush2.bf16.msra.mxu0 0
  %2472 = vmatprep.subr.bf16.mxu0 0
  %2473 = vmatpush2.bf16.msra.mxu0 0
  %2474 = vmatprep.subr.bf16.mxu0 0
  %2475 = vmatpush2.bf16.msra.mxu0 0
  %2476 = vmatprep.subr.bf16.mxu0 0
  %2477 = vmatpush2.bf16.msra.mxu0 0
  %2478 = vmatprep.subr.bf16.mxu0 0
  %2479 = vmatpush2.bf16.msra.mxu0 0
  %2480 = vmatprep.subr.bf16.mxu0 0
  %2481 = vmatpush2.bf16.msra.mxu0 0
  %2482 = vmatprep.mubr.bf16.mxu0 0
  %2483 = vmatmul.mubr.bf16.gmra.mxu0 %v2147
  %v2484 = vpop.f32.mrf.mxu0
  %v2485 = vadd.f32 %v1805, %v2484
  %v2486 = vpop.f32.mrf.mxu0
  %v2487 = vadd.f32 %v1809, %v2486
  %v2488 = vpop.f32.mrf.mxu0
  %v2489 = vadd.f32 %v1805, %v2488
  %v2490 = vpop.f32.mrf.mxu0
  %v2491 = vadd.f32 %v1809, %v2490
  %2492 = vdwg.mxu0
  %v2493 = vmax.f32 %v2184, 0.0
  %v2494 = vmax.f32 %v2186, 0.0
  %v2495 = vmax.f32 %v2227, 0.0
  %v2496 = vmax.f32 %v2229, 0.0
  %v2497 = vmax.f32 %v2270, 0.0
  %v2498 = vmax.f32 %v2272, 0.0
  %v2499 = vmax.f32 %v2313, 0.0
  %v2500 = vmax.f32 %v2315, 0.0
  %v2501 = vmax.f32 %v2356, 0.0
  %v2502 = vmax.f32 %v2358, 0.0
  %v2503 = vmax.f32 %v2399, 0.0
  %v2504 = vmax.f32 %v2401, 0.0
  %v2505 = vmax.f32 %v2442, 0.0
  %v2506 = vmax.f32 %v2444, 0.0
  %v2507 = vmax.f32 %v2485, 0.0
  %v2508 = vmax.f32 %v2487, 0.0
  %v2509 = vmax.f32 %v2188, 0.0
  %v2510 = vmax.f32 %v2190, 0.0
  %v2511 = vmax.f32 %v2231, 0.0
  %v2512 = vmax.f32 %v2233, 0.0
  %v2513 = vmax.f32 %v2274, 0.0
  %v2514 = vmax.f32 %v2276, 0.0
  %v2515 = vmax.f32 %v2317, 0.0
  %v2516 = vmax.f32 %v2319, 0.0
  %v2517 = vmax.f32 %v2360, 0.0
  %v2518 = vmax.f32 %v2362, 0.0
  %v2519 = vmax.f32 %v2403, 0.0
  %v2520 = vmax.f32 %v2405, 0.0
  %v2521 = vmax.f32 %v2446, 0.0
  %v2522 = vmax.f32 %v2448, 0.0
  %v2523 = vmax.f32 %v2489, 0.0
  %v2524 = vmax.f32 %v2491, 0.0
  %v2525 = vpack.c.bf16 %v2509, %v2493
  %v2526 = vpack.c.bf16 %v2510, %v2494
  %v2527 = vpack.c.bf16 %v2511, %v2495
  %v2528 = vpack.c.bf16 %v2512, %v2496
  %v2529 = vpack.c.bf16 %v2513, %v2497
  %v2530 = vpack.c.bf16 %v2514, %v2498
  %v2531 = vpack.c.bf16 %v2515, %v2499
  %v2532 = vpack.c.bf16 %v2516, %v2500
  %v2533 = vpack.c.bf16 %v2517, %v2501
  %v2534 = vpack.c.bf16 %v2518, %v2502
  %v2535 = vpack.c.bf16 %v2519, %v2503
  %v2536 = vpack.c.bf16 %v2520, %v2504
  %v2537 = vpack.c.bf16 %v2521, %v2505
  %v2538 = vpack.c.bf16 %v2522, %v2506
  %v2539 = vpack.c.bf16 %v2523, %v2507
  %v2540 = vpack.c.bf16 %v2524, %v2508
  %v2542 = vlaneseq
  %v2543 = vshrl.u32 %v2542, 7
  %v2544 = vsub.s32 0, %v2543
  %v2545 = vrot.slane %v490, %v2544
  %v2803 = vunpack.c.l.b16 %v234
  %v2804 = vunpack.c.l.b16 %v235
  %v2805 = vunpack.c.l.b16 %v236
  %v2806 = vunpack.c.l.b16 %v237
  %v2807 = vunpack.c.l.b16 %v238
  %v2808 = vunpack.c.l.b16 %v239
  %v2809 = vunpack.c.l.b16 %v240
  %v2810 = vunpack.c.l.b16 %v241
  %v2811 = vunpack.c.l.b16 %v242
  %v2812 = vunpack.c.l.b16 %v243
  %v2813 = vunpack.c.l.b16 %v244
  %v2814 = vunpack.c.l.b16 %v245
  %v2815 = vunpack.c.l.b16 %v246
  %v2816 = vunpack.c.l.b16 %v247
  %v2817 = vunpack.c.l.b16 %v248
  %v2818 = vunpack.c.l.b16 %v249
  %v2819 = vunpack.c.l.b16 %v250
  %v2820 = vunpack.c.l.b16 %v251
  %v2821 = vunpack.c.l.b16 %v252
  %v2822 = vunpack.c.l.b16 %v253
  %v2823 = vunpack.c.l.b16 %v254
  %v2824 = vunpack.c.l.b16 %v255
  %v2825 = vunpack.c.l.b16 %v256
  %v2826 = vunpack.c.l.b16 %v257
  %v2827 = vunpack.c.l.b16 %v258
  %v2828 = vunpack.c.l.b16 %v259
  %v2829 = vunpack.c.l.b16 %v260
  %v2830 = vunpack.c.l.b16 %v261
  %v2831 = vunpack.c.l.b16 %v262
  %v2832 = vunpack.c.l.b16 %v263
  %v2833 = vunpack.c.l.b16 %v264
  %v2834 = vunpack.c.l.b16 %v265
  %v2835 = vunpack.c.l.b16 %v266
  %v2836 = vunpack.c.l.b16 %v267
  %v2837 = vunpack.c.l.b16 %v268
  %v2838 = vunpack.c.l.b16 %v269
  %v2839 = vunpack.c.l.b16 %v270
  %v2840 = vunpack.c.l.b16 %v271
  %v2841 = vunpack.c.l.b16 %v272
  %v2842 = vunpack.c.l.b16 %v273
  %v2843 = vunpack.c.l.b16 %v274
  %v2844 = vunpack.c.l.b16 %v275
  %v2845 = vunpack.c.l.b16 %v276
  %v2846 = vunpack.c.l.b16 %v277
  %v2847 = vunpack.c.l.b16 %v278
  %v2848 = vunpack.c.l.b16 %v279
  %v2849 = vunpack.c.l.b16 %v280
  %v2850 = vunpack.c.l.b16 %v281
  %v2851 = vunpack.c.l.b16 %v282
  %v2852 = vunpack.c.l.b16 %v283
  %v2853 = vunpack.c.l.b16 %v284
  %v2854 = vunpack.c.l.b16 %v285
  %v2855 = vunpack.c.l.b16 %v286
  %v2856 = vunpack.c.l.b16 %v287
  %v2857 = vunpack.c.l.b16 %v288
  %v2858 = vunpack.c.l.b16 %v289
  %v2859 = vunpack.c.l.b16 %v290
  %v2860 = vunpack.c.l.b16 %v291
  %v2861 = vunpack.c.l.b16 %v292
  %v2862 = vunpack.c.l.b16 %v293
  %v2863 = vunpack.c.l.b16 %v294
  %v2864 = vunpack.c.l.b16 %v295
  %v2865 = vunpack.c.l.b16 %v296
  %v2866 = vunpack.c.l.b16 %v297
  %v2867 = vunpack.c.l.b16 %v298
  %v2868 = vunpack.c.l.b16 %v299
  %v2869 = vunpack.c.l.b16 %v300
  %v2870 = vunpack.c.l.b16 %v301
  %v2871 = vunpack.c.l.b16 %v302
  %v2872 = vunpack.c.l.b16 %v303
  %v2873 = vunpack.c.l.b16 %v304
  %v2874 = vunpack.c.l.b16 %v305
  %v2875 = vunpack.c.l.b16 %v306
  %v2876 = vunpack.c.l.b16 %v307
  %v2877 = vunpack.c.l.b16 %v308
  %v2878 = vunpack.c.l.b16 %v309
  %v2879 = vunpack.c.l.b16 %v310
  %v2880 = vunpack.c.l.b16 %v311
  %v2881 = vunpack.c.l.b16 %v312
  %v2882 = vunpack.c.l.b16 %v313
  %v2883 = vunpack.c.l.b16 %v314
  %v2884 = vunpack.c.l.b16 %v315
  %v2885 = vunpack.c.l.b16 %v316
  %v2886 = vunpack.c.l.b16 %v317
  %v2887 = vunpack.c.l.b16 %v318
  %v2888 = vunpack.c.l.b16 %v319
  %v2889 = vunpack.c.l.b16 %v320
  %v2890 = vunpack.c.l.b16 %v321
  %v2891 = vunpack.c.l.b16 %v322
  %v2892 = vunpack.c.l.b16 %v323
  %v2893 = vunpack.c.l.b16 %v324
  %v2894 = vunpack.c.l.b16 %v325
  %v2895 = vunpack.c.l.b16 %v326
  %v2896 = vunpack.c.l.b16 %v327
  %v2897 = vunpack.c.l.b16 %v328
  %v2898 = vunpack.c.l.b16 %v329
  %v2899 = vunpack.c.l.b16 %v330
  %v2900 = vunpack.c.l.b16 %v331
  %v2901 = vunpack.c.l.b16 %v332
  %v2902 = vunpack.c.l.b16 %v333
  %v2903 = vunpack.c.l.b16 %v334
  %v2904 = vunpack.c.l.b16 %v335
  %v2905 = vunpack.c.l.b16 %v336
  %v2906 = vunpack.c.l.b16 %v337
  %v2907 = vunpack.c.l.b16 %v338
  %v2908 = vunpack.c.l.b16 %v339
  %v2909 = vunpack.c.l.b16 %v340
  %v2910 = vunpack.c.l.b16 %v341
  %v2911 = vunpack.c.l.b16 %v342
  %v2912 = vunpack.c.l.b16 %v343
  %v2913 = vunpack.c.l.b16 %v344
  %v2914 = vunpack.c.l.b16 %v345
  %v2915 = vunpack.c.l.b16 %v346
  %v2916 = vunpack.c.l.b16 %v347
  %v2917 = vunpack.c.l.b16 %v348
  %v2918 = vunpack.c.l.b16 %v349
  %v2919 = vunpack.c.l.b16 %v350
  %v2920 = vunpack.c.l.b16 %v351
  %v2921 = vunpack.c.l.b16 %v352
  %v2922 = vunpack.c.l.b16 %v353
  %v2923 = vunpack.c.l.b16 %v354
  %v2924 = vunpack.c.l.b16 %v355
  %v2925 = vunpack.c.l.b16 %v356
  %v2926 = vunpack.c.l.b16 %v357
  %v2927 = vunpack.c.l.b16 %v358
  %v2928 = vunpack.c.l.b16 %v359
  %v2929 = vunpack.c.l.b16 %v360
  %v2930 = vunpack.c.l.b16 %v361
  %v2931 = vunpack.c.l.b16 %v362
  %v2932 = vunpack.c.l.b16 %v363
  %v2933 = vunpack.c.l.b16 %v364
  %v2934 = vunpack.c.l.b16 %v365
  %v2935 = vunpack.c.l.b16 %v366
  %v2936 = vunpack.c.l.b16 %v367
  %v2937 = vunpack.c.l.b16 %v368
  %v2938 = vunpack.c.l.b16 %v369
  %v2939 = vunpack.c.l.b16 %v370
  %v2940 = vunpack.c.l.b16 %v371
  %v2941 = vunpack.c.l.b16 %v372
  %v2942 = vunpack.c.l.b16 %v373
  %v2943 = vunpack.c.l.b16 %v374
  %v2944 = vunpack.c.l.b16 %v375
  %v2945 = vunpack.c.l.b16 %v376
  %v2946 = vunpack.c.l.b16 %v377
  %v2947 = vunpack.c.l.b16 %v378
  %v2948 = vunpack.c.l.b16 %v379
  %v2949 = vunpack.c.l.b16 %v380
  %v2950 = vunpack.c.l.b16 %v381
  %v2951 = vunpack.c.l.b16 %v382
  %v2952 = vunpack.c.l.b16 %v383
  %v2953 = vunpack.c.l.b16 %v384
  %v2954 = vunpack.c.l.b16 %v385
  %v2955 = vunpack.c.l.b16 %v386
  %v2956 = vunpack.c.l.b16 %v387
  %v2957 = vunpack.c.l.b16 %v388
  %v2958 = vunpack.c.l.b16 %v389
  %v2959 = vunpack.c.l.b16 %v390
  %v2960 = vunpack.c.l.b16 %v391
  %v2961 = vunpack.c.l.b16 %v392
  %v2962 = vunpack.c.l.b16 %v393
  %v2963 = vunpack.c.l.b16 %v394
  %v2964 = vunpack.c.l.b16 %v395
  %v2965 = vunpack.c.l.b16 %v396
  %v2966 = vunpack.c.l.b16 %v397
  %v2967 = vunpack.c.l.b16 %v398
  %v2968 = vunpack.c.l.b16 %v399
  %v2969 = vunpack.c.l.b16 %v400
  %v2970 = vunpack.c.l.b16 %v401
  %v2971 = vunpack.c.l.b16 %v402
  %v2972 = vunpack.c.l.b16 %v403
  %v2973 = vunpack.c.l.b16 %v404
  %v2974 = vunpack.c.l.b16 %v405
  %v2975 = vunpack.c.l.b16 %v406
  %v2976 = vunpack.c.l.b16 %v407
  %v2977 = vunpack.c.l.b16 %v408
  %v2978 = vunpack.c.l.b16 %v409
  %v2979 = vunpack.c.l.b16 %v410
  %v2980 = vunpack.c.l.b16 %v411
  %v2981 = vunpack.c.l.b16 %v412
  %v2982 = vunpack.c.l.b16 %v413
  %v2983 = vunpack.c.l.b16 %v414
  %v2984 = vunpack.c.l.b16 %v415
  %v2985 = vunpack.c.l.b16 %v416
  %v2986 = vunpack.c.l.b16 %v417
  %v2987 = vunpack.c.l.b16 %v418
  %v2988 = vunpack.c.l.b16 %v419
  %v2989 = vunpack.c.l.b16 %v420
  %v2990 = vunpack.c.l.b16 %v421
  %v2991 = vunpack.c.l.b16 %v422
  %v2992 = vunpack.c.l.b16 %v423
  %v2993 = vunpack.c.l.b16 %v424
  %v2994 = vunpack.c.l.b16 %v425
  %v2995 = vunpack.c.l.b16 %v426
  %v2996 = vunpack.c.l.b16 %v427
  %v2997 = vunpack.c.l.b16 %v428
  %v2998 = vunpack.c.l.b16 %v429
  %v2999 = vunpack.c.l.b16 %v430
  %v3000 = vunpack.c.l.b16 %v431
  %v3001 = vunpack.c.l.b16 %v432
  %v3002 = vunpack.c.l.b16 %v433
  %v3003 = vunpack.c.l.b16 %v434
  %v3004 = vunpack.c.l.b16 %v435
  %v3005 = vunpack.c.l.b16 %v436
  %v3006 = vunpack.c.l.b16 %v437
  %v3007 = vunpack.c.l.b16 %v438
  %v3008 = vunpack.c.l.b16 %v439
  %v3009 = vunpack.c.l.b16 %v440
  %v3010 = vunpack.c.l.b16 %v441
  %v3011 = vunpack.c.l.b16 %v442
  %v3012 = vunpack.c.l.b16 %v443
  %v3013 = vunpack.c.l.b16 %v444
  %v3014 = vunpack.c.l.b16 %v445
  %v3015 = vunpack.c.l.b16 %v446
  %v3016 = vunpack.c.l.b16 %v447
  %v3017 = vunpack.c.l.b16 %v448
  %v3018 = vunpack.c.l.b16 %v449
  %v3019 = vunpack.c.l.b16 %v450
  %v3020 = vunpack.c.l.b16 %v451
  %v3021 = vunpack.c.l.b16 %v452
  %v3022 = vunpack.c.l.b16 %v453
  %v3023 = vunpack.c.l.b16 %v454
  %v3024 = vunpack.c.l.b16 %v455
  %v3025 = vunpack.c.l.b16 %v456
  %v3026 = vunpack.c.l.b16 %v457
  %v3027 = vunpack.c.l.b16 %v458
  %v3028 = vunpack.c.l.b16 %v459
  %v3029 = vunpack.c.l.b16 %v460
  %v3030 = vunpack.c.l.b16 %v461
  %v3031 = vunpack.c.l.b16 %v462
  %v3032 = vunpack.c.l.b16 %v463
  %v3033 = vunpack.c.l.b16 %v464
  %v3034 = vunpack.c.l.b16 %v465
  %v3035 = vunpack.c.l.b16 %v466
  %v3036 = vunpack.c.l.b16 %v467
  %v3037 = vunpack.c.l.b16 %v468
  %v3038 = vunpack.c.l.b16 %v469
  %v3039 = vunpack.c.l.b16 %v470
  %v3040 = vunpack.c.l.b16 %v471
  %v3041 = vunpack.c.l.b16 %v472
  %v3042 = vunpack.c.l.b16 %v473
  %v3043 = vunpack.c.l.b16 %v474
  %v3044 = vunpack.c.l.b16 %v475
  %v3045 = vunpack.c.l.b16 %v476
  %v3046 = vunpack.c.l.b16 %v477
  %v3047 = vunpack.c.l.b16 %v478
  %v3048 = vunpack.c.l.b16 %v479
  %v3049 = vunpack.c.l.b16 %v480
  %v3050 = vunpack.c.l.b16 %v481
  %v3051 = vunpack.c.l.b16 %v482
  %v3052 = vunpack.c.l.b16 %v483
  %v3053 = vunpack.c.l.b16 %v484
  %v3054 = vunpack.c.l.b16 %v485
  %v3055 = vunpack.c.l.b16 %v486
  %v3056 = vunpack.c.l.b16 %v487
  %v3057 = vunpack.c.l.b16 %v488
  %v3058 = vunpack.c.l.b16 %v489
  %v3059 = vpack.c.b16 %v2804, %v2803
  %v3060 = vpack.c.b16 %v2806, %v2805
  %v3061 = vpack.c.b16 %v2808, %v2807
  %v3062 = vpack.c.b16 %v2810, %v2809
  %v3063 = vpack.c.b16 %v2812, %v2811
  %v3064 = vpack.c.b16 %v2814, %v2813
  %v3065 = vpack.c.b16 %v2816, %v2815
  %v3066 = vpack.c.b16 %v2818, %v2817
  %v3067 = vpack.c.b16 %v2820, %v2819
  %v3068 = vpack.c.b16 %v2822, %v2821
  %v3069 = vpack.c.b16 %v2824, %v2823
  %v3070 = vpack.c.b16 %v2826, %v2825
  %v3071 = vpack.c.b16 %v2828, %v2827
  %v3072 = vpack.c.b16 %v2830, %v2829
  %v3073 = vpack.c.b16 %v2832, %v2831
  %v3074 = vpack.c.b16 %v2834, %v2833
  %v3075 = vpack.c.b16 %v2836, %v2835
  %v3076 = vpack.c.b16 %v2838, %v2837
  %v3077 = vpack.c.b16 %v2840, %v2839
  %v3078 = vpack.c.b16 %v2842, %v2841
  %v3079 = vpack.c.b16 %v2844, %v2843
  %v3080 = vpack.c.b16 %v2846, %v2845
  %v3081 = vpack.c.b16 %v2848, %v2847
  %v3082 = vpack.c.b16 %v2850, %v2849
  %v3083 = vpack.c.b16 %v2852, %v2851
  %v3084 = vpack.c.b16 %v2854, %v2853
  %v3085 = vpack.c.b16 %v2856, %v2855
  %v3086 = vpack.c.b16 %v2858, %v2857
  %v3087 = vpack.c.b16 %v2860, %v2859
  %v3088 = vpack.c.b16 %v2862, %v2861
  %v3089 = vpack.c.b16 %v2864, %v2863
  %v3090 = vpack.c.b16 %v2866, %v2865
  %v3091 = vpack.c.b16 %v2868, %v2867
  %v3092 = vpack.c.b16 %v2870, %v2869
  %v3093 = vpack.c.b16 %v2872, %v2871
  %v3094 = vpack.c.b16 %v2874, %v2873
  %v3095 = vpack.c.b16 %v2876, %v2875
  %v3096 = vpack.c.b16 %v2878, %v2877
  %v3097 = vpack.c.b16 %v2880, %v2879
  %v3098 = vpack.c.b16 %v2882, %v2881
  %v3099 = vpack.c.b16 %v2884, %v2883
  %v3100 = vpack.c.b16 %v2886, %v2885
  %v3101 = vpack.c.b16 %v2888, %v2887
  %v3102 = vpack.c.b16 %v2890, %v2889
  %v3103 = vpack.c.b16 %v2892, %v2891
  %v3104 = vpack.c.b16 %v2894, %v2893
  %v3105 = vpack.c.b16 %v2896, %v2895
  %v3106 = vpack.c.b16 %v2898, %v2897
  %v3107 = vpack.c.b16 %v2900, %v2899
  %v3108 = vpack.c.b16 %v2902, %v2901
  %v3109 = vpack.c.b16 %v2904, %v2903
  %v3110 = vpack.c.b16 %v2906, %v2905
  %v3111 = vpack.c.b16 %v2908, %v2907
  %v3112 = vpack.c.b16 %v2910, %v2909
  %v3113 = vpack.c.b16 %v2912, %v2911
  %v3114 = vpack.c.b16 %v2914, %v2913
  %v3115 = vpack.c.b16 %v2916, %v2915
  %v3116 = vpack.c.b16 %v2918, %v2917
  %v3117 = vpack.c.b16 %v2920, %v2919
  %v3118 = vpack.c.b16 %v2922, %v2921
  %v3119 = vpack.c.b16 %v2924, %v2923
  %v3120 = vpack.c.b16 %v2926, %v2925
  %v3121 = vpack.c.b16 %v2928, %v2927
  %v3122 = vpack.c.b16 %v2930, %v2929
  %v3123 = vpack.c.b16 %v2932, %v2931
  %v3124 = vpack.c.b16 %v2934, %v2933
  %v3125 = vpack.c.b16 %v2936, %v2935
  %v3126 = vpack.c.b16 %v2938, %v2937
  %v3127 = vpack.c.b16 %v2940, %v2939
  %v3128 = vpack.c.b16 %v2942, %v2941
  %v3129 = vpack.c.b16 %v2944, %v2943
  %v3130 = vpack.c.b16 %v2946, %v2945
  %v3131 = vpack.c.b16 %v2948, %v2947
  %v3132 = vpack.c.b16 %v2950, %v2949
  %v3133 = vpack.c.b16 %v2952, %v2951
  %v3134 = vpack.c.b16 %v2954, %v2953
  %v3135 = vpack.c.b16 %v2956, %v2955
  %v3136 = vpack.c.b16 %v2958, %v2957
  %v3137 = vpack.c.b16 %v2960, %v2959
  %v3138 = vpack.c.b16 %v2962, %v2961
  %v3139 = vpack.c.b16 %v2964, %v2963
  %v3140 = vpack.c.b16 %v2966, %v2965
  %v3141 = vpack.c.b16 %v2968, %v2967
  %v3142 = vpack.c.b16 %v2970, %v2969
  %v3143 = vpack.c.b16 %v2972, %v2971
  %v3144 = vpack.c.b16 %v2974, %v2973
  %v3145 = vpack.c.b16 %v2976, %v2975
  %v3146 = vpack.c.b16 %v2978, %v2977
  %v3147 = vpack.c.b16 %v2980, %v2979
  %v3148 = vpack.c.b16 %v2982, %v2981
  %v3149 = vpack.c.b16 %v2984, %v2983
  %v3150 = vpack.c.b16 %v2986, %v2985
  %v3151 = vpack.c.b16 %v2988, %v2987
  %v3152 = vpack.c.b16 %v2990, %v2989
  %v3153 = vpack.c.b16 %v2992, %v2991
  %v3154 = vpack.c.b16 %v2994, %v2993
  %v3155 = vpack.c.b16 %v2996, %v2995
  %v3156 = vpack.c.b16 %v2998, %v2997
  %v3157 = vpack.c.b16 %v3000, %v2999
  %v3158 = vpack.c.b16 %v3002, %v3001
  %v3159 = vpack.c.b16 %v3004, %v3003
  %v3160 = vpack.c.b16 %v3006, %v3005
  %v3161 = vpack.c.b16 %v3008, %v3007
  %v3162 = vpack.c.b16 %v3010, %v3009
  %v3163 = vpack.c.b16 %v3012, %v3011
  %v3164 = vpack.c.b16 %v3014, %v3013
  %v3165 = vpack.c.b16 %v3016, %v3015
  %v3166 = vpack.c.b16 %v3018, %v3017
  %v3167 = vpack.c.b16 %v3020, %v3019
  %v3168 = vpack.c.b16 %v3022, %v3021
  %v3169 = vpack.c.b16 %v3024, %v3023
  %v3170 = vpack.c.b16 %v3026, %v3025
  %v3171 = vpack.c.b16 %v3028, %v3027
  %v3172 = vpack.c.b16 %v3030, %v3029
  %v3173 = vpack.c.b16 %v3032, %v3031
  %v3174 = vpack.c.b16 %v3034, %v3033
  %v3175 = vpack.c.b16 %v3036, %v3035
  %v3176 = vpack.c.b16 %v3038, %v3037
  %v3177 = vpack.c.b16 %v3040, %v3039
  %v3178 = vpack.c.b16 %v3042, %v3041
  %v3179 = vpack.c.b16 %v3044, %v3043
  %v3180 = vpack.c.b16 %v3046, %v3045
  %v3181 = vpack.c.b16 %v3048, %v3047
  %v3182 = vpack.c.b16 %v3050, %v3049
  %v3183 = vpack.c.b16 %v3052, %v3051
  %v3184 = vpack.c.b16 %v3054, %v3053
  %v3185 = vpack.c.b16 %v3056, %v3055
  %v3186 = vpack.c.b16 %v3058, %v3057
  %3315 = vmatprep.subr.bf16.mxu0 0
  %3316 = vmatpush1.bf16.msra.mxu0 %v3066
  %3317 = vmatprep.subr.bf16.mxu0 0
  %3318 = vmatpush1.bf16.msra.mxu0 %v3065
  %3319 = vmatprep.subr.bf16.mxu0 0
  %3320 = vmatpush1.bf16.msra.mxu0 %v3064
  %3321 = vmatprep.subr.bf16.mxu0 0
  %3322 = vmatpush1.bf16.msra.mxu0 %v3063
  %3323 = vmatprep.subr.bf16.mxu0 0
  %3324 = vmatpush1.bf16.msra.mxu0 %v3062
  %3325 = vmatprep.subr.bf16.mxu0 0
  %3326 = vmatpush1.bf16.msra.mxu0 %v3061
  %3327 = vmatprep.subr.bf16.mxu0 0
  %3328 = vmatpush1.bf16.msra.mxu0 %v3060
  %3329 = vmatprep.subr.bf16.mxu0 0
  %3330 = vmatpush1.bf16.msra.mxu0 %v3059
  %3331 = vmatprep.subr.bf16.mxu0 0
  %3332 = vmatpush2.bf16.msra.mxu0 %v3074
  %3333 = vmatprep.subr.bf16.mxu0 0
  %3334 = vmatpush2.bf16.msra.mxu0 %v3073
  %3335 = vmatprep.subr.bf16.mxu0 0
  %3336 = vmatpush2.bf16.msra.mxu0 %v3072
  %3337 = vmatprep.subr.bf16.mxu0 0
  %3338 = vmatpush2.bf16.msra.mxu0 %v3071
  %3339 = vmatprep.subr.bf16.mxu0 0
  %3340 = vmatpush2.bf16.msra.mxu0 %v3070
  %3341 = vmatprep.subr.bf16.mxu0 0
  %3342 = vmatpush2.bf16.msra.mxu0 %v3069
  %3343 = vmatprep.subr.bf16.mxu0 0
  %3344 = vmatpush2.bf16.msra.mxu0 %v3068
  %3345 = vmatprep.subr.bf16.mxu0 0
  %3346 = vmatpush2.bf16.msra.mxu0 %v3067
  %3347 = vmatprep.mubr.bf16.mxu0 %v2526
  %3348 = vmatmul.mubr.bf16.gmra.mxu0 %v2525
  %v3349 = vpop.f32.mrf.mxu0
  %v3350 = vadd.f32 %v2545, %v3349
  %v3351 = vpop.f32.mrf.mxu0
  %v3352 = vpop.f32.mrf.mxu0
  %v3353 = vadd.f32 %v2545, %v3352
  %v3354 = vpop.f32.mrf.mxu0
  %3355 = vdwg.mxu0
  %3356 = vmatprep.subr.bf16.mxu0 0
  %3357 = vmatpush1.bf16.msra.mxu0 %v3082
  %3358 = vmatprep.subr.bf16.mxu0 0
  %3359 = vmatpush1.bf16.msra.mxu0 %v3081
  %3360 = vmatprep.subr.bf16.mxu0 0
  %3361 = vmatpush1.bf16.msra.mxu0 %v3080
  %3362 = vmatprep.subr.bf16.mxu0 0
  %3363 = vmatpush1.bf16.msra.mxu0 %v3079
  %3364 = vmatprep.subr.bf16.mxu0 0
  %3365 = vmatpush1.bf16.msra.mxu0 %v3078
  %3366 = vmatprep.subr.bf16.mxu0 0
  %3367 = vmatpush1.bf16.msra.mxu0 %v3077
  %3368 = vmatprep.subr.bf16.mxu0 0
  %3369 = vmatpush1.bf16.msra.mxu0 %v3076
  %3370 = vmatprep.subr.bf16.mxu0 0
  %3371 = vmatpush1.bf16.msra.mxu0 %v3075
  %3372 = vmatprep.subr.bf16.mxu0 0
  %3373 = vmatpush2.bf16.msra.mxu0 %v3090
  %3374 = vmatprep.subr.bf16.mxu0 0
  %3375 = vmatpush2.bf16.msra.mxu0 %v3089
  %3376 = vmatprep.subr.bf16.mxu0 0
  %3377 = vmatpush2.bf16.msra.mxu0 %v3088
  %3378 = vmatprep.subr.bf16.mxu0 0
  %3379 = vmatpush2.bf16.msra.mxu0 %v3087
  %3380 = vmatprep.subr.bf16.mxu0 0
  %3381 = vmatpush2.bf16.msra.mxu0 %v3086
  %3382 = vmatprep.subr.bf16.mxu0 0
  %3383 = vmatpush2.bf16.msra.mxu0 %v3085
  %3384 = vmatprep.subr.bf16.mxu0 0
  %3385 = vmatpush2.bf16.msra.mxu0 %v3084
  %3386 = vmatprep.subr.bf16.mxu0 0
  %3387 = vmatpush2.bf16.msra.mxu0 %v3083
  %3388 = vmatprep.mubr.bf16.mxu0 %v2528
  %3389 = vmatmul.mubr.bf16.gmra.mxu0 %v2527
  %v3390 = vpop.f32.mrf.mxu0
  %v3391 = vadd.f32 %v3350, %v3390
  %v3392 = vpop.f32.mrf.mxu0
  %v3393 = vpop.f32.mrf.mxu0
  %v3394 = vadd.f32 %v3353, %v3393
  %v3395 = vpop.f32.mrf.mxu0
  %3396 = vdwg.mxu0
  %3397 = vmatprep.subr.bf16.mxu0 0
  %3398 = vmatpush1.bf16.msra.mxu0 %v3098
  %3399 = vmatprep.subr.bf16.mxu0 0
  %3400 = vmatpush1.bf16.msra.mxu0 %v3097
  %3401 = vmatprep.subr.bf16.mxu0 0
  %3402 = vmatpush1.bf16.msra.mxu0 %v3096
  %3403 = vmatprep.subr.bf16.mxu0 0
  %3404 = vmatpush1.bf16.msra.mxu0 %v3095
  %3405 = vmatprep.subr.bf16.mxu0 0
  %3406 = vmatpush1.bf16.msra.mxu0 %v3094
  %3407 = vmatprep.subr.bf16.mxu0 0
  %3408 = vmatpush1.bf16.msra.mxu0 %v3093
  %3409 = vmatprep.subr.bf16.mxu0 0
  %3410 = vmatpush1.bf16.msra.mxu0 %v3092
  %3411 = vmatprep.subr.bf16.mxu0 0
  %3412 = vmatpush1.bf16.msra.mxu0 %v3091
  %3413 = vmatprep.subr.bf16.mxu0 0
  %3414 = vmatpush2.bf16.msra.mxu0 %v3106
  %3415 = vmatprep.subr.bf16.mxu0 0
  %3416 = vmatpush2.bf16.msra.mxu0 %v3105
  %3417 = vmatprep.subr.bf16.mxu0 0
  %3418 = vmatpush2.bf16.msra.mxu0 %v3104
  %3419 = vmatprep.subr.bf16.mxu0 0
  %3420 = vmatpush2.bf16.msra.mxu0 %v3103
  %3421 = vmatprep.subr.bf16.mxu0 0
  %3422 = vmatpush2.bf16.msra.mxu0 %v3102
  %3423 = vmatprep.subr.bf16.mxu0 0
  %3424 = vmatpush2.bf16.msra.mxu0 %v3101
  %3425 = vmatprep.subr.bf16.mxu0 0
  %3426 = vmatpush2.bf16.msra.mxu0 %v3100
  %3427 = vmatprep.subr.bf16.mxu0 0
  %3428 = vmatpush2.bf16.msra.mxu0 %v3099
  %3429 = vmatprep.mubr.bf16.mxu0 %v2530
  %3430 = vmatmul.mubr.bf16.gmra.mxu0 %v2529
  %v3431 = vpop.f32.mrf.mxu0
  %v3432 = vadd.f32 %v3391, %v3431
  %v3433 = vpop.f32.mrf.mxu0
  %v3434 = vpop.f32.mrf.mxu0
  %v3435 = vadd.f32 %v3394, %v3434
  %v3436 = vpop.f32.mrf.mxu0
  %3437 = vdwg.mxu0
  %3438 = vmatprep.subr.bf16.mxu0 0
  %3439 = vmatpush1.bf16.msra.mxu0 %v3114
  %3440 = vmatprep.subr.bf16.mxu0 0
  %3441 = vmatpush1.bf16.msra.mxu0 %v3113
  %3442 = vmatprep.subr.bf16.mxu0 0
  %3443 = vmatpush1.bf16.msra.mxu0 %v3112
  %3444 = vmatprep.subr.bf16.mxu0 0
  %3445 = vmatpush1.bf16.msra.mxu0 %v3111
  %3446 = vmatprep.subr.bf16.mxu0 0
  %3447 = vmatpush1.bf16.msra.mxu0 %v3110
  %3448 = vmatprep.subr.bf16.mxu0 0
  %3449 = vmatpush1.bf16.msra.mxu0 %v3109
  %3450 = vmatprep.subr.bf16.mxu0 0
  %3451 = vmatpush1.bf16.msra.mxu0 %v3108
  %3452 = vmatprep.subr.bf16.mxu0 0
  %3453 = vmatpush1.bf16.msra.mxu0 %v3107
  %3454 = vmatprep.subr.bf16.mxu0 0
  %3455 = vmatpush2.bf16.msra.mxu0 %v3122
  %3456 = vmatprep.subr.bf16.mxu0 0
  %3457 = vmatpush2.bf16.msra.mxu0 %v3121
  %3458 = vmatprep.subr.bf16.mxu0 0
  %3459 = vmatpush2.bf16.msra.mxu0 %v3120
  %3460 = vmatprep.subr.bf16.mxu0 0
  %3461 = vmatpush2.bf16.msra.mxu0 %v3119
  %3462 = vmatprep.subr.bf16.mxu0 0
  %3463 = vmatpush2.bf16.msra.mxu0 %v3118
  %3464 = vmatprep.subr.bf16.mxu0 0
  %3465 = vmatpush2.bf16.msra.mxu0 %v3117
  %3466 = vmatprep.subr.bf16.mxu0 0
  %3467 = vmatpush2.bf16.msra.mxu0 %v3116
  %3468 = vmatprep.subr.bf16.mxu0 0
  %3469 = vmatpush2.bf16.msra.mxu0 %v3115
  %3470 = vmatprep.mubr.bf16.mxu0 %v2532
  %3471 = vmatmul.mubr.bf16.gmra.mxu0 %v2531
  %v3472 = vpop.f32.mrf.mxu0
  %v3473 = vadd.f32 %v3432, %v3472
  %v3474 = vpop.f32.mrf.mxu0
  %v3475 = vpop.f32.mrf.mxu0
  %v3476 = vadd.f32 %v3435, %v3475
  %v3477 = vpop.f32.mrf.mxu0
  %3478 = vdwg.mxu0
  %3479 = vmatprep.subr.bf16.mxu0 0
  %3480 = vmatpush1.bf16.msra.mxu0 %v3130
  %3481 = vmatprep.subr.bf16.mxu0 0
  %3482 = vmatpush1.bf16.msra.mxu0 %v3129
  %3483 = vmatprep.subr.bf16.mxu0 0
  %3484 = vmatpush1.bf16.msra.mxu0 %v3128
  %3485 = vmatprep.subr.bf16.mxu0 0
  %3486 = vmatpush1.bf16.msra.mxu0 %v3127
  %3487 = vmatprep.subr.bf16.mxu0 0
  %3488 = vmatpush1.bf16.msra.mxu0 %v3126
  %3489 = vmatprep.subr.bf16.mxu0 0
  %3490 = vmatpush1.bf16.msra.mxu0 %v3125
  %3491 = vmatprep.subr.bf16.mxu0 0
  %3492 = vmatpush1.bf16.msra.mxu0 %v3124
  %3493 = vmatprep.subr.bf16.mxu0 0
  %3494 = vmatpush1.bf16.msra.mxu0 %v3123
  %3495 = vmatprep.subr.bf16.mxu0 0
  %3496 = vmatpush2.bf16.msra.mxu0 %v3138
  %3497 = vmatprep.subr.bf16.mxu0 0
  %3498 = vmatpush2.bf16.msra.mxu0 %v3137
  %3499 = vmatprep.subr.bf16.mxu0 0
  %3500 = vmatpush2.bf16.msra.mxu0 %v3136
  %3501 = vmatprep.subr.bf16.mxu0 0
  %3502 = vmatpush2.bf16.msra.mxu0 %v3135
  %3503 = vmatprep.subr.bf16.mxu0 0
  %3504 = vmatpush2.bf16.msra.mxu0 %v3134
  %3505 = vmatprep.subr.bf16.mxu0 0
  %3506 = vmatpush2.bf16.msra.mxu0 %v3133
  %3507 = vmatprep.subr.bf16.mxu0 0
  %3508 = vmatpush2.bf16.msra.mxu0 %v3132
  %3509 = vmatprep.subr.bf16.mxu0 0
  %3510 = vmatpush2.bf16.msra.mxu0 %v3131
  %3511 = vmatprep.mubr.bf16.mxu0 %v2534
  %3512 = vmatmul.mubr.bf16.gmra.mxu0 %v2533
  %v3513 = vpop.f32.mrf.mxu0
  %v3514 = vadd.f32 %v3473, %v3513
  %v3515 = vpop.f32.mrf.mxu0
  %v3516 = vpop.f32.mrf.mxu0
  %v3517 = vadd.f32 %v3476, %v3516
  %v3518 = vpop.f32.mrf.mxu0
  %3519 = vdwg.mxu0
  %3520 = vmatprep.subr.bf16.mxu0 0
  %3521 = vmatpush1.bf16.msra.mxu0 %v3146
  %3522 = vmatprep.subr.bf16.mxu0 0
  %3523 = vmatpush1.bf16.msra.mxu0 %v3145
  %3524 = vmatprep.subr.bf16.mxu0 0
  %3525 = vmatpush1.bf16.msra.mxu0 %v3144
  %3526 = vmatprep.subr.bf16.mxu0 0
  %3527 = vmatpush1.bf16.msra.mxu0 %v3143
  %3528 = vmatprep.subr.bf16.mxu0 0
  %3529 = vmatpush1.bf16.msra.mxu0 %v3142
  %3530 = vmatprep.subr.bf16.mxu0 0
  %3531 = vmatpush1.bf16.msra.mxu0 %v3141
  %3532 = vmatprep.subr.bf16.mxu0 0
  %3533 = vmatpush1.bf16.msra.mxu0 %v3140
  %3534 = vmatprep.subr.bf16.mxu0 0
  %3535 = vmatpush1.bf16.msra.mxu0 %v3139
  %3536 = vmatprep.subr.bf16.mxu0 0
  %3537 = vmatpush2.bf16.msra.mxu0 %v3154
  %3538 = vmatprep.subr.bf16.mxu0 0
  %3539 = vmatpush2.bf16.msra.mxu0 %v3153
  %3540 = vmatprep.subr.bf16.mxu0 0
  %3541 = vmatpush2.bf16.msra.mxu0 %v3152
  %3542 = vmatprep.subr.bf16.mxu0 0
  %3543 = vmatpush2.bf16.msra.mxu0 %v3151
  %3544 = vmatprep.subr.bf16.mxu0 0
  %3545 = vmatpush2.bf16.msra.mxu0 %v3150
  %3546 = vmatprep.subr.bf16.mxu0 0
  %3547 = vmatpush2.bf16.msra.mxu0 %v3149
  %3548 = vmatprep.subr.bf16.mxu0 0
  %3549 = vmatpush2.bf16.msra.mxu0 %v3148
  %3550 = vmatprep.subr.bf16.mxu0 0
  %3551 = vmatpush2.bf16.msra.mxu0 %v3147
  %3552 = vmatprep.mubr.bf16.mxu0 %v2536
  %3553 = vmatmul.mubr.bf16.gmra.mxu0 %v2535
  %v3554 = vpop.f32.mrf.mxu0
  %v3555 = vadd.f32 %v3514, %v3554
  %v3556 = vpop.f32.mrf.mxu0
  %v3557 = vpop.f32.mrf.mxu0
  %v3558 = vadd.f32 %v3517, %v3557
  %v3559 = vpop.f32.mrf.mxu0
  %3560 = vdwg.mxu0
  %3561 = vmatprep.subr.bf16.mxu0 0
  %3562 = vmatpush1.bf16.msra.mxu0 %v3162
  %3563 = vmatprep.subr.bf16.mxu0 0
  %3564 = vmatpush1.bf16.msra.mxu0 %v3161
  %3565 = vmatprep.subr.bf16.mxu0 0
  %3566 = vmatpush1.bf16.msra.mxu0 %v3160
  %3567 = vmatprep.subr.bf16.mxu0 0
  %3568 = vmatpush1.bf16.msra.mxu0 %v3159
  %3569 = vmatprep.subr.bf16.mxu0 0
  %3570 = vmatpush1.bf16.msra.mxu0 %v3158
  %3571 = vmatprep.subr.bf16.mxu0 0
  %3572 = vmatpush1.bf16.msra.mxu0 %v3157
  %3573 = vmatprep.subr.bf16.mxu0 0
  %3574 = vmatpush1.bf16.msra.mxu0 %v3156
  %3575 = vmatprep.subr.bf16.mxu0 0
  %3576 = vmatpush1.bf16.msra.mxu0 %v3155
  %3577 = vmatprep.subr.bf16.mxu0 0
  %3578 = vmatpush2.bf16.msra.mxu0 %v3170
  %3579 = vmatprep.subr.bf16.mxu0 0
  %3580 = vmatpush2.bf16.msra.mxu0 %v3169
  %3581 = vmatprep.subr.bf16.mxu0 0
  %3582 = vmatpush2.bf16.msra.mxu0 %v3168
  %3583 = vmatprep.subr.bf16.mxu0 0
  %3584 = vmatpush2.bf16.msra.mxu0 %v3167
  %3585 = vmatprep.subr.bf16.mxu0 0
  %3586 = vmatpush2.bf16.msra.mxu0 %v3166
  %3587 = vmatprep.subr.bf16.mxu0 0
  %3588 = vmatpush2.bf16.msra.mxu0 %v3165
  %3589 = vmatprep.subr.bf16.mxu0 0
  %3590 = vmatpush2.bf16.msra.mxu0 %v3164
  %3591 = vmatprep.subr.bf16.mxu0 0
  %3592 = vmatpush2.bf16.msra.mxu0 %v3163
  %3593 = vmatprep.mubr.bf16.mxu0 %v2538
  %3594 = vmatmul.mubr.bf16.gmra.mxu0 %v2537
  %v3595 = vpop.f32.mrf.mxu0
  %v3596 = vadd.f32 %v3555, %v3595
  %v3597 = vpop.f32.mrf.mxu0
  %v3598 = vpop.f32.mrf.mxu0
  %v3599 = vadd.f32 %v3558, %v3598
  %v3600 = vpop.f32.mrf.mxu0
  %3601 = vdwg.mxu0
  %3602 = vmatprep.subr.bf16.mxu0 0
  %3603 = vmatpush1.bf16.msra.mxu0 %v3178
  %3604 = vmatprep.subr.bf16.mxu0 0
  %3605 = vmatpush1.bf16.msra.mxu0 %v3177
  %3606 = vmatprep.subr.bf16.mxu0 0
  %3607 = vmatpush1.bf16.msra.mxu0 %v3176
  %3608 = vmatprep.subr.bf16.mxu0 0
  %3609 = vmatpush1.bf16.msra.mxu0 %v3175
  %3610 = vmatprep.subr.bf16.mxu0 0
  %3611 = vmatpush1.bf16.msra.mxu0 %v3174
  %3612 = vmatprep.subr.bf16.mxu0 0
  %3613 = vmatpush1.bf16.msra.mxu0 %v3173
  %3614 = vmatprep.subr.bf16.mxu0 0
  %3615 = vmatpush1.bf16.msra.mxu0 %v3172
  %3616 = vmatprep.subr.bf16.mxu0 0
  %3617 = vmatpush1.bf16.msra.mxu0 %v3171
  %3618 = vmatprep.subr.bf16.mxu0 0
  %3619 = vmatpush2.bf16.msra.mxu0 %v3186
  %3620 = vmatprep.subr.bf16.mxu0 0
  %3621 = vmatpush2.bf16.msra.mxu0 %v3185
  %3622 = vmatprep.subr.bf16.mxu0 0
  %3623 = vmatpush2.bf16.msra.mxu0 %v3184
  %3624 = vmatprep.subr.bf16.mxu0 0
  %3625 = vmatpush2.bf16.msra.mxu0 %v3183
  %3626 = vmatprep.subr.bf16.mxu0 0
  %3627 = vmatpush2.bf16.msra.mxu0 %v3182
  %3628 = vmatprep.subr.bf16.mxu0 0
  %3629 = vmatpush2.bf16.msra.mxu0 %v3181
  %3630 = vmatprep.subr.bf16.mxu0 0
  %3631 = vmatpush2.bf16.msra.mxu0 %v3180
  %3632 = vmatprep.subr.bf16.mxu0 0
  %3633 = vmatpush2.bf16.msra.mxu0 %v3179
  %3634 = vmatprep.mubr.bf16.mxu0 %v2540
  %3635 = vmatmul.mubr.bf16.gmra.mxu0 %v2539
  %v3636 = vpop.f32.mrf.mxu0
  %v3637 = vadd.f32 %v3596, %v3636
  %v3638 = vpop.f32.mrf.mxu0
  %v3639 = vpop.f32.mrf.mxu0
  %v3640 = vadd.f32 %v3599, %v3639
  %v3641 = vpop.f32.mrf.mxu0
  %3642 = vdwg.mxu0
  %v3643 = vadd.f32 %v1741, %v3637
  %v3644 = vadd.f32 %v1742, %v3640
  %v3645 = vsel %vm545, %v3643, 0.0
  %3646 = vadd.xlane.f32.xlu0 %v3645
  %v3647 = vpop.xlane.xlu0 %3646
  %v3648 = vsel %vm545, %v3644, 0.0
  %3649 = vadd.xlane.f32.xlu0 %v3648
  %v3650 = vpop.xlane.xlu0 %3649
  %v3651 = vmul.f32 %v3647, %v1706
  %v3652 = vmul.f32 %v3650, %v1706
  %v3653 = vsub.f32 %v3643, %v3651
  %v3654 = vsub.f32 %v3644, %v3652
  %v3655 = vmul.f32 %v3653, %v3653
  %v3656 = vmul.f32 %v3654, %v3654
  %v3657 = vsel %vm545, %v3655, 0.0
  %3658 = vadd.xlane.f32.xlu0 %v3657
  %v3659 = vpop.xlane.xlu0 %3658
  %v3660 = vsel %vm545, %v3656, 0.0
  %3661 = vadd.xlane.f32.xlu0 %v3660
  %v3662 = vpop.xlane.xlu0 %3661
  %v3663 = vmul.f32 %v3659, %v1706
  %v3664 = vmul.f32 %v3662, %v1706
  %v3665 = vadd.f32 %v3663, 1e-05
  %v3666 = vadd.f32 %v3664, 1e-05
  %v3667 = vrsqrt.pop %v3665
  %v3668 = vrsqrt.pop %v3666
  %v3669 = vmul.f32 %v3653, %v3667
  %v3670 = vmul.f32 %v3654, %v3668
  %v3672 = vlaneseq
  %v3673 = vshrl.u32 %v3672, 7
  %v3674 = vsub.s32 0, %v3673
  %v3675 = vrot.slane %v491, %v3674
  %v3677 = vmul.f32 %v3669, %v3675
  %v3678 = vmul.f32 %v3670, %v3675
  %v3680 = vlaneseq
  %v3681 = vshrl.u32 %v3680, 7
  %v3682 = vsub.s32 0, %v3681
  %v3683 = vrot.slane %v492, %v3682
  %v3685 = vadd.f32 %v3677, %v3683
  %v3686 = vadd.f32 %v3678, %v3683
  %s3687 = scalar_lea.vmem %s4, 64
  %v3688 = vld [vmem:[%s3687] sm:$0xff]
  %v3689 = vld [vmem:[%s3687 + $0x8] sm:$0xff]
  %v3690 = vld [vmem:[%s3687 + $0x10] sm:$0xff]
  %v3691 = vld [vmem:[%s3687 + $0x18] sm:$0xff]
  %v3692 = vld [vmem:[%s3687 + $0x20] sm:$0xff]
  %v3693 = vld [vmem:[%s3687 + $0x28] sm:$0xff]
  %v3694 = vld [vmem:[%s3687 + $0x30] sm:$0xff]
  %v3695 = vld [vmem:[%s3687 + $0x38] sm:$0xff]
  %s3696 = scalar_lea.vmem %s5, 2
  %v3697 = vld [vmem:[%s3696] sm:$0x3]
  %s3698 = scalar_lea.vmem %s6, 32
  %v3699 = vld [vmem:[%s3698] sm:$0xf]
  %v3700 = vld [vmem:[%s3698 + $0x4] sm:$0xf]
  %v3701 = vld [vmem:[%s3698 + $0x8] sm:$0xf]
  %v3702 = vld [vmem:[%s3698 + $0xc] sm:$0xf]
  %v3703 = vld [vmem:[%s3698 + $0x10] sm:$0xf]
  %v3704 = vld [vmem:[%s3698 + $0x14] sm:$0xf]
  %v3705 = vld [vmem:[%s3698 + $0x18] sm:$0xf]
  %v3706 = vld [vmem:[%s3698 + $0x1c] sm:$0xf]
  %s3707 = scalar_lea.vmem %s7, 1
  %v3708 = vld [vmem:[%s3707] sm:$0x1]
  %s3709 = scalar_lea.vmem %s8, 1
  %v3710 = vld [vmem:[%s3709] sm:$0x1]
  %s3711 = scalar_lea.vmem %s9, 1
  %v3712 = vld [vmem:[%s3711] sm:$0x1]
  %s3713 = scalar_lea.vmem %s10, 512
  %v3714 = vld [vmem:[%s3713] sm:$0xff]
  %v3715 = vld [vmem:[%s3713 + $0x8] sm:$0xff]
  %v3716 = vld [vmem:[%s3713 + $0x10] sm:$0xff]
  %v3717 = vld [vmem:[%s3713 + $0x18] sm:$0xff]
  %v3718 = vld [vmem:[%s3713 + $0x20] sm:$0xff]
  %v3719 = vld [vmem:[%s3713 + $0x28] sm:$0xff]
  %v3720 = vld [vmem:[%s3713 + $0x30] sm:$0xff]
  %v3721 = vld [vmem:[%s3713 + $0x38] sm:$0xff]
  %v3722 = vld [vmem:[%s3713 + $0x40] sm:$0xff]
  %v3723 = vld [vmem:[%s3713 + $0x48] sm:$0xff]
  %v3724 = vld [vmem:[%s3713 + $0x50] sm:$0xff]
  %v3725 = vld [vmem:[%s3713 + $0x58] sm:$0xff]
  %v3726 = vld [vmem:[%s3713 + $0x60] sm:$0xff]
  %v3727 = vld [vmem:[%s3713 + $0x68] sm:$0xff]
  %v3728 = vld [vmem:[%s3713 + $0x70] sm:$0xff]
  %v3729 = vld [vmem:[%s3713 + $0x78] sm:$0xff]
  %v3730 = vld [vmem:[%s3713 + $0x80] sm:$0xff]
  %v3731 = vld [vmem:[%s3713 + $0x88] sm:$0xff]
  %v3732 = vld [vmem:[%s3713 + $0x90] sm:$0xff]
  %v3733 = vld [vmem:[%s3713 + $0x98] sm:$0xff]
  %v3734 = vld [vmem:[%s3713 + $0xa0] sm:$0xff]
  %v3735 = vld [vmem:[%s3713 + $0xa8] sm:$0xff]
  %v3736 = vld [vmem:[%s3713 + $0xb0] sm:$0xff]
  %v3737 = vld [vmem:[%s3713 + $0xb8] sm:$0xff]
  %v3738 = vld [vmem:[%s3713 + $0xc0] sm:$0xff]
  %v3739 = vld [vmem:[%s3713 + $0xc8] sm:$0xff]
  %v3740 = vld [vmem:[%s3713 + $0xd0] sm:$0xff]
  %v3741 = vld [vmem:[%s3713 + $0xd8] sm:$0xff]
  %v3742 = vld [vmem:[%s3713 + $0xe0] sm:$0xff]
  %v3743 = vld [vmem:[%s3713 + $0xe8] sm:$0xff]
  %v3744 = vld [vmem:[%s3713 + $0xf0] sm:$0xff]
  %v3745 = vld [vmem:[%s3713 + $0xf8] sm:$0xff]
  %v3746 = vld [vmem:[%s3713 + $0x100] sm:$0xff]
  %v3747 = vld [vmem:[%s3713 + $0x108] sm:$0xff]
  %v3748 = vld [vmem:[%s3713 + $0x110] sm:$0xff]
  %v3749 = vld [vmem:[%s3713 + $0x118] sm:$0xff]
  %v3750 = vld [vmem:[%s3713 + $0x120] sm:$0xff]
  %v3751 = vld [vmem:[%s3713 + $0x128] sm:$0xff]
  %v3752 = vld [vmem:[%s3713 + $0x130] sm:$0xff]
  %v3753 = vld [vmem:[%s3713 + $0x138] sm:$0xff]
  %v3754 = vld [vmem:[%s3713 + $0x140] sm:$0xff]
  %v3755 = vld [vmem:[%s3713 + $0x148] sm:$0xff]
  %v3756 = vld [vmem:[%s3713 + $0x150] sm:$0xff]
  %v3757 = vld [vmem:[%s3713 + $0x158] sm:$0xff]
  %v3758 = vld [vmem:[%s3713 + $0x160] sm:$0xff]
  %v3759 = vld [vmem:[%s3713 + $0x168] sm:$0xff]
  %v3760 = vld [vmem:[%s3713 + $0x170] sm:$0xff]
  %v3761 = vld [vmem:[%s3713 + $0x178] sm:$0xff]
  %v3762 = vld [vmem:[%s3713 + $0x180] sm:$0xff]
  %v3763 = vld [vmem:[%s3713 + $0x188] sm:$0xff]
  %v3764 = vld [vmem:[%s3713 + $0x190] sm:$0xff]
  %v3765 = vld [vmem:[%s3713 + $0x198] sm:$0xff]
  %v3766 = vld [vmem:[%s3713 + $0x1a0] sm:$0xff]
  %v3767 = vld [vmem:[%s3713 + $0x1a8] sm:$0xff]
  %v3768 = vld [vmem:[%s3713 + $0x1b0] sm:$0xff]
  %v3769 = vld [vmem:[%s3713 + $0x1b8] sm:$0xff]
  %v3770 = vld [vmem:[%s3713 + $0x1c0] sm:$0xff]
  %v3771 = vld [vmem:[%s3713 + $0x1c8] sm:$0xff]
  %v3772 = vld [vmem:[%s3713 + $0x1d0] sm:$0xff]
  %v3773 = vld [vmem:[%s3713 + $0x1d8] sm:$0xff]
  %v3774 = vld [vmem:[%s3713 + $0x1e0] sm:$0xff]
  %v3775 = vld [vmem:[%s3713 + $0x1e8] sm:$0xff]
  %v3776 = vld [vmem:[%s3713 + $0x1f0] sm:$0xff]
  %v3777 = vld [vmem:[%s3713 + $0x1f8] sm:$0xff]
  %s3778 = scalar_lea.vmem %s11, 16
  %v3779 = vld [vmem:[%s3778] sm:$0xff]
  %v3780 = vld [vmem:[%s3778 + $0x8] sm:$0xff]
  %s3781 = scalar_lea.vmem %s12, 1024
  %v3782 = vld [vmem:[%s3781] sm:$0xf]
  %v3783 = vld [vmem:[%s3781 + $0x4] sm:$0xf]
  %v3784 = vld [vmem:[%s3781 + $0x8] sm:$0xf]
  %v3785 = vld [vmem:[%s3781 + $0xc] sm:$0xf]
  %v3786 = vld [vmem:[%s3781 + $0x10] sm:$0xf]
  %v3787 = vld [vmem:[%s3781 + $0x14] sm:$0xf]
  %v3788 = vld [vmem:[%s3781 + $0x18] sm:$0xf]
  %v3789 = vld [vmem:[%s3781 + $0x1c] sm:$0xf]
  %v3790 = vld [vmem:[%s3781 + $0x20] sm:$0xf]
  %v3791 = vld [vmem:[%s3781 + $0x24] sm:$0xf]
  %v3792 = vld [vmem:[%s3781 + $0x28] sm:$0xf]
  %v3793 = vld [vmem:[%s3781 + $0x2c] sm:$0xf]
  %v3794 = vld [vmem:[%s3781 + $0x30] sm:$0xf]
  %v3795 = vld [vmem:[%s3781 + $0x34] sm:$0xf]
  %v3796 = vld [vmem:[%s3781 + $0x38] sm:$0xf]
  %v3797 = vld [vmem:[%s3781 + $0x3c] sm:$0xf]
  %v3798 = vld [vmem:[%s3781 + $0x40] sm:$0xf]
  %v3799 = vld [vmem:[%s3781 + $0x44] sm:$0xf]
  %v3800 = vld [vmem:[%s3781 + $0x48] sm:$0xf]
  %v3801 = vld [vmem:[%s3781 + $0x4c] sm:$0xf]
  %v3802 = vld [vmem:[%s3781 + $0x50] sm:$0xf]
  %v3803 = vld [vmem:[%s3781 + $0x54] sm:$0xf]
  %v3804 = vld [vmem:[%s3781 + $0x58] sm:$0xf]
  %v3805 = vld [vmem:[%s3781 + $0x5c] sm:$0xf]
  %v3806 = vld [vmem:[%s3781 + $0x60] sm:$0xf]
  %v3807 = vld [vmem:[%s3781 + $0x64] sm:$0xf]
  %v3808 = vld [vmem:[%s3781 + $0x68] sm:$0xf]
  %v3809 = vld [vmem:[%s3781 + $0x6c] sm:$0xf]
  %v3810 = vld [vmem:[%s3781 + $0x70] sm:$0xf]
  %v3811 = vld [vmem:[%s3781 + $0x74] sm:$0xf]
  %v3812 = vld [vmem:[%s3781 + $0x78] sm:$0xf]
  %v3813 = vld [vmem:[%s3781 + $0x7c] sm:$0xf]
  %v3814 = vld [vmem:[%s3781 + $0x80] sm:$0xf]
  %v3815 = vld [vmem:[%s3781 + $0x84] sm:$0xf]
  %v3816 = vld [vmem:[%s3781 + $0x88] sm:$0xf]
  %v3817 = vld [vmem:[%s3781 + $0x8c] sm:$0xf]
  %v3818 = vld [vmem:[%s3781 + $0x90] sm:$0xf]
  %v3819 = vld [vmem:[%s3781 + $0x94] sm:$0xf]
  %v3820 = vld [vmem:[%s3781 + $0x98] sm:$0xf]
  %v3821 = vld [vmem:[%s3781 + $0x9c] sm:$0xf]
  %v3822 = vld [vmem:[%s3781 + $0xa0] sm:$0xf]
  %v3823 = vld [vmem:[%s3781 + $0xa4] sm:$0xf]
  %v3824 = vld [vmem:[%s3781 + $0xa8] sm:$0xf]
  %v3825 = vld [vmem:[%s3781 + $0xac] sm:$0xf]
  %v3826 = vld [vmem:[%s3781 + $0xb0] sm:$0xf]
  %v3827 = vld [vmem:[%s3781 + $0xb4] sm:$0xf]
  %v3828 = vld [vmem:[%s3781 + $0xb8] sm:$0xf]
  %v3829 = vld [vmem:[%s3781 + $0xbc] sm:$0xf]
  %v3830 = vld [vmem:[%s3781 + $0xc0] sm:$0xf]
  %v3831 = vld [vmem:[%s3781 + $0xc4] sm:$0xf]
  %v3832 = vld [vmem:[%s3781 + $0xc8] sm:$0xf]
  %v3833 = vld [vmem:[%s3781 + $0xcc] sm:$0xf]
  %v3834 = vld [vmem:[%s3781 + $0xd0] sm:$0xf]
  %v3835 = vld [vmem:[%s3781 + $0xd4] sm:$0xf]
  %v3836 = vld [vmem:[%s3781 + $0xd8] sm:$0xf]
  %v3837 = vld [vmem:[%s3781 + $0xdc] sm:$0xf]
  %v3838 = vld [vmem:[%s3781 + $0xe0] sm:$0xf]
  %v3839 = vld [vmem:[%s3781 + $0xe4] sm:$0xf]
  %v3840 = vld [vmem:[%s3781 + $0xe8] sm:$0xf]
  %v3841 = vld [vmem:[%s3781 + $0xec] sm:$0xf]
  %v3842 = vld [vmem:[%s3781 + $0xf0] sm:$0xf]
  %v3843 = vld [vmem:[%s3781 + $0xf4] sm:$0xf]
  %v3844 = vld [vmem:[%s3781 + $0xf8] sm:$0xf]
  %v3845 = vld [vmem:[%s3781 + $0xfc] sm:$0xf]
  %v3846 = vld [vmem:[%s3781 + $0x100] sm:$0xf]
  %v3847 = vld [vmem:[%s3781 + $0x104] sm:$0xf]
  %v3848 = vld [vmem:[%s3781 + $0x108] sm:$0xf]
  %v3849 = vld [vmem:[%s3781 + $0x10c] sm:$0xf]
  %v3850 = vld [vmem:[%s3781 + $0x110] sm:$0xf]
  %v3851 = vld [vmem:[%s3781 + $0x114] sm:$0xf]
  %v3852 = vld [vmem:[%s3781 + $0x118] sm:$0xf]
  %v3853 = vld [vmem:[%s3781 + $0x11c] sm:$0xf]
  %v3854 = vld [vmem:[%s3781 + $0x120] sm:$0xf]
  %v3855 = vld [vmem:[%s3781 + $0x124] sm:$0xf]
  %v3856 = vld [vmem:[%s3781 + $0x128] sm:$0xf]
  %v3857 = vld [vmem:[%s3781 + $0x12c] sm:$0xf]
  %v3858 = vld [vmem:[%s3781 + $0x130] sm:$0xf]
  %v3859 = vld [vmem:[%s3781 + $0x134] sm:$0xf]
  %v3860 = vld [vmem:[%s3781 + $0x138] sm:$0xf]
  %v3861 = vld [vmem:[%s3781 + $0x13c] sm:$0xf]
  %v3862 = vld [vmem:[%s3781 + $0x140] sm:$0xf]
  %v3863 = vld [vmem:[%s3781 + $0x144] sm:$0xf]
  %v3864 = vld [vmem:[%s3781 + $0x148] sm:$0xf]
  %v3865 = vld [vmem:[%s3781 + $0x14c] sm:$0xf]
  %v3866 = vld [vmem:[%s3781 + $0x150] sm:$0xf]
  %v3867 = vld [vmem:[%s3781 + $0x154] sm:$0xf]
  %v3868 = vld [vmem:[%s3781 + $0x158] sm:$0xf]
  %v3869 = vld [vmem:[%s3781 + $0x15c] sm:$0xf]
  %v3870 = vld [vmem:[%s3781 + $0x160] sm:$0xf]
  %v3871 = vld [vmem:[%s3781 + $0x164] sm:$0xf]
  %v3872 = vld [vmem:[%s3781 + $0x168] sm:$0xf]
  %v3873 = vld [vmem:[%s3781 + $0x16c] sm:$0xf]
  %v3874 = vld [vmem:[%s3781 + $0x170] sm:$0xf]
  %v3875 = vld [vmem:[%s3781 + $0x174] sm:$0xf]
  %v3876 = vld [vmem:[%s3781 + $0x178] sm:$0xf]
  %v3877 = vld [vmem:[%s3781 + $0x17c] sm:$0xf]
  %v3878 = vld [vmem:[%s3781 + $0x180] sm:$0xf]
  %v3879 = vld [vmem:[%s3781 + $0x184] sm:$0xf]
  %v3880 = vld [vmem:[%s3781 + $0x188] sm:$0xf]
  %v3881 = vld [vmem:[%s3781 + $0x18c] sm:$0xf]
  %v3882 = vld [vmem:[%s3781 + $0x190] sm:$0xf]
  %v3883 = vld [vmem:[%s3781 + $0x194] sm:$0xf]
  %v3884 = vld [vmem:[%s3781 + $0x198] sm:$0xf]
  %v3885 = vld [vmem:[%s3781 + $0x19c] sm:$0xf]
  %v3886 = vld [vmem:[%s3781 + $0x1a0] sm:$0xf]
  %v3887 = vld [vmem:[%s3781 + $0x1a4] sm:$0xf]
  %v3888 = vld [vmem:[%s3781 + $0x1a8] sm:$0xf]
  %v3889 = vld [vmem:[%s3781 + $0x1ac] sm:$0xf]
  %v3890 = vld [vmem:[%s3781 + $0x1b0] sm:$0xf]
  %v3891 = vld [vmem:[%s3781 + $0x1b4] sm:$0xf]
  %v3892 = vld [vmem:[%s3781 + $0x1b8] sm:$0xf]
  %v3893 = vld [vmem:[%s3781 + $0x1bc] sm:$0xf]
  %v3894 = vld [vmem:[%s3781 + $0x1c0] sm:$0xf]
  %v3895 = vld [vmem:[%s3781 + $0x1c4] sm:$0xf]
  %v3896 = vld [vmem:[%s3781 + $0x1c8] sm:$0xf]
  %v3897 = vld [vmem:[%s3781 + $0x1cc] sm:$0xf]
  %v3898 = vld [vmem:[%s3781 + $0x1d0] sm:$0xf]
  %v3899 = vld [vmem:[%s3781 + $0x1d4] sm:$0xf]
  %v3900 = vld [vmem:[%s3781 + $0x1d8] sm:$0xf]
  %v3901 = vld [vmem:[%s3781 + $0x1dc] sm:$0xf]
  %v3902 = vld [vmem:[%s3781 + $0x1e0] sm:$0xf]
  %v3903 = vld [vmem:[%s3781 + $0x1e4] sm:$0xf]
  %v3904 = vld [vmem:[%s3781 + $0x1e8] sm:$0xf]
  %v3905 = vld [vmem:[%s3781 + $0x1ec] sm:$0xf]
  %v3906 = vld [vmem:[%s3781 + $0x1f0] sm:$0xf]
  %v3907 = vld [vmem:[%s3781 + $0x1f4] sm:$0xf]
  %v3908 = vld [vmem:[%s3781 + $0x1f8] sm:$0xf]
  %v3909 = vld [vmem:[%s3781 + $0x1fc] sm:$0xf]
  %v3910 = vld [vmem:[%s3781 + $0x200] sm:$0xf]
  %v3911 = vld [vmem:[%s3781 + $0x204] sm:$0xf]
  %v3912 = vld [vmem:[%s3781 + $0x208] sm:$0xf]
  %v3913 = vld [vmem:[%s3781 + $0x20c] sm:$0xf]
  %v3914 = vld [vmem:[%s3781 + $0x210] sm:$0xf]
  %v3915 = vld [vmem:[%s3781 + $0x214] sm:$0xf]
  %v3916 = vld [vmem:[%s3781 + $0x218] sm:$0xf]
  %v3917 = vld [vmem:[%s3781 + $0x21c] sm:$0xf]
  %v3918 = vld [vmem:[%s3781 + $0x220] sm:$0xf]
  %v3919 = vld [vmem:[%s3781 + $0x224] sm:$0xf]
  %v3920 = vld [vmem:[%s3781 + $0x228] sm:$0xf]
  %v3921 = vld [vmem:[%s3781 + $0x22c] sm:$0xf]
  %v3922 = vld [vmem:[%s3781 + $0x230] sm:$0xf]
  %v3923 = vld [vmem:[%s3781 + $0x234] sm:$0xf]
  %v3924 = vld [vmem:[%s3781 + $0x238] sm:$0xf]
  %v3925 = vld [vmem:[%s3781 + $0x23c] sm:$0xf]
  %v3926 = vld [vmem:[%s3781 + $0x240] sm:$0xf]
  %v3927 = vld [vmem:[%s3781 + $0x244] sm:$0xf]
  %v3928 = vld [vmem:[%s3781 + $0x248] sm:$0xf]
  %v3929 = vld [vmem:[%s3781 + $0x24c] sm:$0xf]
  %v3930 = vld [vmem:[%s3781 + $0x250] sm:$0xf]
  %v3931 = vld [vmem:[%s3781 + $0x254] sm:$0xf]
  %v3932 = vld [vmem:[%s3781 + $0x258] sm:$0xf]
  %v3933 = vld [vmem:[%s3781 + $0x25c] sm:$0xf]
  %v3934 = vld [vmem:[%s3781 + $0x260] sm:$0xf]
  %v3935 = vld [vmem:[%s3781 + $0x264] sm:$0xf]
  %v3936 = vld [vmem:[%s3781 + $0x268] sm:$0xf]
  %v3937 = vld [vmem:[%s3781 + $0x26c] sm:$0xf]
  %v3938 = vld [vmem:[%s3781 + $0x270] sm:$0xf]
  %v3939 = vld [vmem:[%s3781 + $0x274] sm:$0xf]
  %v3940 = vld [vmem:[%s3781 + $0x278] sm:$0xf]
  %v3941 = vld [vmem:[%s3781 + $0x27c] sm:$0xf]
  %v3942 = vld [vmem:[%s3781 + $0x280] sm:$0xf]
  %v3943 = vld [vmem:[%s3781 + $0x284] sm:$0xf]
  %v3944 = vld [vmem:[%s3781 + $0x288] sm:$0xf]
  %v3945 = vld [vmem:[%s3781 + $0x28c] sm:$0xf]
  %v3946 = vld [vmem:[%s3781 + $0x290] sm:$0xf]
  %v3947 = vld [vmem:[%s3781 + $0x294] sm:$0xf]
  %v3948 = vld [vmem:[%s3781 + $0x298] sm:$0xf]
  %v3949 = vld [vmem:[%s3781 + $0x29c] sm:$0xf]
  %v3950 = vld [vmem:[%s3781 + $0x2a0] sm:$0xf]
  %v3951 = vld [vmem:[%s3781 + $0x2a4] sm:$0xf]
  %v3952 = vld [vmem:[%s3781 + $0x2a8] sm:$0xf]
  %v3953 = vld [vmem:[%s3781 + $0x2ac] sm:$0xf]
  %v3954 = vld [vmem:[%s3781 + $0x2b0] sm:$0xf]
  %v3955 = vld [vmem:[%s3781 + $0x2b4] sm:$0xf]
  %v3956 = vld [vmem:[%s3781 + $0x2b8] sm:$0xf]
  %v3957 = vld [vmem:[%s3781 + $0x2bc] sm:$0xf]
  %v3958 = vld [vmem:[%s3781 + $0x2c0] sm:$0xf]
  %v3959 = vld [vmem:[%s3781 + $0x2c4] sm:$0xf]
  %v3960 = vld [vmem:[%s3781 + $0x2c8] sm:$0xf]
  %v3961 = vld [vmem:[%s3781 + $0x2cc] sm:$0xf]
  %v3962 = vld [vmem:[%s3781 + $0x2d0] sm:$0xf]
  %v3963 = vld [vmem:[%s3781 + $0x2d4] sm:$0xf]
  %v3964 = vld [vmem:[%s3781 + $0x2d8] sm:$0xf]
  %v3965 = vld [vmem:[%s3781 + $0x2dc] sm:$0xf]
  %v3966 = vld [vmem:[%s3781 + $0x2e0] sm:$0xf]
  %v3967 = vld [vmem:[%s3781 + $0x2e4] sm:$0xf]
  %v3968 = vld [vmem:[%s3781 + $0x2e8] sm:$0xf]
  %v3969 = vld [vmem:[%s3781 + $0x2ec] sm:$0xf]
  %v3970 = vld [vmem:[%s3781 + $0x2f0] sm:$0xf]
  %v3971 = vld [vmem:[%s3781 + $0x2f4] sm:$0xf]
  %v3972 = vld [vmem:[%s3781 + $0x2f8] sm:$0xf]
  %v3973 = vld [vmem:[%s3781 + $0x2fc] sm:$0xf]
  %v3974 = vld [vmem:[%s3781 + $0x300] sm:$0xf]
  %v3975 = vld [vmem:[%s3781 + $0x304] sm:$0xf]
  %v3976 = vld [vmem:[%s3781 + $0x308] sm:$0xf]
  %v3977 = vld [vmem:[%s3781 + $0x30c] sm:$0xf]
  %v3978 = vld [vmem:[%s3781 + $0x310] sm:$0xf]
  %v3979 = vld [vmem:[%s3781 + $0x314] sm:$0xf]
  %v3980 = vld [vmem:[%s3781 + $0x318] sm:$0xf]
  %v3981 = vld [vmem:[%s3781 + $0x31c] sm:$0xf]
  %v3982 = vld [vmem:[%s3781 + $0x320] sm:$0xf]
  %v3983 = vld [vmem:[%s3781 + $0x324] sm:$0xf]
  %v3984 = vld [vmem:[%s3781 + $0x328] sm:$0xf]
  %v3985 = vld [vmem:[%s3781 + $0x32c] sm:$0xf]
  %v3986 = vld [vmem:[%s3781 + $0x330] sm:$0xf]
  %v3987 = vld [vmem:[%s3781 + $0x334] sm:$0xf]
  %v3988 = vld [vmem:[%s3781 + $0x338] sm:$0xf]
  %v3989 = vld [vmem:[%s3781 + $0x33c] sm:$0xf]
  %v3990 = vld [vmem:[%s3781 + $0x340] sm:$0xf]
  %v3991 = vld [vmem:[%s3781 + $0x344] sm:$0xf]
  %v3992 = vld [vmem:[%s3781 + $0x348] sm:$0xf]
  %v3993 = vld [vmem:[%s3781 + $0x34c] sm:$0xf]
  %v3994 = vld [vmem:[%s3781 + $0x350] sm:$0xf]
  %v3995 = vld [vmem:[%s3781 + $0x354] sm:$0xf]
  %v3996 = vld [vmem:[%s3781 + $0x358] sm:$0xf]
  %v3997 = vld [vmem:[%s3781 + $0x35c] sm:$0xf]
  %v3998 = vld [vmem:[%s3781 + $0x360] sm:$0xf]
  %v3999 = vld [vmem:[%s3781 + $0x364] sm:$0xf]
  %v4000 = vld [vmem:[%s3781 + $0x368] sm:$0xf]
  %v4001 = vld [vmem:[%s3781 + $0x36c] sm:$0xf]
  %v4002 = vld [vmem:[%s3781 + $0x370] sm:$0xf]
  %v4003 = vld [vmem:[%s3781 + $0x374] sm:$0xf]
  %v4004 = vld [vmem:[%s3781 + $0x378] sm:$0xf]
  %v4005 = vld [vmem:[%s3781 + $0x37c] sm:$0xf]
  %v4006 = vld [vmem:[%s3781 + $0x380] sm:$0xf]
  %v4007 = vld [vmem:[%s3781 + $0x384] sm:$0xf]
  %v4008 = vld [vmem:[%s3781 + $0x388] sm:$0xf]
  %v4009 = vld [vmem:[%s3781 + $0x38c] sm:$0xf]
  %v4010 = vld [vmem:[%s3781 + $0x390] sm:$0xf]
  %v4011 = vld [vmem:[%s3781 + $0x394] sm:$0xf]
  %v4012 = vld [vmem:[%s3781 + $0x398] sm:$0xf]
  %v4013 = vld [vmem:[%s3781 + $0x39c] sm:$0xf]
  %v4014 = vld [vmem:[%s3781 + $0x3a0] sm:$0xf]
  %v4015 = vld [vmem:[%s3781 + $0x3a4] sm:$0xf]
  %v4016 = vld [vmem:[%s3781 + $0x3a8] sm:$0xf]
  %v4017 = vld [vmem:[%s3781 + $0x3ac] sm:$0xf]
  %v4018 = vld [vmem:[%s3781 + $0x3b0] sm:$0xf]
  %v4019 = vld [vmem:[%s3781 + $0x3b4] sm:$0xf]
  %v4020 = vld [vmem:[%s3781 + $0x3b8] sm:$0xf]
  %v4021 = vld [vmem:[%s3781 + $0x3bc] sm:$0xf]
  %v4022 = vld [vmem:[%s3781 + $0x3c0] sm:$0xf]
  %v4023 = vld [vmem:[%s3781 + $0x3c4] sm:$0xf]
  %v4024 = vld [vmem:[%s3781 + $0x3c8] sm:$0xf]
  %v4025 = vld [vmem:[%s3781 + $0x3cc] sm:$0xf]
  %v4026 = vld [vmem:[%s3781 + $0x3d0] sm:$0xf]
  %v4027 = vld [vmem:[%s3781 + $0x3d4] sm:$0xf]
  %v4028 = vld [vmem:[%s3781 + $0x3d8] sm:$0xf]
  %v4029 = vld [vmem:[%s3781 + $0x3dc] sm:$0xf]
  %v4030 = vld [vmem:[%s3781 + $0x3e0] sm:$0xf]
  %v4031 = vld [vmem:[%s3781 + $0x3e4] sm:$0xf]
  %v4032 = vld [vmem:[%s3781 + $0x3e8] sm:$0xf]
  %v4033 = vld [vmem:[%s3781 + $0x3ec] sm:$0xf]
  %v4034 = vld [vmem:[%s3781 + $0x3f0] sm:$0xf]
  %v4035 = vld [vmem:[%s3781 + $0x3f4] sm:$0xf]
  %v4036 = vld [vmem:[%s3781 + $0x3f8] sm:$0xf]
  %v4037 = vld [vmem:[%s3781 + $0x3fc] sm:$0xf]
  %s4038 = scalar_lea.vmem %s13, 1
  %v4039 = vld [vmem:[%s4038] sm:$0x1]
  %s4040 = scalar_lea.vmem %s14, 1
  %v4041 = vld [vmem:[%s4040] sm:$0x1]
  %s4042 = scalar_lea.vmem %s15, 1
  %v4043 = vld [vmem:[%s4042] sm:$0x1]
  %v4044 = vpack.c.bf16 %v3686, %v3685
  %v4046 = vlaneseq
  %v4047 = vshrl.u32 %v4046, 7
  %v4048 = vsub.s32 0, %v4047
  %v4049 = vrot.slane %v3697, %v4048
  %v4050 = vlaneseq
  %v4051 = vshrl.u32 %v4050, 7
  %v4052 = vsub.s32 1, %v4051
  %v4053 = vrot.slane %v3697, %v4052
  %v4064 = vunpack.c.l.b16 %v3688
  %v4065 = vunpack.c.h.b16 %v3688
  %v4066 = vunpack.c.l.b16 %v3689
  %v4067 = vunpack.c.h.b16 %v3689
  %v4068 = vunpack.c.l.b16 %v3690
  %v4069 = vunpack.c.h.b16 %v3690
  %v4070 = vunpack.c.l.b16 %v3691
  %v4071 = vunpack.c.h.b16 %v3691
  %v4072 = vunpack.c.l.b16 %v3692
  %v4073 = vunpack.c.h.b16 %v3692
  %v4074 = vunpack.c.l.b16 %v3693
  %v4075 = vunpack.c.h.b16 %v3693
  %v4076 = vunpack.c.l.b16 %v3694
  %v4077 = vunpack.c.h.b16 %v3694
  %v4078 = vunpack.c.l.b16 %v3695
  %v4079 = vunpack.c.h.b16 %v3695
  %v4080 = vpack.c.b16 %v4066, %v4064
  %v4081 = vpack.c.b16 %v4067, %v4065
  %v4082 = vpack.c.b16 %v4070, %v4068
  %v4083 = vpack.c.b16 %v4071, %v4069
  %v4084 = vpack.c.b16 %v4074, %v4072
  %v4085 = vpack.c.b16 %v4075, %v4073
  %v4086 = vpack.c.b16 %v4078, %v4076
  %v4087 = vpack.c.b16 %v4079, %v4077
  %v4097 = vsel %vm545, %v4044, 0
  %4099 = vmatprep.subr.bf16.mxu0 0
  %4100 = vmatpush1.bf16.msra.mxu0 0
  %4101 = vmatprep.subr.bf16.mxu0 0
  %4102 = vmatpush1.bf16.msra.mxu0 0
  %4103 = vmatprep.subr.bf16.mxu0 0
  %4104 = vmatpush1.bf16.msra.mxu0 0
  %4105 = vmatprep.subr.bf16.mxu0 0
  %4106 = vmatpush1.bf16.msra.mxu0 0
  %4107 = vmatprep.subr.bf16.mxu0 %v4087
  %4108 = vmatpush1.bf16.msra.mxu0 %v4086
  %4109 = vmatprep.subr.bf16.mxu0 %v4085
  %4110 = vmatpush1.bf16.msra.mxu0 %v4084
  %4111 = vmatprep.subr.bf16.mxu0 %v4083
  %4112 = vmatpush1.bf16.msra.mxu0 %v4082
  %4113 = vmatprep.subr.bf16.mxu0 %v4081
  %4114 = vmatpush1.bf16.msra.mxu0 %v4080
  %4115 = vmatprep.subr.bf16.mxu0 0
  %4116 = vmatpush2.bf16.msra.mxu0 0
  %4117 = vmatprep.subr.bf16.mxu0 0
  %4118 = vmatpush2.bf16.msra.mxu0 0
  %4119 = vmatprep.subr.bf16.mxu0 0
  %4120 = vmatpush2.bf16.msra.mxu0 0
  %4121 = vmatprep.subr.bf16.mxu0 0
  %4122 = vmatpush2.bf16.msra.mxu0 0
  %4123 = vmatprep.subr.bf16.mxu0 0
  %4124 = vmatpush2.bf16.msra.mxu0 0
  %4125 = vmatprep.subr.bf16.mxu0 0
  %4126 = vmatpush2.bf16.msra.mxu0 0
  %4127 = vmatprep.subr.bf16.mxu0 0
  %4128 = vmatpush2.bf16.msra.mxu0 0
  %4129 = vmatprep.subr.bf16.mxu0 0
  %4130 = vmatpush2.bf16.msra.mxu0 0
  %4131 = vmatprep.mubr.bf16.mxu0 0
  %4132 = vmatmul.mubr.bf16.gmra.mxu0 %v4097
  %v4133 = vpop.f32.mrf.mxu0
  %v4134 = vadd.f32 %v4049, %v4133
  %v4135 = vpop.f32.mrf.mxu0
  %v4136 = vadd.f32 %v4053, %v4135
  %v4137 = vpop.f32.mrf.mxu0
  %v4138 = vadd.f32 %v4049, %v4137
  %v4139 = vpop.f32.mrf.mxu0
  %v4140 = vadd.f32 %v4053, %v4139
  %4141 = vdwg.mxu0
  %v4142 = vpack.c.bf16 %v4134, %v4134
  %v4143 = vpack.c.bf16 %v4138, %v4138
  %v4144 = vpack.c.bf16 %v4136, %v4136
  %v4145 = vpack.c.bf16 %v4140, %v4140
  %4147 = vrot.lane.b32.xlu0 %v4142, 64
  %v4148 = vpop.permute.xlu0 %4147
  %v4150 = vsel %vm103, %v4142, 0
  %v4153 = vsel %vm103, %v4148, 0
  %4155 = vmatprep.subr.bf16.mxu0 0
  %4156 = vmatpush1.bf16.xpose.msra.mxu0 0
  %4157 = vmatprep.subr.bf16.mxu0 0
  %4158 = vmatpush1.bf16.xpose.msra.mxu0 0
  %4159 = vmatprep.subr.bf16.mxu0 0
  %4160 = vmatpush1.bf16.xpose.msra.mxu0 0
  %4161 = vmatprep.subr.bf16.mxu0 0
  %4162 = vmatpush1.bf16.xpose.msra.mxu0 0
  %4163 = vmatprep.subr.bf16.mxu0 0
  %4164 = vmatpush1.bf16.xpose.msra.mxu0 0
  %4165 = vmatprep.subr.bf16.mxu0 0
  %4166 = vmatpush1.bf16.xpose.msra.mxu0 0
  %4167 = vmatprep.subr.bf16.mxu0 0
  %4168 = vmatpush1.bf16.xpose.msra.mxu0 0
  %4169 = vmatprep.subr.bf16.mxu0 0
  %4170 = vmatpush1.bf16.xpose.msra.mxu0 %v4153
  %4171 = vmatprep.subr.bf16.mxu0 0
  %4172 = vmatpush2.bf16.xpose.msra.mxu0 0
  %4173 = vmatprep.subr.bf16.mxu0 0
  %4174 = vmatpush2.bf16.xpose.msra.mxu0 0
  %4175 = vmatprep.subr.bf16.mxu0 0
  %4176 = vmatpush2.bf16.xpose.msra.mxu0 0
  %4177 = vmatprep.subr.bf16.mxu0 0
  %4178 = vmatpush2.bf16.xpose.msra.mxu0 0
  %4179 = vmatprep.subr.bf16.mxu0 0
  %4180 = vmatpush2.bf16.xpose.msra.mxu0 0
  %4181 = vmatprep.subr.bf16.mxu0 0
  %4182 = vmatpush2.bf16.xpose.msra.mxu0 0
  %4183 = vmatprep.subr.bf16.mxu0 0
  %4184 = vmatpush2.bf16.xpose.msra.mxu0 0
  %4185 = vmatprep.subr.bf16.mxu0 0
  %4186 = vmatpush2.bf16.xpose.msra.mxu0 0
  %4187 = vmatprep.mubr.bf16.mxu0 0
  %4188 = vmatmul.mubr.bf16.gmra.mxu0 %v4150
  %v4189 = vpop.f32.mrf.mxu0
  %v4190 = vadd.f32 0.0, %v4189
  %v4191 = vpop.f32.mrf.mxu0
  %v4192 = vpop.f32.mrf.mxu0
  %v4193 = vpop.f32.mrf.mxu0
  %4194 = vdwg.mxu0
  %4196 = vrot.lane.b32.xlu0 %v4143, 64
  %v4197 = vpop.permute.xlu0 %4196
  %v4199 = vsel %vm103, %v4143, 0
  %v4202 = vsel %vm103, %v4197, 0
  %4204 = vmatprep.subr.bf16.mxu0 0
  %4205 = vmatpush1.bf16.xpose.msra.mxu0 0
  %4206 = vmatprep.subr.bf16.mxu0 0
  %4207 = vmatpush1.bf16.xpose.msra.mxu0 0
  %4208 = vmatprep.subr.bf16.mxu0 0
  %4209 = vmatpush1.bf16.xpose.msra.mxu0 0
  %4210 = vmatprep.subr.bf16.mxu0 0
  %4211 = vmatpush1.bf16.xpose.msra.mxu0 0
  %4212 = vmatprep.subr.bf16.mxu0 0
  %4213 = vmatpush1.bf16.xpose.msra.mxu0 0
  %4214 = vmatprep.subr.bf16.mxu0 0
  %4215 = vmatpush1.bf16.xpose.msra.mxu0 0
  %4216 = vmatprep.subr.bf16.mxu0 0
  %4217 = vmatpush1.bf16.xpose.msra.mxu0 0
  %4218 = vmatprep.subr.bf16.mxu0 0
  %4219 = vmatpush1.bf16.xpose.msra.mxu0 %v4202
  %4220 = vmatprep.subr.bf16.mxu0 0
  %4221 = vmatpush2.bf16.xpose.msra.mxu0 0
  %4222 = vmatprep.subr.bf16.mxu0 0
  %4223 = vmatpush2.bf16.xpose.msra.mxu0 0
  %4224 = vmatprep.subr.bf16.mxu0 0
  %4225 = vmatpush2.bf16.xpose.msra.mxu0 0
  %4226 = vmatprep.subr.bf16.mxu0 0
  %4227 = vmatpush2.bf16.xpose.msra.mxu0 0
  %4228 = vmatprep.subr.bf16.mxu0 0
  %4229 = vmatpush2.bf16.xpose.msra.mxu0 0
  %4230 = vmatprep.subr.bf16.mxu0 0
  %4231 = vmatpush2.bf16.xpose.msra.mxu0 0
  %4232 = vmatprep.subr.bf16.mxu0 0
  %4233 = vmatpush2.bf16.xpose.msra.mxu0 0
  %4234 = vmatprep.subr.bf16.mxu0 0
  %4235 = vmatpush2.bf16.xpose.msra.mxu0 0
  %4236 = vmatprep.mubr.bf16.mxu0 0
  %4237 = vmatmul.mubr.bf16.gmra.mxu0 %v4199
  %v4238 = vpop.f32.mrf.mxu0
  %v4239 = vadd.f32 0.0, %v4238
  %v4240 = vpop.f32.mrf.mxu0
  %v4241 = vpop.f32.mrf.mxu0
  %v4242 = vpop.f32.mrf.mxu0
  %4243 = vdwg.mxu0
  %v4244 = vmul.f32 %v4190, 0.25
  %v4245 = vmul.f32 %v4239, 0.25
  %v4246 = vsel %vm696, %v4244, -inf
  %4247 = vmax.xlane.f32.xlu0 %v4246
  %v4248 = vpop.xlane.xlu0 %4247
  %v4249 = vsel %vm696, %v4245, -inf
  %4250 = vmax.xlane.f32.xlu0 %v4249
  %v4251 = vpop.xlane.xlu0 %4250
  %v4252 = vsub.f32 %v4244, %v4248
  %v4253 = vsub.f32 %v4245, %v4251
  %v4254 = vmul.f32 %v4252, 1.442695
  %v4255 = vpow.pop %v4254
  %v4256 = vmul.f32 %v4253, 1.442695
  %v4257 = vpow.pop %v4256
  %v4258 = vsel %vm696, %v4255, 0.0
  %4259 = vadd.xlane.f32.xlu0 %v4258
  %v4260 = vpop.xlane.xlu0 %4259
  %v4261 = vsel %vm696, %v4257, 0.0
  %4262 = vadd.xlane.f32.xlu0 %v4261
  %v4263 = vpop.xlane.xlu0 %4262
  %v4264 = vrcp.pop %v4260
  %v4265 = vmul.f32 %v4255, %v4264
  %v4266 = vrcp.pop %v4263
  %v4267 = vmul.f32 %v4257, %v4266
  %v4268 = vpack.c.bf16 %v4265, %v4265
  %v4269 = vpack.c.bf16 %v4267, %v4267
  %v4271 = vsel %vm696, %v4268, 0
  %v4274 = vsel %vm724, %v4144, 0
  %4276 = vmatprep.subr.bf16.mxu0 0
  %4277 = vmatpush1.bf16.msra.mxu0 0
  %4278 = vmatprep.subr.bf16.mxu0 0
  %4279 = vmatpush1.bf16.msra.mxu0 0
  %4280 = vmatprep.subr.bf16.mxu0 0
  %4281 = vmatpush1.bf16.msra.mxu0 0
  %4282 = vmatprep.subr.bf16.mxu0 0
  %4283 = vmatpush1.bf16.msra.mxu0 0
  %4284 = vmatprep.subr.bf16.mxu0 0
  %4285 = vmatpush1.bf16.msra.mxu0 0
  %4286 = vmatprep.subr.bf16.mxu0 0
  %4287 = vmatpush1.bf16.msra.mxu0 0
  %4288 = vmatprep.subr.bf16.mxu0 0
  %4289 = vmatpush1.bf16.msra.mxu0 0
  %4290 = vmatprep.subr.bf16.mxu0 0
  %4291 = vmatpush1.bf16.msra.mxu0 %v4274
  %4292 = vmatprep.subr.bf16.mxu0 0
  %4293 = vmatpush2.bf16.msra.mxu0 0
  %4294 = vmatprep.subr.bf16.mxu0 0
  %4295 = vmatpush2.bf16.msra.mxu0 0
  %4296 = vmatprep.subr.bf16.mxu0 0
  %4297 = vmatpush2.bf16.msra.mxu0 0
  %4298 = vmatprep.subr.bf16.mxu0 0
  %4299 = vmatpush2.bf16.msra.mxu0 0
  %4300 = vmatprep.subr.bf16.mxu0 0
  %4301 = vmatpush2.bf16.msra.mxu0 0
  %4302 = vmatprep.subr.bf16.mxu0 0
  %4303 = vmatpush2.bf16.msra.mxu0 0
  %4304 = vmatprep.subr.bf16.mxu0 0
  %4305 = vmatpush2.bf16.msra.mxu0 0
  %4306 = vmatprep.subr.bf16.mxu0 0
  %4307 = vmatpush2.bf16.msra.mxu0 0
  %4308 = vmatprep.mubr.bf16.mxu0 0
  %4309 = vmatmul.mubr.bf16.gmra.mxu0 %v4271
  %v4310 = vpop.f32.mrf.mxu0
  %v4311 = vadd.f32 0.0, %v4310
  %v4312 = vpop.f32.mrf.mxu0
  %v4313 = vpop.f32.mrf.mxu0
  %v4314 = vpop.f32.mrf.mxu0
  %4315 = vdwg.mxu0
  %v4317 = vsel %vm696, %v4269, 0
  %v4320 = vsel %vm724, %v4145, 0
  %4322 = vmatprep.subr.bf16.mxu0 0
  %4323 = vmatpush1.bf16.msra.mxu0 0
  %4324 = vmatprep.subr.bf16.mxu0 0
  %4325 = vmatpush1.bf16.msra.mxu0 0
  %4326 = vmatprep.subr.bf16.mxu0 0
  %4327 = vmatpush1.bf16.msra.mxu0 0
  %4328 = vmatprep.subr.bf16.mxu0 0
  %4329 = vmatpush1.bf16.msra.mxu0 0
  %4330 = vmatprep.subr.bf16.mxu0 0
  %4331 = vmatpush1.bf16.msra.mxu0 0
  %4332 = vmatprep.subr.bf16.mxu0 0
  %4333 = vmatpush1.bf16.msra.mxu0 0
  %4334 = vmatprep.subr.bf16.mxu0 0
  %4335 = vmatpush1.bf16.msra.mxu0 0
  %4336 = vmatprep.subr.bf16.mxu0 0
  %4337 = vmatpush1.bf16.msra.mxu0 %v4320
  %4338 = vmatprep.subr.bf16.mxu0 0
  %4339 = vmatpush2.bf16.msra.mxu0 0
  %4340 = vmatprep.subr.bf16.mxu0 0
  %4341 = vmatpush2.bf16.msra.mxu0 0
  %4342 = vmatprep.subr.bf16.mxu0 0
  %4343 = vmatpush2.bf16.msra.mxu0 0
  %4344 = vmatprep.subr.bf16.mxu0 0
  %4345 = vmatpush2.bf16.msra.mxu0 0
  %4346 = vmatprep.subr.bf16.mxu0 0
  %4347 = vmatpush2.bf16.msra.mxu0 0
  %4348 = vmatprep.subr.bf16.mxu0 0
  %4349 = vmatpush2.bf16.msra.mxu0 0
  %4350 = vmatprep.subr.bf16.mxu0 0
  %4351 = vmatpush2.bf16.msra.mxu0 0
  %4352 = vmatprep.subr.bf16.mxu0 0
  %4353 = vmatpush2.bf16.msra.mxu0 0
  %4354 = vmatprep.mubr.bf16.mxu0 0
  %4355 = vmatmul.mubr.bf16.gmra.mxu0 %v4317
  %v4356 = vpop.f32.mrf.mxu0
  %v4357 = vadd.f32 0.0, %v4356
  %v4358 = vpop.f32.mrf.mxu0
  %v4359 = vpop.f32.mrf.mxu0
  %v4360 = vpop.f32.mrf.mxu0
  %4361 = vdwg.mxu0
  %v4362 = vpack.c.bf16 %v4357, %v4311
  %4363 = vrot.lane.b32.xlu0 %v4142, 112
  %v4364 = vpop.permute.xlu0 %4363
  %4365 = vrot.lane.b32.xlu0 %v4142, 48
  %v4366 = vpop.permute.xlu0 %4365
  %v4368 = vsel %vm103, %v4364, 0
  %v4371 = vsel %vm103, %v4366, 0
  %4373 = vmatprep.subr.bf16.mxu0 0
  %4374 = vmatpush1.bf16.xpose.msra.mxu0 0
  %4375 = vmatprep.subr.bf16.mxu0 0
  %4376 = vmatpush1.bf16.xpose.msra.mxu0 0
  %4377 = vmatprep.subr.bf16.mxu0 0
  %4378 = vmatpush1.bf16.xpose.msra.mxu0 0
  %4379 = vmatprep.subr.bf16.mxu0 0
  %4380 = vmatpush1.bf16.xpose.msra.mxu0 0
  %4381 = vmatprep.subr.bf16.mxu0 0
  %4382 = vmatpush1.bf16.xpose.msra.mxu0 0
  %4383 = vmatprep.subr.bf16.mxu0 0
  %4384 = vmatpush1.bf16.xpose.msra.mxu0 0
  %4385 = vmatprep.subr.bf16.mxu0 0
  %4386 = vmatpush1.bf16.xpose.msra.mxu0 0
  %4387 = vmatprep.subr.bf16.mxu0 0
  %4388 = vmatpush1.bf16.xpose.msra.mxu0 %v4371
  %4389 = vmatprep.subr.bf16.mxu0 0
  %4390 = vmatpush2.bf16.xpose.msra.mxu0 0
  %4391 = vmatprep.subr.bf16.mxu0 0
  %4392 = vmatpush2.bf16.xpose.msra.mxu0 0
  %4393 = vmatprep.subr.bf16.mxu0 0
  %4394 = vmatpush2.bf16.xpose.msra.mxu0 0
  %4395 = vmatprep.subr.bf16.mxu0 0
  %4396 = vmatpush2.bf16.xpose.msra.mxu0 0
  %4397 = vmatprep.subr.bf16.mxu0 0
  %4398 = vmatpush2.bf16.xpose.msra.mxu0 0
  %4399 = vmatprep.subr.bf16.mxu0 0
  %4400 = vmatpush2.bf16.xpose.msra.mxu0 0
  %4401 = vmatprep.subr.bf16.mxu0 0
  %4402 = vmatpush2.bf16.xpose.msra.mxu0 0
  %4403 = vmatprep.subr.bf16.mxu0 0
  %4404 = vmatpush2.bf16.xpose.msra.mxu0 0
  %4405 = vmatprep.mubr.bf16.mxu0 0
  %4406 = vmatmul.mubr.bf16.gmra.mxu0 %v4368
  %v4407 = vpop.f32.mrf.mxu0
  %v4408 = vadd.f32 0.0, %v4407
  %v4409 = vpop.f32.mrf.mxu0
  %v4410 = vpop.f32.mrf.mxu0
  %v4411 = vpop.f32.mrf.mxu0
  %4412 = vdwg.mxu0
  %4413 = vrot.lane.b32.xlu0 %v4143, 112
  %v4414 = vpop.permute.xlu0 %4413
  %4415 = vrot.lane.b32.xlu0 %v4143, 48
  %v4416 = vpop.permute.xlu0 %4415
  %v4418 = vsel %vm103, %v4414, 0
  %v4421 = vsel %vm103, %v4416, 0
  %4423 = vmatprep.subr.bf16.mxu0 0
  %4424 = vmatpush1.bf16.xpose.msra.mxu0 0
  %4425 = vmatprep.subr.bf16.mxu0 0
  %4426 = vmatpush1.bf16.xpose.msra.mxu0 0
  %4427 = vmatprep.subr.bf16.mxu0 0
  %4428 = vmatpush1.bf16.xpose.msra.mxu0 0
  %4429 = vmatprep.subr.bf16.mxu0 0
  %4430 = vmatpush1.bf16.xpose.msra.mxu0 0
  %4431 = vmatprep.subr.bf16.mxu0 0
  %4432 = vmatpush1.bf16.xpose.msra.mxu0 0
  %4433 = vmatprep.subr.bf16.mxu0 0
  %4434 = vmatpush1.bf16.xpose.msra.mxu0 0
  %4435 = vmatprep.subr.bf16.mxu0 0
  %4436 = vmatpush1.bf16.xpose.msra.mxu0 0
  %4437 = vmatprep.subr.bf16.mxu0 0
  %4438 = vmatpush1.bf16.xpose.msra.mxu0 %v4421
  %4439 = vmatprep.subr.bf16.mxu0 0
  %4440 = vmatpush2.bf16.xpose.msra.mxu0 0
  %4441 = vmatprep.subr.bf16.mxu0 0
  %4442 = vmatpush2.bf16.xpose.msra.mxu0 0
  %4443 = vmatprep.subr.bf16.mxu0 0
  %4444 = vmatpush2.bf16.xpose.msra.mxu0 0
  %4445 = vmatprep.subr.bf16.mxu0 0
  %4446 = vmatpush2.bf16.xpose.msra.mxu0 0
  %4447 = vmatprep.subr.bf16.mxu0 0
  %4448 = vmatpush2.bf16.xpose.msra.mxu0 0
  %4449 = vmatprep.subr.bf16.mxu0 0
  %4450 = vmatpush2.bf16.xpose.msra.mxu0 0
  %4451 = vmatprep.subr.bf16.mxu0 0
  %4452 = vmatpush2.bf16.xpose.msra.mxu0 0
  %4453 = vmatprep.subr.bf16.mxu0 0
  %4454 = vmatpush2.bf16.xpose.msra.mxu0 0
  %4455 = vmatprep.mubr.bf16.mxu0 0
  %4456 = vmatmul.mubr.bf16.gmra.mxu0 %v4418
  %v4457 = vpop.f32.mrf.mxu0
  %v4458 = vadd.f32 0.0, %v4457
  %v4459 = vpop.f32.mrf.mxu0
  %v4460 = vpop.f32.mrf.mxu0
  %v4461 = vpop.f32.mrf.mxu0
  %4462 = vdwg.mxu0
  %v4463 = vmul.f32 %v4408, 0.25
  %v4464 = vmul.f32 %v4458, 0.25
  %v4465 = vsel %vm696, %v4463, -inf
  %4466 = vmax.xlane.f32.xlu0 %v4465
  %v4467 = vpop.xlane.xlu0 %4466
  %v4468 = vsel %vm696, %v4464, -inf
  %4469 = vmax.xlane.f32.xlu0 %v4468
  %v4470 = vpop.xlane.xlu0 %4469
  %v4471 = vsub.f32 %v4463, %v4467
  %v4472 = vsub.f32 %v4464, %v4470
  %v4473 = vmul.f32 %v4471, 1.442695
  %v4474 = vpow.pop %v4473
  %v4475 = vmul.f32 %v4472, 1.442695
  %v4476 = vpow.pop %v4475
  %v4477 = vsel %vm696, %v4474, 0.0
  %4478 = vadd.xlane.f32.xlu0 %v4477
  %v4479 = vpop.xlane.xlu0 %4478
  %v4480 = vsel %vm696, %v4476, 0.0
  %4481 = vadd.xlane.f32.xlu0 %v4480
  %v4482 = vpop.xlane.xlu0 %4481
  %v4483 = vrcp.pop %v4479
  %v4484 = vmul.f32 %v4474, %v4483
  %v4485 = vrcp.pop %v4482
  %v4486 = vmul.f32 %v4476, %v4485
  %v4487 = vpack.c.bf16 %v4484, %v4484
  %v4488 = vpack.c.bf16 %v4486, %v4486
  %4490 = vrot.lane.b32.xlu0 %v4144, 112
  %v4491 = vpop.permute.xlu0 %4490
  %v4493 = vsel %vm696, %v4487, 0
  %v4496 = vsel %vm724, %v4491, 0
  %4498 = vmatprep.subr.bf16.mxu0 0
  %4499 = vmatpush1.bf16.msra.mxu0 0
  %4500 = vmatprep.subr.bf16.mxu0 0
  %4501 = vmatpush1.bf16.msra.mxu0 0
  %4502 = vmatprep.subr.bf16.mxu0 0
  %4503 = vmatpush1.bf16.msra.mxu0 0
  %4504 = vmatprep.subr.bf16.mxu0 0
  %4505 = vmatpush1.bf16.msra.mxu0 0
  %4506 = vmatprep.subr.bf16.mxu0 0
  %4507 = vmatpush1.bf16.msra.mxu0 0
  %4508 = vmatprep.subr.bf16.mxu0 0
  %4509 = vmatpush1.bf16.msra.mxu0 0
  %4510 = vmatprep.subr.bf16.mxu0 0
  %4511 = vmatpush1.bf16.msra.mxu0 0
  %4512 = vmatprep.subr.bf16.mxu0 0
  %4513 = vmatpush1.bf16.msra.mxu0 %v4496
  %4514 = vmatprep.subr.bf16.mxu0 0
  %4515 = vmatpush2.bf16.msra.mxu0 0
  %4516 = vmatprep.subr.bf16.mxu0 0
  %4517 = vmatpush2.bf16.msra.mxu0 0
  %4518 = vmatprep.subr.bf16.mxu0 0
  %4519 = vmatpush2.bf16.msra.mxu0 0
  %4520 = vmatprep.subr.bf16.mxu0 0
  %4521 = vmatpush2.bf16.msra.mxu0 0
  %4522 = vmatprep.subr.bf16.mxu0 0
  %4523 = vmatpush2.bf16.msra.mxu0 0
  %4524 = vmatprep.subr.bf16.mxu0 0
  %4525 = vmatpush2.bf16.msra.mxu0 0
  %4526 = vmatprep.subr.bf16.mxu0 0
  %4527 = vmatpush2.bf16.msra.mxu0 0
  %4528 = vmatprep.subr.bf16.mxu0 0
  %4529 = vmatpush2.bf16.msra.mxu0 0
  %4530 = vmatprep.mubr.bf16.mxu0 0
  %4531 = vmatmul.mubr.bf16.gmra.mxu0 %v4493
  %v4532 = vpop.f32.mrf.mxu0
  %v4533 = vadd.f32 0.0, %v4532
  %v4534 = vpop.f32.mrf.mxu0
  %v4535 = vpop.f32.mrf.mxu0
  %v4536 = vpop.f32.mrf.mxu0
  %4537 = vdwg.mxu0
  %4539 = vrot.lane.b32.xlu0 %v4145, 112
  %v4540 = vpop.permute.xlu0 %4539
  %v4542 = vsel %vm696, %v4488, 0
  %v4545 = vsel %vm724, %v4540, 0
  %4547 = vmatprep.subr.bf16.mxu0 0
  %4548 = vmatpush1.bf16.msra.mxu0 0
  %4549 = vmatprep.subr.bf16.mxu0 0
  %4550 = vmatpush1.bf16.msra.mxu0 0
  %4551 = vmatprep.subr.bf16.mxu0 0
  %4552 = vmatpush1.bf16.msra.mxu0 0
  %4553 = vmatprep.subr.bf16.mxu0 0
  %4554 = vmatpush1.bf16.msra.mxu0 0
  %4555 = vmatprep.subr.bf16.mxu0 0
  %4556 = vmatpush1.bf16.msra.mxu0 0
  %4557 = vmatprep.subr.bf16.mxu0 0
  %4558 = vmatpush1.bf16.msra.mxu0 0
  %4559 = vmatprep.subr.bf16.mxu0 0
  %4560 = vmatpush1.bf16.msra.mxu0 0
  %4561 = vmatprep.subr.bf16.mxu0 0
  %4562 = vmatpush1.bf16.msra.mxu0 %v4545
  %4563 = vmatprep.subr.bf16.mxu0 0
  %4564 = vmatpush2.bf16.msra.mxu0 0
  %4565 = vmatprep.subr.bf16.mxu0 0
  %4566 = vmatpush2.bf16.msra.mxu0 0
  %4567 = vmatprep.subr.bf16.mxu0 0
  %4568 = vmatpush2.bf16.msra.mxu0 0
  %4569 = vmatprep.subr.bf16.mxu0 0
  %4570 = vmatpush2.bf16.msra.mxu0 0
  %4571 = vmatprep.subr.bf16.mxu0 0
  %4572 = vmatpush2.bf16.msra.mxu0 0
  %4573 = vmatprep.subr.bf16.mxu0 0
  %4574 = vmatpush2.bf16.msra.mxu0 0
  %4575 = vmatprep.subr.bf16.mxu0 0
  %4576 = vmatpush2.bf16.msra.mxu0 0
  %4577 = vmatprep.subr.bf16.mxu0 0
  %4578 = vmatpush2.bf16.msra.mxu0 0
  %4579 = vmatprep.mubr.bf16.mxu0 0
  %4580 = vmatmul.mubr.bf16.gmra.mxu0 %v4542
  %v4581 = vpop.f32.mrf.mxu0
  %v4582 = vadd.f32 0.0, %v4581
  %v4583 = vpop.f32.mrf.mxu0
  %v4584 = vpop.f32.mrf.mxu0
  %v4585 = vpop.f32.mrf.mxu0
  %4586 = vdwg.mxu0
  %v4587 = vpack.c.bf16 %v4582, %v4533
  %v4590 = vunpack.c.l.b16 %v3701
  %v4591 = vunpack.c.l.b16 %v3702
  %v4592 = vpack.c.b16 %v4591, %v4590
  %v4595 = vsel %vm103, %v4587, 0
  %4597 = vmatprep.subr.bf16.mxu0 0
  %4598 = vmatpush1.bf16.msra.mxu0 0
  %4599 = vmatprep.subr.bf16.mxu0 0
  %4600 = vmatpush1.bf16.msra.mxu0 0
  %4601 = vmatprep.subr.bf16.mxu0 0
  %4602 = vmatpush1.bf16.msra.mxu0 0
  %4603 = vmatprep.subr.bf16.mxu0 0
  %4604 = vmatpush1.bf16.msra.mxu0 0
  %4605 = vmatprep.subr.bf16.mxu0 0
  %4606 = vmatpush1.bf16.msra.mxu0 0
  %4607 = vmatprep.subr.bf16.mxu0 0
  %4608 = vmatpush1.bf16.msra.mxu0 0
  %4609 = vmatprep.subr.bf16.mxu0 0
  %4610 = vmatpush1.bf16.msra.mxu0 0
  %4611 = vmatprep.subr.bf16.mxu0 0
  %4612 = vmatpush1.bf16.msra.mxu0 %v4592
  %4613 = vmatprep.subr.bf16.mxu0 0
  %4614 = vmatpush2.bf16.msra.mxu0 0
  %4615 = vmatprep.subr.bf16.mxu0 0
  %4616 = vmatpush2.bf16.msra.mxu0 0
  %4617 = vmatprep.subr.bf16.mxu0 0
  %4618 = vmatpush2.bf16.msra.mxu0 0
  %4619 = vmatprep.subr.bf16.mxu0 0
  %4620 = vmatpush2.bf16.msra.mxu0 0
  %4621 = vmatprep.subr.bf16.mxu0 0
  %4622 = vmatpush2.bf16.msra.mxu0 0
  %4623 = vmatprep.subr.bf16.mxu0 0
  %4624 = vmatpush2.bf16.msra.mxu0 0
  %4625 = vmatprep.subr.bf16.mxu0 0
  %4626 = vmatpush2.bf16.msra.mxu0 0
  %4627 = vmatprep.subr.bf16.mxu0 0
  %4628 = vmatpush2.bf16.msra.mxu0 0
  %4629 = vmatprep.mubr.bf16.mxu0 0
  %4630 = vmatmul.mubr.bf16.gmra.mxu0 %v4595
  %v4631 = vpop.f32.mrf.mxu0
  %v4632 = vadd.f32 0.0, %v4631
  %v4633 = vpop.f32.mrf.mxu0
  %v4634 = vpop.f32.mrf.mxu0
  %v4635 = vadd.f32 0.0, %v4634
  %v4636 = vpop.f32.mrf.mxu0
  %4637 = vdwg.mxu0
  %v4640 = vunpack.c.l.b16 %v3699
  %v4641 = vunpack.c.l.b16 %v3700
  %v4642 = vpack.c.b16 %v4641, %v4640
  %v4645 = vsel %vm103, %v4362, 0
  %4647 = vmatprep.subr.bf16.mxu0 0
  %4648 = vmatpush1.bf16.msra.mxu0 0
  %4649 = vmatprep.subr.bf16.mxu0 0
  %4650 = vmatpush1.bf16.msra.mxu0 0
  %4651 = vmatprep.subr.bf16.mxu0 0
  %4652 = vmatpush1.bf16.msra.mxu0 0
  %4653 = vmatprep.subr.bf16.mxu0 0
  %4654 = vmatpush1.bf16.msra.mxu0 0
  %4655 = vmatprep.subr.bf16.mxu0 0
  %4656 = vmatpush1.bf16.msra.mxu0 0
  %4657 = vmatprep.subr.bf16.mxu0 0
  %4658 = vmatpush1.bf16.msra.mxu0 0
  %4659 = vmatprep.subr.bf16.mxu0 0
  %4660 = vmatpush1.bf16.msra.mxu0 0
  %4661 = vmatprep.subr.bf16.mxu0 0
  %4662 = vmatpush1.bf16.msra.mxu0 %v4642
  %4663 = vmatprep.subr.bf16.mxu0 0
  %4664 = vmatpush2.bf16.msra.mxu0 0
  %4665 = vmatprep.subr.bf16.mxu0 0
  %4666 = vmatpush2.bf16.msra.mxu0 0
  %4667 = vmatprep.subr.bf16.mxu0 0
  %4668 = vmatpush2.bf16.msra.mxu0 0
  %4669 = vmatprep.subr.bf16.mxu0 0
  %4670 = vmatpush2.bf16.msra.mxu0 0
  %4671 = vmatprep.subr.bf16.mxu0 0
  %4672 = vmatpush2.bf16.msra.mxu0 0
  %4673 = vmatprep.subr.bf16.mxu0 0
  %4674 = vmatpush2.bf16.msra.mxu0 0
  %4675 = vmatprep.subr.bf16.mxu0 0
  %4676 = vmatpush2.bf16.msra.mxu0 0
  %4677 = vmatprep.subr.bf16.mxu0 0
  %4678 = vmatpush2.bf16.msra.mxu0 0
  %4679 = vmatprep.mubr.bf16.mxu0 0
  %4680 = vmatmul.mubr.bf16.gmra.mxu0 %v4645
  %v4681 = vpop.f32.mrf.mxu0
  %v4682 = vadd.f32 %v4632, %v4681
  %v4683 = vpop.f32.mrf.mxu0
  %v4684 = vpop.f32.mrf.mxu0
  %v4685 = vadd.f32 %v4635, %v4684
  %v4686 = vpop.f32.mrf.mxu0
  %4687 = vdwg.mxu0
  %4688 = vrot.lane.b32.xlu0 %v4142, 96
  %v4689 = vpop.permute.xlu0 %4688
  %4690 = vrot.lane.b32.xlu0 %v4142, 32
  %v4691 = vpop.permute.xlu0 %4690
  %v4693 = vsel %vm103, %v4689, 0
  %v4696 = vsel %vm103, %v4691, 0
  %4698 = vmatprep.subr.bf16.mxu0 0
  %4699 = vmatpush1.bf16.xpose.msra.mxu0 0
  %4700 = vmatprep.subr.bf16.mxu0 0
  %4701 = vmatpush1.bf16.xpose.msra.mxu0 0
  %4702 = vmatprep.subr.bf16.mxu0 0
  %4703 = vmatpush1.bf16.xpose.msra.mxu0 0
  %4704 = vmatprep.subr.bf16.mxu0 0
  %4705 = vmatpush1.bf16.xpose.msra.mxu0 0
  %4706 = vmatprep.subr.bf16.mxu0 0
  %4707 = vmatpush1.bf16.xpose.msra.mxu0 0
  %4708 = vmatprep.subr.bf16.mxu0 0
  %4709 = vmatpush1.bf16.xpose.msra.mxu0 0
  %4710 = vmatprep.subr.bf16.mxu0 0
  %4711 = vmatpush1.bf16.xpose.msra.mxu0 0
  %4712 = vmatprep.subr.bf16.mxu0 0
  %4713 = vmatpush1.bf16.xpose.msra.mxu0 %v4696
  %4714 = vmatprep.subr.bf16.mxu0 0
  %4715 = vmatpush2.bf16.xpose.msra.mxu0 0
  %4716 = vmatprep.subr.bf16.mxu0 0
  %4717 = vmatpush2.bf16.xpose.msra.mxu0 0
  %4718 = vmatprep.subr.bf16.mxu0 0
  %4719 = vmatpush2.bf16.xpose.msra.mxu0 0
  %4720 = vmatprep.subr.bf16.mxu0 0
  %4721 = vmatpush2.bf16.xpose.msra.mxu0 0
  %4722 = vmatprep.subr.bf16.mxu0 0
  %4723 = vmatpush2.bf16.xpose.msra.mxu0 0
  %4724 = vmatprep.subr.bf16.mxu0 0
  %4725 = vmatpush2.bf16.xpose.msra.mxu0 0
  %4726 = vmatprep.subr.bf16.mxu0 0
  %4727 = vmatpush2.bf16.xpose.msra.mxu0 0
  %4728 = vmatprep.subr.bf16.mxu0 0
  %4729 = vmatpush2.bf16.xpose.msra.mxu0 0
  %4730 = vmatprep.mubr.bf16.mxu0 0
  %4731 = vmatmul.mubr.bf16.gmra.mxu0 %v4693
  %v4732 = vpop.f32.mrf.mxu0
  %v4733 = vadd.f32 0.0, %v4732
  %v4734 = vpop.f32.mrf.mxu0
  %v4735 = vpop.f32.mrf.mxu0
  %v4736 = vpop.f32.mrf.mxu0
  %4737 = vdwg.mxu0
  %4738 = vrot.lane.b32.xlu0 %v4143, 96
  %v4739 = vpop.permute.xlu0 %4738
  %4740 = vrot.lane.b32.xlu0 %v4143, 32
  %v4741 = vpop.permute.xlu0 %4740
  %v4743 = vsel %vm103, %v4739, 0
  %v4746 = vsel %vm103, %v4741, 0
  %4748 = vmatprep.subr.bf16.mxu0 0
  %4749 = vmatpush1.bf16.xpose.msra.mxu0 0
  %4750 = vmatprep.subr.bf16.mxu0 0
  %4751 = vmatpush1.bf16.xpose.msra.mxu0 0
  %4752 = vmatprep.subr.bf16.mxu0 0
  %4753 = vmatpush1.bf16.xpose.msra.mxu0 0
  %4754 = vmatprep.subr.bf16.mxu0 0
  %4755 = vmatpush1.bf16.xpose.msra.mxu0 0
  %4756 = vmatprep.subr.bf16.mxu0 0
  %4757 = vmatpush1.bf16.xpose.msra.mxu0 0
  %4758 = vmatprep.subr.bf16.mxu0 0
  %4759 = vmatpush1.bf16.xpose.msra.mxu0 0
  %4760 = vmatprep.subr.bf16.mxu0 0
  %4761 = vmatpush1.bf16.xpose.msra.mxu0 0
  %4762 = vmatprep.subr.bf16.mxu0 0
  %4763 = vmatpush1.bf16.xpose.msra.mxu0 %v4746
  %4764 = vmatprep.subr.bf16.mxu0 0
  %4765 = vmatpush2.bf16.xpose.msra.mxu0 0
  %4766 = vmatprep.subr.bf16.mxu0 0
  %4767 = vmatpush2.bf16.xpose.msra.mxu0 0
  %4768 = vmatprep.subr.bf16.mxu0 0
  %4769 = vmatpush2.bf16.xpose.msra.mxu0 0
  %4770 = vmatprep.subr.bf16.mxu0 0
  %4771 = vmatpush2.bf16.xpose.msra.mxu0 0
  %4772 = vmatprep.subr.bf16.mxu0 0
  %4773 = vmatpush2.bf16.xpose.msra.mxu0 0
  %4774 = vmatprep.subr.bf16.mxu0 0
  %4775 = vmatpush2.bf16.xpose.msra.mxu0 0
  %4776 = vmatprep.subr.bf16.mxu0 0
  %4777 = vmatpush2.bf16.xpose.msra.mxu0 0
  %4778 = vmatprep.subr.bf16.mxu0 0
  %4779 = vmatpush2.bf16.xpose.msra.mxu0 0
  %4780 = vmatprep.mubr.bf16.mxu0 0
  %4781 = vmatmul.mubr.bf16.gmra.mxu0 %v4743
  %v4782 = vpop.f32.mrf.mxu0
  %v4783 = vadd.f32 0.0, %v4782
  %v4784 = vpop.f32.mrf.mxu0
  %v4785 = vpop.f32.mrf.mxu0
  %v4786 = vpop.f32.mrf.mxu0
  %4787 = vdwg.mxu0
  %v4788 = vmul.f32 %v4733, 0.25
  %v4789 = vmul.f32 %v4783, 0.25
  %v4790 = vsel %vm696, %v4788, -inf
  %4791 = vmax.xlane.f32.xlu0 %v4790
  %v4792 = vpop.xlane.xlu0 %4791
  %v4793 = vsel %vm696, %v4789, -inf
  %4794 = vmax.xlane.f32.xlu0 %v4793
  %v4795 = vpop.xlane.xlu0 %4794
  %v4796 = vsub.f32 %v4788, %v4792
  %v4797 = vsub.f32 %v4789, %v4795
  %v4798 = vmul.f32 %v4796, 1.442695
  %v4799 = vpow.pop %v4798
  %v4800 = vmul.f32 %v4797, 1.442695
  %v4801 = vpow.pop %v4800
  %v4802 = vsel %vm696, %v4799, 0.0
  %4803 = vadd.xlane.f32.xlu0 %v4802
  %v4804 = vpop.xlane.xlu0 %4803
  %v4805 = vsel %vm696, %v4801, 0.0
  %4806 = vadd.xlane.f32.xlu0 %v4805
  %v4807 = vpop.xlane.xlu0 %4806
  %v4808 = vrcp.pop %v4804
  %v4809 = vmul.f32 %v4799, %v4808
  %v4810 = vrcp.pop %v4807
  %v4811 = vmul.f32 %v4801, %v4810
  %v4812 = vpack.c.bf16 %v4809, %v4809
  %v4813 = vpack.c.bf16 %v4811, %v4811
  %4814 = vrot.lane.b32.xlu0 %v4144, 96
  %v4815 = vpop.permute.xlu0 %4814
  %v4817 = vsel %vm696, %v4812, 0
  %v4820 = vsel %vm724, %v4815, 0
  %4822 = vmatprep.subr.bf16.mxu0 0
  %4823 = vmatpush1.bf16.msra.mxu0 0
  %4824 = vmatprep.subr.bf16.mxu0 0
  %4825 = vmatpush1.bf16.msra.mxu0 0
  %4826 = vmatprep.subr.bf16.mxu0 0
  %4827 = vmatpush1.bf16.msra.mxu0 0
  %4828 = vmatprep.subr.bf16.mxu0 0
  %4829 = vmatpush1.bf16.msra.mxu0 0
  %4830 = vmatprep.subr.bf16.mxu0 0
  %4831 = vmatpush1.bf16.msra.mxu0 0
  %4832 = vmatprep.subr.bf16.mxu0 0
  %4833 = vmatpush1.bf16.msra.mxu0 0
  %4834 = vmatprep.subr.bf16.mxu0 0
  %4835 = vmatpush1.bf16.msra.mxu0 0
  %4836 = vmatprep.subr.bf16.mxu0 0
  %4837 = vmatpush1.bf16.msra.mxu0 %v4820
  %4838 = vmatprep.subr.bf16.mxu0 0
  %4839 = vmatpush2.bf16.msra.mxu0 0
  %4840 = vmatprep.subr.bf16.mxu0 0
  %4841 = vmatpush2.bf16.msra.mxu0 0
  %4842 = vmatprep.subr.bf16.mxu0 0
  %4843 = vmatpush2.bf16.msra.mxu0 0
  %4844 = vmatprep.subr.bf16.mxu0 0
  %4845 = vmatpush2.bf16.msra.mxu0 0
  %4846 = vmatprep.subr.bf16.mxu0 0
  %4847 = vmatpush2.bf16.msra.mxu0 0
  %4848 = vmatprep.subr.bf16.mxu0 0
  %4849 = vmatpush2.bf16.msra.mxu0 0
  %4850 = vmatprep.subr.bf16.mxu0 0
  %4851 = vmatpush2.bf16.msra.mxu0 0
  %4852 = vmatprep.subr.bf16.mxu0 0
  %4853 = vmatpush2.bf16.msra.mxu0 0
  %4854 = vmatprep.mubr.bf16.mxu0 0
  %4855 = vmatmul.mubr.bf16.gmra.mxu0 %v4817
  %v4856 = vpop.f32.mrf.mxu0
  %v4857 = vadd.f32 0.0, %v4856
  %v4858 = vpop.f32.mrf.mxu0
  %v4859 = vpop.f32.mrf.mxu0
  %v4860 = vpop.f32.mrf.mxu0
  %4861 = vdwg.mxu0
  %4862 = vrot.lane.b32.xlu0 %v4145, 96
  %v4863 = vpop.permute.xlu0 %4862
  %v4865 = vsel %vm696, %v4813, 0
  %v4868 = vsel %vm724, %v4863, 0
  %4870 = vmatprep.subr.bf16.mxu0 0
  %4871 = vmatpush1.bf16.msra.mxu0 0
  %4872 = vmatprep.subr.bf16.mxu0 0
  %4873 = vmatpush1.bf16.msra.mxu0 0
  %4874 = vmatprep.subr.bf16.mxu0 0
  %4875 = vmatpush1.bf16.msra.mxu0 0
  %4876 = vmatprep.subr.bf16.mxu0 0
  %4877 = vmatpush1.bf16.msra.mxu0 0
  %4878 = vmatprep.subr.bf16.mxu0 0
  %4879 = vmatpush1.bf16.msra.mxu0 0
  %4880 = vmatprep.subr.bf16.mxu0 0
  %4881 = vmatpush1.bf16.msra.mxu0 0
  %4882 = vmatprep.subr.bf16.mxu0 0
  %4883 = vmatpush1.bf16.msra.mxu0 0
  %4884 = vmatprep.subr.bf16.mxu0 0
  %4885 = vmatpush1.bf16.msra.mxu0 %v4868
  %4886 = vmatprep.subr.bf16.mxu0 0
  %4887 = vmatpush2.bf16.msra.mxu0 0
  %4888 = vmatprep.subr.bf16.mxu0 0
  %4889 = vmatpush2.bf16.msra.mxu0 0
  %4890 = vmatprep.subr.bf16.mxu0 0
  %4891 = vmatpush2.bf16.msra.mxu0 0
  %4892 = vmatprep.subr.bf16.mxu0 0
  %4893 = vmatpush2.bf16.msra.mxu0 0
  %4894 = vmatprep.subr.bf16.mxu0 0
  %4895 = vmatpush2.bf16.msra.mxu0 0
  %4896 = vmatprep.subr.bf16.mxu0 0
  %4897 = vmatpush2.bf16.msra.mxu0 0
  %4898 = vmatprep.subr.bf16.mxu0 0
  %4899 = vmatpush2.bf16.msra.mxu0 0
  %4900 = vmatprep.subr.bf16.mxu0 0
  %4901 = vmatpush2.bf16.msra.mxu0 0
  %4902 = vmatprep.mubr.bf16.mxu0 0
  %4903 = vmatmul.mubr.bf16.gmra.mxu0 %v4865
  %v4904 = vpop.f32.mrf.mxu0
  %v4905 = vadd.f32 0.0, %v4904
  %v4906 = vpop.f32.mrf.mxu0
  %v4907 = vpop.f32.mrf.mxu0
  %v4908 = vpop.f32.mrf.mxu0
  %4909 = vdwg.mxu0
  %v4910 = vpack.c.bf16 %v4905, %v4857
  %v4913 = vunpack.c.l.b16 %v3703
  %v4914 = vunpack.c.l.b16 %v3704
  %v4915 = vpack.c.b16 %v4914, %v4913
  %v4918 = vsel %vm103, %v4910, 0
  %4920 = vmatprep.subr.bf16.mxu0 0
  %4921 = vmatpush1.bf16.msra.mxu0 0
  %4922 = vmatprep.subr.bf16.mxu0 0
  %4923 = vmatpush1.bf16.msra.mxu0 0
  %4924 = vmatprep.subr.bf16.mxu0 0
  %4925 = vmatpush1.bf16.msra.mxu0 0
  %4926 = vmatprep.subr.bf16.mxu0 0
  %4927 = vmatpush1.bf16.msra.mxu0 0
  %4928 = vmatprep.subr.bf16.mxu0 0
  %4929 = vmatpush1.bf16.msra.mxu0 0
  %4930 = vmatprep.subr.bf16.mxu0 0
  %4931 = vmatpush1.bf16.msra.mxu0 0
  %4932 = vmatprep.subr.bf16.mxu0 0
  %4933 = vmatpush1.bf16.msra.mxu0 0
  %4934 = vmatprep.subr.bf16.mxu0 0
  %4935 = vmatpush1.bf16.msra.mxu0 %v4915
  %4936 = vmatprep.subr.bf16.mxu0 0
  %4937 = vmatpush2.bf16.msra.mxu0 0
  %4938 = vmatprep.subr.bf16.mxu0 0
  %4939 = vmatpush2.bf16.msra.mxu0 0
  %4940 = vmatprep.subr.bf16.mxu0 0
  %4941 = vmatpush2.bf16.msra.mxu0 0
  %4942 = vmatprep.subr.bf16.mxu0 0
  %4943 = vmatpush2.bf16.msra.mxu0 0
  %4944 = vmatprep.subr.bf16.mxu0 0
  %4945 = vmatpush2.bf16.msra.mxu0 0
  %4946 = vmatprep.subr.bf16.mxu0 0
  %4947 = vmatpush2.bf16.msra.mxu0 0
  %4948 = vmatprep.subr.bf16.mxu0 0
  %4949 = vmatpush2.bf16.msra.mxu0 0
  %4950 = vmatprep.subr.bf16.mxu0 0
  %4951 = vmatpush2.bf16.msra.mxu0 0
  %4952 = vmatprep.mubr.bf16.mxu0 0
  %4953 = vmatmul.mubr.bf16.gmra.mxu0 %v4918
  %v4954 = vpop.f32.mrf.mxu0
  %v4955 = vadd.f32 0.0, %v4954
  %v4956 = vpop.f32.mrf.mxu0
  %v4957 = vpop.f32.mrf.mxu0
  %v4958 = vadd.f32 0.0, %v4957
  %v4959 = vpop.f32.mrf.mxu0
  %4960 = vdwg.mxu0
  %v4961 = vadd.f32 %v4682, %v4955
  %v4962 = vadd.f32 %v4685, %v4958
  %4963 = vrot.lane.b32.xlu0 %v4142, 80
  %v4964 = vpop.permute.xlu0 %4963
  %4965 = vrot.lane.b32.xlu0 %v4142, 16
  %v4966 = vpop.permute.xlu0 %4965
  %v4968 = vsel %vm103, %v4964, 0
  %v4971 = vsel %vm103, %v4966, 0
  %4973 = vmatprep.subr.bf16.mxu0 0
  %4974 = vmatpush1.bf16.xpose.msra.mxu0 0
  %4975 = vmatprep.subr.bf16.mxu0 0
  %4976 = vmatpush1.bf16.xpose.msra.mxu0 0
  %4977 = vmatprep.subr.bf16.mxu0 0
  %4978 = vmatpush1.bf16.xpose.msra.mxu0 0
  %4979 = vmatprep.subr.bf16.mxu0 0
  %4980 = vmatpush1.bf16.xpose.msra.mxu0 0
  %4981 = vmatprep.subr.bf16.mxu0 0
  %4982 = vmatpush1.bf16.xpose.msra.mxu0 0
  %4983 = vmatprep.subr.bf16.mxu0 0
  %4984 = vmatpush1.bf16.xpose.msra.mxu0 0
  %4985 = vmatprep.subr.bf16.mxu0 0
  %4986 = vmatpush1.bf16.xpose.msra.mxu0 0
  %4987 = vmatprep.subr.bf16.mxu0 0
  %4988 = vmatpush1.bf16.xpose.msra.mxu0 %v4971
  %4989 = vmatprep.subr.bf16.mxu0 0
  %4990 = vmatpush2.bf16.xpose.msra.mxu0 0
  %4991 = vmatprep.subr.bf16.mxu0 0
  %4992 = vmatpush2.bf16.xpose.msra.mxu0 0
  %4993 = vmatprep.subr.bf16.mxu0 0
  %4994 = vmatpush2.bf16.xpose.msra.mxu0 0
  %4995 = vmatprep.subr.bf16.mxu0 0
  %4996 = vmatpush2.bf16.xpose.msra.mxu0 0
  %4997 = vmatprep.subr.bf16.mxu0 0
  %4998 = vmatpush2.bf16.xpose.msra.mxu0 0
  %4999 = vmatprep.subr.bf16.mxu0 0
  %5000 = vmatpush2.bf16.xpose.msra.mxu0 0
  %5001 = vmatprep.subr.bf16.mxu0 0
  %5002 = vmatpush2.bf16.xpose.msra.mxu0 0
  %5003 = vmatprep.subr.bf16.mxu0 0
  %5004 = vmatpush2.bf16.xpose.msra.mxu0 0
  %5005 = vmatprep.mubr.bf16.mxu0 0
  %5006 = vmatmul.mubr.bf16.gmra.mxu0 %v4968
  %v5007 = vpop.f32.mrf.mxu0
  %v5008 = vadd.f32 0.0, %v5007
  %v5009 = vpop.f32.mrf.mxu0
  %v5010 = vpop.f32.mrf.mxu0
  %v5011 = vpop.f32.mrf.mxu0
  %5012 = vdwg.mxu0
  %5013 = vrot.lane.b32.xlu0 %v4143, 80
  %v5014 = vpop.permute.xlu0 %5013
  %5015 = vrot.lane.b32.xlu0 %v4143, 16
  %v5016 = vpop.permute.xlu0 %5015
  %v5018 = vsel %vm103, %v5014, 0
  %v5021 = vsel %vm103, %v5016, 0
  %5023 = vmatprep.subr.bf16.mxu0 0
  %5024 = vmatpush1.bf16.xpose.msra.mxu0 0
  %5025 = vmatprep.subr.bf16.mxu0 0
  %5026 = vmatpush1.bf16.xpose.msra.mxu0 0
  %5027 = vmatprep.subr.bf16.mxu0 0
  %5028 = vmatpush1.bf16.xpose.msra.mxu0 0
  %5029 = vmatprep.subr.bf16.mxu0 0
  %5030 = vmatpush1.bf16.xpose.msra.mxu0 0
  %5031 = vmatprep.subr.bf16.mxu0 0
  %5032 = vmatpush1.bf16.xpose.msra.mxu0 0
  %5033 = vmatprep.subr.bf16.mxu0 0
  %5034 = vmatpush1.bf16.xpose.msra.mxu0 0
  %5035 = vmatprep.subr.bf16.mxu0 0
  %5036 = vmatpush1.bf16.xpose.msra.mxu0 0
  %5037 = vmatprep.subr.bf16.mxu0 0
  %5038 = vmatpush1.bf16.xpose.msra.mxu0 %v5021
  %5039 = vmatprep.subr.bf16.mxu0 0
  %5040 = vmatpush2.bf16.xpose.msra.mxu0 0
  %5041 = vmatprep.subr.bf16.mxu0 0
  %5042 = vmatpush2.bf16.xpose.msra.mxu0 0
  %5043 = vmatprep.subr.bf16.mxu0 0
  %5044 = vmatpush2.bf16.xpose.msra.mxu0 0
  %5045 = vmatprep.subr.bf16.mxu0 0
  %5046 = vmatpush2.bf16.xpose.msra.mxu0 0
  %5047 = vmatprep.subr.bf16.mxu0 0
  %5048 = vmatpush2.bf16.xpose.msra.mxu0 0
  %5049 = vmatprep.subr.bf16.mxu0 0
  %5050 = vmatpush2.bf16.xpose.msra.mxu0 0
  %5051 = vmatprep.subr.bf16.mxu0 0
  %5052 = vmatpush2.bf16.xpose.msra.mxu0 0
  %5053 = vmatprep.subr.bf16.mxu0 0
  %5054 = vmatpush2.bf16.xpose.msra.mxu0 0
  %5055 = vmatprep.mubr.bf16.mxu0 0
  %5056 = vmatmul.mubr.bf16.gmra.mxu0 %v5018
  %v5057 = vpop.f32.mrf.mxu0
  %v5058 = vadd.f32 0.0, %v5057
  %v5059 = vpop.f32.mrf.mxu0
  %v5060 = vpop.f32.mrf.mxu0
  %v5061 = vpop.f32.mrf.mxu0
  %5062 = vdwg.mxu0
  %v5063 = vmul.f32 %v5008, 0.25
  %v5064 = vmul.f32 %v5058, 0.25
  %v5065 = vsel %vm696, %v5063, -inf
  %5066 = vmax.xlane.f32.xlu0 %v5065
  %v5067 = vpop.xlane.xlu0 %5066
  %v5068 = vsel %vm696, %v5064, -inf
  %5069 = vmax.xlane.f32.xlu0 %v5068
  %v5070 = vpop.xlane.xlu0 %5069
  %v5071 = vsub.f32 %v5063, %v5067
  %v5072 = vsub.f32 %v5064, %v5070
  %v5073 = vmul.f32 %v5071, 1.442695
  %v5074 = vpow.pop %v5073
  %v5075 = vmul.f32 %v5072, 1.442695
  %v5076 = vpow.pop %v5075
  %v5077 = vsel %vm696, %v5074, 0.0
  %5078 = vadd.xlane.f32.xlu0 %v5077
  %v5079 = vpop.xlane.xlu0 %5078
  %v5080 = vsel %vm696, %v5076, 0.0
  %5081 = vadd.xlane.f32.xlu0 %v5080
  %v5082 = vpop.xlane.xlu0 %5081
  %v5083 = vrcp.pop %v5079
  %v5084 = vmul.f32 %v5074, %v5083
  %v5085 = vrcp.pop %v5082
  %v5086 = vmul.f32 %v5076, %v5085
  %v5087 = vpack.c.bf16 %v5084, %v5084
  %v5088 = vpack.c.bf16 %v5086, %v5086
  %5089 = vrot.lane.b32.xlu0 %v4144, 80
  %v5090 = vpop.permute.xlu0 %5089
  %v5092 = vsel %vm696, %v5087, 0
  %v5095 = vsel %vm724, %v5090, 0
  %5097 = vmatprep.subr.bf16.mxu0 0
  %5098 = vmatpush1.bf16.msra.mxu0 0
  %5099 = vmatprep.subr.bf16.mxu0 0
  %5100 = vmatpush1.bf16.msra.mxu0 0
  %5101 = vmatprep.subr.bf16.mxu0 0
  %5102 = vmatpush1.bf16.msra.mxu0 0
  %5103 = vmatprep.subr.bf16.mxu0 0
  %5104 = vmatpush1.bf16.msra.mxu0 0
  %5105 = vmatprep.subr.bf16.mxu0 0
  %5106 = vmatpush1.bf16.msra.mxu0 0
  %5107 = vmatprep.subr.bf16.mxu0 0
  %5108 = vmatpush1.bf16.msra.mxu0 0
  %5109 = vmatprep.subr.bf16.mxu0 0
  %5110 = vmatpush1.bf16.msra.mxu0 0
  %5111 = vmatprep.subr.bf16.mxu0 0
  %5112 = vmatpush1.bf16.msra.mxu0 %v5095
  %5113 = vmatprep.subr.bf16.mxu0 0
  %5114 = vmatpush2.bf16.msra.mxu0 0
  %5115 = vmatprep.subr.bf16.mxu0 0
  %5116 = vmatpush2.bf16.msra.mxu0 0
  %5117 = vmatprep.subr.bf16.mxu0 0
  %5118 = vmatpush2.bf16.msra.mxu0 0
  %5119 = vmatprep.subr.bf16.mxu0 0
  %5120 = vmatpush2.bf16.msra.mxu0 0
  %5121 = vmatprep.subr.bf16.mxu0 0
  %5122 = vmatpush2.bf16.msra.mxu0 0
  %5123 = vmatprep.subr.bf16.mxu0 0
  %5124 = vmatpush2.bf16.msra.mxu0 0
  %5125 = vmatprep.subr.bf16.mxu0 0
  %5126 = vmatpush2.bf16.msra.mxu0 0
  %5127 = vmatprep.subr.bf16.mxu0 0
  %5128 = vmatpush2.bf16.msra.mxu0 0
  %5129 = vmatprep.mubr.bf16.mxu0 0
  %5130 = vmatmul.mubr.bf16.gmra.mxu0 %v5092
  %v5131 = vpop.f32.mrf.mxu0
  %v5132 = vadd.f32 0.0, %v5131
  %v5133 = vpop.f32.mrf.mxu0
  %v5134 = vpop.f32.mrf.mxu0
  %v5135 = vpop.f32.mrf.mxu0
  %5136 = vdwg.mxu0
  %5137 = vrot.lane.b32.xlu0 %v4145, 80
  %v5138 = vpop.permute.xlu0 %5137
  %v5140 = vsel %vm696, %v5088, 0
  %v5143 = vsel %vm724, %v5138, 0
  %5145 = vmatprep.subr.bf16.mxu0 0
  %5146 = vmatpush1.bf16.msra.mxu0 0
  %5147 = vmatprep.subr.bf16.mxu0 0
  %5148 = vmatpush1.bf16.msra.mxu0 0
  %5149 = vmatprep.subr.bf16.mxu0 0
  %5150 = vmatpush1.bf16.msra.mxu0 0
  %5151 = vmatprep.subr.bf16.mxu0 0
  %5152 = vmatpush1.bf16.msra.mxu0 0
  %5153 = vmatprep.subr.bf16.mxu0 0
  %5154 = vmatpush1.bf16.msra.mxu0 0
  %5155 = vmatprep.subr.bf16.mxu0 0
  %5156 = vmatpush1.bf16.msra.mxu0 0
  %5157 = vmatprep.subr.bf16.mxu0 0
  %5158 = vmatpush1.bf16.msra.mxu0 0
  %5159 = vmatprep.subr.bf16.mxu0 0
  %5160 = vmatpush1.bf16.msra.mxu0 %v5143
  %5161 = vmatprep.subr.bf16.mxu0 0
  %5162 = vmatpush2.bf16.msra.mxu0 0
  %5163 = vmatprep.subr.bf16.mxu0 0
  %5164 = vmatpush2.bf16.msra.mxu0 0
  %5165 = vmatprep.subr.bf16.mxu0 0
  %5166 = vmatpush2.bf16.msra.mxu0 0
  %5167 = vmatprep.subr.bf16.mxu0 0
  %5168 = vmatpush2.bf16.msra.mxu0 0
  %5169 = vmatprep.subr.bf16.mxu0 0
  %5170 = vmatpush2.bf16.msra.mxu0 0
  %5171 = vmatprep.subr.bf16.mxu0 0
  %5172 = vmatpush2.bf16.msra.mxu0 0
  %5173 = vmatprep.subr.bf16.mxu0 0
  %5174 = vmatpush2.bf16.msra.mxu0 0
  %5175 = vmatprep.subr.bf16.mxu0 0
  %5176 = vmatpush2.bf16.msra.mxu0 0
  %5177 = vmatprep.mubr.bf16.mxu0 0
  %5178 = vmatmul.mubr.bf16.gmra.mxu0 %v5140
  %v5179 = vpop.f32.mrf.mxu0
  %v5180 = vadd.f32 0.0, %v5179
  %v5181 = vpop.f32.mrf.mxu0
  %v5182 = vpop.f32.mrf.mxu0
  %v5183 = vpop.f32.mrf.mxu0
  %5184 = vdwg.mxu0
  %v5185 = vpack.c.bf16 %v5180, %v5132
  %v5188 = vunpack.c.l.b16 %v3705
  %v5189 = vunpack.c.l.b16 %v3706
  %v5190 = vpack.c.b16 %v5189, %v5188
  %v5193 = vsel %vm103, %v5185, 0
  %5195 = vmatprep.subr.bf16.mxu0 0
  %5196 = vmatpush1.bf16.msra.mxu0 0
  %5197 = vmatprep.subr.bf16.mxu0 0
  %5198 = vmatpush1.bf16.msra.mxu0 0
  %5199 = vmatprep.subr.bf16.mxu0 0
  %5200 = vmatpush1.bf16.msra.mxu0 0
  %5201 = vmatprep.subr.bf16.mxu0 0
  %5202 = vmatpush1.bf16.msra.mxu0 0
  %5203 = vmatprep.subr.bf16.mxu0 0
  %5204 = vmatpush1.bf16.msra.mxu0 0
  %5205 = vmatprep.subr.bf16.mxu0 0
  %5206 = vmatpush1.bf16.msra.mxu0 0
  %5207 = vmatprep.subr.bf16.mxu0 0
  %5208 = vmatpush1.bf16.msra.mxu0 0
  %5209 = vmatprep.subr.bf16.mxu0 0
  %5210 = vmatpush1.bf16.msra.mxu0 %v5190
  %5211 = vmatprep.subr.bf16.mxu0 0
  %5212 = vmatpush2.bf16.msra.mxu0 0
  %5213 = vmatprep.subr.bf16.mxu0 0
  %5214 = vmatpush2.bf16.msra.mxu0 0
  %5215 = vmatprep.subr.bf16.mxu0 0
  %5216 = vmatpush2.bf16.msra.mxu0 0
  %5217 = vmatprep.subr.bf16.mxu0 0
  %5218 = vmatpush2.bf16.msra.mxu0 0
  %5219 = vmatprep.subr.bf16.mxu0 0
  %5220 = vmatpush2.bf16.msra.mxu0 0
  %5221 = vmatprep.subr.bf16.mxu0 0
  %5222 = vmatpush2.bf16.msra.mxu0 0
  %5223 = vmatprep.subr.bf16.mxu0 0
  %5224 = vmatpush2.bf16.msra.mxu0 0
  %5225 = vmatprep.subr.bf16.mxu0 0
  %5226 = vmatpush2.bf16.msra.mxu0 0
  %5227 = vmatprep.mubr.bf16.mxu0 0
  %5228 = vmatmul.mubr.bf16.gmra.mxu0 %v5193
  %v5229 = vpop.f32.mrf.mxu0
  %v5230 = vadd.f32 0.0, %v5229
  %v5231 = vpop.f32.mrf.mxu0
  %v5232 = vpop.f32.mrf.mxu0
  %v5233 = vadd.f32 0.0, %v5232
  %v5234 = vpop.f32.mrf.mxu0
  %5235 = vdwg.mxu0
  %v5236 = vadd.f32 %v4961, %v5230
  %v5237 = vadd.f32 %v4962, %v5233
  %v5239 = vlaneseq
  %v5240 = vshrl.u32 %v5239, 7
  %v5241 = vsub.s32 0, %v5240
  %v5242 = vrot.slane %v3708, %v5241
  %v5244 = vadd.f32 %v5236, %v5242
  %v5245 = vadd.f32 %v5237, %v5242
  %v5246 = vadd.f32 %v3685, %v5244
  %v5247 = vadd.f32 %v3686, %v5245
  %v5248 = vsel %vm545, %v5246, 0.0
  %5249 = vadd.xlane.f32.xlu0 %v5248
  %v5250 = vpop.xlane.xlu0 %5249
  %v5251 = vsel %vm545, %v5247, 0.0
  %5252 = vadd.xlane.f32.xlu0 %v5251
  %v5253 = vpop.xlane.xlu0 %5252
  %v5254 = vmul.f32 %v5250, %v1706
  %v5255 = vmul.f32 %v5253, %v1706
  %v5256 = vsub.f32 %v5246, %v5254
  %v5257 = vsub.f32 %v5247, %v5255
  %v5258 = vmul.f32 %v5256, %v5256
  %v5259 = vmul.f32 %v5257, %v5257
  %v5260 = vsel %vm545, %v5258, 0.0
  %5261 = vadd.xlane.f32.xlu0 %v5260
  %v5262 = vpop.xlane.xlu0 %5261
  %v5263 = vsel %vm545, %v5259, 0.0
  %5264 = vadd.xlane.f32.xlu0 %v5263
  %v5265 = vpop.xlane.xlu0 %5264
  %v5266 = vmul.f32 %v5262, %v1706
  %v5267 = vmul.f32 %v5265, %v1706
  %v5268 = vadd.f32 %v5266, 1e-05
  %v5269 = vadd.f32 %v5267, 1e-05
  %v5270 = vrsqrt.pop %v5268
  %v5271 = vrsqrt.pop %v5269
  %v5272 = vmul.f32 %v5256, %v5270
  %v5273 = vmul.f32 %v5257, %v5271
  %v5275 = vlaneseq
  %v5276 = vshrl.u32 %v5275, 7
  %v5277 = vsub.s32 0, %v5276
  %v5278 = vrot.slane %v3710, %v5277
  %v5280 = vmul.f32 %v5272, %v5278
  %v5281 = vmul.f32 %v5273, %v5278
  %v5283 = vlaneseq
  %v5284 = vshrl.u32 %v5283, 7
  %v5285 = vsub.s32 0, %v5284
  %v5286 = vrot.slane %v3712, %v5285
  %v5288 = vadd.f32 %v5280, %v5286
  %v5289 = vadd.f32 %v5281, %v5286
  %v5290 = vpack.c.bf16 %v5289, %v5288
  %v5293 = vlaneseq
  %v5294 = vshrl.u32 %v5293, 7
  %v5295 = vsub.s32 0, %v5294
  %v5296 = vrot.slane %v3779, %v5295
  %v5297 = vlaneseq
  %v5298 = vshrl.u32 %v5297, 7
  %v5299 = vsub.s32 1, %v5298
  %v5300 = vrot.slane %v3779, %v5299
  %v5301 = vlaneseq
  %v5302 = vshrl.u32 %v5301, 7
  %v5303 = vsub.s32 2, %v5302
  %v5304 = vrot.slane %v3779, %v5303
  %v5305 = vlaneseq
  %v5306 = vshrl.u32 %v5305, 7
  %v5307 = vsub.s32 3, %v5306
  %v5308 = vrot.slane %v3779, %v5307
  %v5309 = vlaneseq
  %v5310 = vshrl.u32 %v5309, 7
  %v5311 = vsub.s32 4, %v5310
  %v5312 = vrot.slane %v3779, %v5311
  %v5313 = vlaneseq
  %v5314 = vshrl.u32 %v5313, 7
  %v5315 = vsub.s32 5, %v5314
  %v5316 = vrot.slane %v3779, %v5315
  %v5317 = vlaneseq
  %v5318 = vshrl.u32 %v5317, 7
  %v5319 = vsub.s32 6, %v5318
  %v5320 = vrot.slane %v3779, %v5319
  %v5321 = vlaneseq
  %v5322 = vshrl.u32 %v5321, 7
  %v5323 = vsub.s32 7, %v5322
  %v5324 = vrot.slane %v3779, %v5323
  %v5325 = vlaneseq
  %v5326 = vshrl.u32 %v5325, 7
  %v5327 = vsub.s32 0, %v5326
  %v5328 = vrot.slane %v3780, %v5327
  %v5329 = vlaneseq
  %v5330 = vshrl.u32 %v5329, 7
  %v5331 = vsub.s32 1, %v5330
  %v5332 = vrot.slane %v3780, %v5331
  %v5333 = vlaneseq
  %v5334 = vshrl.u32 %v5333, 7
  %v5335 = vsub.s32 2, %v5334
  %v5336 = vrot.slane %v3780, %v5335
  %v5337 = vlaneseq
  %v5338 = vshrl.u32 %v5337, 7
  %v5339 = vsub.s32 3, %v5338
  %v5340 = vrot.slane %v3780, %v5339
  %v5341 = vlaneseq
  %v5342 = vshrl.u32 %v5341, 7
  %v5343 = vsub.s32 4, %v5342
  %v5344 = vrot.slane %v3780, %v5343
  %v5345 = vlaneseq
  %v5346 = vshrl.u32 %v5345, 7
  %v5347 = vsub.s32 5, %v5346
  %v5348 = vrot.slane %v3780, %v5347
  %v5349 = vlaneseq
  %v5350 = vshrl.u32 %v5349, 7
  %v5351 = vsub.s32 6, %v5350
  %v5352 = vrot.slane %v3780, %v5351
  %v5353 = vlaneseq
  %v5354 = vshrl.u32 %v5353, 7
  %v5355 = vsub.s32 7, %v5354
  %v5356 = vrot.slane %v3780, %v5355
  %v5437 = vunpack.c.l.b16 %v3714
  %v5438 = vunpack.c.h.b16 %v3714
  %v5439 = vunpack.c.l.b16 %v3715
  %v5440 = vunpack.c.h.b16 %v3715
  %v5441 = vunpack.c.l.b16 %v3716
  %v5442 = vunpack.c.h.b16 %v3716
  %v5443 = vunpack.c.l.b16 %v3717
  %v5444 = vunpack.c.h.b16 %v3717
  %v5445 = vunpack.c.l.b16 %v3718
  %v5446 = vunpack.c.h.b16 %v3718
  %v5447 = vunpack.c.l.b16 %v3719
  %v5448 = vunpack.c.h.b16 %v3719
  %v5449 = vunpack.c.l.b16 %v3720
  %v5450 = vunpack.c.h.b16 %v3720
  %v5451 = vunpack.c.l.b16 %v3721
  %v5452 = vunpack.c.h.b16 %v3721
  %v5453 = vunpack.c.l.b16 %v3722
  %v5454 = vunpack.c.h.b16 %v3722
  %v5455 = vunpack.c.l.b16 %v3723
  %v5456 = vunpack.c.h.b16 %v3723
  %v5457 = vunpack.c.l.b16 %v3724
  %v5458 = vunpack.c.h.b16 %v3724
  %v5459 = vunpack.c.l.b16 %v3725
  %v5460 = vunpack.c.h.b16 %v3725
  %v5461 = vunpack.c.l.b16 %v3726
  %v5462 = vunpack.c.h.b16 %v3726
  %v5463 = vunpack.c.l.b16 %v3727
  %v5464 = vunpack.c.h.b16 %v3727
  %v5465 = vunpack.c.l.b16 %v3728
  %v5466 = vunpack.c.h.b16 %v3728
  %v5467 = vunpack.c.l.b16 %v3729
  %v5468 = vunpack.c.h.b16 %v3729
  %v5469 = vunpack.c.l.b16 %v3730
  %v5470 = vunpack.c.h.b16 %v3730
  %v5471 = vunpack.c.l.b16 %v3731
  %v5472 = vunpack.c.h.b16 %v3731
  %v5473 = vunpack.c.l.b16 %v3732
  %v5474 = vunpack.c.h.b16 %v3732
  %v5475 = vunpack.c.l.b16 %v3733
  %v5476 = vunpack.c.h.b16 %v3733
  %v5477 = vunpack.c.l.b16 %v3734
  %v5478 = vunpack.c.h.b16 %v3734
  %v5479 = vunpack.c.l.b16 %v3735
  %v5480 = vunpack.c.h.b16 %v3735
  %v5481 = vunpack.c.l.b16 %v3736
  %v5482 = vunpack.c.h.b16 %v3736
  %v5483 = vunpack.c.l.b16 %v3737
  %v5484 = vunpack.c.h.b16 %v3737
  %v5485 = vunpack.c.l.b16 %v3738
  %v5486 = vunpack.c.h.b16 %v3738
  %v5487 = vunpack.c.l.b16 %v3739
  %v5488 = vunpack.c.h.b16 %v3739
  %v5489 = vunpack.c.l.b16 %v3740
  %v5490 = vunpack.c.h.b16 %v3740
  %v5491 = vunpack.c.l.b16 %v3741
  %v5492 = vunpack.c.h.b16 %v3741
  %v5493 = vunpack.c.l.b16 %v3742
  %v5494 = vunpack.c.h.b16 %v3742
  %v5495 = vunpack.c.l.b16 %v3743
  %v5496 = vunpack.c.h.b16 %v3743
  %v5497 = vunpack.c.l.b16 %v3744
  %v5498 = vunpack.c.h.b16 %v3744
  %v5499 = vunpack.c.l.b16 %v3745
  %v5500 = vunpack.c.h.b16 %v3745
  %v5501 = vunpack.c.l.b16 %v3746
  %v5502 = vunpack.c.h.b16 %v3746
  %v5503 = vunpack.c.l.b16 %v3747
  %v5504 = vunpack.c.h.b16 %v3747
  %v5505 = vunpack.c.l.b16 %v3748
  %v5506 = vunpack.c.h.b16 %v3748
  %v5507 = vunpack.c.l.b16 %v3749
  %v5508 = vunpack.c.h.b16 %v3749
  %v5509 = vunpack.c.l.b16 %v3750
  %v5510 = vunpack.c.h.b16 %v3750
  %v5511 = vunpack.c.l.b16 %v3751
  %v5512 = vunpack.c.h.b16 %v3751
  %v5513 = vunpack.c.l.b16 %v3752
  %v5514 = vunpack.c.h.b16 %v3752
  %v5515 = vunpack.c.l.b16 %v3753
  %v5516 = vunpack.c.h.b16 %v3753
  %v5517 = vunpack.c.l.b16 %v3754
  %v5518 = vunpack.c.h.b16 %v3754
  %v5519 = vunpack.c.l.b16 %v3755
  %v5520 = vunpack.c.h.b16 %v3755
  %v5521 = vunpack.c.l.b16 %v3756
  %v5522 = vunpack.c.h.b16 %v3756
  %v5523 = vunpack.c.l.b16 %v3757
  %v5524 = vunpack.c.h.b16 %v3757
  %v5525 = vunpack.c.l.b16 %v3758
  %v5526 = vunpack.c.h.b16 %v3758
  %v5527 = vunpack.c.l.b16 %v3759
  %v5528 = vunpack.c.h.b16 %v3759
  %v5529 = vunpack.c.l.b16 %v3760
  %v5530 = vunpack.c.h.b16 %v3760
  %v5531 = vunpack.c.l.b16 %v3761
  %v5532 = vunpack.c.h.b16 %v3761
  %v5533 = vunpack.c.l.b16 %v3762
  %v5534 = vunpack.c.h.b16 %v3762
  %v5535 = vunpack.c.l.b16 %v3763
  %v5536 = vunpack.c.h.b16 %v3763
  %v5537 = vunpack.c.l.b16 %v3764
  %v5538 = vunpack.c.h.b16 %v3764
  %v5539 = vunpack.c.l.b16 %v3765
  %v5540 = vunpack.c.h.b16 %v3765
  %v5541 = vunpack.c.l.b16 %v3766
  %v5542 = vunpack.c.h.b16 %v3766
  %v5543 = vunpack.c.l.b16 %v3767
  %v5544 = vunpack.c.h.b16 %v3767
  %v5545 = vunpack.c.l.b16 %v3768
  %v5546 = vunpack.c.h.b16 %v3768
  %v5547 = vunpack.c.l.b16 %v3769
  %v5548 = vunpack.c.h.b16 %v3769
  %v5549 = vunpack.c.l.b16 %v3770
  %v5550 = vunpack.c.h.b16 %v3770
  %v5551 = vunpack.c.l.b16 %v3771
  %v5552 = vunpack.c.h.b16 %v3771
  %v5553 = vunpack.c.l.b16 %v3772
  %v5554 = vunpack.c.h.b16 %v3772
  %v5555 = vunpack.c.l.b16 %v3773
  %v5556 = vunpack.c.h.b16 %v3773
  %v5557 = vunpack.c.l.b16 %v3774
  %v5558 = vunpack.c.h.b16 %v3774
  %v5559 = vunpack.c.l.b16 %v3775
  %v5560 = vunpack.c.h.b16 %v3775
  %v5561 = vunpack.c.l.b16 %v3776
  %v5562 = vunpack.c.h.b16 %v3776
  %v5563 = vunpack.c.l.b16 %v3777
  %v5564 = vunpack.c.h.b16 %v3777
  %v5565 = vpack.c.b16 %v5453, %v5437
  %v5566 = vpack.c.b16 %v5454, %v5438
  %v5567 = vpack.c.b16 %v5455, %v5439
  %v5568 = vpack.c.b16 %v5456, %v5440
  %v5569 = vpack.c.b16 %v5457, %v5441
  %v5570 = vpack.c.b16 %v5458, %v5442
  %v5571 = vpack.c.b16 %v5459, %v5443
  %v5572 = vpack.c.b16 %v5460, %v5444
  %v5573 = vpack.c.b16 %v5461, %v5445
  %v5574 = vpack.c.b16 %v5462, %v5446
  %v5575 = vpack.c.b16 %v5463, %v5447
  %v5576 = vpack.c.b16 %v5464, %v5448
  %v5577 = vpack.c.b16 %v5465, %v5449
  %v5578 = vpack.c.b16 %v5466, %v5450
  %v5579 = vpack.c.b16 %v5467, %v5451
  %v5580 = vpack.c.b16 %v5468, %v5452
  %v5581 = vpack.c.b16 %v5485, %v5469
  %v5582 = vpack.c.b16 %v5486, %v5470
  %v5583 = vpack.c.b16 %v5487, %v5471
  %v5584 = vpack.c.b16 %v5488, %v5472
  %v5585 = vpack.c.b16 %v5489, %v5473
  %v5586 = vpack.c.b16 %v5490, %v5474
  %v5587 = vpack.c.b16 %v5491, %v5475
  %v5588 = vpack.c.b16 %v5492, %v5476
  %v5589 = vpack.c.b16 %v5493, %v5477
  %v5590 = vpack.c.b16 %v5494, %v5478
  %v5591 = vpack.c.b16 %v5495, %v5479
  %v5592 = vpack.c.b16 %v5496, %v5480
  %v5593 = vpack.c.b16 %v5497, %v5481
  %v5594 = vpack.c.b16 %v5498, %v5482
  %v5595 = vpack.c.b16 %v5499, %v5483
  %v5596 = vpack.c.b16 %v5500, %v5484
  %v5597 = vpack.c.b16 %v5517, %v5501
  %v5598 = vpack.c.b16 %v5518, %v5502
  %v5599 = vpack.c.b16 %v5519, %v5503
  %v5600 = vpack.c.b16 %v5520, %v5504
  %v5601 = vpack.c.b16 %v5521, %v5505
  %v5602 = vpack.c.b16 %v5522, %v5506
  %v5603 = vpack.c.b16 %v5523, %v5507
  %v5604 = vpack.c.b16 %v5524, %v5508
  %v5605 = vpack.c.b16 %v5525, %v5509
  %v5606 = vpack.c.b16 %v5526, %v5510
  %v5607 = vpack.c.b16 %v5527, %v5511
  %v5608 = vpack.c.b16 %v5528, %v5512
  %v5609 = vpack.c.b16 %v5529, %v5513
  %v5610 = vpack.c.b16 %v5530, %v5514
  %v5611 = vpack.c.b16 %v5531, %v5515
  %v5612 = vpack.c.b16 %v5532, %v5516
  %v5613 = vpack.c.b16 %v5549, %v5533
  %v5614 = vpack.c.b16 %v5550, %v5534
  %v5615 = vpack.c.b16 %v5551, %v5535
  %v5616 = vpack.c.b16 %v5552, %v5536
  %v5617 = vpack.c.b16 %v5553, %v5537
  %v5618 = vpack.c.b16 %v5554, %v5538
  %v5619 = vpack.c.b16 %v5555, %v5539
  %v5620 = vpack.c.b16 %v5556, %v5540
  %v5621 = vpack.c.b16 %v5557, %v5541
  %v5622 = vpack.c.b16 %v5558, %v5542
  %v5623 = vpack.c.b16 %v5559, %v5543
  %v5624 = vpack.c.b16 %v5560, %v5544
  %v5625 = vpack.c.b16 %v5561, %v5545
  %v5626 = vpack.c.b16 %v5562, %v5546
  %v5627 = vpack.c.b16 %v5563, %v5547
  %v5628 = vpack.c.b16 %v5564, %v5548
  %v5694 = vsel %vm545, %v5290, 0
  %5696 = vmatprep.subr.bf16.mxu0 0
  %5697 = vmatpush1.bf16.msra.mxu0 0
  %5698 = vmatprep.subr.bf16.mxu0 0
  %5699 = vmatpush1.bf16.msra.mxu0 0
  %5700 = vmatprep.subr.bf16.mxu0 0
  %5701 = vmatpush1.bf16.msra.mxu0 0
  %5702 = vmatprep.subr.bf16.mxu0 0
  %5703 = vmatpush1.bf16.msra.mxu0 0
  %5704 = vmatprep.subr.bf16.mxu0 %v5614
  %5705 = vmatpush1.bf16.msra.mxu0 %v5613
  %5706 = vmatprep.subr.bf16.mxu0 %v5598
  %5707 = vmatpush1.bf16.msra.mxu0 %v5597
  %5708 = vmatprep.subr.bf16.mxu0 %v5582
  %5709 = vmatpush1.bf16.msra.mxu0 %v5581
  %5710 = vmatprep.subr.bf16.mxu0 %v5566
  %5711 = vmatpush1.bf16.msra.mxu0 %v5565
  %5712 = vmatprep.subr.bf16.mxu0 0
  %5713 = vmatpush2.bf16.msra.mxu0 0
  %5714 = vmatprep.subr.bf16.mxu0 0
  %5715 = vmatpush2.bf16.msra.mxu0 0
  %5716 = vmatprep.subr.bf16.mxu0 0
  %5717 = vmatpush2.bf16.msra.mxu0 0
  %5718 = vmatprep.subr.bf16.mxu0 0
  %5719 = vmatpush2.bf16.msra.mxu0 0
  %5720 = vmatprep.subr.bf16.mxu0 0
  %5721 = vmatpush2.bf16.msra.mxu0 0
  %5722 = vmatprep.subr.bf16.mxu0 0
  %5723 = vmatpush2.bf16.msra.mxu0 0
  %5724 = vmatprep.subr.bf16.mxu0 0
  %5725 = vmatpush2.bf16.msra.mxu0 0
  %5726 = vmatprep.subr.bf16.mxu0 0
  %5727 = vmatpush2.bf16.msra.mxu0 0
  %5728 = vmatprep.mubr.bf16.mxu0 0
  %5729 = vmatmul.mubr.bf16.gmra.mxu0 %v5694
  %v5730 = vpop.f32.mrf.mxu0
  %v5731 = vadd.f32 %v5296, %v5730
  %v5732 = vpop.f32.mrf.mxu0
  %v5733 = vadd.f32 %v5300, %v5732
  %v5734 = vpop.f32.mrf.mxu0
  %v5735 = vadd.f32 %v5296, %v5734
  %v5736 = vpop.f32.mrf.mxu0
  %v5737 = vadd.f32 %v5300, %v5736
  %5738 = vdwg.mxu0
  %5739 = vmatprep.subr.bf16.mxu0 0
  %5740 = vmatpush1.bf16.msra.mxu0 0
  %5741 = vmatprep.subr.bf16.mxu0 0
  %5742 = vmatpush1.bf16.msra.mxu0 0
  %5743 = vmatprep.subr.bf16.mxu0 0
  %5744 = vmatpush1.bf16.msra.mxu0 0
  %5745 = vmatprep.subr.bf16.mxu0 0
  %5746 = vmatpush1.bf16.msra.mxu0 0
  %5747 = vmatprep.subr.bf16.mxu0 %v5616
  %5748 = vmatpush1.bf16.msra.mxu0 %v5615
  %5749 = vmatprep.subr.bf16.mxu0 %v5600
  %5750 = vmatpush1.bf16.msra.mxu0 %v5599
  %5751 = vmatprep.subr.bf16.mxu0 %v5584
  %5752 = vmatpush1.bf16.msra.mxu0 %v5583
  %5753 = vmatprep.subr.bf16.mxu0 %v5568
  %5754 = vmatpush1.bf16.msra.mxu0 %v5567
  %5755 = vmatprep.subr.bf16.mxu0 0
  %5756 = vmatpush2.bf16.msra.mxu0 0
  %5757 = vmatprep.subr.bf16.mxu0 0
  %5758 = vmatpush2.bf16.msra.mxu0 0
  %5759 = vmatprep.subr.bf16.mxu0 0
  %5760 = vmatpush2.bf16.msra.mxu0 0
  %5761 = vmatprep.subr.bf16.mxu0 0
  %5762 = vmatpush2.bf16.msra.mxu0 0
  %5763 = vmatprep.subr.bf16.mxu0 0
  %5764 = vmatpush2.bf16.msra.mxu0 0
  %5765 = vmatprep.subr.bf16.mxu0 0
  %5766 = vmatpush2.bf16.msra.mxu0 0
  %5767 = vmatprep.subr.bf16.mxu0 0
  %5768 = vmatpush2.bf16.msra.mxu0 0
  %5769 = vmatprep.subr.bf16.mxu0 0
  %5770 = vmatpush2.bf16.msra.mxu0 0
  %5771 = vmatprep.mubr.bf16.mxu0 0
  %5772 = vmatmul.mubr.bf16.gmra.mxu0 %v5694
  %v5773 = vpop.f32.mrf.mxu0
  %v5774 = vadd.f32 %v5304, %v5773
  %v5775 = vpop.f32.mrf.mxu0
  %v5776 = vadd.f32 %v5308, %v5775
  %v5777 = vpop.f32.mrf.mxu0
  %v5778 = vadd.f32 %v5304, %v5777
  %v5779 = vpop.f32.mrf.mxu0
  %v5780 = vadd.f32 %v5308, %v5779
  %5781 = vdwg.mxu0
  %5782 = vmatprep.subr.bf16.mxu0 0
  %5783 = vmatpush1.bf16.msra.mxu0 0
  %5784 = vmatprep.subr.bf16.mxu0 0
  %5785 = vmatpush1.bf16.msra.mxu0 0
  %5786 = vmatprep.subr.bf16.mxu0 0
  %5787 = vmatpush1.bf16.msra.mxu0 0
  %5788 = vmatprep.subr.bf16.mxu0 0
  %5789 = vmatpush1.bf16.msra.mxu0 0
  %5790 = vmatprep.subr.bf16.mxu0 %v5618
  %5791 = vmatpush1.bf16.msra.mxu0 %v5617
  %5792 = vmatprep.subr.bf16.mxu0 %v5602
  %5793 = vmatpush1.bf16.msra.mxu0 %v5601
  %5794 = vmatprep.subr.bf16.mxu0 %v5586
  %5795 = vmatpush1.bf16.msra.mxu0 %v5585
  %5796 = vmatprep.subr.bf16.mxu0 %v5570
  %5797 = vmatpush1.bf16.msra.mxu0 %v5569
  %5798 = vmatprep.subr.bf16.mxu0 0
  %5799 = vmatpush2.bf16.msra.mxu0 0
  %5800 = vmatprep.subr.bf16.mxu0 0
  %5801 = vmatpush2.bf16.msra.mxu0 0
  %5802 = vmatprep.subr.bf16.mxu0 0
  %5803 = vmatpush2.bf16.msra.mxu0 0
  %5804 = vmatprep.subr.bf16.mxu0 0
  %5805 = vmatpush2.bf16.msra.mxu0 0
  %5806 = vmatprep.subr.bf16.mxu0 0
  %5807 = vmatpush2.bf16.msra.mxu0 0
  %5808 = vmatprep.subr.bf16.mxu0 0
  %5809 = vmatpush2.bf16.msra.mxu0 0
  %5810 = vmatprep.subr.bf16.mxu0 0
  %5811 = vmatpush2.bf16.msra.mxu0 0
  %5812 = vmatprep.subr.bf16.mxu0 0
  %5813 = vmatpush2.bf16.msra.mxu0 0
  %5814 = vmatprep.mubr.bf16.mxu0 0
  %5815 = vmatmul.mubr.bf16.gmra.mxu0 %v5694
  %v5816 = vpop.f32.mrf.mxu0
  %v5817 = vadd.f32 %v5312, %v5816
  %v5818 = vpop.f32.mrf.mxu0
  %v5819 = vadd.f32 %v5316, %v5818
  %v5820 = vpop.f32.mrf.mxu0
  %v5821 = vadd.f32 %v5312, %v5820
  %v5822 = vpop.f32.mrf.mxu0
  %v5823 = vadd.f32 %v5316, %v5822
  %5824 = vdwg.mxu0
  %5825 = vmatprep.subr.bf16.mxu0 0
  %5826 = vmatpush1.bf16.msra.mxu0 0
  %5827 = vmatprep.subr.bf16.mxu0 0
  %5828 = vmatpush1.bf16.msra.mxu0 0
  %5829 = vmatprep.subr.bf16.mxu0 0
  %5830 = vmatpush1.bf16.msra.mxu0 0
  %5831 = vmatprep.subr.bf16.mxu0 0
  %5832 = vmatpush1.bf16.msra.mxu0 0
  %5833 = vmatprep.subr.bf16.mxu0 %v5620
  %5834 = vmatpush1.bf16.msra.mxu0 %v5619
  %5835 = vmatprep.subr.bf16.mxu0 %v5604
  %5836 = vmatpush1.bf16.msra.mxu0 %v5603
  %5837 = vmatprep.subr.bf16.mxu0 %v5588
  %5838 = vmatpush1.bf16.msra.mxu0 %v5587
  %5839 = vmatprep.subr.bf16.mxu0 %v5572
  %5840 = vmatpush1.bf16.msra.mxu0 %v5571
  %5841 = vmatprep.subr.bf16.mxu0 0
  %5842 = vmatpush2.bf16.msra.mxu0 0
  %5843 = vmatprep.subr.bf16.mxu0 0
  %5844 = vmatpush2.bf16.msra.mxu0 0
  %5845 = vmatprep.subr.bf16.mxu0 0
  %5846 = vmatpush2.bf16.msra.mxu0 0
  %5847 = vmatprep.subr.bf16.mxu0 0
  %5848 = vmatpush2.bf16.msra.mxu0 0
  %5849 = vmatprep.subr.bf16.mxu0 0
  %5850 = vmatpush2.bf16.msra.mxu0 0
  %5851 = vmatprep.subr.bf16.mxu0 0
  %5852 = vmatpush2.bf16.msra.mxu0 0
  %5853 = vmatprep.subr.bf16.mxu0 0
  %5854 = vmatpush2.bf16.msra.mxu0 0
  %5855 = vmatprep.subr.bf16.mxu0 0
  %5856 = vmatpush2.bf16.msra.mxu0 0
  %5857 = vmatprep.mubr.bf16.mxu0 0
  %5858 = vmatmul.mubr.bf16.gmra.mxu0 %v5694
  %v5859 = vpop.f32.mrf.mxu0
  %v5860 = vadd.f32 %v5320, %v5859
  %v5861 = vpop.f32.mrf.mxu0
  %v5862 = vadd.f32 %v5324, %v5861
  %v5863 = vpop.f32.mrf.mxu0
  %v5864 = vadd.f32 %v5320, %v5863
  %v5865 = vpop.f32.mrf.mxu0
  %v5866 = vadd.f32 %v5324, %v5865
  %5867 = vdwg.mxu0
  %5868 = vmatprep.subr.bf16.mxu0 0
  %5869 = vmatpush1.bf16.msra.mxu0 0
  %5870 = vmatprep.subr.bf16.mxu0 0
  %5871 = vmatpush1.bf16.msra.mxu0 0
  %5872 = vmatprep.subr.bf16.mxu0 0
  %5873 = vmatpush1.bf16.msra.mxu0 0
  %5874 = vmatprep.subr.bf16.mxu0 0
  %5875 = vmatpush1.bf16.msra.mxu0 0
  %5876 = vmatprep.subr.bf16.mxu0 %v5622
  %5877 = vmatpush1.bf16.msra.mxu0 %v5621
  %5878 = vmatprep.subr.bf16.mxu0 %v5606
  %5879 = vmatpush1.bf16.msra.mxu0 %v5605
  %5880 = vmatprep.subr.bf16.mxu0 %v5590
  %5881 = vmatpush1.bf16.msra.mxu0 %v5589
  %5882 = vmatprep.subr.bf16.mxu0 %v5574
  %5883 = vmatpush1.bf16.msra.mxu0 %v5573
  %5884 = vmatprep.subr.bf16.mxu0 0
  %5885 = vmatpush2.bf16.msra.mxu0 0
  %5886 = vmatprep.subr.bf16.mxu0 0
  %5887 = vmatpush2.bf16.msra.mxu0 0
  %5888 = vmatprep.subr.bf16.mxu0 0
  %5889 = vmatpush2.bf16.msra.mxu0 0
  %5890 = vmatprep.subr.bf16.mxu0 0
  %5891 = vmatpush2.bf16.msra.mxu0 0
  %5892 = vmatprep.subr.bf16.mxu0 0
  %5893 = vmatpush2.bf16.msra.mxu0 0
  %5894 = vmatprep.subr.bf16.mxu0 0
  %5895 = vmatpush2.bf16.msra.mxu0 0
  %5896 = vmatprep.subr.bf16.mxu0 0
  %5897 = vmatpush2.bf16.msra.mxu0 0
  %5898 = vmatprep.subr.bf16.mxu0 0
  %5899 = vmatpush2.bf16.msra.mxu0 0
  %5900 = vmatprep.mubr.bf16.mxu0 0
  %5901 = vmatmul.mubr.bf16.gmra.mxu0 %v5694
  %v5902 = vpop.f32.mrf.mxu0
  %v5903 = vadd.f32 %v5328, %v5902
  %v5904 = vpop.f32.mrf.mxu0
  %v5905 = vadd.f32 %v5332, %v5904
  %v5906 = vpop.f32.mrf.mxu0
  %v5907 = vadd.f32 %v5328, %v5906
  %v5908 = vpop.f32.mrf.mxu0
  %v5909 = vadd.f32 %v5332, %v5908
  %5910 = vdwg.mxu0
  %5911 = vmatprep.subr.bf16.mxu0 0
  %5912 = vmatpush1.bf16.msra.mxu0 0
  %5913 = vmatprep.subr.bf16.mxu0 0
  %5914 = vmatpush1.bf16.msra.mxu0 0
  %5915 = vmatprep.subr.bf16.mxu0 0
  %5916 = vmatpush1.bf16.msra.mxu0 0
  %5917 = vmatprep.subr.bf16.mxu0 0
  %5918 = vmatpush1.bf16.msra.mxu0 0
  %5919 = vmatprep.subr.bf16.mxu0 %v5624
  %5920 = vmatpush1.bf16.msra.mxu0 %v5623
  %5921 = vmatprep.subr.bf16.mxu0 %v5608
  %5922 = vmatpush1.bf16.msra.mxu0 %v5607
  %5923 = vmatprep.subr.bf16.mxu0 %v5592
  %5924 = vmatpush1.bf16.msra.mxu0 %v5591
  %5925 = vmatprep.subr.bf16.mxu0 %v5576
  %5926 = vmatpush1.bf16.msra.mxu0 %v5575
  %5927 = vmatprep.subr.bf16.mxu0 0
  %5928 = vmatpush2.bf16.msra.mxu0 0
  %5929 = vmatprep.subr.bf16.mxu0 0
  %5930 = vmatpush2.bf16.msra.mxu0 0
  %5931 = vmatprep.subr.bf16.mxu0 0
  %5932 = vmatpush2.bf16.msra.mxu0 0
  %5933 = vmatprep.subr.bf16.mxu0 0
  %5934 = vmatpush2.bf16.msra.mxu0 0
  %5935 = vmatprep.subr.bf16.mxu0 0
  %5936 = vmatpush2.bf16.msra.mxu0 0
  %5937 = vmatprep.subr.bf16.mxu0 0
  %5938 = vmatpush2.bf16.msra.mxu0 0
  %5939 = vmatprep.subr.bf16.mxu0 0
  %5940 = vmatpush2.bf16.msra.mxu0 0
  %5941 = vmatprep.subr.bf16.mxu0 0
  %5942 = vmatpush2.bf16.msra.mxu0 0
  %5943 = vmatprep.mubr.bf16.mxu0 0
  %5944 = vmatmul.mubr.bf16.gmra.mxu0 %v5694
  %v5945 = vpop.f32.mrf.mxu0
  %v5946 = vadd.f32 %v5336, %v5945
  %v5947 = vpop.f32.mrf.mxu0
  %v5948 = vadd.f32 %v5340, %v5947
  %v5949 = vpop.f32.mrf.mxu0
  %v5950 = vadd.f32 %v5336, %v5949
  %v5951 = vpop.f32.mrf.mxu0
  %v5952 = vadd.f32 %v5340, %v5951
  %5953 = vdwg.mxu0
  %5954 = vmatprep.subr.bf16.mxu0 0
  %5955 = vmatpush1.bf16.msra.mxu0 0
  %5956 = vmatprep.subr.bf16.mxu0 0
  %5957 = vmatpush1.bf16.msra.mxu0 0
  %5958 = vmatprep.subr.bf16.mxu0 0
  %5959 = vmatpush1.bf16.msra.mxu0 0
  %5960 = vmatprep.subr.bf16.mxu0 0
  %5961 = vmatpush1.bf16.msra.mxu0 0
  %5962 = vmatprep.subr.bf16.mxu0 %v5626
  %5963 = vmatpush1.bf16.msra.mxu0 %v5625
  %5964 = vmatprep.subr.bf16.mxu0 %v5610
  %5965 = vmatpush1.bf16.msra.mxu0 %v5609
  %5966 = vmatprep.subr.bf16.mxu0 %v5594
  %5967 = vmatpush1.bf16.msra.mxu0 %v5593
  %5968 = vmatprep.subr.bf16.mxu0 %v5578
  %5969 = vmatpush1.bf16.msra.mxu0 %v5577
  %5970 = vmatprep.subr.bf16.mxu0 0
  %5971 = vmatpush2.bf16.msra.mxu0 0
  %5972 = vmatprep.subr.bf16.mxu0 0
  %5973 = vmatpush2.bf16.msra.mxu0 0
  %5974 = vmatprep.subr.bf16.mxu0 0
  %5975 = vmatpush2.bf16.msra.mxu0 0
  %5976 = vmatprep.subr.bf16.mxu0 0
  %5977 = vmatpush2.bf16.msra.mxu0 0
  %5978 = vmatprep.subr.bf16.mxu0 0
  %5979 = vmatpush2.bf16.msra.mxu0 0
  %5980 = vmatprep.subr.bf16.mxu0 0
  %5981 = vmatpush2.bf16.msra.mxu0 0
  %5982 = vmatprep.subr.bf16.mxu0 0
  %5983 = vmatpush2.bf16.msra.mxu0 0
  %5984 = vmatprep.subr.bf16.mxu0 0
  %5985 = vmatpush2.bf16.msra.mxu0 0
  %5986 = vmatprep.mubr.bf16.mxu0 0
  %5987 = vmatmul.mubr.bf16.gmra.mxu0 %v5694
  %v5988 = vpop.f32.mrf.mxu0
  %v5989 = vadd.f32 %v5344, %v5988
  %v5990 = vpop.f32.mrf.mxu0
  %v5991 = vadd.f32 %v5348, %v5990
  %v5992 = vpop.f32.mrf.mxu0
  %v5993 = vadd.f32 %v5344, %v5992
  %v5994 = vpop.f32.mrf.mxu0
  %v5995 = vadd.f32 %v5348, %v5994
  %5996 = vdwg.mxu0
  %5997 = vmatprep.subr.bf16.mxu0 0
  %5998 = vmatpush1.bf16.msra.mxu0 0
  %5999 = vmatprep.subr.bf16.mxu0 0
  %6000 = vmatpush1.bf16.msra.mxu0 0
  %6001 = vmatprep.subr.bf16.mxu0 0
  %6002 = vmatpush1.bf16.msra.mxu0 0
  %6003 = vmatprep.subr.bf16.mxu0 0
  %6004 = vmatpush1.bf16.msra.mxu0 0
  %6005 = vmatprep.subr.bf16.mxu0 %v5628
  %6006 = vmatpush1.bf16.msra.mxu0 %v5627
  %6007 = vmatprep.subr.bf16.mxu0 %v5612
  %6008 = vmatpush1.bf16.msra.mxu0 %v5611
  %6009 = vmatprep.subr.bf16.mxu0 %v5596
  %6010 = vmatpush1.bf16.msra.mxu0 %v5595
  %6011 = vmatprep.subr.bf16.mxu0 %v5580
  %6012 = vmatpush1.bf16.msra.mxu0 %v5579
  %6013 = vmatprep.subr.bf16.mxu0 0
  %6014 = vmatpush2.bf16.msra.mxu0 0
  %6015 = vmatprep.subr.bf16.mxu0 0
  %6016 = vmatpush2.bf16.msra.mxu0 0
  %6017 = vmatprep.subr.bf16.mxu0 0
  %6018 = vmatpush2.bf16.msra.mxu0 0
  %6019 = vmatprep.subr.bf16.mxu0 0
  %6020 = vmatpush2.bf16.msra.mxu0 0
  %6021 = vmatprep.subr.bf16.mxu0 0
  %6022 = vmatpush2.bf16.msra.mxu0 0
  %6023 = vmatprep.subr.bf16.mxu0 0
  %6024 = vmatpush2.bf16.msra.mxu0 0
  %6025 = vmatprep.subr.bf16.mxu0 0
  %6026 = vmatpush2.bf16.msra.mxu0 0
  %6027 = vmatprep.subr.bf16.mxu0 0
  %6028 = vmatpush2.bf16.msra.mxu0 0
  %6029 = vmatprep.mubr.bf16.mxu0 0
  %6030 = vmatmul.mubr.bf16.gmra.mxu0 %v5694
  %v6031 = vpop.f32.mrf.mxu0
  %v6032 = vadd.f32 %v5352, %v6031
  %v6033 = vpop.f32.mrf.mxu0
  %v6034 = vadd.f32 %v5356, %v6033
  %v6035 = vpop.f32.mrf.mxu0
  %v6036 = vadd.f32 %v5352, %v6035
  %v6037 = vpop.f32.mrf.mxu0
  %v6038 = vadd.f32 %v5356, %v6037
  %6039 = vdwg.mxu0
  %v6040 = vmax.f32 %v5731, 0.0
  %v6041 = vmax.f32 %v5733, 0.0
  %v6042 = vmax.f32 %v5774, 0.0
  %v6043 = vmax.f32 %v5776, 0.0
  %v6044 = vmax.f32 %v5817, 0.0
  %v6045 = vmax.f32 %v5819, 0.0
  %v6046 = vmax.f32 %v5860, 0.0
  %v6047 = vmax.f32 %v5862, 0.0
  %v6048 = vmax.f32 %v5903, 0.0
  %v6049 = vmax.f32 %v5905, 0.0
  %v6050 = vmax.f32 %v5946, 0.0
  %v6051 = vmax.f32 %v5948, 0.0
  %v6052 = vmax.f32 %v5989, 0.0
  %v6053 = vmax.f32 %v5991, 0.0
  %v6054 = vmax.f32 %v6032, 0.0
  %v6055 = vmax.f32 %v6034, 0.0
  %v6056 = vmax.f32 %v5735, 0.0
  %v6057 = vmax.f32 %v5737, 0.0
  %v6058 = vmax.f32 %v5778, 0.0
  %v6059 = vmax.f32 %v5780, 0.0
  %v6060 = vmax.f32 %v5821, 0.0
  %v6061 = vmax.f32 %v5823, 0.0
  %v6062 = vmax.f32 %v5864, 0.0
  %v6063 = vmax.f32 %v5866, 0.0
  %v6064 = vmax.f32 %v5907, 0.0
  %v6065 = vmax.f32 %v5909, 0.0
  %v6066 = vmax.f32 %v5950, 0.0
  %v6067 = vmax.f32 %v5952, 0.0
  %v6068 = vmax.f32 %v5993, 0.0
  %v6069 = vmax.f32 %v5995, 0.0
  %v6070 = vmax.f32 %v6036, 0.0
  %v6071 = vmax.f32 %v6038, 0.0
  %v6072 = vpack.c.bf16 %v6056, %v6040
  %v6073 = vpack.c.bf16 %v6057, %v6041
  %v6074 = vpack.c.bf16 %v6058, %v6042
  %v6075 = vpack.c.bf16 %v6059, %v6043
  %v6076 = vpack.c.bf16 %v6060, %v6044
  %v6077 = vpack.c.bf16 %v6061, %v6045
  %v6078 = vpack.c.bf16 %v6062, %v6046
  %v6079 = vpack.c.bf16 %v6063, %v6047
  %v6080 = vpack.c.bf16 %v6064, %v6048
  %v6081 = vpack.c.bf16 %v6065, %v6049
  %v6082 = vpack.c.bf16 %v6066, %v6050
  %v6083 = vpack.c.bf16 %v6067, %v6051
  %v6084 = vpack.c.bf16 %v6068, %v6052
  %v6085 = vpack.c.bf16 %v6069, %v6053
  %v6086 = vpack.c.bf16 %v6070, %v6054
  %v6087 = vpack.c.bf16 %v6071, %v6055
  %v6089 = vlaneseq
  %v6090 = vshrl.u32 %v6089, 7
  %v6091 = vsub.s32 0, %v6090
  %v6092 = vrot.slane %v4039, %v6091
  %v6350 = vunpack.c.l.b16 %v3782
  %v6351 = vunpack.c.l.b16 %v3783
  %v6352 = vunpack.c.l.b16 %v3784
  %v6353 = vunpack.c.l.b16 %v3785
  %v6354 = vunpack.c.l.b16 %v3786
  %v6355 = vunpack.c.l.b16 %v3787
  %v6356 = vunpack.c.l.b16 %v3788
  %v6357 = vunpack.c.l.b16 %v3789
  %v6358 = vunpack.c.l.b16 %v3790
  %v6359 = vunpack.c.l.b16 %v3791
  %v6360 = vunpack.c.l.b16 %v3792
  %v6361 = vunpack.c.l.b16 %v3793
  %v6362 = vunpack.c.l.b16 %v3794
  %v6363 = vunpack.c.l.b16 %v3795
  %v6364 = vunpack.c.l.b16 %v3796
  %v6365 = vunpack.c.l.b16 %v3797
  %v6366 = vunpack.c.l.b16 %v3798
  %v6367 = vunpack.c.l.b16 %v3799
  %v6368 = vunpack.c.l.b16 %v3800
  %v6369 = vunpack.c.l.b16 %v3801
  %v6370 = vunpack.c.l.b16 %v3802
  %v6371 = vunpack.c.l.b16 %v3803
  %v6372 = vunpack.c.l.b16 %v3804
  %v6373 = vunpack.c.l.b16 %v3805
  %v6374 = vunpack.c.l.b16 %v3806
  %v6375 = vunpack.c.l.b16 %v3807
  %v6376 = vunpack.c.l.b16 %v3808
  %v6377 = vunpack.c.l.b16 %v3809
  %v6378 = vunpack.c.l.b16 %v3810
  %v6379 = vunpack.c.l.b16 %v3811
  %v6380 = vunpack.c.l.b16 %v3812
  %v6381 = vunpack.c.l.b16 %v3813
  %v6382 = vunpack.c.l.b16 %v3814
  %v6383 = vunpack.c.l.b16 %v3815
  %v6384 = vunpack.c.l.b16 %v3816
  %v6385 = vunpack.c.l.b16 %v3817
  %v6386 = vunpack.c.l.b16 %v3818
  %v6387 = vunpack.c.l.b16 %v3819
  %v6388 = vunpack.c.l.b16 %v3820
  %v6389 = vunpack.c.l.b16 %v3821
  %v6390 = vunpack.c.l.b16 %v3822
  %v6391 = vunpack.c.l.b16 %v3823
  %v6392 = vunpack.c.l.b16 %v3824
  %v6393 = vunpack.c.l.b16 %v3825
  %v6394 = vunpack.c.l.b16 %v3826
  %v6395 = vunpack.c.l.b16 %v3827
  %v6396 = vunpack.c.l.b16 %v3828
  %v6397 = vunpack.c.l.b16 %v3829
  %v6398 = vunpack.c.l.b16 %v3830
  %v6399 = vunpack.c.l.b16 %v3831
  %v6400 = vunpack.c.l.b16 %v3832
  %v6401 = vunpack.c.l.b16 %v3833
  %v6402 = vunpack.c.l.b16 %v3834
  %v6403 = vunpack.c.l.b16 %v3835
  %v6404 = vunpack.c.l.b16 %v3836
  %v6405 = vunpack.c.l.b16 %v3837
  %v6406 = vunpack.c.l.b16 %v3838
  %v6407 = vunpack.c.l.b16 %v3839
  %v6408 = vunpack.c.l.b16 %v3840
  %v6409 = vunpack.c.l.b16 %v3841
  %v6410 = vunpack.c.l.b16 %v3842
  %v6411 = vunpack.c.l.b16 %v3843
  %v6412 = vunpack.c.l.b16 %v3844
  %v6413 = vunpack.c.l.b16 %v3845
  %v6414 = vunpack.c.l.b16 %v3846
  %v6415 = vunpack.c.l.b16 %v3847
  %v6416 = vunpack.c.l.b16 %v3848
  %v6417 = vunpack.c.l.b16 %v3849
  %v6418 = vunpack.c.l.b16 %v3850
  %v6419 = vunpack.c.l.b16 %v3851
  %v6420 = vunpack.c.l.b16 %v3852
  %v6421 = vunpack.c.l.b16 %v3853
  %v6422 = vunpack.c.l.b16 %v3854
  %v6423 = vunpack.c.l.b16 %v3855
  %v6424 = vunpack.c.l.b16 %v3856
  %v6425 = vunpack.c.l.b16 %v3857
  %v6426 = vunpack.c.l.b16 %v3858
  %v6427 = vunpack.c.l.b16 %v3859
  %v6428 = vunpack.c.l.b16 %v3860
  %v6429 = vunpack.c.l.b16 %v3861
  %v6430 = vunpack.c.l.b16 %v3862
  %v6431 = vunpack.c.l.b16 %v3863
  %v6432 = vunpack.c.l.b16 %v3864
  %v6433 = vunpack.c.l.b16 %v3865
  %v6434 = vunpack.c.l.b16 %v3866
  %v6435 = vunpack.c.l.b16 %v3867
  %v6436 = vunpack.c.l.b16 %v3868
  %v6437 = vunpack.c.l.b16 %v3869
  %v6438 = vunpack.c.l.b16 %v3870
  %v6439 = vunpack.c.l.b16 %v3871
  %v6440 = vunpack.c.l.b16 %v3872
  %v6441 = vunpack.c.l.b16 %v3873
  %v6442 = vunpack.c.l.b16 %v3874
  %v6443 = vunpack.c.l.b16 %v3875
  %v6444 = vunpack.c.l.b16 %v3876
  %v6445 = vunpack.c.l.b16 %v3877
  %v6446 = vunpack.c.l.b16 %v3878
  %v6447 = vunpack.c.l.b16 %v3879
  %v6448 = vunpack.c.l.b16 %v3880
  %v6449 = vunpack.c.l.b16 %v3881
  %v6450 = vunpack.c.l.b16 %v3882
  %v6451 = vunpack.c.l.b16 %v3883
  %v6452 = vunpack.c.l.b16 %v3884
  %v6453 = vunpack.c.l.b16 %v3885
  %v6454 = vunpack.c.l.b16 %v3886
  %v6455 = vunpack.c.l.b16 %v3887
  %v6456 = vunpack.c.l.b16 %v3888
  %v6457 = vunpack.c.l.b16 %v3889
  %v6458 = vunpack.c.l.b16 %v3890
  %v6459 = vunpack.c.l.b16 %v3891
  %v6460 = vunpack.c.l.b16 %v3892
  %v6461 = vunpack.c.l.b16 %v3893
  %v6462 = vunpack.c.l.b16 %v3894
  %v6463 = vunpack.c.l.b16 %v3895
  %v6464 = vunpack.c.l.b16 %v3896
  %v6465 = vunpack.c.l.b16 %v3897
  %v6466 = vunpack.c.l.b16 %v3898
  %v6467 = vunpack.c.l.b16 %v3899
  %v6468 = vunpack.c.l.b16 %v3900
  %v6469 = vunpack.c.l.b16 %v3901
  %v6470 = vunpack.c.l.b16 %v3902
  %v6471 = vunpack.c.l.b16 %v3903
  %v6472 = vunpack.c.l.b16 %v3904
  %v6473 = vunpack.c.l.b16 %v3905
  %v6474 = vunpack.c.l.b16 %v3906
  %v6475 = vunpack.c.l.b16 %v3907
  %v6476 = vunpack.c.l.b16 %v3908
  %v6477 = vunpack.c.l.b16 %v3909
  %v6478 = vunpack.c.l.b16 %v3910
  %v6479 = vunpack.c.l.b16 %v3911
  %v6480 = vunpack.c.l.b16 %v3912
  %v6481 = vunpack.c.l.b16 %v3913
  %v6482 = vunpack.c.l.b16 %v3914
  %v6483 = vunpack.c.l.b16 %v3915
  %v6484 = vunpack.c.l.b16 %v3916
  %v6485 = vunpack.c.l.b16 %v3917
  %v6486 = vunpack.c.l.b16 %v3918
  %v6487 = vunpack.c.l.b16 %v3919
  %v6488 = vunpack.c.l.b16 %v3920
  %v6489 = vunpack.c.l.b16 %v3921
  %v6490 = vunpack.c.l.b16 %v3922
  %v6491 = vunpack.c.l.b16 %v3923
  %v6492 = vunpack.c.l.b16 %v3924
  %v6493 = vunpack.c.l.b16 %v3925
  %v6494 = vunpack.c.l.b16 %v3926
  %v6495 = vunpack.c.l.b16 %v3927
  %v6496 = vunpack.c.l.b16 %v3928
  %v6497 = vunpack.c.l.b16 %v3929
  %v6498 = vunpack.c.l.b16 %v3930
  %v6499 = vunpack.c.l.b16 %v3931
  %v6500 = vunpack.c.l.b16 %v3932
  %v6501 = vunpack.c.l.b16 %v3933
  %v6502 = vunpack.c.l.b16 %v3934
  %v6503 = vunpack.c.l.b16 %v3935
  %v6504 = vunpack.c.l.b16 %v3936
  %v6505 = vunpack.c.l.b16 %v3937
  %v6506 = vunpack.c.l.b16 %v3938
  %v6507 = vunpack.c.l.b16 %v3939
  %v6508 = vunpack.c.l.b16 %v3940
  %v6509 = vunpack.c.l.b16 %v3941
  %v6510 = vunpack.c.l.b16 %v3942
  %v6511 = vunpack.c.l.b16 %v3943
  %v6512 = vunpack.c.l.b16 %v3944
  %v6513 = vunpack.c.l.b16 %v3945
  %v6514 = vunpack.c.l.b16 %v3946
  %v6515 = vunpack.c.l.b16 %v3947
  %v6516 = vunpack.c.l.b16 %v3948
  %v6517 = vunpack.c.l.b16 %v3949
  %v6518 = vunpack.c.l.b16 %v3950
  %v6519 = vunpack.c.l.b16 %v3951
  %v6520 = vunpack.c.l.b16 %v3952
  %v6521 = vunpack.c.l.b16 %v3953
  %v6522 = vunpack.c.l.b16 %v3954
  %v6523 = vunpack.c.l.b16 %v3955
  %v6524 = vunpack.c.l.b16 %v3956
  %v6525 = vunpack.c.l.b16 %v3957
  %v6526 = vunpack.c.l.b16 %v3958
  %v6527 = vunpack.c.l.b16 %v3959
  %v6528 = vunpack.c.l.b16 %v3960
  %v6529 = vunpack.c.l.b16 %v3961
  %v6530 = vunpack.c.l.b16 %v3962
  %v6531 = vunpack.c.l.b16 %v3963
  %v6532 = vunpack.c.l.b16 %v3964
  %v6533 = vunpack.c.l.b16 %v3965
  %v6534 = vunpack.c.l.b16 %v3966
  %v6535 = vunpack.c.l.b16 %v3967
  %v6536 = vunpack.c.l.b16 %v3968
  %v6537 = vunpack.c.l.b16 %v3969
  %v6538 = vunpack.c.l.b16 %v3970
  %v6539 = vunpack.c.l.b16 %v3971
  %v6540 = vunpack.c.l.b16 %v3972
  %v6541 = vunpack.c.l.b16 %v3973
  %v6542 = vunpack.c.l.b16 %v3974
  %v6543 = vunpack.c.l.b16 %v3975
  %v6544 = vunpack.c.l.b16 %v3976
  %v6545 = vunpack.c.l.b16 %v3977
  %v6546 = vunpack.c.l.b16 %v3978
  %v6547 = vunpack.c.l.b16 %v3979
  %v6548 = vunpack.c.l.b16 %v3980
  %v6549 = vunpack.c.l.b16 %v3981
  %v6550 = vunpack.c.l.b16 %v3982
  %v6551 = vunpack.c.l.b16 %v3983
  %v6552 = vunpack.c.l.b16 %v3984
  %v6553 = vunpack.c.l.b16 %v3985
  %v6554 = vunpack.c.l.b16 %v3986
  %v6555 = vunpack.c.l.b16 %v3987
  %v6556 = vunpack.c.l.b16 %v3988
  %v6557 = vunpack.c.l.b16 %v3989
  %v6558 = vunpack.c.l.b16 %v3990
  %v6559 = vunpack.c.l.b16 %v3991
  %v6560 = vunpack.c.l.b16 %v3992
  %v6561 = vunpack.c.l.b16 %v3993
  %v6562 = vunpack.c.l.b16 %v3994
  %v6563 = vunpack.c.l.b16 %v3995
  %v6564 = vunpack.c.l.b16 %v3996
  %v6565 = vunpack.c.l.b16 %v3997
  %v6566 = vunpack.c.l.b16 %v3998
  %v6567 = vunpack.c.l.b16 %v3999
  %v6568 = vunpack.c.l.b16 %v4000
  %v6569 = vunpack.c.l.b16 %v4001
  %v6570 = vunpack.c.l.b16 %v4002
  %v6571 = vunpack.c.l.b16 %v4003
  %v6572 = vunpack.c.l.b16 %v4004
  %v6573 = vunpack.c.l.b16 %v4005
  %v6574 = vunpack.c.l.b16 %v4006
  %v6575 = vunpack.c.l.b16 %v4007
  %v6576 = vunpack.c.l.b16 %v4008
  %v6577 = vunpack.c.l.b16 %v4009
  %v6578 = vunpack.c.l.b16 %v4010
  %v6579 = vunpack.c.l.b16 %v4011
  %v6580 = vunpack.c.l.b16 %v4012
  %v6581 = vunpack.c.l.b16 %v4013
  %v6582 = vunpack.c.l.b16 %v4014
  %v6583 = vunpack.c.l.b16 %v4015
  %v6584 = vunpack.c.l.b16 %v4016
  %v6585 = vunpack.c.l.b16 %v4017
  %v6586 = vunpack.c.l.b16 %v4018
  %v6587 = vunpack.c.l.b16 %v4019
  %v6588 = vunpack.c.l.b16 %v4020
  %v6589 = vunpack.c.l.b16 %v4021
  %v6590 = vunpack.c.l.b16 %v4022
  %v6591 = vunpack.c.l.b16 %v4023
  %v6592 = vunpack.c.l.b16 %v4024
  %v6593 = vunpack.c.l.b16 %v4025
  %v6594 = vunpack.c.l.b16 %v4026
  %v6595 = vunpack.c.l.b16 %v4027
  %v6596 = vunpack.c.l.b16 %v4028
  %v6597 = vunpack.c.l.b16 %v4029
  %v6598 = vunpack.c.l.b16 %v4030
  %v6599 = vunpack.c.l.b16 %v4031
  %v6600 = vunpack.c.l.b16 %v4032
  %v6601 = vunpack.c.l.b16 %v4033
  %v6602 = vunpack.c.l.b16 %v4034
  %v6603 = vunpack.c.l.b16 %v4035
  %v6604 = vunpack.c.l.b16 %v4036
  %v6605 = vunpack.c.l.b16 %v4037
  %v6606 = vpack.c.b16 %v6351, %v6350
  %v6607 = vpack.c.b16 %v6353, %v6352
  %v6608 = vpack.c.b16 %v6355, %v6354
  %v6609 = vpack.c.b16 %v6357, %v6356
  %v6610 = vpack.c.b16 %v6359, %v6358
  %v6611 = vpack.c.b16 %v6361, %v6360
  %v6612 = vpack.c.b16 %v6363, %v6362
  %v6613 = vpack.c.b16 %v6365, %v6364
  %v6614 = vpack.c.b16 %v6367, %v6366
  %v6615 = vpack.c.b16 %v6369, %v6368
  %v6616 = vpack.c.b16 %v6371, %v6370
  %v6617 = vpack.c.b16 %v6373, %v6372
  %v6618 = vpack.c.b16 %v6375, %v6374
  %v6619 = vpack.c.b16 %v6377, %v6376
  %v6620 = vpack.c.b16 %v6379, %v6378
  %v6621 = vpack.c.b16 %v6381, %v6380
  %v6622 = vpack.c.b16 %v6383, %v6382
  %v6623 = vpack.c.b16 %v6385, %v6384
  %v6624 = vpack.c.b16 %v6387, %v6386
  %v6625 = vpack.c.b16 %v6389, %v6388
  %v6626 = vpack.c.b16 %v6391, %v6390
  %v6627 = vpack.c.b16 %v6393, %v6392
  %v6628 = vpack.c.b16 %v6395, %v6394
  %v6629 = vpack.c.b16 %v6397, %v6396
  %v6630 = vpack.c.b16 %v6399, %v6398
  %v6631 = vpack.c.b16 %v6401, %v6400
  %v6632 = vpack.c.b16 %v6403, %v6402
  %v6633 = vpack.c.b16 %v6405, %v6404
  %v6634 = vpack.c.b16 %v6407, %v6406
  %v6635 = vpack.c.b16 %v6409, %v6408
  %v6636 = vpack.c.b16 %v6411, %v6410
  %v6637 = vpack.c.b16 %v6413, %v6412
  %v6638 = vpack.c.b16 %v6415, %v6414
  %v6639 = vpack.c.b16 %v6417, %v6416
  %v6640 = vpack.c.b16 %v6419, %v6418
  %v6641 = vpack.c.b16 %v6421, %v6420
  %v6642 = vpack.c.b16 %v6423, %v6422
  %v6643 = vpack.c.b16 %v6425, %v6424
  %v6644 = vpack.c.b16 %v6427, %v6426
  %v6645 = vpack.c.b16 %v6429, %v6428
  %v6646 = vpack.c.b16 %v6431, %v6430
  %v6647 = vpack.c.b16 %v6433, %v6432
  %v6648 = vpack.c.b16 %v6435, %v6434
  %v6649 = vpack.c.b16 %v6437, %v6436
  %v6650 = vpack.c.b16 %v6439, %v6438
  %v6651 = vpack.c.b16 %v6441, %v6440
  %v6652 = vpack.c.b16 %v6443, %v6442
  %v6653 = vpack.c.b16 %v6445, %v6444
  %v6654 = vpack.c.b16 %v6447, %v6446
  %v6655 = vpack.c.b16 %v6449, %v6448
  %v6656 = vpack.c.b16 %v6451, %v6450
  %v6657 = vpack.c.b16 %v6453, %v6452
  %v6658 = vpack.c.b16 %v6455, %v6454
  %v6659 = vpack.c.b16 %v6457, %v6456
  %v6660 = vpack.c.b16 %v6459, %v6458
  %v6661 = vpack.c.b16 %v6461, %v6460
  %v6662 = vpack.c.b16 %v6463, %v6462
  %v6663 = vpack.c.b16 %v6465, %v6464
  %v6664 = vpack.c.b16 %v6467, %v6466
  %v6665 = vpack.c.b16 %v6469, %v6468
  %v6666 = vpack.c.b16 %v6471, %v6470
  %v6667 = vpack.c.b16 %v6473, %v6472
  %v6668 = vpack.c.b16 %v6475, %v6474
  %v6669 = vpack.c.b16 %v6477, %v6476
  %v6670 = vpack.c.b16 %v6479, %v6478
  %v6671 = vpack.c.b16 %v6481, %v6480
  %v6672 = vpack.c.b16 %v6483, %v6482
  %v6673 = vpack.c.b16 %v6485, %v6484
  %v6674 = vpack.c.b16 %v6487, %v6486
  %v6675 = vpack.c.b16 %v6489, %v6488
  %v6676 = vpack.c.b16 %v6491, %v6490
  %v6677 = vpack.c.b16 %v6493, %v6492
  %v6678 = vpack.c.b16 %v6495, %v6494
  %v6679 = vpack.c.b16 %v6497, %v6496
  %v6680 = vpack.c.b16 %v6499, %v6498
  %v6681 = vpack.c.b16 %v6501, %v6500
  %v6682 = vpack.c.b16 %v6503, %v6502
  %v6683 = vpack.c.b16 %v6505, %v6504
  %v6684 = vpack.c.b16 %v6507, %v6506
  %v6685 = vpack.c.b16 %v6509, %v6508
  %v6686 = vpack.c.b16 %v6511, %v6510
  %v6687 = vpack.c.b16 %v6513, %v6512
  %v6688 = vpack.c.b16 %v6515, %v6514
  %v6689 = vpack.c.b16 %v6517, %v6516
  %v6690 = vpack.c.b16 %v6519, %v6518
  %v6691 = vpack.c.b16 %v6521, %v6520
  %v6692 = vpack.c.b16 %v6523, %v6522
  %v6693 = vpack.c.b16 %v6525, %v6524
  %v6694 = vpack.c.b16 %v6527, %v6526
  %v6695 = vpack.c.b16 %v6529, %v6528
  %v6696 = vpack.c.b16 %v6531, %v6530
  %v6697 = vpack.c.b16 %v6533, %v6532
  %v6698 = vpack.c.b16 %v6535, %v6534
  %v6699 = vpack.c.b16 %v6537, %v6536
  %v6700 = vpack.c.b16 %v6539, %v6538
  %v6701 = vpack.c.b16 %v6541, %v6540
  %v6702 = vpack.c.b16 %v6543, %v6542
  %v6703 = vpack.c.b16 %v6545, %v6544
  %v6704 = vpack.c.b16 %v6547, %v6546
  %v6705 = vpack.c.b16 %v6549, %v6548
  %v6706 = vpack.c.b16 %v6551, %v6550
  %v6707 = vpack.c.b16 %v6553, %v6552
  %v6708 = vpack.c.b16 %v6555, %v6554
  %v6709 = vpack.c.b16 %v6557, %v6556
  %v6710 = vpack.c.b16 %v6559, %v6558
  %v6711 = vpack.c.b16 %v6561, %v6560
  %v6712 = vpack.c.b16 %v6563, %v6562
  %v6713 = vpack.c.b16 %v6565, %v6564
  %v6714 = vpack.c.b16 %v6567, %v6566
  %v6715 = vpack.c.b16 %v6569, %v6568
  %v6716 = vpack.c.b16 %v6571, %v6570
  %v6717 = vpack.c.b16 %v6573, %v6572
  %v6718 = vpack.c.b16 %v6575, %v6574
  %v6719 = vpack.c.b16 %v6577, %v6576
  %v6720 = vpack.c.b16 %v6579, %v6578
  %v6721 = vpack.c.b16 %v6581, %v6580
  %v6722 = vpack.c.b16 %v6583, %v6582
  %v6723 = vpack.c.b16 %v6585, %v6584
  %v6724 = vpack.c.b16 %v6587, %v6586
  %v6725 = vpack.c.b16 %v6589, %v6588
  %v6726 = vpack.c.b16 %v6591, %v6590
  %v6727 = vpack.c.b16 %v6593, %v6592
  %v6728 = vpack.c.b16 %v6595, %v6594
  %v6729 = vpack.c.b16 %v6597, %v6596
  %v6730 = vpack.c.b16 %v6599, %v6598
  %v6731 = vpack.c.b16 %v6601, %v6600
  %v6732 = vpack.c.b16 %v6603, %v6602
  %v6733 = vpack.c.b16 %v6605, %v6604
  %6862 = vmatprep.subr.bf16.mxu0 0
  %6863 = vmatpush1.bf16.msra.mxu0 %v6613
  %6864 = vmatprep.subr.bf16.mxu0 0
  %6865 = vmatpush1.bf16.msra.mxu0 %v6612
  %6866 = vmatprep.subr.bf16.mxu0 0
  %6867 = vmatpush1.bf16.msra.mxu0 %v6611
  %6868 = vmatprep.subr.bf16.mxu0 0
  %6869 = vmatpush1.bf16.msra.mxu0 %v6610
  %6870 = vmatprep.subr.bf16.mxu0 0
  %6871 = vmatpush1.bf16.msra.mxu0 %v6609
  %6872 = vmatprep.subr.bf16.mxu0 0
  %6873 = vmatpush1.bf16.msra.mxu0 %v6608
  %6874 = vmatprep.subr.bf16.mxu0 0
  %6875 = vmatpush1.bf16.msra.mxu0 %v6607
  %6876 = vmatprep.subr.bf16.mxu0 0
  %6877 = vmatpush1.bf16.msra.mxu0 %v6606
  %6878 = vmatprep.subr.bf16.mxu0 0
  %6879 = vmatpush2.bf16.msra.mxu0 %v6621
  %6880 = vmatprep.subr.bf16.mxu0 0
  %6881 = vmatpush2.bf16.msra.mxu0 %v6620
  %6882 = vmatprep.subr.bf16.mxu0 0
  %6883 = vmatpush2.bf16.msra.mxu0 %v6619
  %6884 = vmatprep.subr.bf16.mxu0 0
  %6885 = vmatpush2.bf16.msra.mxu0 %v6618
  %6886 = vmatprep.subr.bf16.mxu0 0
  %6887 = vmatpush2.bf16.msra.mxu0 %v6617
  %6888 = vmatprep.subr.bf16.mxu0 0
  %6889 = vmatpush2.bf16.msra.mxu0 %v6616
  %6890 = vmatprep.subr.bf16.mxu0 0
  %6891 = vmatpush2.bf16.msra.mxu0 %v6615
  %6892 = vmatprep.subr.bf16.mxu0 0
  %6893 = vmatpush2.bf16.msra.mxu0 %v6614
  %6894 = vmatprep.mubr.bf16.mxu0 %v6073
  %6895 = vmatmul.mubr.bf16.gmra.mxu0 %v6072
  %v6896 = vpop.f32.mrf.mxu0
  %v6897 = vadd.f32 %v6092, %v6896
  %v6898 = vpop.f32.mrf.mxu0
  %v6899 = vpop.f32.mrf.mxu0
  %v6900 = vadd.f32 %v6092, %v6899
  %v6901 = vpop.f32.mrf.mxu0
  %6902 = vdwg.mxu0
  %6903 = vmatprep.subr.bf16.mxu0 0
  %6904 = vmatpush1.bf16.msra.mxu0 %v6629
  %6905 = vmatprep.subr.bf16.mxu0 0
  %6906 = vmatpush1.bf16.msra.mxu0 %v6628
  %6907 = vmatprep.subr.bf16.mxu0 0
  %6908 = vmatpush1.bf16.msra.mxu0 %v6627
  %6909 = vmatprep.subr.bf16.mxu0 0
  %6910 = vmatpush1.bf16.msra.mxu0 %v6626
  %6911 = vmatprep.subr.bf16.mxu0 0
  %6912 = vmatpush1.bf16.msra.mxu0 %v6625
  %6913 = vmatprep.subr.bf16.mxu0 0
  %6914 = vmatpush1.bf16.msra.mxu0 %v6624
  %6915 = vmatprep.subr.bf16.mxu0 0
  %6916 = vmatpush1.bf16.msra.mxu0 %v6623
  %6917 = vmatprep.subr.bf16.mxu0 0
  %6918 = vmatpush1.bf16.msra.mxu0 %v6622
  %6919 = vmatprep.subr.bf16.mxu0 0
  %6920 = vmatpush2.bf16.msra.mxu0 %v6637
  %6921 = vmatprep.subr.bf16.mxu0 0
  %6922 = vmatpush2.bf16.msra.mxu0 %v6636
  %6923 = vmatprep.subr.bf16.mxu0 0
  %6924 = vmatpush2.bf16.msra.mxu0 %v6635
  %6925 = vmatprep.subr.bf16.mxu0 0
  %6926 = vmatpush2.bf16.msra.mxu0 %v6634
  %6927 = vmatprep.subr.bf16.mxu0 0
  %6928 = vmatpush2.bf16.msra.mxu0 %v6633
  %6929 = vmatprep.subr.bf16.mxu0 0
  %6930 = vmatpush2.bf16.msra.mxu0 %v6632
  %6931 = vmatprep.subr.bf16.mxu0 0
  %6932 = vmatpush2.bf16.msra.mxu0 %v6631
  %6933 = vmatprep.subr.bf16.mxu0 0
  %6934 = vmatpush2.bf16.msra.mxu0 %v6630
  %6935 = vmatprep.mubr.bf16.mxu0 %v6075
  %6936 = vmatmul.mubr.bf16.gmra.mxu0 %v6074
  %v6937 = vpop.f32.mrf.mxu0
  %v6938 = vadd.f32 %v6897, %v6937
  %v6939 = vpop.f32.mrf.mxu0
  %v6940 = vpop.f32.mrf.mxu0
  %v6941 = vadd.f32 %v6900, %v6940
  %v6942 = vpop.f32.mrf.mxu0
  %6943 = vdwg.mxu0
  %6944 = vmatprep.subr.bf16.mxu0 0
  %6945 = vmatpush1.bf16.msra.mxu0 %v6645
  %6946 = vmatprep.subr.bf16.mxu0 0
  %6947 = vmatpush1.bf16.msra.mxu0 %v6644
  %6948 = vmatprep.subr.bf16.mxu0 0
  %6949 = vmatpush1.bf16.msra.mxu0 %v6643
  %6950 = vmatprep.subr.bf16.mxu0 0
  %6951 = vmatpush1.bf16.msra.mxu0 %v6642
  %6952 = vmatprep.subr.bf16.mxu0 0
  %6953 = vmatpush1.bf16.msra.mxu0 %v6641
  %6954 = vmatprep.subr.bf16.mxu0 0
  %6955 = vmatpush1.bf16.msra.mxu0 %v6640
  %6956 = vmatprep.subr.bf16.mxu0 0
  %6957 = vmatpush1.bf16.msra.mxu0 %v6639
  %6958 = vmatprep.subr.bf16.mxu0 0
  %6959 = vmatpush1.bf16.msra.mxu0 %v6638
  %6960 = vmatprep.subr.bf16.mxu0 0
  %6961 = vmatpush2.bf16.msra.mxu0 %v6653
  %6962 = vmatprep.subr.bf16.mxu0 0
  %6963 = vmatpush2.bf16.msra.mxu0 %v6652
  %6964 = vmatprep.subr.bf16.mxu0 0
  %6965 = vmatpush2.bf16.msra.mxu0 %v6651
  %6966 = vmatprep.subr.bf16.mxu0 0
  %6967 = vmatpush2.bf16.msra.mxu0 %v6650
  %6968 = vmatprep.subr.bf16.mxu0 0
  %6969 = vmatpush2.bf16.msra.mxu0 %v6649
  %6970 = vmatprep.subr.bf16.mxu0 0
  %6971 = vmatpush2.bf16.msra.mxu0 %v6648
  %6972 = vmatprep.subr.bf16.mxu0 0
  %6973 = vmatpush2.bf16.msra.mxu0 %v6647
  %6974 = vmatprep.subr.bf16.mxu0 0
  %6975 = vmatpush2.bf16.msra.mxu0 %v6646
  %6976 = vmatprep.mubr.bf16.mxu0 %v6077
  %6977 = vmatmul.mubr.bf16.gmra.mxu0 %v6076
  %v6978 = vpop.f32.mrf.mxu0
  %v6979 = vadd.f32 %v6938, %v6978
  %v6980 = vpop.f32.mrf.mxu0
  %v6981 = vpop.f32.mrf.mxu0
  %v6982 = vadd.f32 %v6941, %v6981
  %v6983 = vpop.f32.mrf.mxu0
  %6984 = vdwg.mxu0
  %6985 = vmatprep.subr.bf16.mxu0 0
  %6986 = vmatpush1.bf16.msra.mxu0 %v6661
  %6987 = vmatprep.subr.bf16.mxu0 0
  %6988 = vmatpush1.bf16.msra.mxu0 %v6660
  %6989 = vmatprep.subr.bf16.mxu0 0
  %6990 = vmatpush1.bf16.msra.mxu0 %v6659
  %6991 = vmatprep.subr.bf16.mxu0 0
  %6992 = vmatpush1.bf16.msra.mxu0 %v6658
  %6993 = vmatprep.subr.bf16.mxu0 0
  %6994 = vmatpush1.bf16.msra.mxu0 %v6657
  %6995 = vmatprep.subr.bf16.mxu0 0
  %6996 = vmatpush1.bf16.msra.mxu0 %v6656
  %6997 = vmatprep.subr.bf16.mxu0 0
  %6998 = vmatpush1.bf16.msra.mxu0 %v6655
  %6999 = vmatprep.subr.bf16.mxu0 0
  %7000 = vmatpush1.bf16.msra.mxu0 %v6654
  %7001 = vmatprep.subr.bf16.mxu0 0
  %7002 = vmatpush2.bf16.msra.mxu0 %v6669
  %7003 = vmatprep.subr.bf16.mxu0 0
  %7004 = vmatpush2.bf16.msra.mxu0 %v6668
  %7005 = vmatprep.subr.bf16.mxu0 0
  %7006 = vmatpush2.bf16.msra.mxu0 %v6667
  %7007 = vmatprep.subr.bf16.mxu0 0
  %7008 = vmatpush2.bf16.msra.mxu0 %v6666
  %7009 = vmatprep.subr.bf16.mxu0 0
  %7010 = vmatpush2.bf16.msra.mxu0 %v6665
  %7011 = vmatprep.subr.bf16.mxu0 0
  %7012 = vmatpush2.bf16.msra.mxu0 %v6664
  %7013 = vmatprep.subr.bf16.mxu0 0
  %7014 = vmatpush2.bf16.msra.mxu0 %v6663
  %7015 = vmatprep.subr.bf16.mxu0 0
  %7016 = vmatpush2.bf16.msra.mxu0 %v6662
  %7017 = vmatprep.mubr.bf16.mxu0 %v6079
  %7018 = vmatmul.mubr.bf16.gmra.mxu0 %v6078
  %v7019 = vpop.f32.mrf.mxu0
  %v7020 = vadd.f32 %v6979, %v7019
  %v7021 = vpop.f32.mrf.mxu0
  %v7022 = vpop.f32.mrf.mxu0
  %v7023 = vadd.f32 %v6982, %v7022
  %v7024 = vpop.f32.mrf.mxu0
  %7025 = vdwg.mxu0
  %7026 = vmatprep.subr.bf16.mxu0 0
  %7027 = vmatpush1.bf16.msra.mxu0 %v6677
  %7028 = vmatprep.subr.bf16.mxu0 0
  %7029 = vmatpush1.bf16.msra.mxu0 %v6676
  %7030 = vmatprep.subr.bf16.mxu0 0
  %7031 = vmatpush1.bf16.msra.mxu0 %v6675
  %7032 = vmatprep.subr.bf16.mxu0 0
  %7033 = vmatpush1.bf16.msra.mxu0 %v6674
  %7034 = vmatprep.subr.bf16.mxu0 0
  %7035 = vmatpush1.bf16.msra.mxu0 %v6673
  %7036 = vmatprep.subr.bf16.mxu0 0
  %7037 = vmatpush1.bf16.msra.mxu0 %v6672
  %7038 = vmatprep.subr.bf16.mxu0 0
  %7039 = vmatpush1.bf16.msra.mxu0 %v6671
  %7040 = vmatprep.subr.bf16.mxu0 0
  %7041 = vmatpush1.bf16.msra.mxu0 %v6670
  %7042 = vmatprep.subr.bf16.mxu0 0
  %7043 = vmatpush2.bf16.msra.mxu0 %v6685
  %7044 = vmatprep.subr.bf16.mxu0 0
  %7045 = vmatpush2.bf16.msra.mxu0 %v6684
  %7046 = vmatprep.subr.bf16.mxu0 0
  %7047 = vmatpush2.bf16.msra.mxu0 %v6683
  %7048 = vmatprep.subr.bf16.mxu0 0
  %7049 = vmatpush2.bf16.msra.mxu0 %v6682
  %7050 = vmatprep.subr.bf16.mxu0 0
  %7051 = vmatpush2.bf16.msra.mxu0 %v6681
  %7052 = vmatprep.subr.bf16.mxu0 0
  %7053 = vmatpush2.bf16.msra.mxu0 %v6680
  %7054 = vmatprep.subr.bf16.mxu0 0
  %7055 = vmatpush2.bf16.msra.mxu0 %v6679
  %7056 = vmatprep.subr.bf16.mxu0 0
  %7057 = vmatpush2.bf16.msra.mxu0 %v6678
  %7058 = vmatprep.mubr.bf16.mxu0 %v6081
  %7059 = vmatmul.mubr.bf16.gmra.mxu0 %v6080
  %v7060 = vpop.f32.mrf.mxu0
  %v7061 = vadd.f32 %v7020, %v7060
  %v7062 = vpop.f32.mrf.mxu0
  %v7063 = vpop.f32.mrf.mxu0
  %v7064 = vadd.f32 %v7023, %v7063
  %v7065 = vpop.f32.mrf.mxu0
  %7066 = vdwg.mxu0
  %7067 = vmatprep.subr.bf16.mxu0 0
  %7068 = vmatpush1.bf16.msra.mxu0 %v6693
  %7069 = vmatprep.subr.bf16.mxu0 0
  %7070 = vmatpush1.bf16.msra.mxu0 %v6692
  %7071 = vmatprep.subr.bf16.mxu0 0
  %7072 = vmatpush1.bf16.msra.mxu0 %v6691
  %7073 = vmatprep.subr.bf16.mxu0 0
  %7074 = vmatpush1.bf16.msra.mxu0 %v6690
  %7075 = vmatprep.subr.bf16.mxu0 0
  %7076 = vmatpush1.bf16.msra.mxu0 %v6689
  %7077 = vmatprep.subr.bf16.mxu0 0
  %7078 = vmatpush1.bf16.msra.mxu0 %v6688
  %7079 = vmatprep.subr.bf16.mxu0 0
  %7080 = vmatpush1.bf16.msra.mxu0 %v6687
  %7081 = vmatprep.subr.bf16.mxu0 0
  %7082 = vmatpush1.bf16.msra.mxu0 %v6686
  %7083 = vmatprep.subr.bf16.mxu0 0
  %7084 = vmatpush2.bf16.msra.mxu0 %v6701
  %7085 = vmatprep.subr.bf16.mxu0 0
  %7086 = vmatpush2.bf16.msra.mxu0 %v6700
  %7087 = vmatprep.subr.bf16.mxu0 0
  %7088 = vmatpush2.bf16.msra.mxu0 %v6699
  %7089 = vmatprep.subr.bf16.mxu0 0
  %7090 = vmatpush2.bf16.msra.mxu0 %v6698
  %7091 = vmatprep.subr.bf16.mxu0 0
  %7092 = vmatpush2.bf16.msra.mxu0 %v6697
  %7093 = vmatprep.subr.bf16.mxu0 0
  %7094 = vmatpush2.bf16.msra.mxu0 %v6696
  %7095 = vmatprep.subr.bf16.mxu0 0
  %7096 = vmatpush2.bf16.msra.mxu0 %v6695
  %7097 = vmatprep.subr.bf16.mxu0 0
  %7098 = vmatpush2.bf16.msra.mxu0 %v6694
  %7099 = vmatprep.mubr.bf16.mxu0 %v6083
  %7100 = vmatmul.mubr.bf16.gmra.mxu0 %v6082
  %v7101 = vpop.f32.mrf.mxu0
  %v7102 = vadd.f32 %v7061, %v7101
  %v7103 = vpop.f32.mrf.mxu0
  %v7104 = vpop.f32.mrf.mxu0
  %v7105 = vadd.f32 %v7064, %v7104
  %v7106 = vpop.f32.mrf.mxu0
  %7107 = vdwg.mxu0
  %7108 = vmatprep.subr.bf16.mxu0 0
  %7109 = vmatpush1.bf16.msra.mxu0 %v6709
  %7110 = vmatprep.subr.bf16.mxu0 0
  %7111 = vmatpush1.bf16.msra.mxu0 %v6708
  %7112 = vmatprep.subr.bf16.mxu0 0
  %7113 = vmatpush1.bf16.msra.mxu0 %v6707
  %7114 = vmatprep.subr.bf16.mxu0 0
  %7115 = vmatpush1.bf16.msra.mxu0 %v6706
  %7116 = vmatprep.subr.bf16.mxu0 0
  %7117 = vmatpush1.bf16.msra.mxu0 %v6705
  %7118 = vmatprep.subr.bf16.mxu0 0
  %7119 = vmatpush1.bf16.msra.mxu0 %v6704
  %7120 = vmatprep.subr.bf16.mxu0 0
  %7121 = vmatpush1.bf16.msra.mxu0 %v6703
  %7122 = vmatprep.subr.bf16.mxu0 0
  %7123 = vmatpush1.bf16.msra.mxu0 %v6702
  %7124 = vmatprep.subr.bf16.mxu0 0
  %7125 = vmatpush2.bf16.msra.mxu0 %v6717
  %7126 = vmatprep.subr.bf16.mxu0 0
  %7127 = vmatpush2.bf16.msra.mxu0 %v6716
  %7128 = vmatprep.subr.bf16.mxu0 0
  %7129 = vmatpush2.bf16.msra.mxu0 %v6715
  %7130 = vmatprep.subr.bf16.mxu0 0
  %7131 = vmatpush2.bf16.msra.mxu0 %v6714
  %7132 = vmatprep.subr.bf16.mxu0 0
  %7133 = vmatpush2.bf16.msra.mxu0 %v6713
  %7134 = vmatprep.subr.bf16.mxu0 0
  %7135 = vmatpush2.bf16.msra.mxu0 %v6712
  %7136 = vmatprep.subr.bf16.mxu0 0
  %7137 = vmatpush2.bf16.msra.mxu0 %v6711
  %7138 = vmatprep.subr.bf16.mxu0 0
  %7139 = vmatpush2.bf16.msra.mxu0 %v6710
  %7140 = vmatprep.mubr.bf16.mxu0 %v6085
  %7141 = vmatmul.mubr.bf16.gmra.mxu0 %v6084
  %v7142 = vpop.f32.mrf.mxu0
  %v7143 = vadd.f32 %v7102, %v7142
  %v7144 = vpop.f32.mrf.mxu0
  %v7145 = vpop.f32.mrf.mxu0
  %v7146 = vadd.f32 %v7105, %v7145
  %v7147 = vpop.f32.mrf.mxu0
  %7148 = vdwg.mxu0
  %7149 = vmatprep.subr.bf16.mxu0 0
  %7150 = vmatpush1.bf16.msra.mxu0 %v6725
  %7151 = vmatprep.subr.bf16.mxu0 0
  %7152 = vmatpush1.bf16.msra.mxu0 %v6724
  %7153 = vmatprep.subr.bf16.mxu0 0
  %7154 = vmatpush1.bf16.msra.mxu0 %v6723
  %7155 = vmatprep.subr.bf16.mxu0 0
  %7156 = vmatpush1.bf16.msra.mxu0 %v6722
  %7157 = vmatprep.subr.bf16.mxu0 0
  %7158 = vmatpush1.bf16.msra.mxu0 %v6721
  %7159 = vmatprep.subr.bf16.mxu0 0
  %7160 = vmatpush1.bf16.msra.mxu0 %v6720
  %7161 = vmatprep.subr.bf16.mxu0 0
  %7162 = vmatpush1.bf16.msra.mxu0 %v6719
  %7163 = vmatprep.subr.bf16.mxu0 0
  %7164 = vmatpush1.bf16.msra.mxu0 %v6718
  %7165 = vmatprep.subr.bf16.mxu0 0
  %7166 = vmatpush2.bf16.msra.mxu0 %v6733
  %7167 = vmatprep.subr.bf16.mxu0 0
  %7168 = vmatpush2.bf16.msra.mxu0 %v6732
  %7169 = vmatprep.subr.bf16.mxu0 0
  %7170 = vmatpush2.bf16.msra.mxu0 %v6731
  %7171 = vmatprep.subr.bf16.mxu0 0
  %7172 = vmatpush2.bf16.msra.mxu0 %v6730
  %7173 = vmatprep.subr.bf16.mxu0 0
  %7174 = vmatpush2.bf16.msra.mxu0 %v6729
  %7175 = vmatprep.subr.bf16.mxu0 0
  %7176 = vmatpush2.bf16.msra.mxu0 %v6728
  %7177 = vmatprep.subr.bf16.mxu0 0
  %7178 = vmatpush2.bf16.msra.mxu0 %v6727
  %7179 = vmatprep.subr.bf16.mxu0 0
  %7180 = vmatpush2.bf16.msra.mxu0 %v6726
  %7181 = vmatprep.mubr.bf16.mxu0 %v6087
  %7182 = vmatmul.mubr.bf16.gmra.mxu0 %v6086
  %v7183 = vpop.f32.mrf.mxu0
  %v7184 = vadd.f32 %v7143, %v7183
  %v7185 = vpop.f32.mrf.mxu0
  %v7186 = vpop.f32.mrf.mxu0
  %v7187 = vadd.f32 %v7146, %v7186
  %v7188 = vpop.f32.mrf.mxu0
  %7189 = vdwg.mxu0
  %v7190 = vadd.f32 %v5288, %v7184
  %v7191 = vadd.f32 %v5289, %v7187
  %v7192 = vsel %vm545, %v7190, 0.0
  %7193 = vadd.xlane.f32.xlu0 %v7192
  %v7194 = vpop.xlane.xlu0 %7193
  %v7195 = vsel %vm545, %v7191, 0.0
  %7196 = vadd.xlane.f32.xlu0 %v7195
  %v7197 = vpop.xlane.xlu0 %7196
  %v7198 = vmul.f32 %v7194, %v1706
  %v7199 = vmul.f32 %v7197, %v1706
  %v7200 = vsub.f32 %v7190, %v7198
  %v7201 = vsub.f32 %v7191, %v7199
  %v7202 = vmul.f32 %v7200, %v7200
  %v7203 = vmul.f32 %v7201, %v7201
  %v7204 = vsel %vm545, %v7202, 0.0
  %7205 = vadd.xlane.f32.xlu0 %v7204
  %v7206 = vpop.xlane.xlu0 %7205
  %v7207 = vsel %vm545, %v7203, 0.0
  %7208 = vadd.xlane.f32.xlu0 %v7207
  %v7209 = vpop.xlane.xlu0 %7208
  %v7210 = vmul.f32 %v7206, %v1706
  %v7211 = vmul.f32 %v7209, %v1706
  %v7212 = vadd.f32 %v7210, 1e-05
  %v7213 = vadd.f32 %v7211, 1e-05
  %v7214 = vrsqrt.pop %v7212
  %v7215 = vrsqrt.pop %v7213
  %v7216 = vmul.f32 %v7200, %v7214
  %v7217 = vmul.f32 %v7201, %v7215
  %v7219 = vlaneseq
  %v7220 = vshrl.u32 %v7219, 7
  %v7221 = vsub.s32 0, %v7220
  %v7222 = vrot.slane %v4041, %v7221
  %v7224 = vmul.f32 %v7216, %v7222
  %v7225 = vmul.f32 %v7217, %v7222
  %v7227 = vlaneseq
  %v7228 = vshrl.u32 %v7227, 7
  %v7229 = vsub.s32 0, %v7228
  %v7230 = vrot.slane %v4043, %v7229
  %v7232 = vadd.f32 %v7224, %v7230
  %v7233 = vadd.f32 %v7225, %v7230
  %s7234 = scalar_lea.vmem %s4, 128
  %v7235 = vld [vmem:[%s7234] sm:$0xff]
  %v7236 = vld [vmem:[%s7234 + $0x8] sm:$0xff]
  %v7237 = vld [vmem:[%s7234 + $0x10] sm:$0xff]
  %v7238 = vld [vmem:[%s7234 + $0x18] sm:$0xff]
  %v7239 = vld [vmem:[%s7234 + $0x20] sm:$0xff]
  %v7240 = vld [vmem:[%s7234 + $0x28] sm:$0xff]
  %v7241 = vld [vmem:[%s7234 + $0x30] sm:$0xff]
  %v7242 = vld [vmem:[%s7234 + $0x38] sm:$0xff]
  %s7243 = scalar_lea.vmem %s5, 4
  %v7244 = vld [vmem:[%s7243] sm:$0x3]
  %s7245 = scalar_lea.vmem %s6, 64
  %v7246 = vld [vmem:[%s7245] sm:$0xf]
  %v7247 = vld [vmem:[%s7245 + $0x4] sm:$0xf]
  %v7248 = vld [vmem:[%s7245 + $0x8] sm:$0xf]
  %v7249 = vld [vmem:[%s7245 + $0xc] sm:$0xf]
  %v7250 = vld [vmem:[%s7245 + $0x10] sm:$0xf]
  %v7251 = vld [vmem:[%s7245 + $0x14] sm:$0xf]
  %v7252 = vld [vmem:[%s7245 + $0x18] sm:$0xf]
  %v7253 = vld [vmem:[%s7245 + $0x1c] sm:$0xf]
  %s7254 = scalar_lea.vmem %s7, 2
  %v7255 = vld [vmem:[%s7254] sm:$0x1]
  %s7256 = scalar_lea.vmem %s8, 2
  %v7257 = vld [vmem:[%s7256] sm:$0x1]
  %s7258 = scalar_lea.vmem %s9, 2
  %v7259 = vld [vmem:[%s7258] sm:$0x1]
  %s7260 = scalar_lea.vmem %s10, 1024
  %v7261 = vld [vmem:[%s7260] sm:$0xff]
  %v7262 = vld [vmem:[%s7260 + $0x8] sm:$0xff]
  %v7263 = vld [vmem:[%s7260 + $0x10] sm:$0xff]
  %v7264 = vld [vmem:[%s7260 + $0x18] sm:$0xff]
  %v7265 = vld [vmem:[%s7260 + $0x20] sm:$0xff]
  %v7266 = vld [vmem:[%s7260 + $0x28] sm:$0xff]
  %v7267 = vld [vmem:[%s7260 + $0x30] sm:$0xff]
  %v7268 = vld [vmem:[%s7260 + $0x38] sm:$0xff]
  %v7269 = vld [vmem:[%s7260 + $0x40] sm:$0xff]
  %v7270 = vld [vmem:[%s7260 + $0x48] sm:$0xff]
  %v7271 = vld [vmem:[%s7260 + $0x50] sm:$0xff]
  %v7272 = vld [vmem:[%s7260 + $0x58] sm:$0xff]
  %v7273 = vld [vmem:[%s7260 + $0x60] sm:$0xff]
  %v7274 = vld [vmem:[%s7260 + $0x68] sm:$0xff]
  %v7275 = vld [vmem:[%s7260 + $0x70] sm:$0xff]
  %v7276 = vld [vmem:[%s7260 + $0x78] sm:$0xff]
  %v7277 = vld [vmem:[%s7260 + $0x80] sm:$0xff]
  %v7278 = vld [vmem:[%s7260 + $0x88] sm:$0xff]
  %v7279 = vld [vmem:[%s7260 + $0x90] sm:$0xff]
  %v7280 = vld [vmem:[%s7260 + $0x98] sm:$0xff]
  %v7281 = vld [vmem:[%s7260 + $0xa0] sm:$0xff]
  %v7282 = vld [vmem:[%s7260 + $0xa8] sm:$0xff]
  %v7283 = vld [vmem:[%s7260 + $0xb0] sm:$0xff]
  %v7284 = vld [vmem:[%s7260 + $0xb8] sm:$0xff]
  %v7285 = vld [vmem:[%s7260 + $0xc0] sm:$0xff]
  %v7286 = vld [vmem:[%s7260 + $0xc8] sm:$0xff]
  %v7287 = vld [vmem:[%s7260 + $0xd0] sm:$0xff]
  %v7288 = vld [vmem:[%s7260 + $0xd8] sm:$0xff]
  %v7289 = vld [vmem:[%s7260 + $0xe0] sm:$0xff]
  %v7290 = vld [vmem:[%s7260 + $0xe8] sm:$0xff]
  %v7291 = vld [vmem:[%s7260 + $0xf0] sm:$0xff]
  %v7292 = vld [vmem:[%s7260 + $0xf8] sm:$0xff]
  %v7293 = vld [vmem:[%s7260 + $0x100] sm:$0xff]
  %v7294 = vld [vmem:[%s7260 + $0x108] sm:$0xff]
  %v7295 = vld [vmem:[%s7260 + $0x110] sm:$0xff]
  %v7296 = vld [vmem:[%s7260 + $0x118] sm:$0xff]
  %v7297 = vld [vmem:[%s7260 + $0x120] sm:$0xff]
  %v7298 = vld [vmem:[%s7260 + $0x128] sm:$0xff]
  %v7299 = vld [vmem:[%s7260 + $0x130] sm:$0xff]
  %v7300 = vld [vmem:[%s7260 + $0x138] sm:$0xff]
  %v7301 = vld [vmem:[%s7260 + $0x140] sm:$0xff]
  %v7302 = vld [vmem:[%s7260 + $0x148] sm:$0xff]
  %v7303 = vld [vmem:[%s7260 + $0x150] sm:$0xff]
  %v7304 = vld [vmem:[%s7260 + $0x158] sm:$0xff]
  %v7305 = vld [vmem:[%s7260 + $0x160] sm:$0xff]
  %v7306 = vld [vmem:[%s7260 + $0x168] sm:$0xff]
  %v7307 = vld [vmem:[%s7260 + $0x170] sm:$0xff]
  %v7308 = vld [vmem:[%s7260 + $0x178] sm:$0xff]
  %v7309 = vld [vmem:[%s7260 + $0x180] sm:$0xff]
  %v7310 = vld [vmem:[%s7260 + $0x188] sm:$0xff]
  %v7311 = vld [vmem:[%s7260 + $0x190] sm:$0xff]
  %v7312 = vld [vmem:[%s7260 + $0x198] sm:$0xff]
  %v7313 = vld [vmem:[%s7260 + $0x1a0] sm:$0xff]
  %v7314 = vld [vmem:[%s7260 + $0x1a8] sm:$0xff]
  %v7315 = vld [vmem:[%s7260 + $0x1b0] sm:$0xff]
  %v7316 = vld [vmem:[%s7260 + $0x1b8] sm:$0xff]
  %v7317 = vld [vmem:[%s7260 + $0x1c0] sm:$0xff]
  %v7318 = vld [vmem:[%s7260 + $0x1c8] sm:$0xff]
  %v7319 = vld [vmem:[%s7260 + $0x1d0] sm:$0xff]
  %v7320 = vld [vmem:[%s7260 + $0x1d8] sm:$0xff]
  %v7321 = vld [vmem:[%s7260 + $0x1e0] sm:$0xff]
  %v7322 = vld [vmem:[%s7260 + $0x1e8] sm:$0xff]
  %v7323 = vld [vmem:[%s7260 + $0x1f0] sm:$0xff]
  %v7324 = vld [vmem:[%s7260 + $0x1f8] sm:$0xff]
  %s7325 = scalar_lea.vmem %s11, 32
  %v7326 = vld [vmem:[%s7325] sm:$0xff]
  %v7327 = vld [vmem:[%s7325 + $0x8] sm:$0xff]
  %s7328 = scalar_lea.vmem %s12, 2048
  %v7329 = vld [vmem:[%s7328] sm:$0xf]
  %v7330 = vld [vmem:[%s7328 + $0x4] sm:$0xf]
  %v7331 = vld [vmem:[%s7328 + $0x8] sm:$0xf]
  %v7332 = vld [vmem:[%s7328 + $0xc] sm:$0xf]
  %v7333 = vld [vmem:[%s7328 + $0x10] sm:$0xf]
  %v7334 = vld [vmem:[%s7328 + $0x14] sm:$0xf]
  %v7335 = vld [vmem:[%s7328 + $0x18] sm:$0xf]
  %v7336 = vld [vmem:[%s7328 + $0x1c] sm:$0xf]
  %v7337 = vld [vmem:[%s7328 + $0x20] sm:$0xf]
  %v7338 = vld [vmem:[%s7328 + $0x24] sm:$0xf]
  %v7339 = vld [vmem:[%s7328 + $0x28] sm:$0xf]
  %v7340 = vld [vmem:[%s7328 + $0x2c] sm:$0xf]
  %v7341 = vld [vmem:[%s7328 + $0x30] sm:$0xf]
  %v7342 = vld [vmem:[%s7328 + $0x34] sm:$0xf]
  %v7343 = vld [vmem:[%s7328 + $0x38] sm:$0xf]
  %v7344 = vld [vmem:[%s7328 + $0x3c] sm:$0xf]
  %v7345 = vld [vmem:[%s7328 + $0x40] sm:$0xf]
  %v7346 = vld [vmem:[%s7328 + $0x44] sm:$0xf]
  %v7347 = vld [vmem:[%s7328 + $0x48] sm:$0xf]
  %v7348 = vld [vmem:[%s7328 + $0x4c] sm:$0xf]
  %v7349 = vld [vmem:[%s7328 + $0x50] sm:$0xf]
  %v7350 = vld [vmem:[%s7328 + $0x54] sm:$0xf]
  %v7351 = vld [vmem:[%s7328 + $0x58] sm:$0xf]
  %v7352 = vld [vmem:[%s7328 + $0x5c] sm:$0xf]
  %v7353 = vld [vmem:[%s7328 + $0x60] sm:$0xf]
  %v7354 = vld [vmem:[%s7328 + $0x64] sm:$0xf]
  %v7355 = vld [vmem:[%s7328 + $0x68] sm:$0xf]
  %v7356 = vld [vmem:[%s7328 + $0x6c] sm:$0xf]
  %v7357 = vld [vmem:[%s7328 + $0x70] sm:$0xf]
  %v7358 = vld [vmem:[%s7328 + $0x74] sm:$0xf]
  %v7359 = vld [vmem:[%s7328 + $0x78] sm:$0xf]
  %v7360 = vld [vmem:[%s7328 + $0x7c] sm:$0xf]
  %v7361 = vld [vmem:[%s7328 + $0x80] sm:$0xf]
  %v7362 = vld [vmem:[%s7328 + $0x84] sm:$0xf]
  %v7363 = vld [vmem:[%s7328 + $0x88] sm:$0xf]
  %v7364 = vld [vmem:[%s7328 + $0x8c] sm:$0xf]
  %v7365 = vld [vmem:[%s7328 + $0x90] sm:$0xf]
  %v7366 = vld [vmem:[%s7328 + $0x94] sm:$0xf]
  %v7367 = vld [vmem:[%s7328 + $0x98] sm:$0xf]
  %v7368 = vld [vmem:[%s7328 + $0x9c] sm:$0xf]
  %v7369 = vld [vmem:[%s7328 + $0xa0] sm:$0xf]
  %v7370 = vld [vmem:[%s7328 + $0xa4] sm:$0xf]
  %v7371 = vld [vmem:[%s7328 + $0xa8] sm:$0xf]
  %v7372 = vld [vmem:[%s7328 + $0xac] sm:$0xf]
  %v7373 = vld [vmem:[%s7328 + $0xb0] sm:$0xf]
  %v7374 = vld [vmem:[%s7328 + $0xb4] sm:$0xf]
  %v7375 = vld [vmem:[%s7328 + $0xb8] sm:$0xf]
  %v7376 = vld [vmem:[%s7328 + $0xbc] sm:$0xf]
  %v7377 = vld [vmem:[%s7328 + $0xc0] sm:$0xf]
  %v7378 = vld [vmem:[%s7328 + $0xc4] sm:$0xf]
  %v7379 = vld [vmem:[%s7328 + $0xc8] sm:$0xf]
  %v7380 = vld [vmem:[%s7328 + $0xcc] sm:$0xf]
  %v7381 = vld [vmem:[%s7328 + $0xd0] sm:$0xf]
  %v7382 = vld [vmem:[%s7328 + $0xd4] sm:$0xf]
  %v7383 = vld [vmem:[%s7328 + $0xd8] sm:$0xf]
  %v7384 = vld [vmem:[%s7328 + $0xdc] sm:$0xf]
  %v7385 = vld [vmem:[%s7328 + $0xe0] sm:$0xf]
  %v7386 = vld [vmem:[%s7328 + $0xe4] sm:$0xf]
  %v7387 = vld [vmem:[%s7328 + $0xe8] sm:$0xf]
  %v7388 = vld [vmem:[%s7328 + $0xec] sm:$0xf]
  %v7389 = vld [vmem:[%s7328 + $0xf0] sm:$0xf]
  %v7390 = vld [vmem:[%s7328 + $0xf4] sm:$0xf]
  %v7391 = vld [vmem:[%s7328 + $0xf8] sm:$0xf]
  %v7392 = vld [vmem:[%s7328 + $0xfc] sm:$0xf]
  %v7393 = vld [vmem:[%s7328 + $0x100] sm:$0xf]
  %v7394 = vld [vmem:[%s7328 + $0x104] sm:$0xf]
  %v7395 = vld [vmem:[%s7328 + $0x108] sm:$0xf]
  %v7396 = vld [vmem:[%s7328 + $0x10c] sm:$0xf]
  %v7397 = vld [vmem:[%s7328 + $0x110] sm:$0xf]
  %v7398 = vld [vmem:[%s7328 + $0x114] sm:$0xf]
  %v7399 = vld [vmem:[%s7328 + $0x118] sm:$0xf]
  %v7400 = vld [vmem:[%s7328 + $0x11c] sm:$0xf]
  %v7401 = vld [vmem:[%s7328 + $0x120] sm:$0xf]
  %v7402 = vld [vmem:[%s7328 + $0x124] sm:$0xf]
  %v7403 = vld [vmem:[%s7328 + $0x128] sm:$0xf]
  %v7404 = vld [vmem:[%s7328 + $0x12c] sm:$0xf]
  %v7405 = vld [vmem:[%s7328 + $0x130] sm:$0xf]
  %v7406 = vld [vmem:[%s7328 + $0x134] sm:$0xf]
  %v7407 = vld [vmem:[%s7328 + $0x138] sm:$0xf]
  %v7408 = vld [vmem:[%s7328 + $0x13c] sm:$0xf]
  %v7409 = vld [vmem:[%s7328 + $0x140] sm:$0xf]
  %v7410 = vld [vmem:[%s7328 + $0x144] sm:$0xf]
  %v7411 = vld [vmem:[%s7328 + $0x148] sm:$0xf]
  %v7412 = vld [vmem:[%s7328 + $0x14c] sm:$0xf]
  %v7413 = vld [vmem:[%s7328 + $0x150] sm:$0xf]
  %v7414 = vld [vmem:[%s7328 + $0x154] sm:$0xf]
  %v7415 = vld [vmem:[%s7328 + $0x158] sm:$0xf]
  %v7416 = vld [vmem:[%s7328 + $0x15c] sm:$0xf]
  %v7417 = vld [vmem:[%s7328 + $0x160] sm:$0xf]
  %v7418 = vld [vmem:[%s7328 + $0x164] sm:$0xf]
  %v7419 = vld [vmem:[%s7328 + $0x168] sm:$0xf]
  %v7420 = vld [vmem:[%s7328 + $0x16c] sm:$0xf]
  %v7421 = vld [vmem:[%s7328 + $0x170] sm:$0xf]
  %v7422 = vld [vmem:[%s7328 + $0x174] sm:$0xf]
  %v7423 = vld [vmem:[%s7328 + $0x178] sm:$0xf]
  %v7424 = vld [vmem:[%s7328 + $0x17c] sm:$0xf]
  %v7425 = vld [vmem:[%s7328 + $0x180] sm:$0xf]
  %v7426 = vld [vmem:[%s7328 + $0x184] sm:$0xf]
  %v7427 = vld [vmem:[%s7328 + $0x188] sm:$0xf]
  %v7428 = vld [vmem:[%s7328 + $0x18c] sm:$0xf]
  %v7429 = vld [vmem:[%s7328 + $0x190] sm:$0xf]
  %v7430 = vld [vmem:[%s7328 + $0x194] sm:$0xf]
  %v7431 = vld [vmem:[%s7328 + $0x198] sm:$0xf]
  %v7432 = vld [vmem:[%s7328 + $0x19c] sm:$0xf]
  %v7433 = vld [vmem:[%s7328 + $0x1a0] sm:$0xf]
  %v7434 = vld [vmem:[%s7328 + $0x1a4] sm:$0xf]
  %v7435 = vld [vmem:[%s7328 + $0x1a8] sm:$0xf]
  %v7436 = vld [vmem:[%s7328 + $0x1ac] sm:$0xf]
  %v7437 = vld [vmem:[%s7328 + $0x1b0] sm:$0xf]
  %v7438 = vld [vmem:[%s7328 + $0x1b4] sm:$0xf]
  %v7439 = vld [vmem:[%s7328 + $0x1b8] sm:$0xf]
  %v7440 = vld [vmem:[%s7328 + $0x1bc] sm:$0xf]
  %v7441 = vld [vmem:[%s7328 + $0x1c0] sm:$0xf]
  %v7442 = vld [vmem:[%s7328 + $0x1c4] sm:$0xf]
  %v7443 = vld [vmem:[%s7328 + $0x1c8] sm:$0xf]
  %v7444 = vld [vmem:[%s7328 + $0x1cc] sm:$0xf]
  %v7445 = vld [vmem:[%s7328 + $0x1d0] sm:$0xf]
  %v7446 = vld [vmem:[%s7328 + $0x1d4] sm:$0xf]
  %v7447 = vld [vmem:[%s7328 + $0x1d8] sm:$0xf]
  %v7448 = vld [vmem:[%s7328 + $0x1dc] sm:$0xf]
  %v7449 = vld [vmem:[%s7328 + $0x1e0] sm:$0xf]
  %v7450 = vld [vmem:[%s7328 + $0x1e4] sm:$0xf]
  %v7451 = vld [vmem:[%s7328 + $0x1e8] sm:$0xf]
  %v7452 = vld [vmem:[%s7328 + $0x1ec] sm:$0xf]
  %v7453 = vld [vmem:[%s7328 + $0x1f0] sm:$0xf]
  %v7454 = vld [vmem:[%s7328 + $0x1f4] sm:$0xf]
  %v7455 = vld [vmem:[%s7328 + $0x1f8] sm:$0xf]
  %v7456 = vld [vmem:[%s7328 + $0x1fc] sm:$0xf]
  %v7457 = vld [vmem:[%s7328 + $0x200] sm:$0xf]
  %v7458 = vld [vmem:[%s7328 + $0x204] sm:$0xf]
  %v7459 = vld [vmem:[%s7328 + $0x208] sm:$0xf]
  %v7460 = vld [vmem:[%s7328 + $0x20c] sm:$0xf]
  %v7461 = vld [vmem:[%s7328 + $0x210] sm:$0xf]
  %v7462 = vld [vmem:[%s7328 + $0x214] sm:$0xf]
  %v7463 = vld [vmem:[%s7328 + $0x218] sm:$0xf]
  %v7464 = vld [vmem:[%s7328 + $0x21c] sm:$0xf]
  %v7465 = vld [vmem:[%s7328 + $0x220] sm:$0xf]
  %v7466 = vld [vmem:[%s7328 + $0x224] sm:$0xf]
  %v7467 = vld [vmem:[%s7328 + $0x228] sm:$0xf]
  %v7468 = vld [vmem:[%s7328 + $0x22c] sm:$0xf]
  %v7469 = vld [vmem:[%s7328 + $0x230] sm:$0xf]
  %v7470 = vld [vmem:[%s7328 + $0x234] sm:$0xf]
  %v7471 = vld [vmem:[%s7328 + $0x238] sm:$0xf]
  %v7472 = vld [vmem:[%s7328 + $0x23c] sm:$0xf]
  %v7473 = vld [vmem:[%s7328 + $0x240] sm:$0xf]
  %v7474 = vld [vmem:[%s7328 + $0x244] sm:$0xf]
  %v7475 = vld [vmem:[%s7328 + $0x248] sm:$0xf]
  %v7476 = vld [vmem:[%s7328 + $0x24c] sm:$0xf]
  %v7477 = vld [vmem:[%s7328 + $0x250] sm:$0xf]
  %v7478 = vld [vmem:[%s7328 + $0x254] sm:$0xf]
  %v7479 = vld [vmem:[%s7328 + $0x258] sm:$0xf]
  %v7480 = vld [vmem:[%s7328 + $0x25c] sm:$0xf]
  %v7481 = vld [vmem:[%s7328 + $0x260] sm:$0xf]
  %v7482 = vld [vmem:[%s7328 + $0x264] sm:$0xf]
  %v7483 = vld [vmem:[%s7328 + $0x268] sm:$0xf]
  %v7484 = vld [vmem:[%s7328 + $0x26c] sm:$0xf]
  %v7485 = vld [vmem:[%s7328 + $0x270] sm:$0xf]
  %v7486 = vld [vmem:[%s7328 + $0x274] sm:$0xf]
  %v7487 = vld [vmem:[%s7328 + $0x278] sm:$0xf]
  %v7488 = vld [vmem:[%s7328 + $0x27c] sm:$0xf]
  %v7489 = vld [vmem:[%s7328 + $0x280] sm:$0xf]
  %v7490 = vld [vmem:[%s7328 + $0x284] sm:$0xf]
  %v7491 = vld [vmem:[%s7328 + $0x288] sm:$0xf]
  %v7492 = vld [vmem:[%s7328 + $0x28c] sm:$0xf]
  %v7493 = vld [vmem:[%s7328 + $0x290] sm:$0xf]
  %v7494 = vld [vmem:[%s7328 + $0x294] sm:$0xf]
  %v7495 = vld [vmem:[%s7328 + $0x298] sm:$0xf]
  %v7496 = vld [vmem:[%s7328 + $0x29c] sm:$0xf]
  %v7497 = vld [vmem:[%s7328 + $0x2a0] sm:$0xf]
  %v7498 = vld [vmem:[%s7328 + $0x2a4] sm:$0xf]
  %v7499 = vld [vmem:[%s7328 + $0x2a8] sm:$0xf]
  %v7500 = vld [vmem:[%s7328 + $0x2ac] sm:$0xf]
  %v7501 = vld [vmem:[%s7328 + $0x2b0] sm:$0xf]
  %v7502 = vld [vmem:[%s7328 + $0x2b4] sm:$0xf]
  %v7503 = vld [vmem:[%s7328 + $0x2b8] sm:$0xf]
  %v7504 = vld [vmem:[%s7328 + $0x2bc] sm:$0xf]
  %v7505 = vld [vmem:[%s7328 + $0x2c0] sm:$0xf]
  %v7506 = vld [vmem:[%s7328 + $0x2c4] sm:$0xf]
  %v7507 = vld [vmem:[%s7328 + $0x2c8] sm:$0xf]
  %v7508 = vld [vmem:[%s7328 + $0x2cc] sm:$0xf]
  %v7509 = vld [vmem:[%s7328 + $0x2d0] sm:$0xf]
  %v7510 = vld [vmem:[%s7328 + $0x2d4] sm:$0xf]
  %v7511 = vld [vmem:[%s7328 + $0x2d8] sm:$0xf]
  %v7512 = vld [vmem:[%s7328 + $0x2dc] sm:$0xf]
  %v7513 = vld [vmem:[%s7328 + $0x2e0] sm:$0xf]
  %v7514 = vld [vmem:[%s7328 + $0x2e4] sm:$0xf]
  %v7515 = vld [vmem:[%s7328 + $0x2e8] sm:$0xf]
  %v7516 = vld [vmem:[%s7328 + $0x2ec] sm:$0xf]
  %v7517 = vld [vmem:[%s7328 + $0x2f0] sm:$0xf]
  %v7518 = vld [vmem:[%s7328 + $0x2f4] sm:$0xf]
  %v7519 = vld [vmem:[%s7328 + $0x2f8] sm:$0xf]
  %v7520 = vld [vmem:[%s7328 + $0x2fc] sm:$0xf]
  %v7521 = vld [vmem:[%s7328 + $0x300] sm:$0xf]
  %v7522 = vld [vmem:[%s7328 + $0x304] sm:$0xf]
  %v7523 = vld [vmem:[%s7328 + $0x308] sm:$0xf]
  %v7524 = vld [vmem:[%s7328 + $0x30c] sm:$0xf]
  %v7525 = vld [vmem:[%s7328 + $0x310] sm:$0xf]
  %v7526 = vld [vmem:[%s7328 + $0x314] sm:$0xf]
  %v7527 = vld [vmem:[%s7328 + $0x318] sm:$0xf]
  %v7528 = vld [vmem:[%s7328 + $0x31c] sm:$0xf]
  %v7529 = vld [vmem:[%s7328 + $0x320] sm:$0xf]
  %v7530 = vld [vmem:[%s7328 + $0x324] sm:$0xf]
  %v7531 = vld [vmem:[%s7328 + $0x328] sm:$0xf]
  %v7532 = vld [vmem:[%s7328 + $0x32c] sm:$0xf]
  %v7533 = vld [vmem:[%s7328 + $0x330] sm:$0xf]
  %v7534 = vld [vmem:[%s7328 + $0x334] sm:$0xf]
  %v7535 = vld [vmem:[%s7328 + $0x338] sm:$0xf]
  %v7536 = vld [vmem:[%s7328 + $0x33c] sm:$0xf]
  %v7537 = vld [vmem:[%s7328 + $0x340] sm:$0xf]
  %v7538 = vld [vmem:[%s7328 + $0x344] sm:$0xf]
  %v7539 = vld [vmem:[%s7328 + $0x348] sm:$0xf]
  %v7540 = vld [vmem:[%s7328 + $0x34c] sm:$0xf]
  %v7541 = vld [vmem:[%s7328 + $0x350] sm:$0xf]
  %v7542 = vld [vmem:[%s7328 + $0x354] sm:$0xf]
  %v7543 = vld [vmem:[%s7328 + $0x358] sm:$0xf]
  %v7544 = vld [vmem:[%s7328 + $0x35c] sm:$0xf]
  %v7545 = vld [vmem:[%s7328 + $0x360] sm:$0xf]
  %v7546 = vld [vmem:[%s7328 + $0x364] sm:$0xf]
  %v7547 = vld [vmem:[%s7328 + $0x368] sm:$0xf]
  %v7548 = vld [vmem:[%s7328 + $0x36c] sm:$0xf]
  %v7549 = vld [vmem:[%s7328 + $0x370] sm:$0xf]
  %v7550 = vld [vmem:[%s7328 + $0x374] sm:$0xf]
  %v7551 = vld [vmem:[%s7328 + $0x378] sm:$0xf]
  %v7552 = vld [vmem:[%s7328 + $0x37c] sm:$0xf]
  %v7553 = vld [vmem:[%s7328 + $0x380] sm:$0xf]
  %v7554 = vld [vmem:[%s7328 + $0x384] sm:$0xf]
  %v7555 = vld [vmem:[%s7328 + $0x388] sm:$0xf]
  %v7556 = vld [vmem:[%s7328 + $0x38c] sm:$0xf]
  %v7557 = vld [vmem:[%s7328 + $0x390] sm:$0xf]
  %v7558 = vld [vmem:[%s7328 + $0x394] sm:$0xf]
  %v7559 = vld [vmem:[%s7328 + $0x398] sm:$0xf]
  %v7560 = vld [vmem:[%s7328 + $0x39c] sm:$0xf]
  %v7561 = vld [vmem:[%s7328 + $0x3a0] sm:$0xf]
  %v7562 = vld [vmem:[%s7328 + $0x3a4] sm:$0xf]
  %v7563 = vld [vmem:[%s7328 + $0x3a8] sm:$0xf]
  %v7564 = vld [vmem:[%s7328 + $0x3ac] sm:$0xf]
  %v7565 = vld [vmem:[%s7328 + $0x3b0] sm:$0xf]
  %v7566 = vld [vmem:[%s7328 + $0x3b4] sm:$0xf]
  %v7567 = vld [vmem:[%s7328 + $0x3b8] sm:$0xf]
  %v7568 = vld [vmem:[%s7328 + $0x3bc] sm:$0xf]
  %v7569 = vld [vmem:[%s7328 + $0x3c0] sm:$0xf]
  %v7570 = vld [vmem:[%s7328 + $0x3c4] sm:$0xf]
  %v7571 = vld [vmem:[%s7328 + $0x3c8] sm:$0xf]
  %v7572 = vld [vmem:[%s7328 + $0x3cc] sm:$0xf]
  %v7573 = vld [vmem:[%s7328 + $0x3d0] sm:$0xf]
  %v7574 = vld [vmem:[%s7328 + $0x3d4] sm:$0xf]
  %v7575 = vld [vmem:[%s7328 + $0x3d8] sm:$0xf]
  %v7576 = vld [vmem:[%s7328 + $0x3dc] sm:$0xf]
  %v7577 = vld [vmem:[%s7328 + $0x3e0] sm:$0xf]
  %v7578 = vld [vmem:[%s7328 + $0x3e4] sm:$0xf]
  %v7579 = vld [vmem:[%s7328 + $0x3e8] sm:$0xf]
  %v7580 = vld [vmem:[%s7328 + $0x3ec] sm:$0xf]
  %v7581 = vld [vmem:[%s7328 + $0x3f0] sm:$0xf]
  %v7582 = vld [vmem:[%s7328 + $0x3f4] sm:$0xf]
  %v7583 = vld [vmem:[%s7328 + $0x3f8] sm:$0xf]
  %v7584 = vld [vmem:[%s7328 + $0x3fc] sm:$0xf]
  %s7585 = scalar_lea.vmem %s13, 2
  %v7586 = vld [vmem:[%s7585] sm:$0x1]
  %s7587 = scalar_lea.vmem %s14, 2
  %v7588 = vld [vmem:[%s7587] sm:$0x1]
  %s7589 = scalar_lea.vmem %s15, 2
  %v7590 = vld [vmem:[%s7589] sm:$0x1]
  %v7591 = vpack.c.bf16 %v7233, %v7232
  %v7593 = vlaneseq
  %v7594 = vshrl.u32 %v7593, 7
  %v7595 = vsub.s32 0, %v7594
  %v7596 = vrot.slane %v7244, %v7595
  %v7597 = vlaneseq
  %v7598 = vshrl.u32 %v7597, 7
  %v7599 = vsub.s32 1, %v7598
  %v7600 = vrot.slane %v7244, %v7599
  %v7611 = vunpack.c.l.b16 %v7235
  %v7612 = vunpack.c.h.b16 %v7235
  %v7613 = vunpack.c.l.b16 %v7236
  %v7614 = vunpack.c.h.b16 %v7236
  %v7615 = vunpack.c.l.b16 %v7237
  %v7616 = vunpack.c.h.b16 %v7237
  %v7617 = vunpack.c.l.b16 %v7238
  %v7618 = vunpack.c.h.b16 %v7238
  %v7619 = vunpack.c.l.b16 %v7239
  %v7620 = vunpack.c.h.b16 %v7239
  %v7621 = vunpack.c.l.b16 %v7240
  %v7622 = vunpack.c.h.b16 %v7240
  %v7623 = vunpack.c.l.b16 %v7241
  %v7624 = vunpack.c.h.b16 %v7241
  %v7625 = vunpack.c.l.b16 %v7242
  %v7626 = vunpack.c.h.b16 %v7242
  %v7627 = vpack.c.b16 %v7613, %v7611
  %v7628 = vpack.c.b16 %v7614, %v7612
  %v7629 = vpack.c.b16 %v7617, %v7615
  %v7630 = vpack.c.b16 %v7618, %v7616
  %v7631 = vpack.c.b16 %v7621, %v7619
  %v7632 = vpack.c.b16 %v7622, %v7620
  %v7633 = vpack.c.b16 %v7625, %v7623
  %v7634 = vpack.c.b16 %v7626, %v7624
  %v7644 = vsel %vm545, %v7591, 0
  %7646 = vmatprep.subr.bf16.mxu0 0
  %7647 = vmatpush1.bf16.msra.mxu0 0
  %7648 = vmatprep.subr.bf16.mxu0 0
  %7649 = vmatpush1.bf16.msra.mxu0 0
  %7650 = vmatprep.subr.bf16.mxu0 0
  %7651 = vmatpush1.bf16.msra.mxu0 0
  %7652 = vmatprep.subr.bf16.mxu0 0
  %7653 = vmatpush1.bf16.msra.mxu0 0
  %7654 = vmatprep.subr.bf16.mxu0 %v7634
  %7655 = vmatpush1.bf16.msra.mxu0 %v7633
  %7656 = vmatprep.subr.bf16.mxu0 %v7632
  %7657 = vmatpush1.bf16.msra.mxu0 %v7631
  %7658 = vmatprep.subr.bf16.mxu0 %v7630
  %7659 = vmatpush1.bf16.msra.mxu0 %v7629
  %7660 = vmatprep.subr.bf16.mxu0 %v7628
  %7661 = vmatpush1.bf16.msra.mxu0 %v7627
  %7662 = vmatprep.subr.bf16.mxu0 0
  %7663 = vmatpush2.bf16.msra.mxu0 0
  %7664 = vmatprep.subr.bf16.mxu0 0
  %7665 = vmatpush2.bf16.msra.mxu0 0
  %7666 = vmatprep.subr.bf16.mxu0 0
  %7667 = vmatpush2.bf16.msra.mxu0 0
  %7668 = vmatprep.subr.bf16.mxu0 0
  %7669 = vmatpush2.bf16.msra.mxu0 0
  %7670 = vmatprep.subr.bf16.mxu0 0
  %7671 = vmatpush2.bf16.msra.mxu0 0
  %7672 = vmatprep.subr.bf16.mxu0 0
  %7673 = vmatpush2.bf16.msra.mxu0 0
  %7674 = vmatprep.subr.bf16.mxu0 0
  %7675 = vmatpush2.bf16.msra.mxu0 0
  %7676 = vmatprep.subr.bf16.mxu0 0
  %7677 = vmatpush2.bf16.msra.mxu0 0
  %7678 = vmatprep.mubr.bf16.mxu0 0
  %7679 = vmatmul.mubr.bf16.gmra.mxu0 %v7644
  %v7680 = vpop.f32.mrf.mxu0
  %v7681 = vadd.f32 %v7596, %v7680
  %v7682 = vpop.f32.mrf.mxu0
  %v7683 = vadd.f32 %v7600, %v7682
  %v7684 = vpop.f32.mrf.mxu0
  %v7685 = vadd.f32 %v7596, %v7684
  %v7686 = vpop.f32.mrf.mxu0
  %v7687 = vadd.f32 %v7600, %v7686
  %7688 = vdwg.mxu0
  %v7689 = vpack.c.bf16 %v7681, %v7681
  %v7690 = vpack.c.bf16 %v7685, %v7685
  %v7691 = vpack.c.bf16 %v7683, %v7683
  %v7692 = vpack.c.bf16 %v7687, %v7687
  %7694 = vrot.lane.b32.xlu0 %v7689, 64
  %v7695 = vpop.permute.xlu0 %7694
  %v7697 = vsel %vm103, %v7689, 0
  %v7700 = vsel %vm103, %v7695, 0
  %7702 = vmatprep.subr.bf16.mxu0 0
  %7703 = vmatpush1.bf16.xpose.msra.mxu0 0
  %7704 = vmatprep.subr.bf16.mxu0 0
  %7705 = vmatpush1.bf16.xpose.msra.mxu0 0
  %7706 = vmatprep.subr.bf16.mxu0 0
  %7707 = vmatpush1.bf16.xpose.msra.mxu0 0
  %7708 = vmatprep.subr.bf16.mxu0 0
  %7709 = vmatpush1.bf16.xpose.msra.mxu0 0
  %7710 = vmatprep.subr.bf16.mxu0 0
  %7711 = vmatpush1.bf16.xpose.msra.mxu0 0
  %7712 = vmatprep.subr.bf16.mxu0 0
  %7713 = vmatpush1.bf16.xpose.msra.mxu0 0
  %7714 = vmatprep.subr.bf16.mxu0 0
  %7715 = vmatpush1.bf16.xpose.msra.mxu0 0
  %7716 = vmatprep.subr.bf16.mxu0 0
  %7717 = vmatpush1.bf16.xpose.msra.mxu0 %v7700
  %7718 = vmatprep.subr.bf16.mxu0 0
  %7719 = vmatpush2.bf16.xpose.msra.mxu0 0
  %7720 = vmatprep.subr.bf16.mxu0 0
  %7721 = vmatpush2.bf16.xpose.msra.mxu0 0
  %7722 = vmatprep.subr.bf16.mxu0 0
  %7723 = vmatpush2.bf16.xpose.msra.mxu0 0
  %7724 = vmatprep.subr.bf16.mxu0 0
  %7725 = vmatpush2.bf16.xpose.msra.mxu0 0
  %7726 = vmatprep.subr.bf16.mxu0 0
  %7727 = vmatpush2.bf16.xpose.msra.mxu0 0
  %7728 = vmatprep.subr.bf16.mxu0 0
  %7729 = vmatpush2.bf16.xpose.msra.mxu0 0
  %7730 = vmatprep.subr.bf16.mxu0 0
  %7731 = vmatpush2.bf16.xpose.msra.mxu0 0
  %7732 = vmatprep.subr.bf16.mxu0 0
  %7733 = vmatpush2.bf16.xpose.msra.mxu0 0
  %7734 = vmatprep.mubr.bf16.mxu0 0
  %7735 = vmatmul.mubr.bf16.gmra.mxu0 %v7697
  %v7736 = vpop.f32.mrf.mxu0
  %v7737 = vadd.f32 0.0, %v7736
  %v7738 = vpop.f32.mrf.mxu0
  %v7739 = vpop.f32.mrf.mxu0
  %v7740 = vpop.f32.mrf.mxu0
  %7741 = vdwg.mxu0
  %7743 = vrot.lane.b32.xlu0 %v7690, 64
  %v7744 = vpop.permute.xlu0 %7743
  %v7746 = vsel %vm103, %v7690, 0
  %v7749 = vsel %vm103, %v7744, 0
  %7751 = vmatprep.subr.bf16.mxu0 0
  %7752 = vmatpush1.bf16.xpose.msra.mxu0 0
  %7753 = vmatprep.subr.bf16.mxu0 0
  %7754 = vmatpush1.bf16.xpose.msra.mxu0 0
  %7755 = vmatprep.subr.bf16.mxu0 0
  %7756 = vmatpush1.bf16.xpose.msra.mxu0 0
  %7757 = vmatprep.subr.bf16.mxu0 0
  %7758 = vmatpush1.bf16.xpose.msra.mxu0 0
  %7759 = vmatprep.subr.bf16.mxu0 0
  %7760 = vmatpush1.bf16.xpose.msra.mxu0 0
  %7761 = vmatprep.subr.bf16.mxu0 0
  %7762 = vmatpush1.bf16.xpose.msra.mxu0 0
  %7763 = vmatprep.subr.bf16.mxu0 0
  %7764 = vmatpush1.bf16.xpose.msra.mxu0 0
  %7765 = vmatprep.subr.bf16.mxu0 0
  %7766 = vmatpush1.bf16.xpose.msra.mxu0 %v7749
  %7767 = vmatprep.subr.bf16.mxu0 0
  %7768 = vmatpush2.bf16.xpose.msra.mxu0 0
  %7769 = vmatprep.subr.bf16.mxu0 0
  %7770 = vmatpush2.bf16.xpose.msra.mxu0 0
  %7771 = vmatprep.subr.bf16.mxu0 0
  %7772 = vmatpush2.bf16.xpose.msra.mxu0 0
  %7773 = vmatprep.subr.bf16.mxu0 0
  %7774 = vmatpush2.bf16.xpose.msra.mxu0 0
  %7775 = vmatprep.subr.bf16.mxu0 0
  %7776 = vmatpush2.bf16.xpose.msra.mxu0 0
  %7777 = vmatprep.subr.bf16.mxu0 0
  %7778 = vmatpush2.bf16.xpose.msra.mxu0 0
  %7779 = vmatprep.subr.bf16.mxu0 0
  %7780 = vmatpush2.bf16.xpose.msra.mxu0 0
  %7781 = vmatprep.subr.bf16.mxu0 0
  %7782 = vmatpush2.bf16.xpose.msra.mxu0 0
  %7783 = vmatprep.mubr.bf16.mxu0 0
  %7784 = vmatmul.mubr.bf16.gmra.mxu0 %v7746
  %v7785 = vpop.f32.mrf.mxu0
  %v7786 = vadd.f32 0.0, %v7785
  %v7787 = vpop.f32.mrf.mxu0
  %v7788 = vpop.f32.mrf.mxu0
  %v7789 = vpop.f32.mrf.mxu0
  %7790 = vdwg.mxu0
  %v7791 = vmul.f32 %v7737, 0.25
  %v7792 = vmul.f32 %v7786, 0.25
  %v7793 = vsel %vm696, %v7791, -inf
  %7794 = vmax.xlane.f32.xlu0 %v7793
  %v7795 = vpop.xlane.xlu0 %7794
  %v7796 = vsel %vm696, %v7792, -inf
  %7797 = vmax.xlane.f32.xlu0 %v7796
  %v7798 = vpop.xlane.xlu0 %7797
  %v7799 = vsub.f32 %v7791, %v7795
  %v7800 = vsub.f32 %v7792, %v7798
  %v7801 = vmul.f32 %v7799, 1.442695
  %v7802 = vpow.pop %v7801
  %v7803 = vmul.f32 %v7800, 1.442695
  %v7804 = vpow.pop %v7803
  %v7805 = vsel %vm696, %v7802, 0.0
  %7806 = vadd.xlane.f32.xlu0 %v7805
  %v7807 = vpop.xlane.xlu0 %7806
  %v7808 = vsel %vm696, %v7804, 0.0
  %7809 = vadd.xlane.f32.xlu0 %v7808
  %v7810 = vpop.xlane.xlu0 %7809
  %v7811 = vrcp.pop %v7807
  %v7812 = vmul.f32 %v7802, %v7811
  %v7813 = vrcp.pop %v7810
  %v7814 = vmul.f32 %v7804, %v7813
  %v7815 = vpack.c.bf16 %v7812, %v7812
  %v7816 = vpack.c.bf16 %v7814, %v7814
  %v7818 = vsel %vm696, %v7815, 0
  %v7821 = vsel %vm724, %v7691, 0
  %7823 = vmatprep.subr.bf16.mxu0 0
  %7824 = vmatpush1.bf16.msra.mxu0 0
  %7825 = vmatprep.subr.bf16.mxu0 0
  %7826 = vmatpush1.bf16.msra.mxu0 0
  %7827 = vmatprep.subr.bf16.mxu0 0
  %7828 = vmatpush1.bf16.msra.mxu0 0
  %7829 = vmatprep.subr.bf16.mxu0 0
  %7830 = vmatpush1.bf16.msra.mxu0 0
  %7831 = vmatprep.subr.bf16.mxu0 0
  %7832 = vmatpush1.bf16.msra.mxu0 0
  %7833 = vmatprep.subr.bf16.mxu0 0
  %7834 = vmatpush1.bf16.msra.mxu0 0
  %7835 = vmatprep.subr.bf16.mxu0 0
  %7836 = vmatpush1.bf16.msra.mxu0 0
  %7837 = vmatprep.subr.bf16.mxu0 0
  %7838 = vmatpush1.bf16.msra.mxu0 %v7821
  %7839 = vmatprep.subr.bf16.mxu0 0
  %7840 = vmatpush2.bf16.msra.mxu0 0
  %7841 = vmatprep.subr.bf16.mxu0 0
  %7842 = vmatpush2.bf16.msra.mxu0 0
  %7843 = vmatprep.subr.bf16.mxu0 0
  %7844 = vmatpush2.bf16.msra.mxu0 0
  %7845 = vmatprep.subr.bf16.mxu0 0
  %7846 = vmatpush2.bf16.msra.mxu0 0
  %7847 = vmatprep.subr.bf16.mxu0 0
  %7848 = vmatpush2.bf16.msra.mxu0 0
  %7849 = vmatprep.subr.bf16.mxu0 0
  %7850 = vmatpush2.bf16.msra.mxu0 0
  %7851 = vmatprep.subr.bf16.mxu0 0
  %7852 = vmatpush2.bf16.msra.mxu0 0
  %7853 = vmatprep.subr.bf16.mxu0 0
  %7854 = vmatpush2.bf16.msra.mxu0 0
  %7855 = vmatprep.mubr.bf16.mxu0 0
  %7856 = vmatmul.mubr.bf16.gmra.mxu0 %v7818
  %v7857 = vpop.f32.mrf.mxu0
  %v7858 = vadd.f32 0.0, %v7857
  %v7859 = vpop.f32.mrf.mxu0
  %v7860 = vpop.f32.mrf.mxu0
  %v7861 = vpop.f32.mrf.mxu0
  %7862 = vdwg.mxu0
  %v7864 = vsel %vm696, %v7816, 0
  %v7867 = vsel %vm724, %v7692, 0
  %7869 = vmatprep.subr.bf16.mxu0 0
  %7870 = vmatpush1.bf16.msra.mxu0 0
  %7871 = vmatprep.subr.bf16.mxu0 0
  %7872 = vmatpush1.bf16.msra.mxu0 0
  %7873 = vmatprep.subr.bf16.mxu0 0
  %7874 = vmatpush1.bf16.msra.mxu0 0
  %7875 = vmatprep.subr.bf16.mxu0 0
  %7876 = vmatpush1.bf16.msra.mxu0 0
  %7877 = vmatprep.subr.bf16.mxu0 0
  %7878 = vmatpush1.bf16.msra.mxu0 0
  %7879 = vmatprep.subr.bf16.mxu0 0
  %7880 = vmatpush1.bf16.msra.mxu0 0
  %7881 = vmatprep.subr.bf16.mxu0 0
  %7882 = vmatpush1.bf16.msra.mxu0 0
  %7883 = vmatprep.subr.bf16.mxu0 0
  %7884 = vmatpush1.bf16.msra.mxu0 %v7867
  %7885 = vmatprep.subr.bf16.mxu0 0
  %7886 = vmatpush2.bf16.msra.mxu0 0
  %7887 = vmatprep.subr.bf16.mxu0 0
  %7888 = vmatpush2.bf16.msra.mxu0 0
  %7889 = vmatprep.subr.bf16.mxu0 0
  %7890 = vmatpush2.bf16.msra.mxu0 0
  %7891 = vmatprep.subr.bf16.mxu0 0
  %7892 = vmatpush2.bf16.msra.mxu0 0
  %7893 = vmatprep.subr.bf16.mxu0 0
  %7894 = vmatpush2.bf16.msra.mxu0 0
  %7895 = vmatprep.subr.bf16.mxu0 0
  %7896 = vmatpush2.bf16.msra.mxu0 0
  %7897 = vmatprep.subr.bf16.mxu0 0
  %7898 = vmatpush2.bf16.msra.mxu0 0
  %7899 = vmatprep.subr.bf16.mxu0 0
  %7900 = vmatpush2.bf16.msra.mxu0 0
  %7901 = vmatprep.mubr.bf16.mxu0 0
  %7902 = vmatmul.mubr.bf16.gmra.mxu0 %v7864
  %v7903 = vpop.f32.mrf.mxu0
  %v7904 = vadd.f32 0.0, %v7903
  %v7905 = vpop.f32.mrf.mxu0
  %v7906 = vpop.f32.mrf.mxu0
  %v7907 = vpop.f32.mrf.mxu0
  %7908 = vdwg.mxu0
  %v7909 = vpack.c.bf16 %v7904, %v7858
  %7910 = vrot.lane.b32.xlu0 %v7689, 112
  %v7911 = vpop.permute.xlu0 %7910
  %7912 = vrot.lane.b32.xlu0 %v7689, 48
  %v7913 = vpop.permute.xlu0 %7912
  %v7915 = vsel %vm103, %v7911, 0
  %v7918 = vsel %vm103, %v7913, 0
  %7920 = vmatprep.subr.bf16.mxu0 0
  %7921 = vmatpush1.bf16.xpose.msra.mxu0 0
  %7922 = vmatprep.subr.bf16.mxu0 0
  %7923 = vmatpush1.bf16.xpose.msra.mxu0 0
  %7924 = vmatprep.subr.bf16.mxu0 0
  %7925 = vmatpush1.bf16.xpose.msra.mxu0 0
  %7926 = vmatprep.subr.bf16.mxu0 0
  %7927 = vmatpush1.bf16.xpose.msra.mxu0 0
  %7928 = vmatprep.subr.bf16.mxu0 0
  %7929 = vmatpush1.bf16.xpose.msra.mxu0 0
  %7930 = vmatprep.subr.bf16.mxu0 0
  %7931 = vmatpush1.bf16.xpose.msra.mxu0 0
  %7932 = vmatprep.subr.bf16.mxu0 0
  %7933 = vmatpush1.bf16.xpose.msra.mxu0 0
  %7934 = vmatprep.subr.bf16.mxu0 0
  %7935 = vmatpush1.bf16.xpose.msra.mxu0 %v7918
  %7936 = vmatprep.subr.bf16.mxu0 0
  %7937 = vmatpush2.bf16.xpose.msra.mxu0 0
  %7938 = vmatprep.subr.bf16.mxu0 0
  %7939 = vmatpush2.bf16.xpose.msra.mxu0 0
  %7940 = vmatprep.subr.bf16.mxu0 0
  %7941 = vmatpush2.bf16.xpose.msra.mxu0 0
  %7942 = vmatprep.subr.bf16.mxu0 0
  %7943 = vmatpush2.bf16.xpose.msra.mxu0 0
  %7944 = vmatprep.subr.bf16.mxu0 0
  %7945 = vmatpush2.bf16.xpose.msra.mxu0 0
  %7946 = vmatprep.subr.bf16.mxu0 0
  %7947 = vmatpush2.bf16.xpose.msra.mxu0 0
  %7948 = vmatprep.subr.bf16.mxu0 0
  %7949 = vmatpush2.bf16.xpose.msra.mxu0 0
  %7950 = vmatprep.subr.bf16.mxu0 0
  %7951 = vmatpush2.bf16.xpose.msra.mxu0 0
  %7952 = vmatprep.mubr.bf16.mxu0 0
  %7953 = vmatmul.mubr.bf16.gmra.mxu0 %v7915
  %v7954 = vpop.f32.mrf.mxu0
  %v7955 = vadd.f32 0.0, %v7954
  %v7956 = vpop.f32.mrf.mxu0
  %v7957 = vpop.f32.mrf.mxu0
  %v7958 = vpop.f32.mrf.mxu0
  %7959 = vdwg.mxu0
  %7960 = vrot.lane.b32.xlu0 %v7690, 112
  %v7961 = vpop.permute.xlu0 %7960
  %7962 = vrot.lane.b32.xlu0 %v7690, 48
  %v7963 = vpop.permute.xlu0 %7962
  %v7965 = vsel %vm103, %v7961, 0
  %v7968 = vsel %vm103, %v7963, 0
  %7970 = vmatprep.subr.bf16.mxu0 0
  %7971 = vmatpush1.bf16.xpose.msra.mxu0 0
  %7972 = vmatprep.subr.bf16.mxu0 0
  %7973 = vmatpush1.bf16.xpose.msra.mxu0 0
  %7974 = vmatprep.subr.bf16.mxu0 0
  %7975 = vmatpush1.bf16.xpose.msra.mxu0 0
  %7976 = vmatprep.subr.bf16.mxu0 0
  %7977 = vmatpush1.bf16.xpose.msra.mxu0 0
  %7978 = vmatprep.subr.bf16.mxu0 0
  %7979 = vmatpush1.bf16.xpose.msra.mxu0 0
  %7980 = vmatprep.subr.bf16.mxu0 0
  %7981 = vmatpush1.bf16.xpose.msra.mxu0 0
  %7982 = vmatprep.subr.bf16.mxu0 0
  %7983 = vmatpush1.bf16.xpose.msra.mxu0 0
  %7984 = vmatprep.subr.bf16.mxu0 0
  %7985 = vmatpush1.bf16.xpose.msra.mxu0 %v7968
  %7986 = vmatprep.subr.bf16.mxu0 0
  %7987 = vmatpush2.bf16.xpose.msra.mxu0 0
  %7988 = vmatprep.subr.bf16.mxu0 0
  %7989 = vmatpush2.bf16.xpose.msra.mxu0 0
  %7990 = vmatprep.subr.bf16.mxu0 0
  %7991 = vmatpush2.bf16.xpose.msra.mxu0 0
  %7992 = vmatprep.subr.bf16.mxu0 0
  %7993 = vmatpush2.bf16.xpose.msra.mxu0 0
  %7994 = vmatprep.subr.bf16.mxu0 0
  %7995 = vmatpush2.bf16.xpose.msra.mxu0 0
  %7996 = vmatprep.subr.bf16.mxu0 0
  %7997 = vmatpush2.bf16.xpose.msra.mxu0 0
  %7998 = vmatprep.subr.bf16.mxu0 0
  %7999 = vmatpush2.bf16.xpose.msra.mxu0 0
  %8000 = vmatprep.subr.bf16.mxu0 0
  %8001 = vmatpush2.bf16.xpose.msra.mxu0 0
  %8002 = vmatprep.mubr.bf16.mxu0 0
  %8003 = vmatmul.mubr.bf16.gmra.mxu0 %v7965
  %v8004 = vpop.f32.mrf.mxu0
  %v8005 = vadd.f32 0.0, %v8004
  %v8006 = vpop.f32.mrf.mxu0
  %v8007 = vpop.f32.mrf.mxu0
  %v8008 = vpop.f32.mrf.mxu0
  %8009 = vdwg.mxu0
  %v8010 = vmul.f32 %v7955, 0.25
  %v8011 = vmul.f32 %v8005, 0.25
  %v8012 = vsel %vm696, %v8010, -inf
  %8013 = vmax.xlane.f32.xlu0 %v8012
  %v8014 = vpop.xlane.xlu0 %8013
  %v8015 = vsel %vm696, %v8011, -inf
  %8016 = vmax.xlane.f32.xlu0 %v8015
  %v8017 = vpop.xlane.xlu0 %8016
  %v8018 = vsub.f32 %v8010, %v8014
  %v8019 = vsub.f32 %v8011, %v8017
  %v8020 = vmul.f32 %v8018, 1.442695
  %v8021 = vpow.pop %v8020
  %v8022 = vmul.f32 %v8019, 1.442695
  %v8023 = vpow.pop %v8022
  %v8024 = vsel %vm696, %v8021, 0.0
  %8025 = vadd.xlane.f32.xlu0 %v8024
  %v8026 = vpop.xlane.xlu0 %8025
  %v8027 = vsel %vm696, %v8023, 0.0
  %8028 = vadd.xlane.f32.xlu0 %v8027
  %v8029 = vpop.xlane.xlu0 %8028
  %v8030 = vrcp.pop %v8026
  %v8031 = vmul.f32 %v8021, %v8030
  %v8032 = vrcp.pop %v8029
  %v8033 = vmul.f32 %v8023, %v8032
  %v8034 = vpack.c.bf16 %v8031, %v8031
  %v8035 = vpack.c.bf16 %v8033, %v8033
  %8037 = vrot.lane.b32.xlu0 %v7691, 112
  %v8038 = vpop.permute.xlu0 %8037
  %v8040 = vsel %vm696, %v8034, 0
  %v8043 = vsel %vm724, %v8038, 0
  %8045 = vmatprep.subr.bf16.mxu0 0
  %8046 = vmatpush1.bf16.msra.mxu0 0
  %8047 = vmatprep.subr.bf16.mxu0 0
  %8048 = vmatpush1.bf16.msra.mxu0 0
  %8049 = vmatprep.subr.bf16.mxu0 0
  %8050 = vmatpush1.bf16.msra.mxu0 0
  %8051 = vmatprep.subr.bf16.mxu0 0
  %8052 = vmatpush1.bf16.msra.mxu0 0
  %8053 = vmatprep.subr.bf16.mxu0 0
  %8054 = vmatpush1.bf16.msra.mxu0 0
  %8055 = vmatprep.subr.bf16.mxu0 0
  %8056 = vmatpush1.bf16.msra.mxu0 0
  %8057 = vmatprep.subr.bf16.mxu0 0
  %8058 = vmatpush1.bf16.msra.mxu0 0
  %8059 = vmatprep.subr.bf16.mxu0 0
  %8060 = vmatpush1.bf16.msra.mxu0 %v8043
  %8061 = vmatprep.subr.bf16.mxu0 0
  %8062 = vmatpush2.bf16.msra.mxu0 0
  %8063 = vmatprep.subr.bf16.mxu0 0
  %8064 = vmatpush2.bf16.msra.mxu0 0
  %8065 = vmatprep.subr.bf16.mxu0 0
  %8066 = vmatpush2.bf16.msra.mxu0 0
  %8067 = vmatprep.subr.bf16.mxu0 0
  %8068 = vmatpush2.bf16.msra.mxu0 0
  %8069 = vmatprep.subr.bf16.mxu0 0
  %8070 = vmatpush2.bf16.msra.mxu0 0
  %8071 = vmatprep.subr.bf16.mxu0 0
  %8072 = vmatpush2.bf16.msra.mxu0 0
  %8073 = vmatprep.subr.bf16.mxu0 0
  %8074 = vmatpush2.bf16.msra.mxu0 0
  %8075 = vmatprep.subr.bf16.mxu0 0
  %8076 = vmatpush2.bf16.msra.mxu0 0
  %8077 = vmatprep.mubr.bf16.mxu0 0
  %8078 = vmatmul.mubr.bf16.gmra.mxu0 %v8040
  %v8079 = vpop.f32.mrf.mxu0
  %v8080 = vadd.f32 0.0, %v8079
  %v8081 = vpop.f32.mrf.mxu0
  %v8082 = vpop.f32.mrf.mxu0
  %v8083 = vpop.f32.mrf.mxu0
  %8084 = vdwg.mxu0
  %8086 = vrot.lane.b32.xlu0 %v7692, 112
  %v8087 = vpop.permute.xlu0 %8086
  %v8089 = vsel %vm696, %v8035, 0
  %v8092 = vsel %vm724, %v8087, 0
  %8094 = vmatprep.subr.bf16.mxu0 0
  %8095 = vmatpush1.bf16.msra.mxu0 0
  %8096 = vmatprep.subr.bf16.mxu0 0
  %8097 = vmatpush1.bf16.msra.mxu0 0
  %8098 = vmatprep.subr.bf16.mxu0 0
  %8099 = vmatpush1.bf16.msra.mxu0 0
  %8100 = vmatprep.subr.bf16.mxu0 0
  %8101 = vmatpush1.bf16.msra.mxu0 0
  %8102 = vmatprep.subr.bf16.mxu0 0
  %8103 = vmatpush1.bf16.msra.mxu0 0
  %8104 = vmatprep.subr.bf16.mxu0 0
  %8105 = vmatpush1.bf16.msra.mxu0 0
  %8106 = vmatprep.subr.bf16.mxu0 0
  %8107 = vmatpush1.bf16.msra.mxu0 0
  %8108 = vmatprep.subr.bf16.mxu0 0
  %8109 = vmatpush1.bf16.msra.mxu0 %v8092
  %8110 = vmatprep.subr.bf16.mxu0 0
  %8111 = vmatpush2.bf16.msra.mxu0 0
  %8112 = vmatprep.subr.bf16.mxu0 0
  %8113 = vmatpush2.bf16.msra.mxu0 0
  %8114 = vmatprep.subr.bf16.mxu0 0
  %8115 = vmatpush2.bf16.msra.mxu0 0
  %8116 = vmatprep.subr.bf16.mxu0 0
  %8117 = vmatpush2.bf16.msra.mxu0 0
  %8118 = vmatprep.subr.bf16.mxu0 0
  %8119 = vmatpush2.bf16.msra.mxu0 0
  %8120 = vmatprep.subr.bf16.mxu0 0
  %8121 = vmatpush2.bf16.msra.mxu0 0
  %8122 = vmatprep.subr.bf16.mxu0 0
  %8123 = vmatpush2.bf16.msra.mxu0 0
  %8124 = vmatprep.subr.bf16.mxu0 0
  %8125 = vmatpush2.bf16.msra.mxu0 0
  %8126 = vmatprep.mubr.bf16.mxu0 0
  %8127 = vmatmul.mubr.bf16.gmra.mxu0 %v8089
  %v8128 = vpop.f32.mrf.mxu0
  %v8129 = vadd.f32 0.0, %v8128
  %v8130 = vpop.f32.mrf.mxu0
  %v8131 = vpop.f32.mrf.mxu0
  %v8132 = vpop.f32.mrf.mxu0
  %8133 = vdwg.mxu0
  %v8134 = vpack.c.bf16 %v8129, %v8080
  %v8137 = vunpack.c.l.b16 %v7248
  %v8138 = vunpack.c.l.b16 %v7249
  %v8139 = vpack.c.b16 %v8138, %v8137
  %v8142 = vsel %vm103, %v8134, 0
  %8144 = vmatprep.subr.bf16.mxu0 0
  %8145 = vmatpush1.bf16.msra.mxu0 0
  %8146 = vmatprep.subr.bf16.mxu0 0
  %8147 = vmatpush1.bf16.msra.mxu0 0
  %8148 = vmatprep.subr.bf16.mxu0 0
  %8149 = vmatpush1.bf16.msra.mxu0 0
  %8150 = vmatprep.subr.bf16.mxu0 0
  %8151 = vmatpush1.bf16.msra.mxu0 0
  %8152 = vmatprep.subr.bf16.mxu0 0
  %8153 = vmatpush1.bf16.msra.mxu0 0
  %8154 = vmatprep.subr.bf16.mxu0 0
  %8155 = vmatpush1.bf16.msra.mxu0 0
  %8156 = vmatprep.subr.bf16.mxu0 0
  %8157 = vmatpush1.bf16.msra.mxu0 0
  %8158 = vmatprep.subr.bf16.mxu0 0
  %8159 = vmatpush1.bf16.msra.mxu0 %v8139
  %8160 = vmatprep.subr.bf16.mxu0 0
  %8161 = vmatpush2.bf16.msra.mxu0 0
  %8162 = vmatprep.subr.bf16.mxu0 0
  %8163 = vmatpush2.bf16.msra.mxu0 0
  %8164 = vmatprep.subr.bf16.mxu0 0
  %8165 = vmatpush2.bf16.msra.mxu0 0
  %8166 = vmatprep.subr.bf16.mxu0 0
  %8167 = vmatpush2.bf16.msra.mxu0 0
  %8168 = vmatprep.subr.bf16.mxu0 0
  %8169 = vmatpush2.bf16.msra.mxu0 0
  %8170 = vmatprep.subr.bf16.mxu0 0
  %8171 = vmatpush2.bf16.msra.mxu0 0
  %8172 = vmatprep.subr.bf16.mxu0 0
  %8173 = vmatpush2.bf16.msra.mxu0 0
  %8174 = vmatprep.subr.bf16.mxu0 0
  %8175 = vmatpush2.bf16.msra.mxu0 0
  %8176 = vmatprep.mubr.bf16.mxu0 0
  %8177 = vmatmul.mubr.bf16.gmra.mxu0 %v8142
  %v8178 = vpop.f32.mrf.mxu0
  %v8179 = vadd.f32 0.0, %v8178
  %v8180 = vpop.f32.mrf.mxu0
  %v8181 = vpop.f32.mrf.mxu0
  %v8182 = vadd.f32 0.0, %v8181
  %v8183 = vpop.f32.mrf.mxu0
  %8184 = vdwg.mxu0
  %v8187 = vunpack.c.l.b16 %v7246
  %v8188 = vunpack.c.l.b16 %v7247
  %v8189 = vpack.c.b16 %v8188, %v8187
  %v8192 = vsel %vm103, %v7909, 0
  %8194 = vmatprep.subr.bf16.mxu0 0
  %8195 = vmatpush1.bf16.msra.mxu0 0
  %8196 = vmatprep.subr.bf16.mxu0 0
  %8197 = vmatpush1.bf16.msra.mxu0 0
  %8198 = vmatprep.subr.bf16.mxu0 0
  %8199 = vmatpush1.bf16.msra.mxu0 0
  %8200 = vmatprep.subr.bf16.mxu0 0
  %8201 = vmatpush1.bf16.msra.mxu0 0
  %8202 = vmatprep.subr.bf16.mxu0 0
  %8203 = vmatpush1.bf16.msra.mxu0 0
  %8204 = vmatprep.subr.bf16.mxu0 0
  %8205 = vmatpush1.bf16.msra.mxu0 0
  %8206 = vmatprep.subr.bf16.mxu0 0
  %8207 = vmatpush1.bf16.msra.mxu0 0
  %8208 = vmatprep.subr.bf16.mxu0 0
  %8209 = vmatpush1.bf16.msra.mxu0 %v8189
  %8210 = vmatprep.subr.bf16.mxu0 0
  %8211 = vmatpush2.bf16.msra.mxu0 0
  %8212 = vmatprep.subr.bf16.mxu0 0
  %8213 = vmatpush2.bf16.msra.mxu0 0
  %8214 = vmatprep.subr.bf16.mxu0 0
  %8215 = vmatpush2.bf16.msra.mxu0 0
  %8216 = vmatprep.subr.bf16.mxu0 0
  %8217 = vmatpush2.bf16.msra.mxu0 0
  %8218 = vmatprep.subr.bf16.mxu0 0
  %8219 = vmatpush2.bf16.msra.mxu0 0
  %8220 = vmatprep.subr.bf16.mxu0 0
  %8221 = vmatpush2.bf16.msra.mxu0 0
  %8222 = vmatprep.subr.bf16.mxu0 0
  %8223 = vmatpush2.bf16.msra.mxu0 0
  %8224 = vmatprep.subr.bf16.mxu0 0
  %8225 = vmatpush2.bf16.msra.mxu0 0
  %8226 = vmatprep.mubr.bf16.mxu0 0
  %8227 = vmatmul.mubr.bf16.gmra.mxu0 %v8192
  %v8228 = vpop.f32.mrf.mxu0
  %v8229 = vadd.f32 %v8179, %v8228
  %v8230 = vpop.f32.mrf.mxu0
  %v8231 = vpop.f32.mrf.mxu0
  %v8232 = vadd.f32 %v8182, %v8231
  %v8233 = vpop.f32.mrf.mxu0
  %8234 = vdwg.mxu0
  %8235 = vrot.lane.b32.xlu0 %v7689, 96
  %v8236 = vpop.permute.xlu0 %8235
  %8237 = vrot.lane.b32.xlu0 %v7689, 32
  %v8238 = vpop.permute.xlu0 %8237
  %v8240 = vsel %vm103, %v8236, 0
  %v8243 = vsel %vm103, %v8238, 0
  %8245 = vmatprep.subr.bf16.mxu0 0
  %8246 = vmatpush1.bf16.xpose.msra.mxu0 0
  %8247 = vmatprep.subr.bf16.mxu0 0
  %8248 = vmatpush1.bf16.xpose.msra.mxu0 0
  %8249 = vmatprep.subr.bf16.mxu0 0
  %8250 = vmatpush1.bf16.xpose.msra.mxu0 0
  %8251 = vmatprep.subr.bf16.mxu0 0
  %8252 = vmatpush1.bf16.xpose.msra.mxu0 0
  %8253 = vmatprep.subr.bf16.mxu0 0
  %8254 = vmatpush1.bf16.xpose.msra.mxu0 0
  %8255 = vmatprep.subr.bf16.mxu0 0
  %8256 = vmatpush1.bf16.xpose.msra.mxu0 0
  %8257 = vmatprep.subr.bf16.mxu0 0
  %8258 = vmatpush1.bf16.xpose.msra.mxu0 0
  %8259 = vmatprep.subr.bf16.mxu0 0
  %8260 = vmatpush1.bf16.xpose.msra.mxu0 %v8243
  %8261 = vmatprep.subr.bf16.mxu0 0
  %8262 = vmatpush2.bf16.xpose.msra.mxu0 0
  %8263 = vmatprep.subr.bf16.mxu0 0
  %8264 = vmatpush2.bf16.xpose.msra.mxu0 0
  %8265 = vmatprep.subr.bf16.mxu0 0
  %8266 = vmatpush2.bf16.xpose.msra.mxu0 0
  %8267 = vmatprep.subr.bf16.mxu0 0
  %8268 = vmatpush2.bf16.xpose.msra.mxu0 0
  %8269 = vmatprep.subr.bf16.mxu0 0
  %8270 = vmatpush2.bf16.xpose.msra.mxu0 0
  %8271 = vmatprep.subr.bf16.mxu0 0
  %8272 = vmatpush2.bf16.xpose.msra.mxu0 0
  %8273 = vmatprep.subr.bf16.mxu0 0
  %8274 = vmatpush2.bf16.xpose.msra.mxu0 0
  %8275 = vmatprep.subr.bf16.mxu0 0
  %8276 = vmatpush2.bf16.xpose.msra.mxu0 0
  %8277 = vmatprep.mubr.bf16.mxu0 0
  %8278 = vmatmul.mubr.bf16.gmra.mxu0 %v8240
  %v8279 = vpop.f32.mrf.mxu0
  %v8280 = vadd.f32 0.0, %v8279
  %v8281 = vpop.f32.mrf.mxu0
  %v8282 = vpop.f32.mrf.mxu0
  %v8283 = vpop.f32.mrf.mxu0
  %8284 = vdwg.mxu0
  %8285 = vrot.lane.b32.xlu0 %v7690, 96
  %v8286 = vpop.permute.xlu0 %8285
  %8287 = vrot.lane.b32.xlu0 %v7690, 32
  %v8288 = vpop.permute.xlu0 %8287
  %v8290 = vsel %vm103, %v8286, 0
  %v8293 = vsel %vm103, %v8288, 0
  %8295 = vmatprep.subr.bf16.mxu0 0
  %8296 = vmatpush1.bf16.xpose.msra.mxu0 0
  %8297 = vmatprep.subr.bf16.mxu0 0
  %8298 = vmatpush1.bf16.xpose.msra.mxu0 0
  %8299 = vmatprep.subr.bf16.mxu0 0
  %8300 = vmatpush1.bf16.xpose.msra.mxu0 0
  %8301 = vmatprep.subr.bf16.mxu0 0
  %8302 = vmatpush1.bf16.xpose.msra.mxu0 0
  %8303 = vmatprep.subr.bf16.mxu0 0
  %8304 = vmatpush1.bf16.xpose.msra.mxu0 0
  %8305 = vmatprep.subr.bf16.mxu0 0
  %8306 = vmatpush1.bf16.xpose.msra.mxu0 0
  %8307 = vmatprep.subr.bf16.mxu0 0
  %8308 = vmatpush1.bf16.xpose.msra.mxu0 0
  %8309 = vmatprep.subr.bf16.mxu0 0
  %8310 = vmatpush1.bf16.xpose.msra.mxu0 %v8293
  %8311 = vmatprep.subr.bf16.mxu0 0
  %8312 = vmatpush2.bf16.xpose.msra.mxu0 0
  %8313 = vmatprep.subr.bf16.mxu0 0
  %8314 = vmatpush2.bf16.xpose.msra.mxu0 0
  %8315 = vmatprep.subr.bf16.mxu0 0
  %8316 = vmatpush2.bf16.xpose.msra.mxu0 0
  %8317 = vmatprep.subr.bf16.mxu0 0
  %8318 = vmatpush2.bf16.xpose.msra.mxu0 0
  %8319 = vmatprep.subr.bf16.mxu0 0
  %8320 = vmatpush2.bf16.xpose.msra.mxu0 0
  %8321 = vmatprep.subr.bf16.mxu0 0
  %8322 = vmatpush2.bf16.xpose.msra.mxu0 0
  %8323 = vmatprep.subr.bf16.mxu0 0
  %8324 = vmatpush2.bf16.xpose.msra.mxu0 0
  %8325 = vmatprep.subr.bf16.mxu0 0
  %8326 = vmatpush2.bf16.xpose.msra.mxu0 0
  %8327 = vmatprep.mubr.bf16.mxu0 0
  %8328 = vmatmul.mubr.bf16.gmra.mxu0 %v8290
  %v8329 = vpop.f32.mrf.mxu0
  %v8330 = vadd.f32 0.0, %v8329
  %v8331 = vpop.f32.mrf.mxu0
  %v8332 = vpop.f32.mrf.mxu0
  %v8333 = vpop.f32.mrf.mxu0
  %8334 = vdwg.mxu0
  %v8335 = vmul.f32 %v8280, 0.25
  %v8336 = vmul.f32 %v8330, 0.25
  %v8337 = vsel %vm696, %v8335, -inf
  %8338 = vmax.xlane.f32.xlu0 %v8337
  %v8339 = vpop.xlane.xlu0 %8338
  %v8340 = vsel %vm696, %v8336, -inf
  %8341 = vmax.xlane.f32.xlu0 %v8340
  %v8342 = vpop.xlane.xlu0 %8341
  %v8343 = vsub.f32 %v8335, %v8339
  %v8344 = vsub.f32 %v8336, %v8342
  %v8345 = vmul.f32 %v8343, 1.442695
  %v8346 = vpow.pop %v8345
  %v8347 = vmul.f32 %v8344, 1.442695
  %v8348 = vpow.pop %v8347
  %v8349 = vsel %vm696, %v8346, 0.0
  %8350 = vadd.xlane.f32.xlu0 %v8349
  %v8351 = vpop.xlane.xlu0 %8350
  %v8352 = vsel %vm696, %v8348, 0.0
  %8353 = vadd.xlane.f32.xlu0 %v8352
  %v8354 = vpop.xlane.xlu0 %8353
  %v8355 = vrcp.pop %v8351
  %v8356 = vmul.f32 %v8346, %v8355
  %v8357 = vrcp.pop %v8354
  %v8358 = vmul.f32 %v8348, %v8357
  %v8359 = vpack.c.bf16 %v8356, %v8356
  %v8360 = vpack.c.bf16 %v8358, %v8358
  %8361 = vrot.lane.b32.xlu0 %v7691, 96
  %v8362 = vpop.permute.xlu0 %8361
  %v8364 = vsel %vm696, %v8359, 0
  %v8367 = vsel %vm724, %v8362, 0
  %8369 = vmatprep.subr.bf16.mxu0 0
  %8370 = vmatpush1.bf16.msra.mxu0 0
  %8371 = vmatprep.subr.bf16.mxu0 0
  %8372 = vmatpush1.bf16.msra.mxu0 0
  %8373 = vmatprep.subr.bf16.mxu0 0
  %8374 = vmatpush1.bf16.msra.mxu0 0
  %8375 = vmatprep.subr.bf16.mxu0 0
  %8376 = vmatpush1.bf16.msra.mxu0 0
  %8377 = vmatprep.subr.bf16.mxu0 0
  %8378 = vmatpush1.bf16.msra.mxu0 0
  %8379 = vmatprep.subr.bf16.mxu0 0
  %8380 = vmatpush1.bf16.msra.mxu0 0
  %8381 = vmatprep.subr.bf16.mxu0 0
  %8382 = vmatpush1.bf16.msra.mxu0 0
  %8383 = vmatprep.subr.bf16.mxu0 0
  %8384 = vmatpush1.bf16.msra.mxu0 %v8367
  %8385 = vmatprep.subr.bf16.mxu0 0
  %8386 = vmatpush2.bf16.msra.mxu0 0
  %8387 = vmatprep.subr.bf16.mxu0 0
  %8388 = vmatpush2.bf16.msra.mxu0 0
  %8389 = vmatprep.subr.bf16.mxu0 0
  %8390 = vmatpush2.bf16.msra.mxu0 0
  %8391 = vmatprep.subr.bf16.mxu0 0
  %8392 = vmatpush2.bf16.msra.mxu0 0
  %8393 = vmatprep.subr.bf16.mxu0 0
  %8394 = vmatpush2.bf16.msra.mxu0 0
  %8395 = vmatprep.subr.bf16.mxu0 0
  %8396 = vmatpush2.bf16.msra.mxu0 0
  %8397 = vmatprep.subr.bf16.mxu0 0
  %8398 = vmatpush2.bf16.msra.mxu0 0
  %8399 = vmatprep.subr.bf16.mxu0 0
  %8400 = vmatpush2.bf16.msra.mxu0 0
  %8401 = vmatprep.mubr.bf16.mxu0 0
  %8402 = vmatmul.mubr.bf16.gmra.mxu0 %v8364
  %v8403 = vpop.f32.mrf.mxu0
  %v8404 = vadd.f32 0.0, %v8403
  %v8405 = vpop.f32.mrf.mxu0
  %v8406 = vpop.f32.mrf.mxu0
  %v8407 = vpop.f32.mrf.mxu0
  %8408 = vdwg.mxu0
  %8409 = vrot.lane.b32.xlu0 %v7692, 96
  %v8410 = vpop.permute.xlu0 %8409
  %v8412 = vsel %vm696, %v8360, 0
  %v8415 = vsel %vm724, %v8410, 0
  %8417 = vmatprep.subr.bf16.mxu0 0
  %8418 = vmatpush1.bf16.msra.mxu0 0
  %8419 = vmatprep.subr.bf16.mxu0 0
  %8420 = vmatpush1.bf16.msra.mxu0 0
  %8421 = vmatprep.subr.bf16.mxu0 0
  %8422 = vmatpush1.bf16.msra.mxu0 0
  %8423 = vmatprep.subr.bf16.mxu0 0
  %8424 = vmatpush1.bf16.msra.mxu0 0
  %8425 = vmatprep.subr.bf16.mxu0 0
  %8426 = vmatpush1.bf16.msra.mxu0 0
  %8427 = vmatprep.subr.bf16.mxu0 0
  %8428 = vmatpush1.bf16.msra.mxu0 0
  %8429 = vmatprep.subr.bf16.mxu0 0
  %8430 = vmatpush1.bf16.msra.mxu0 0
  %8431 = vmatprep.subr.bf16.mxu0 0
  %8432 = vmatpush1.bf16.msra.mxu0 %v8415
  %8433 = vmatprep.subr.bf16.mxu0 0
  %8434 = vmatpush2.bf16.msra.mxu0 0
  %8435 = vmatprep.subr.bf16.mxu0 0
  %8436 = vmatpush2.bf16.msra.mxu0 0
  %8437 = vmatprep.subr.bf16.mxu0 0
  %8438 = vmatpush2.bf16.msra.mxu0 0
  %8439 = vmatprep.subr.bf16.mxu0 0
  %8440 = vmatpush2.bf16.msra.mxu0 0
  %8441 = vmatprep.subr.bf16.mxu0 0
  %8442 = vmatpush2.bf16.msra.mxu0 0
  %8443 = vmatprep.subr.bf16.mxu0 0
  %8444 = vmatpush2.bf16.msra.mxu0 0
  %8445 = vmatprep.subr.bf16.mxu0 0
  %8446 = vmatpush2.bf16.msra.mxu0 0
  %8447 = vmatprep.subr.bf16.mxu0 0
  %8448 = vmatpush2.bf16.msra.mxu0 0
  %8449 = vmatprep.mubr.bf16.mxu0 0
  %8450 = vmatmul.mubr.bf16.gmra.mxu0 %v8412
  %v8451 = vpop.f32.mrf.mxu0
  %v8452 = vadd.f32 0.0, %v8451
  %v8453 = vpop.f32.mrf.mxu0
  %v8454 = vpop.f32.mrf.mxu0
  %v8455 = vpop.f32.mrf.mxu0
  %8456 = vdwg.mxu0
  %v8457 = vpack.c.bf16 %v8452, %v8404
  %v8460 = vunpack.c.l.b16 %v7250
  %v8461 = vunpack.c.l.b16 %v7251
  %v8462 = vpack.c.b16 %v8461, %v8460
  %v8465 = vsel %vm103, %v8457, 0
  %8467 = vmatprep.subr.bf16.mxu0 0
  %8468 = vmatpush1.bf16.msra.mxu0 0
  %8469 = vmatprep.subr.bf16.mxu0 0
  %8470 = vmatpush1.bf16.msra.mxu0 0
  %8471 = vmatprep.subr.bf16.mxu0 0
  %8472 = vmatpush1.bf16.msra.mxu0 0
  %8473 = vmatprep.subr.bf16.mxu0 0
  %8474 = vmatpush1.bf16.msra.mxu0 0
  %8475 = vmatprep.subr.bf16.mxu0 0
  %8476 = vmatpush1.bf16.msra.mxu0 0
  %8477 = vmatprep.subr.bf16.mxu0 0
  %8478 = vmatpush1.bf16.msra.mxu0 0
  %8479 = vmatprep.subr.bf16.mxu0 0
  %8480 = vmatpush1.bf16.msra.mxu0 0
  %8481 = vmatprep.subr.bf16.mxu0 0
  %8482 = vmatpush1.bf16.msra.mxu0 %v8462
  %8483 = vmatprep.subr.bf16.mxu0 0
  %8484 = vmatpush2.bf16.msra.mxu0 0
  %8485 = vmatprep.subr.bf16.mxu0 0
  %8486 = vmatpush2.bf16.msra.mxu0 0
  %8487 = vmatprep.subr.bf16.mxu0 0
  %8488 = vmatpush2.bf16.msra.mxu0 0
  %8489 = vmatprep.subr.bf16.mxu0 0
  %8490 = vmatpush2.bf16.msra.mxu0 0
  %8491 = vmatprep.subr.bf16.mxu0 0
  %8492 = vmatpush2.bf16.msra.mxu0 0
  %8493 = vmatprep.subr.bf16.mxu0 0
  %8494 = vmatpush2.bf16.msra.mxu0 0
  %8495 = vmatprep.subr.bf16.mxu0 0
  %8496 = vmatpush2.bf16.msra.mxu0 0
  %8497 = vmatprep.subr.bf16.mxu0 0
  %8498 = vmatpush2.bf16.msra.mxu0 0
  %8499 = vmatprep.mubr.bf16.mxu0 0
  %8500 = vmatmul.mubr.bf16.gmra.mxu0 %v8465
  %v8501 = vpop.f32.mrf.mxu0
  %v8502 = vadd.f32 0.0, %v8501
  %v8503 = vpop.f32.mrf.mxu0
  %v8504 = vpop.f32.mrf.mxu0
  %v8505 = vadd.f32 0.0, %v8504
  %v8506 = vpop.f32.mrf.mxu0
  %8507 = vdwg.mxu0
  %v8508 = vadd.f32 %v8229, %v8502
  %v8509 = vadd.f32 %v8232, %v8505
  %8510 = vrot.lane.b32.xlu0 %v7689, 80
  %v8511 = vpop.permute.xlu0 %8510
  %8512 = vrot.lane.b32.xlu0 %v7689, 16
  %v8513 = vpop.permute.xlu0 %8512
  %v8515 = vsel %vm103, %v8511, 0
  %v8518 = vsel %vm103, %v8513, 0
  %8520 = vmatprep.subr.bf16.mxu0 0
  %8521 = vmatpush1.bf16.xpose.msra.mxu0 0
  %8522 = vmatprep.subr.bf16.mxu0 0
  %8523 = vmatpush1.bf16.xpose.msra.mxu0 0
  %8524 = vmatprep.subr.bf16.mxu0 0
  %8525 = vmatpush1.bf16.xpose.msra.mxu0 0
  %8526 = vmatprep.subr.bf16.mxu0 0
  %8527 = vmatpush1.bf16.xpose.msra.mxu0 0
  %8528 = vmatprep.subr.bf16.mxu0 0
  %8529 = vmatpush1.bf16.xpose.msra.mxu0 0
  %8530 = vmatprep.subr.bf16.mxu0 0
  %8531 = vmatpush1.bf16.xpose.msra.mxu0 0
  %8532 = vmatprep.subr.bf16.mxu0 0
  %8533 = vmatpush1.bf16.xpose.msra.mxu0 0
  %8534 = vmatprep.subr.bf16.mxu0 0
  %8535 = vmatpush1.bf16.xpose.msra.mxu0 %v8518
  %8536 = vmatprep.subr.bf16.mxu0 0
  %8537 = vmatpush2.bf16.xpose.msra.mxu0 0
  %8538 = vmatprep.subr.bf16.mxu0 0
  %8539 = vmatpush2.bf16.xpose.msra.mxu0 0
  %8540 = vmatprep.subr.bf16.mxu0 0
  %8541 = vmatpush2.bf16.xpose.msra.mxu0 0
  %8542 = vmatprep.subr.bf16.mxu0 0
  %8543 = vmatpush2.bf16.xpose.msra.mxu0 0
  %8544 = vmatprep.subr.bf16.mxu0 0
  %8545 = vmatpush2.bf16.xpose.msra.mxu0 0
  %8546 = vmatprep.subr.bf16.mxu0 0
  %8547 = vmatpush2.bf16.xpose.msra.mxu0 0
  %8548 = vmatprep.subr.bf16.mxu0 0
  %8549 = vmatpush2.bf16.xpose.msra.mxu0 0
  %8550 = vmatprep.subr.bf16.mxu0 0
  %8551 = vmatpush2.bf16.xpose.msra.mxu0 0
  %8552 = vmatprep.mubr.bf16.mxu0 0
  %8553 = vmatmul.mubr.bf16.gmra.mxu0 %v8515
  %v8554 = vpop.f32.mrf.mxu0
  %v8555 = vadd.f32 0.0, %v8554
  %v8556 = vpop.f32.mrf.mxu0
  %v8557 = vpop.f32.mrf.mxu0
  %v8558 = vpop.f32.mrf.mxu0
  %8559 = vdwg.mxu0
  %8560 = vrot.lane.b32.xlu0 %v7690, 80
  %v8561 = vpop.permute.xlu0 %8560
  %8562 = vrot.lane.b32.xlu0 %v7690, 16
  %v8563 = vpop.permute.xlu0 %8562
  %v8565 = vsel %vm103, %v8561, 0
  %v8568 = vsel %vm103, %v8563, 0
  %8570 = vmatprep.subr.bf16.mxu0 0
  %8571 = vmatpush1.bf16.xpose.msra.mxu0 0
  %8572 = vmatprep.subr.bf16.mxu0 0
  %8573 = vmatpush1.bf16.xpose.msra.mxu0 0
  %8574 = vmatprep.subr.bf16.mxu0 0
  %8575 = vmatpush1.bf16.xpose.msra.mxu0 0
  %8576 = vmatprep.subr.bf16.mxu0 0
  %8577 = vmatpush1.bf16.xpose.msra.mxu0 0
  %8578 = vmatprep.subr.bf16.mxu0 0
  %8579 = vmatpush1.bf16.xpose.msra.mxu0 0
  %8580 = vmatprep.subr.bf16.mxu0 0
  %8581 = vmatpush1.bf16.xpose.msra.mxu0 0
  %8582 = vmatprep.subr.bf16.mxu0 0
  %8583 = vmatpush1.bf16.xpose.msra.mxu0 0
  %8584 = vmatprep.subr.bf16.mxu0 0
  %8585 = vmatpush1.bf16.xpose.msra.mxu0 %v8568
  %8586 = vmatprep.subr.bf16.mxu0 0
  %8587 = vmatpush2.bf16.xpose.msra.mxu0 0
  %8588 = vmatprep.subr.bf16.mxu0 0
  %8589 = vmatpush2.bf16.xpose.msra.mxu0 0
  %8590 = vmatprep.subr.bf16.mxu0 0
  %8591 = vmatpush2.bf16.xpose.msra.mxu0 0
  %8592 = vmatprep.subr.bf16.mxu0 0
  %8593 = vmatpush2.bf16.xpose.msra.mxu0 0
  %8594 = vmatprep.subr.bf16.mxu0 0
  %8595 = vmatpush2.bf16.xpose.msra.mxu0 0
  %8596 = vmatprep.subr.bf16.mxu0 0
  %8597 = vmatpush2.bf16.xpose.msra.mxu0 0
  %8598 = vmatprep.subr.bf16.mxu0 0
  %8599 = vmatpush2.bf16.xpose.msra.mxu0 0
  %8600 = vmatprep.subr.bf16.mxu0 0
  %8601 = vmatpush2.bf16.xpose.msra.mxu0 0
  %8602 = vmatprep.mubr.bf16.mxu0 0
  %8603 = vmatmul.mubr.bf16.gmra.mxu0 %v8565
  %v8604 = vpop.f32.mrf.mxu0
  %v8605 = vadd.f32 0.0, %v8604
  %v8606 = vpop.f32.mrf.mxu0
  %v8607 = vpop.f32.mrf.mxu0
  %v8608 = vpop.f32.mrf.mxu0
  %8609 = vdwg.mxu0
  %v8610 = vmul.f32 %v8555, 0.25
  %v8611 = vmul.f32 %v8605, 0.25
  %v8612 = vsel %vm696, %v8610, -inf
  %8613 = vmax.xlane.f32.xlu0 %v8612
  %v8614 = vpop.xlane.xlu0 %8613
  %v8615 = vsel %vm696, %v8611, -inf
  %8616 = vmax.xlane.f32.xlu0 %v8615
  %v8617 = vpop.xlane.xlu0 %8616
  %v8618 = vsub.f32 %v8610, %v8614
  %v8619 = vsub.f32 %v8611, %v8617
  %v8620 = vmul.f32 %v8618, 1.442695
  %v8621 = vpow.pop %v8620
  %v8622 = vmul.f32 %v8619, 1.442695
  %v8623 = vpow.pop %v8622
  %v8624 = vsel %vm696, %v8621, 0.0
  %8625 = vadd.xlane.f32.xlu0 %v8624
  %v8626 = vpop.xlane.xlu0 %8625
  %v8627 = vsel %vm696, %v8623, 0.0
  %8628 = vadd.xlane.f32.xlu0 %v8627
  %v8629 = vpop.xlane.xlu0 %8628
  %v8630 = vrcp.pop %v8626
  %v8631 = vmul.f32 %v8621, %v8630
  %v8632 = vrcp.pop %v8629
  %v8633 = vmul.f32 %v8623, %v8632
  %v8634 = vpack.c.bf16 %v8631, %v8631
  %v8635 = vpack.c.bf16 %v8633, %v8633
  %8636 = vrot.lane.b32.xlu0 %v7691, 80
  %v8637 = vpop.permute.xlu0 %8636
  %v8639 = vsel %vm696, %v8634, 0
  %v8642 = vsel %vm724, %v8637, 0
  %8644 = vmatprep.subr.bf16.mxu0 0
  %8645 = vmatpush1.bf16.msra.mxu0 0
  %8646 = vmatprep.subr.bf16.mxu0 0
  %8647 = vmatpush1.bf16.msra.mxu0 0
  %8648 = vmatprep.subr.bf16.mxu0 0
  %8649 = vmatpush1.bf16.msra.mxu0 0
  %8650 = vmatprep.subr.bf16.mxu0 0
  %8651 = vmatpush1.bf16.msra.mxu0 0
  %8652 = vmatprep.subr.bf16.mxu0 0
  %8653 = vmatpush1.bf16.msra.mxu0 0
  %8654 = vmatprep.subr.bf16.mxu0 0
  %8655 = vmatpush1.bf16.msra.mxu0 0
  %8656 = vmatprep.subr.bf16.mxu0 0
  %8657 = vmatpush1.bf16.msra.mxu0 0
  %8658 = vmatprep.subr.bf16.mxu0 0
  %8659 = vmatpush1.bf16.msra.mxu0 %v8642
  %8660 = vmatprep.subr.bf16.mxu0 0
  %8661 = vmatpush2.bf16.msra.mxu0 0
  %8662 = vmatprep.subr.bf16.mxu0 0
  %8663 = vmatpush2.bf16.msra.mxu0 0
  %8664 = vmatprep.subr.bf16.mxu0 0
  %8665 = vmatpush2.bf16.msra.mxu0 0
  %8666 = vmatprep.subr.bf16.mxu0 0
  %8667 = vmatpush2.bf16.msra.mxu0 0
  %8668 = vmatprep.subr.bf16.mxu0 0
  %8669 = vmatpush2.bf16.msra.mxu0 0
  %8670 = vmatprep.subr.bf16.mxu0 0
  %8671 = vmatpush2.bf16.msra.mxu0 0
  %8672 = vmatprep.subr.bf16.mxu0 0
  %8673 = vmatpush2.bf16.msra.mxu0 0
  %8674 = vmatprep.subr.bf16.mxu0 0
  %8675 = vmatpush2.bf16.msra.mxu0 0
  %8676 = vmatprep.mubr.bf16.mxu0 0
  %8677 = vmatmul.mubr.bf16.gmra.mxu0 %v8639
  %v8678 = vpop.f32.mrf.mxu0
  %v8679 = vadd.f32 0.0, %v8678
  %v8680 = vpop.f32.mrf.mxu0
  %v8681 = vpop.f32.mrf.mxu0
  %v8682 = vpop.f32.mrf.mxu0
  %8683 = vdwg.mxu0
  %8684 = vrot.lane.b32.xlu0 %v7692, 80
  %v8685 = vpop.permute.xlu0 %8684
  %v8687 = vsel %vm696, %v8635, 0
  %v8690 = vsel %vm724, %v8685, 0
  %8692 = vmatprep.subr.bf16.mxu0 0
  %8693 = vmatpush1.bf16.msra.mxu0 0
  %8694 = vmatprep.subr.bf16.mxu0 0
  %8695 = vmatpush1.bf16.msra.mxu0 0
  %8696 = vmatprep.subr.bf16.mxu0 0
  %8697 = vmatpush1.bf16.msra.mxu0 0
  %8698 = vmatprep.subr.bf16.mxu0 0
  %8699 = vmatpush1.bf16.msra.mxu0 0
  %8700 = vmatprep.subr.bf16.mxu0 0
  %8701 = vmatpush1.bf16.msra.mxu0 0
  %8702 = vmatprep.subr.bf16.mxu0 0
  %8703 = vmatpush1.bf16.msra.mxu0 0
  %8704 = vmatprep.subr.bf16.mxu0 0
  %8705 = vmatpush1.bf16.msra.mxu0 0
  %8706 = vmatprep.subr.bf16.mxu0 0
  %8707 = vmatpush1.bf16.msra.mxu0 %v8690
  %8708 = vmatprep.subr.bf16.mxu0 0
  %8709 = vmatpush2.bf16.msra.mxu0 0
  %8710 = vmatprep.subr.bf16.mxu0 0
  %8711 = vmatpush2.bf16.msra.mxu0 0
  %8712 = vmatprep.subr.bf16.mxu0 0
  %8713 = vmatpush2.bf16.msra.mxu0 0
  %8714 = vmatprep.subr.bf16.mxu0 0
  %8715 = vmatpush2.bf16.msra.mxu0 0
  %8716 = vmatprep.subr.bf16.mxu0 0
  %8717 = vmatpush2.bf16.msra.mxu0 0
  %8718 = vmatprep.subr.bf16.mxu0 0
  %8719 = vmatpush2.bf16.msra.mxu0 0
  %8720 = vmatprep.subr.bf16.mxu0 0
  %8721 = vmatpush2.bf16.msra.mxu0 0
  %8722 = vmatprep.subr.bf16.mxu0 0
  %8723 = vmatpush2.bf16.msra.mxu0 0
  %8724 = vmatprep.mubr.bf16.mxu0 0
  %8725 = vmatmul.mubr.bf16.gmra.mxu0 %v8687
  %v8726 = vpop.f32.mrf.mxu0
  %v8727 = vadd.f32 0.0, %v8726
  %v8728 = vpop.f32.mrf.mxu0
  %v8729 = vpop.f32.mrf.mxu0
  %v8730 = vpop.f32.mrf.mxu0
  %8731 = vdwg.mxu0
  %v8732 = vpack.c.bf16 %v8727, %v8679
  %v8735 = vunpack.c.l.b16 %v7252
  %v8736 = vunpack.c.l.b16 %v7253
  %v8737 = vpack.c.b16 %v8736, %v8735
  %v8740 = vsel %vm103, %v8732, 0
  %8742 = vmatprep.subr.bf16.mxu0 0
  %8743 = vmatpush1.bf16.msra.mxu0 0
  %8744 = vmatprep.subr.bf16.mxu0 0
  %8745 = vmatpush1.bf16.msra.mxu0 0
  %8746 = vmatprep.subr.bf16.mxu0 0
  %8747 = vmatpush1.bf16.msra.mxu0 0
  %8748 = vmatprep.subr.bf16.mxu0 0
  %8749 = vmatpush1.bf16.msra.mxu0 0
  %8750 = vmatprep.subr.bf16.mxu0 0
  %8751 = vmatpush1.bf16.msra.mxu0 0
  %8752 = vmatprep.subr.bf16.mxu0 0
  %8753 = vmatpush1.bf16.msra.mxu0 0
  %8754 = vmatprep.subr.bf16.mxu0 0
  %8755 = vmatpush1.bf16.msra.mxu0 0
  %8756 = vmatprep.subr.bf16.mxu0 0
  %8757 = vmatpush1.bf16.msra.mxu0 %v8737
  %8758 = vmatprep.subr.bf16.mxu0 0
  %8759 = vmatpush2.bf16.msra.mxu0 0
  %8760 = vmatprep.subr.bf16.mxu0 0
  %8761 = vmatpush2.bf16.msra.mxu0 0
  %8762 = vmatprep.subr.bf16.mxu0 0
  %8763 = vmatpush2.bf16.msra.mxu0 0
  %8764 = vmatprep.subr.bf16.mxu0 0
  %8765 = vmatpush2.bf16.msra.mxu0 0
  %8766 = vmatprep.subr.bf16.mxu0 0
  %8767 = vmatpush2.bf16.msra.mxu0 0
  %8768 = vmatprep.subr.bf16.mxu0 0
  %8769 = vmatpush2.bf16.msra.mxu0 0
  %8770 = vmatprep.subr.bf16.mxu0 0
  %8771 = vmatpush2.bf16.msra.mxu0 0
  %8772 = vmatprep.subr.bf16.mxu0 0
  %8773 = vmatpush2.bf16.msra.mxu0 0
  %8774 = vmatprep.mubr.bf16.mxu0 0
  %8775 = vmatmul.mubr.bf16.gmra.mxu0 %v8740
  %v8776 = vpop.f32.mrf.mxu0
  %v8777 = vadd.f32 0.0, %v8776
  %v8778 = vpop.f32.mrf.mxu0
  %v8779 = vpop.f32.mrf.mxu0
  %v8780 = vadd.f32 0.0, %v8779
  %v8781 = vpop.f32.mrf.mxu0
  %8782 = vdwg.mxu0
  %v8783 = vadd.f32 %v8508, %v8777
  %v8784 = vadd.f32 %v8509, %v8780
  %v8786 = vlaneseq
  %v8787 = vshrl.u32 %v8786, 7
  %v8788 = vsub.s32 0, %v8787
  %v8789 = vrot.slane %v7255, %v8788
  %v8791 = vadd.f32 %v8783, %v8789
  %v8792 = vadd.f32 %v8784, %v8789
  %v8793 = vadd.f32 %v7232, %v8791
  %v8794 = vadd.f32 %v7233, %v8792
  %v8795 = vsel %vm545, %v8793, 0.0
  %8796 = vadd.xlane.f32.xlu0 %v8795
  %v8797 = vpop.xlane.xlu0 %8796
  %v8798 = vsel %vm545, %v8794, 0.0
  %8799 = vadd.xlane.f32.xlu0 %v8798
  %v8800 = vpop.xlane.xlu0 %8799
  %v8801 = vmul.f32 %v8797, %v1706
  %v8802 = vmul.f32 %v8800, %v1706
  %v8803 = vsub.f32 %v8793, %v8801
  %v8804 = vsub.f32 %v8794, %v8802
  %v8805 = vmul.f32 %v8803, %v8803
  %v8806 = vmul.f32 %v8804, %v8804
  %v8807 = vsel %vm545, %v8805, 0.0
  %8808 = vadd.xlane.f32.xlu0 %v8807
  %v8809 = vpop.xlane.xlu0 %8808
  %v8810 = vsel %vm545, %v8806, 0.0
  %8811 = vadd.xlane.f32.xlu0 %v8810
  %v8812 = vpop.xlane.xlu0 %8811
  %v8813 = vmul.f32 %v8809, %v1706
  %v8814 = vmul.f32 %v8812, %v1706
  %v8815 = vadd.f32 %v8813, 1e-05
  %v8816 = vadd.f32 %v8814, 1e-05
  %v8817 = vrsqrt.pop %v8815
  %v8818 = vrsqrt.pop %v8816
  %v8819 = vmul.f32 %v8803, %v8817
  %v8820 = vmul.f32 %v8804, %v8818
  %v8822 = vlaneseq
  %v8823 = vshrl.u32 %v8822, 7
  %v8824 = vsub.s32 0, %v8823
  %v8825 = vrot.slane %v7257, %v8824
  %v8827 = vmul.f32 %v8819, %v8825
  %v8828 = vmul.f32 %v8820, %v8825
  %v8830 = vlaneseq
  %v8831 = vshrl.u32 %v8830, 7
  %v8832 = vsub.s32 0, %v8831
  %v8833 = vrot.slane %v7259, %v8832
  %v8835 = vadd.f32 %v8827, %v8833
  %v8836 = vadd.f32 %v8828, %v8833
  %v8837 = vpack.c.bf16 %v8836, %v8835
  %v8840 = vlaneseq
  %v8841 = vshrl.u32 %v8840, 7
  %v8842 = vsub.s32 0, %v8841
  %v8843 = vrot.slane %v7326, %v8842
  %v8844 = vlaneseq
  %v8845 = vshrl.u32 %v8844, 7
  %v8846 = vsub.s32 1, %v8845
  %v8847 = vrot.slane %v7326, %v8846
  %v8848 = vlaneseq
  %v8849 = vshrl.u32 %v8848, 7
  %v8850 = vsub.s32 2, %v8849
  %v8851 = vrot.slane %v7326, %v8850
  %v8852 = vlaneseq
  %v8853 = vshrl.u32 %v8852, 7
  %v8854 = vsub.s32 3, %v8853
  %v8855 = vrot.slane %v7326, %v8854
  %v8856 = vlaneseq
  %v8857 = vshrl.u32 %v8856, 7
  %v8858 = vsub.s32 4, %v8857
  %v8859 = vrot.slane %v7326, %v8858
  %v8860 = vlaneseq
  %v8861 = vshrl.u32 %v8860, 7
  %v8862 = vsub.s32 5, %v8861
  %v8863 = vrot.slane %v7326, %v8862
  %v8864 = vlaneseq
  %v8865 = vshrl.u32 %v8864, 7
  %v8866 = vsub.s32 6, %v8865
  %v8867 = vrot.slane %v7326, %v8866
  %v8868 = vlaneseq
  %v8869 = vshrl.u32 %v8868, 7
  %v8870 = vsub.s32 7, %v8869
  %v8871 = vrot.slane %v7326, %v8870
  %v8872 = vlaneseq
  %v8873 = vshrl.u32 %v8872, 7
  %v8874 = vsub.s32 0, %v8873
  %v8875 = vrot.slane %v7327, %v8874
  %v8876 = vlaneseq
  %v8877 = vshrl.u32 %v8876, 7
  %v8878 = vsub.s32 1, %v8877
  %v8879 = vrot.slane %v7327, %v8878
  %v8880 = vlaneseq
  %v8881 = vshrl.u32 %v8880, 7
  %v8882 = vsub.s32 2, %v8881
  %v8883 = vrot.slane %v7327, %v8882
  %v8884 = vlaneseq
  %v8885 = vshrl.u32 %v8884, 7
  %v8886 = vsub.s32 3, %v8885
  %v8887 = vrot.slane %v7327, %v8886
  %v8888 = vlaneseq
  %v8889 = vshrl.u32 %v8888, 7
  %v8890 = vsub.s32 4, %v8889
  %v8891 = vrot.slane %v7327, %v8890
  %v8892 = vlaneseq
  %v8893 = vshrl.u32 %v8892, 7
  %v8894 = vsub.s32 5, %v8893
  %v8895 = vrot.slane %v7327, %v8894
  %v8896 = vlaneseq
  %v8897 = vshrl.u32 %v8896, 7
  %v8898 = vsub.s32 6, %v8897
  %v8899 = vrot.slane %v7327, %v8898
  %v8900 = vlaneseq
  %v8901 = vshrl.u32 %v8900, 7
  %v8902 = vsub.s32 7, %v8901
  %v8903 = vrot.slane %v7327, %v8902
  %v8984 = vunpack.c.l.b16 %v7261
  %v8985 = vunpack.c.h.b16 %v7261
  %v8986 = vunpack.c.l.b16 %v7262
  %v8987 = vunpack.c.h.b16 %v7262
  %v8988 = vunpack.c.l.b16 %v7263
  %v8989 = vunpack.c.h.b16 %v7263
  %v8990 = vunpack.c.l.b16 %v7264
  %v8991 = vunpack.c.h.b16 %v7264
  %v8992 = vunpack.c.l.b16 %v7265
  %v8993 = vunpack.c.h.b16 %v7265
  %v8994 = vunpack.c.l.b16 %v7266
  %v8995 = vunpack.c.h.b16 %v7266
  %v8996 = vunpack.c.l.b16 %v7267
  %v8997 = vunpack.c.h.b16 %v7267
  %v8998 = vunpack.c.l.b16 %v7268
  %v8999 = vunpack.c.h.b16 %v7268
  %v9000 = vunpack.c.l.b16 %v7269
  %v9001 = vunpack.c.h.b16 %v7269
  %v9002 = vunpack.c.l.b16 %v7270
  %v9003 = vunpack.c.h.b16 %v7270
  %v9004 = vunpack.c.l.b16 %v7271
  %v9005 = vunpack.c.h.b16 %v7271
  %v9006 = vunpack.c.l.b16 %v7272
  %v9007 = vunpack.c.h.b16 %v7272
  %v9008 = vunpack.c.l.b16 %v7273
  %v9009 = vunpack.c.h.b16 %v7273
  %v9010 = vunpack.c.l.b16 %v7274
  %v9011 = vunpack.c.h.b16 %v7274
  %v9012 = vunpack.c.l.b16 %v7275
  %v9013 = vunpack.c.h.b16 %v7275
  %v9014 = vunpack.c.l.b16 %v7276
  %v9015 = vunpack.c.h.b16 %v7276
  %v9016 = vunpack.c.l.b16 %v7277
  %v9017 = vunpack.c.h.b16 %v7277
  %v9018 = vunpack.c.l.b16 %v7278
  %v9019 = vunpack.c.h.b16 %v7278
  %v9020 = vunpack.c.l.b16 %v7279
  %v9021 = vunpack.c.h.b16 %v7279
  %v9022 = vunpack.c.l.b16 %v7280
  %v9023 = vunpack.c.h.b16 %v7280
  %v9024 = vunpack.c.l.b16 %v7281
  %v9025 = vunpack.c.h.b16 %v7281
  %v9026 = vunpack.c.l.b16 %v7282
  %v9027 = vunpack.c.h.b16 %v7282
  %v9028 = vunpack.c.l.b16 %v7283
  %v9029 = vunpack.c.h.b16 %v7283
  %v9030 = vunpack.c.l.b16 %v7284
  %v9031 = vunpack.c.h.b16 %v7284
  %v9032 = vunpack.c.l.b16 %v7285
  %v9033 = vunpack.c.h.b16 %v7285
  %v9034 = vunpack.c.l.b16 %v7286
  %v9035 = vunpack.c.h.b16 %v7286
  %v9036 = vunpack.c.l.b16 %v7287
  %v9037 = vunpack.c.h.b16 %v7287
  %v9038 = vunpack.c.l.b16 %v7288
  %v9039 = vunpack.c.h.b16 %v7288
  %v9040 = vunpack.c.l.b16 %v7289
  %v9041 = vunpack.c.h.b16 %v7289
  %v9042 = vunpack.c.l.b16 %v7290
  %v9043 = vunpack.c.h.b16 %v7290
  %v9044 = vunpack.c.l.b16 %v7291
  %v9045 = vunpack.c.h.b16 %v7291
  %v9046 = vunpack.c.l.b16 %v7292
  %v9047 = vunpack.c.h.b16 %v7292
  %v9048 = vunpack.c.l.b16 %v7293
  %v9049 = vunpack.c.h.b16 %v7293
  %v9050 = vunpack.c.l.b16 %v7294
  %v9051 = vunpack.c.h.b16 %v7294
  %v9052 = vunpack.c.l.b16 %v7295
  %v9053 = vunpack.c.h.b16 %v7295
  %v9054 = vunpack.c.l.b16 %v7296
  %v9055 = vunpack.c.h.b16 %v7296
  %v9056 = vunpack.c.l.b16 %v7297
  %v9057 = vunpack.c.h.b16 %v7297
  %v9058 = vunpack.c.l.b16 %v7298
  %v9059 = vunpack.c.h.b16 %v7298
  %v9060 = vunpack.c.l.b16 %v7299
  %v9061 = vunpack.c.h.b16 %v7299
  %v9062 = vunpack.c.l.b16 %v7300
  %v9063 = vunpack.c.h.b16 %v7300
  %v9064 = vunpack.c.l.b16 %v7301
  %v9065 = vunpack.c.h.b16 %v7301
  %v9066 = vunpack.c.l.b16 %v7302
  %v9067 = vunpack.c.h.b16 %v7302
  %v9068 = vunpack.c.l.b16 %v7303
  %v9069 = vunpack.c.h.b16 %v7303
  %v9070 = vunpack.c.l.b16 %v7304
  %v9071 = vunpack.c.h.b16 %v7304
  %v9072 = vunpack.c.l.b16 %v7305
  %v9073 = vunpack.c.h.b16 %v7305
  %v9074 = vunpack.c.l.b16 %v7306
  %v9075 = vunpack.c.h.b16 %v7306
  %v9076 = vunpack.c.l.b16 %v7307
  %v9077 = vunpack.c.h.b16 %v7307
  %v9078 = vunpack.c.l.b16 %v7308
  %v9079 = vunpack.c.h.b16 %v7308
  %v9080 = vunpack.c.l.b16 %v7309
  %v9081 = vunpack.c.h.b16 %v7309
  %v9082 = vunpack.c.l.b16 %v7310
  %v9083 = vunpack.c.h.b16 %v7310
  %v9084 = vunpack.c.l.b16 %v7311
  %v9085 = vunpack.c.h.b16 %v7311
  %v9086 = vunpack.c.l.b16 %v7312
  %v9087 = vunpack.c.h.b16 %v7312
  %v9088 = vunpack.c.l.b16 %v7313
  %v9089 = vunpack.c.h.b16 %v7313
  %v9090 = vunpack.c.l.b16 %v7314
  %v9091 = vunpack.c.h.b16 %v7314
  %v9092 = vunpack.c.l.b16 %v7315
  %v9093 = vunpack.c.h.b16 %v7315
  %v9094 = vunpack.c.l.b16 %v7316
  %v9095 = vunpack.c.h.b16 %v7316
  %v9096 = vunpack.c.l.b16 %v7317
  %v9097 = vunpack.c.h.b16 %v7317
  %v9098 = vunpack.c.l.b16 %v7318
  %v9099 = vunpack.c.h.b16 %v7318
  %v9100 = vunpack.c.l.b16 %v7319
  %v9101 = vunpack.c.h.b16 %v7319
  %v9102 = vunpack.c.l.b16 %v7320
  %v9103 = vunpack.c.h.b16 %v7320
  %v9104 = vunpack.c.l.b16 %v7321
  %v9105 = vunpack.c.h.b16 %v7321
  %v9106 = vunpack.c.l.b16 %v7322
  %v9107 = vunpack.c.h.b16 %v7322
  %v9108 = vunpack.c.l.b16 %v7323
  %v9109 = vunpack.c.h.b16 %v7323
  %v9110 = vunpack.c.l.b16 %v7324
  %v9111 = vunpack.c.h.b16 %v7324
  %v9112 = vpack.c.b16 %v9000, %v8984
  %v9113 = vpack.c.b16 %v9001, %v8985
  %v9114 = vpack.c.b16 %v9002, %v8986
  %v9115 = vpack.c.b16 %v9003, %v8987
  %v9116 = vpack.c.b16 %v9004, %v8988
  %v9117 = vpack.c.b16 %v9005, %v8989
  %v9118 = vpack.c.b16 %v9006, %v8990
  %v9119 = vpack.c.b16 %v9007, %v8991
  %v9120 = vpack.c.b16 %v9008, %v8992
  %v9121 = vpack.c.b16 %v9009, %v8993
  %v9122 = vpack.c.b16 %v9010, %v8994
  %v9123 = vpack.c.b16 %v9011, %v8995
  %v9124 = vpack.c.b16 %v9012, %v8996
  %v9125 = vpack.c.b16 %v9013, %v8997
  %v9126 = vpack.c.b16 %v9014, %v8998
  %v9127 = vpack.c.b16 %v9015, %v8999
  %v9128 = vpack.c.b16 %v9032, %v9016
  %v9129 = vpack.c.b16 %v9033, %v9017
  %v9130 = vpack.c.b16 %v9034, %v9018
  %v9131 = vpack.c.b16 %v9035, %v9019
  %v9132 = vpack.c.b16 %v9036, %v9020
  %v9133 = vpack.c.b16 %v9037, %v9021
  %v9134 = vpack.c.b16 %v9038, %v9022
  %v9135 = vpack.c.b16 %v9039, %v9023
  %v9136 = vpack.c.b16 %v9040, %v9024
  %v9137 = vpack.c.b16 %v9041, %v9025
  %v9138 = vpack.c.b16 %v9042, %v9026
  %v9139 = vpack.c.b16 %v9043, %v9027
  %v9140 = vpack.c.b16 %v9044, %v9028
  %v9141 = vpack.c.b16 %v9045, %v9029
  %v9142 = vpack.c.b16 %v9046, %v9030
  %v9143 = vpack.c.b16 %v9047, %v9031
  %v9144 = vpack.c.b16 %v9064, %v9048
  %v9145 = vpack.c.b16 %v9065, %v9049
  %v9146 = vpack.c.b16 %v9066, %v9050
  %v9147 = vpack.c.b16 %v9067, %v9051
  %v9148 = vpack.c.b16 %v9068, %v9052
  %v9149 = vpack.c.b16 %v9069, %v9053
  %v9150 = vpack.c.b16 %v9070, %v9054
  %v9151 = vpack.c.b16 %v9071, %v9055
  %v9152 = vpack.c.b16 %v9072, %v9056
  %v9153 = vpack.c.b16 %v9073, %v9057
  %v9154 = vpack.c.b16 %v9074, %v9058
  %v9155 = vpack.c.b16 %v9075, %v9059
  %v9156 = vpack.c.b16 %v9076, %v9060
  %v9157 = vpack.c.b16 %v9077, %v9061
  %v9158 = vpack.c.b16 %v9078, %v9062
  %v9159 = vpack.c.b16 %v9079, %v9063
  %v9160 = vpack.c.b16 %v9096, %v9080
  %v9161 = vpack.c.b16 %v9097, %v9081
  %v9162 = vpack.c.b16 %v9098, %v9082
  %v9163 = vpack.c.b16 %v9099, %v9083
  %v9164 = vpack.c.b16 %v9100, %v9084
  %v9165 = vpack.c.b16 %v9101, %v9085
  %v9166 = vpack.c.b16 %v9102, %v9086
  %v9167 = vpack.c.b16 %v9103, %v9087
  %v9168 = vpack.c.b16 %v9104, %v9088
  %v9169 = vpack.c.b16 %v9105, %v9089
  %v9170 = vpack.c.b16 %v9106, %v9090
  %v9171 = vpack.c.b16 %v9107, %v9091
  %v9172 = vpack.c.b16 %v9108, %v9092
  %v9173 = vpack.c.b16 %v9109, %v9093
  %v9174 = vpack.c.b16 %v9110, %v9094
  %v9175 = vpack.c.b16 %v9111, %v9095
  %v9241 = vsel %vm545, %v8837, 0
  %9243 = vmatprep.subr.bf16.mxu0 0
  %9244 = vmatpush1.bf16.msra.mxu0 0
  %9245 = vmatprep.subr.bf16.mxu0 0
  %9246 = vmatpush1.bf16.msra.mxu0 0
  %9247 = vmatprep.subr.bf16.mxu0 0
  %9248 = vmatpush1.bf16.msra.mxu0 0
  %9249 = vmatprep.subr.bf16.mxu0 0
  %9250 = vmatpush1.bf16.msra.mxu0 0
  %9251 = vmatprep.subr.bf16.mxu0 %v9161
  %9252 = vmatpush1.bf16.msra.mxu0 %v9160
  %9253 = vmatprep.subr.bf16.mxu0 %v9145
  %9254 = vmatpush1.bf16.msra.mxu0 %v9144
  %9255 = vmatprep.subr.bf16.mxu0 %v9129
  %9256 = vmatpush1.bf16.msra.mxu0 %v9128
  %9257 = vmatprep.subr.bf16.mxu0 %v9113
  %9258 = vmatpush1.bf16.msra.mxu0 %v9112
  %9259 = vmatprep.subr.bf16.mxu0 0
  %9260 = vmatpush2.bf16.msra.mxu0 0
  %9261 = vmatprep.subr.bf16.mxu0 0
  %9262 = vmatpush2.bf16.msra.mxu0 0
  %9263 = vmatprep.subr.bf16.mxu0 0
  %9264 = vmatpush2.bf16.msra.mxu0 0
  %9265 = vmatprep.subr.bf16.mxu0 0
  %9266 = vmatpush2.bf16.msra.mxu0 0
  %9267 = vmatprep.subr.bf16.mxu0 0
  %9268 = vmatpush2.bf16.msra.mxu0 0
  %9269 = vmatprep.subr.bf16.mxu0 0
  %9270 = vmatpush2.bf16.msra.mxu0 0
  %9271 = vmatprep.subr.bf16.mxu0 0
  %9272 = vmatpush2.bf16.msra.mxu0 0
  %9273 = vmatprep.subr.bf16.mxu0 0
  %9274 = vmatpush2.bf16.msra.mxu0 0
  %9275 = vmatprep.mubr.bf16.mxu0 0
  %9276 = vmatmul.mubr.bf16.gmra.mxu0 %v9241
  %v9277 = vpop.f32.mrf.mxu0
  %v9278 = vadd.f32 %v8843, %v9277
  %v9279 = vpop.f32.mrf.mxu0
  %v9280 = vadd.f32 %v8847, %v9279
  %v9281 = vpop.f32.mrf.mxu0
  %v9282 = vadd.f32 %v8843, %v9281
  %v9283 = vpop.f32.mrf.mxu0
  %v9284 = vadd.f32 %v8847, %v9283
  %9285 = vdwg.mxu0
  %9286 = vmatprep.subr.bf16.mxu0 0
  %9287 = vmatpush1.bf16.msra.mxu0 0
  %9288 = vmatprep.subr.bf16.mxu0 0
  %9289 = vmatpush1.bf16.msra.mxu0 0
  %9290 = vmatprep.subr.bf16.mxu0 0
  %9291 = vmatpush1.bf16.msra.mxu0 0
  %9292 = vmatprep.subr.bf16.mxu0 0
  %9293 = vmatpush1.bf16.msra.mxu0 0
  %9294 = vmatprep.subr.bf16.mxu0 %v9163
  %9295 = vmatpush1.bf16.msra.mxu0 %v9162
  %9296 = vmatprep.subr.bf16.mxu0 %v9147
  %9297 = vmatpush1.bf16.msra.mxu0 %v9146
  %9298 = vmatprep.subr.bf16.mxu0 %v9131
  %9299 = vmatpush1.bf16.msra.mxu0 %v9130
  %9300 = vmatprep.subr.bf16.mxu0 %v9115
  %9301 = vmatpush1.bf16.msra.mxu0 %v9114
  %9302 = vmatprep.subr.bf16.mxu0 0
  %9303 = vmatpush2.bf16.msra.mxu0 0
  %9304 = vmatprep.subr.bf16.mxu0 0
  %9305 = vmatpush2.bf16.msra.mxu0 0
  %9306 = vmatprep.subr.bf16.mxu0 0
  %9307 = vmatpush2.bf16.msra.mxu0 0
  %9308 = vmatprep.subr.bf16.mxu0 0
  %9309 = vmatpush2.bf16.msra.mxu0 0
  %9310 = vmatprep.subr.bf16.mxu0 0
  %9311 = vmatpush2.bf16.msra.mxu0 0
  %9312 = vmatprep.subr.bf16.mxu0 0
  %9313 = vmatpush2.bf16.msra.mxu0 0
  %9314 = vmatprep.subr.bf16.mxu0 0
  %9315 = vmatpush2.bf16.msra.mxu0 0
  %9316 = vmatprep.subr.bf16.mxu0 0
  %9317 = vmatpush2.bf16.msra.mxu0 0
  %9318 = vmatprep.mubr.bf16.mxu0 0
  %9319 = vmatmul.mubr.bf16.gmra.mxu0 %v9241
  %v9320 = vpop.f32.mrf.mxu0
  %v9321 = vadd.f32 %v8851, %v9320
  %v9322 = vpop.f32.mrf.mxu0
  %v9323 = vadd.f32 %v8855, %v9322
  %v9324 = vpop.f32.mrf.mxu0
  %v9325 = vadd.f32 %v8851, %v9324
  %v9326 = vpop.f32.mrf.mxu0
  %v9327 = vadd.f32 %v8855, %v9326
  %9328 = vdwg.mxu0
  %9329 = vmatprep.subr.bf16.mxu0 0
  %9330 = vmatpush1.bf16.msra.mxu0 0
  %9331 = vmatprep.subr.bf16.mxu0 0
  %9332 = vmatpush1.bf16.msra.mxu0 0
  %9333 = vmatprep.subr.bf16.mxu0 0
  %9334 = vmatpush1.bf16.msra.mxu0 0
  %9335 = vmatprep.subr.bf16.mxu0 0
  %9336 = vmatpush1.bf16.msra.mxu0 0
  %9337 = vmatprep.subr.bf16.mxu0 %v9165
  %9338 = vmatpush1.bf16.msra.mxu0 %v9164
  %9339 = vmatprep.subr.bf16.mxu0 %v9149
  %9340 = vmatpush1.bf16.msra.mxu0 %v9148
  %9341 = vmatprep.subr.bf16.mxu0 %v9133
  %9342 = vmatpush1.bf16.msra.mxu0 %v9132
  %9343 = vmatprep.subr.bf16.mxu0 %v9117
  %9344 = vmatpush1.bf16.msra.mxu0 %v9116
  %9345 = vmatprep.subr.bf16.mxu0 0
  %9346 = vmatpush2.bf16.msra.mxu0 0
  %9347 = vmatprep.subr.bf16.mxu0 0
  %9348 = vmatpush2.bf16.msra.mxu0 0
  %9349 = vmatprep.subr.bf16.mxu0 0
  %9350 = vmatpush2.bf16.msra.mxu0 0
  %9351 = vmatprep.subr.bf16.mxu0 0
  %9352 = vmatpush2.bf16.msra.mxu0 0
  %9353 = vmatprep.subr.bf16.mxu0 0
  %9354 = vmatpush2.bf16.msra.mxu0 0
  %9355 = vmatprep.subr.bf16.mxu0 0
  %9356 = vmatpush2.bf16.msra.mxu0 0
  %9357 = vmatprep.subr.bf16.mxu0 0
  %9358 = vmatpush2.bf16.msra.mxu0 0
  %9359 = vmatprep.subr.bf16.mxu0 0
  %9360 = vmatpush2.bf16.msra.mxu0 0
  %9361 = vmatprep.mubr.bf16.mxu0 0
  %9362 = vmatmul.mubr.bf16.gmra.mxu0 %v9241
  %v9363 = vpop.f32.mrf.mxu0
  %v9364 = vadd.f32 %v8859, %v9363
  %v9365 = vpop.f32.mrf.mxu0
  %v9366 = vadd.f32 %v8863, %v9365
  %v9367 = vpop.f32.mrf.mxu0
  %v9368 = vadd.f32 %v8859, %v9367
  %v9369 = vpop.f32.mrf.mxu0
  %v9370 = vadd.f32 %v8863, %v9369
  %9371 = vdwg.mxu0
  %9372 = vmatprep.subr.bf16.mxu0 0
  %9373 = vmatpush1.bf16.msra.mxu0 0
  %9374 = vmatprep.subr.bf16.mxu0 0
  %9375 = vmatpush1.bf16.msra.mxu0 0
  %9376 = vmatprep.subr.bf16.mxu0 0
  %9377 = vmatpush1.bf16.msra.mxu0 0
  %9378 = vmatprep.subr.bf16.mxu0 0
  %9379 = vmatpush1.bf16.msra.mxu0 0
  %9380 = vmatprep.subr.bf16.mxu0 %v9167
  %9381 = vmatpush1.bf16.msra.mxu0 %v9166
  %9382 = vmatprep.subr.bf16.mxu0 %v9151
  %9383 = vmatpush1.bf16.msra.mxu0 %v9150
  %9384 = vmatprep.subr.bf16.mxu0 %v9135
  %9385 = vmatpush1.bf16.msra.mxu0 %v9134
  %9386 = vmatprep.subr.bf16.mxu0 %v9119
  %9387 = vmatpush1.bf16.msra.mxu0 %v9118
  %9388 = vmatprep.subr.bf16.mxu0 0
  %9389 = vmatpush2.bf16.msra.mxu0 0
  %9390 = vmatprep.subr.bf16.mxu0 0
  %9391 = vmatpush2.bf16.msra.mxu0 0
  %9392 = vmatprep.subr.bf16.mxu0 0
  %9393 = vmatpush2.bf16.msra.mxu0 0
  %9394 = vmatprep.subr.bf16.mxu0 0
  %9395 = vmatpush2.bf16.msra.mxu0 0
  %9396 = vmatprep.subr.bf16.mxu0 0
  %9397 = vmatpush2.bf16.msra.mxu0 0
  %9398 = vmatprep.subr.bf16.mxu0 0
  %9399 = vmatpush2.bf16.msra.mxu0 0
  %9400 = vmatprep.subr.bf16.mxu0 0
  %9401 = vmatpush2.bf16.msra.mxu0 0
  %9402 = vmatprep.subr.bf16.mxu0 0
  %9403 = vmatpush2.bf16.msra.mxu0 0
  %9404 = vmatprep.mubr.bf16.mxu0 0
  %9405 = vmatmul.mubr.bf16.gmra.mxu0 %v9241
  %v9406 = vpop.f32.mrf.mxu0
  %v9407 = vadd.f32 %v8867, %v9406
  %v9408 = vpop.f32.mrf.mxu0
  %v9409 = vadd.f32 %v8871, %v9408
  %v9410 = vpop.f32.mrf.mxu0
  %v9411 = vadd.f32 %v8867, %v9410
  %v9412 = vpop.f32.mrf.mxu0
  %v9413 = vadd.f32 %v8871, %v9412
  %9414 = vdwg.mxu0
  %9415 = vmatprep.subr.bf16.mxu0 0
  %9416 = vmatpush1.bf16.msra.mxu0 0
  %9417 = vmatprep.subr.bf16.mxu0 0
  %9418 = vmatpush1.bf16.msra.mxu0 0
  %9419 = vmatprep.subr.bf16.mxu0 0
  %9420 = vmatpush1.bf16.msra.mxu0 0
  %9421 = vmatprep.subr.bf16.mxu0 0
  %9422 = vmatpush1.bf16.msra.mxu0 0
  %9423 = vmatprep.subr.bf16.mxu0 %v9169
  %9424 = vmatpush1.bf16.msra.mxu0 %v9168
  %9425 = vmatprep.subr.bf16.mxu0 %v9153
  %9426 = vmatpush1.bf16.msra.mxu0 %v9152
  %9427 = vmatprep.subr.bf16.mxu0 %v9137
  %9428 = vmatpush1.bf16.msra.mxu0 %v9136
  %9429 = vmatprep.subr.bf16.mxu0 %v9121
  %9430 = vmatpush1.bf16.msra.mxu0 %v9120
  %9431 = vmatprep.subr.bf16.mxu0 0
  %9432 = vmatpush2.bf16.msra.mxu0 0
  %9433 = vmatprep.subr.bf16.mxu0 0
  %9434 = vmatpush2.bf16.msra.mxu0 0
  %9435 = vmatprep.subr.bf16.mxu0 0
  %9436 = vmatpush2.bf16.msra.mxu0 0
  %9437 = vmatprep.subr.bf16.mxu0 0
  %9438 = vmatpush2.bf16.msra.mxu0 0
  %9439 = vmatprep.subr.bf16.mxu0 0
  %9440 = vmatpush2.bf16.msra.mxu0 0
  %9441 = vmatprep.subr.bf16.mxu0 0
  %9442 = vmatpush2.bf16.msra.mxu0 0
  %9443 = vmatprep.subr.bf16.mxu0 0
  %9444 = vmatpush2.bf16.msra.mxu0 0
  %9445 = vmatprep.subr.bf16.mxu0 0
  %9446 = vmatpush2.bf16.msra.mxu0 0
  %9447 = vmatprep.mubr.bf16.mxu0 0
  %9448 = vmatmul.mubr.bf16.gmra.mxu0 %v9241
  %v9449 = vpop.f32.mrf.mxu0
  %v9450 = vadd.f32 %v8875, %v9449
  %v9451 = vpop.f32.mrf.mxu0
  %v9452 = vadd.f32 %v8879, %v9451
  %v9453 = vpop.f32.mrf.mxu0
  %v9454 = vadd.f32 %v8875, %v9453
  %v9455 = vpop.f32.mrf.mxu0
  %v9456 = vadd.f32 %v8879, %v9455
  %9457 = vdwg.mxu0
  %9458 = vmatprep.subr.bf16.mxu0 0
  %9459 = vmatpush1.bf16.msra.mxu0 0
  %9460 = vmatprep.subr.bf16.mxu0 0
  %9461 = vmatpush1.bf16.msra.mxu0 0
  %9462 = vmatprep.subr.bf16.mxu0 0
  %9463 = vmatpush1.bf16.msra.mxu0 0
  %9464 = vmatprep.subr.bf16.mxu0 0
  %9465 = vmatpush1.bf16.msra.mxu0 0
  %9466 = vmatprep.subr.bf16.mxu0 %v9171
  %9467 = vmatpush1.bf16.msra.mxu0 %v9170
  %9468 = vmatprep.subr.bf16.mxu0 %v9155
  %9469 = vmatpush1.bf16.msra.mxu0 %v9154
  %9470 = vmatprep.subr.bf16.mxu0 %v9139
  %9471 = vmatpush1.bf16.msra.mxu0 %v9138
  %9472 = vmatprep.subr.bf16.mxu0 %v9123
  %9473 = vmatpush1.bf16.msra.mxu0 %v9122
  %9474 = vmatprep.subr.bf16.mxu0 0
  %9475 = vmatpush2.bf16.msra.mxu0 0
  %9476 = vmatprep.subr.bf16.mxu0 0
  %9477 = vmatpush2.bf16.msra.mxu0 0
  %9478 = vmatprep.subr.bf16.mxu0 0
  %9479 = vmatpush2.bf16.msra.mxu0 0
  %9480 = vmatprep.subr.bf16.mxu0 0
  %9481 = vmatpush2.bf16.msra.mxu0 0
  %9482 = vmatprep.subr.bf16.mxu0 0
  %9483 = vmatpush2.bf16.msra.mxu0 0
  %9484 = vmatprep.subr.bf16.mxu0 0
  %9485 = vmatpush2.bf16.msra.mxu0 0
  %9486 = vmatprep.subr.bf16.mxu0 0
  %9487 = vmatpush2.bf16.msra.mxu0 0
  %9488 = vmatprep.subr.bf16.mxu0 0
  %9489 = vmatpush2.bf16.msra.mxu0 0
  %9490 = vmatprep.mubr.bf16.mxu0 0
  %9491 = vmatmul.mubr.bf16.gmra.mxu0 %v9241
  %v9492 = vpop.f32.mrf.mxu0
  %v9493 = vadd.f32 %v8883, %v9492
  %v9494 = vpop.f32.mrf.mxu0
  %v9495 = vadd.f32 %v8887, %v9494
  %v9496 = vpop.f32.mrf.mxu0
  %v9497 = vadd.f32 %v8883, %v9496
  %v9498 = vpop.f32.mrf.mxu0
  %v9499 = vadd.f32 %v8887, %v9498
  %9500 = vdwg.mxu0
  %9501 = vmatprep.subr.bf16.mxu0 0
  %9502 = vmatpush1.bf16.msra.mxu0 0
  %9503 = vmatprep.subr.bf16.mxu0 0
  %9504 = vmatpush1.bf16.msra.mxu0 0
  %9505 = vmatprep.subr.bf16.mxu0 0
  %9506 = vmatpush1.bf16.msra.mxu0 0
  %9507 = vmatprep.subr.bf16.mxu0 0
  %9508 = vmatpush1.bf16.msra.mxu0 0
  %9509 = vmatprep.subr.bf16.mxu0 %v9173
  %9510 = vmatpush1.bf16.msra.mxu0 %v9172
  %9511 = vmatprep.subr.bf16.mxu0 %v9157
  %9512 = vmatpush1.bf16.msra.mxu0 %v9156
  %9513 = vmatprep.subr.bf16.mxu0 %v9141
  %9514 = vmatpush1.bf16.msra.mxu0 %v9140
  %9515 = vmatprep.subr.bf16.mxu0 %v9125
  %9516 = vmatpush1.bf16.msra.mxu0 %v9124
  %9517 = vmatprep.subr.bf16.mxu0 0
  %9518 = vmatpush2.bf16.msra.mxu0 0
  %9519 = vmatprep.subr.bf16.mxu0 0
  %9520 = vmatpush2.bf16.msra.mxu0 0
  %9521 = vmatprep.subr.bf16.mxu0 0
  %9522 = vmatpush2.bf16.msra.mxu0 0
  %9523 = vmatprep.subr.bf16.mxu0 0
  %9524 = vmatpush2.bf16.msra.mxu0 0
  %9525 = vmatprep.subr.bf16.mxu0 0
  %9526 = vmatpush2.bf16.msra.mxu0 0
  %9527 = vmatprep.subr.bf16.mxu0 0
  %9528 = vmatpush2.bf16.msra.mxu0 0
  %9529 = vmatprep.subr.bf16.mxu0 0
  %9530 = vmatpush2.bf16.msra.mxu0 0
  %9531 = vmatprep.subr.bf16.mxu0 0
  %9532 = vmatpush2.bf16.msra.mxu0 0
  %9533 = vmatprep.mubr.bf16.mxu0 0
  %9534 = vmatmul.mubr.bf16.gmra.mxu0 %v9241
  %v9535 = vpop.f32.mrf.mxu0
  %v9536 = vadd.f32 %v8891, %v9535
  %v9537 = vpop.f32.mrf.mxu0
  %v9538 = vadd.f32 %v8895, %v9537
  %v9539 = vpop.f32.mrf.mxu0
  %v9540 = vadd.f32 %v8891, %v9539
  %v9541 = vpop.f32.mrf.mxu0
  %v9542 = vadd.f32 %v8895, %v9541
  %9543 = vdwg.mxu0
  %9544 = vmatprep.subr.bf16.mxu0 0
  %9545 = vmatpush1.bf16.msra.mxu0 0
  %9546 = vmatprep.subr.bf16.mxu0 0
  %9547 = vmatpush1.bf16.msra.mxu0 0
  %9548 = vmatprep.subr.bf16.mxu0 0
  %9549 = vmatpush1.bf16.msra.mxu0 0
  %9550 = vmatprep.subr.bf16.mxu0 0
  %9551 = vmatpush1.bf16.msra.mxu0 0
  %9552 = vmatprep.subr.bf16.mxu0 %v9175
  %9553 = vmatpush1.bf16.msra.mxu0 %v9174
  %9554 = vmatprep.subr.bf16.mxu0 %v9159
  %9555 = vmatpush1.bf16.msra.mxu0 %v9158
  %9556 = vmatprep.subr.bf16.mxu0 %v9143
  %9557 = vmatpush1.bf16.msra.mxu0 %v9142
  %9558 = vmatprep.subr.bf16.mxu0 %v9127
  %9559 = vmatpush1.bf16.msra.mxu0 %v9126
  %9560 = vmatprep.subr.bf16.mxu0 0
  %9561 = vmatpush2.bf16.msra.mxu0 0
  %9562 = vmatprep.subr.bf16.mxu0 0
  %9563 = vmatpush2.bf16.msra.mxu0 0
  %9564 = vmatprep.subr.bf16.mxu0 0
  %9565 = vmatpush2.bf16.msra.mxu0 0
  %9566 = vmatprep.subr.bf16.mxu0 0
  %9567 = vmatpush2.bf16.msra.mxu0 0
  %9568 = vmatprep.subr.bf16.mxu0 0
  %9569 = vmatpush2.bf16.msra.mxu0 0
  %9570 = vmatprep.subr.bf16.mxu0 0
  %9571 = vmatpush2.bf16.msra.mxu0 0
  %9572 = vmatprep.subr.bf16.mxu0 0
  %9573 = vmatpush2.bf16.msra.mxu0 0
  %9574 = vmatprep.subr.bf16.mxu0 0
  %9575 = vmatpush2.bf16.msra.mxu0 0
  %9576 = vmatprep.mubr.bf16.mxu0 0
  %9577 = vmatmul.mubr.bf16.gmra.mxu0 %v9241
  %v9578 = vpop.f32.mrf.mxu0
  %v9579 = vadd.f32 %v8899, %v9578
  %v9580 = vpop.f32.mrf.mxu0
  %v9581 = vadd.f32 %v8903, %v9580
  %v9582 = vpop.f32.mrf.mxu0
  %v9583 = vadd.f32 %v8899, %v9582
  %v9584 = vpop.f32.mrf.mxu0
  %v9585 = vadd.f32 %v8903, %v9584
  %9586 = vdwg.mxu0
  %v9587 = vmax.f32 %v9278, 0.0
  %v9588 = vmax.f32 %v9280, 0.0
  %v9589 = vmax.f32 %v9321, 0.0
  %v9590 = vmax.f32 %v9323, 0.0
  %v9591 = vmax.f32 %v9364, 0.0
  %v9592 = vmax.f32 %v9366, 0.0
  %v9593 = vmax.f32 %v9407, 0.0
  %v9594 = vmax.f32 %v9409, 0.0
  %v9595 = vmax.f32 %v9450, 0.0
  %v9596 = vmax.f32 %v9452, 0.0
  %v9597 = vmax.f32 %v9493, 0.0
  %v9598 = vmax.f32 %v9495, 0.0
  %v9599 = vmax.f32 %v9536, 0.0
  %v9600 = vmax.f32 %v9538, 0.0
  %v9601 = vmax.f32 %v9579, 0.0
  %v9602 = vmax.f32 %v9581, 0.0
  %v9603 = vmax.f32 %v9282, 0.0
  %v9604 = vmax.f32 %v9284, 0.0
  %v9605 = vmax.f32 %v9325, 0.0
  %v9606 = vmax.f32 %v9327, 0.0
  %v9607 = vmax.f32 %v9368, 0.0
  %v9608 = vmax.f32 %v9370, 0.0
  %v9609 = vmax.f32 %v9411, 0.0
  %v9610 = vmax.f32 %v9413, 0.0
  %v9611 = vmax.f32 %v9454, 0.0
  %v9612 = vmax.f32 %v9456, 0.0
  %v9613 = vmax.f32 %v9497, 0.0
  %v9614 = vmax.f32 %v9499, 0.0
  %v9615 = vmax.f32 %v9540, 0.0
  %v9616 = vmax.f32 %v9542, 0.0
  %v9617 = vmax.f32 %v9583, 0.0
  %v9618 = vmax.f32 %v9585, 0.0
  %v9619 = vpack.c.bf16 %v9603, %v9587
  %v9620 = vpack.c.bf16 %v9604, %v9588
  %v9621 = vpack.c.bf16 %v9605, %v9589
  %v9622 = vpack.c.bf16 %v9606, %v9590
  %v9623 = vpack.c.bf16 %v9607, %v9591
  %v9624 = vpack.c.bf16 %v9608, %v9592
  %v9625 = vpack.c.bf16 %v9609, %v9593
  %v9626 = vpack.c.bf16 %v9610, %v9594
  %v9627 = vpack.c.bf16 %v9611, %v9595
  %v9628 = vpack.c.bf16 %v9612, %v9596
  %v9629 = vpack.c.bf16 %v9613, %v9597
  %v9630 = vpack.c.bf16 %v9614, %v9598
  %v9631 = vpack.c.bf16 %v9615, %v9599
  %v9632 = vpack.c.bf16 %v9616, %v9600
  %v9633 = vpack.c.bf16 %v9617, %v9601
  %v9634 = vpack.c.bf16 %v9618, %v9602
  %v9636 = vlaneseq
  %v9637 = vshrl.u32 %v9636, 7
  %v9638 = vsub.s32 0, %v9637
  %v9639 = vrot.slane %v7586, %v9638
  %v9897 = vunpack.c.l.b16 %v7329
  %v9898 = vunpack.c.l.b16 %v7330
  %v9899 = vunpack.c.l.b16 %v7331
  %v9900 = vunpack.c.l.b16 %v7332
  %v9901 = vunpack.c.l.b16 %v7333
  %v9902 = vunpack.c.l.b16 %v7334
  %v9903 = vunpack.c.l.b16 %v7335
  %v9904 = vunpack.c.l.b16 %v7336
  %v9905 = vunpack.c.l.b16 %v7337
  %v9906 = vunpack.c.l.b16 %v7338
  %v9907 = vunpack.c.l.b16 %v7339
  %v9908 = vunpack.c.l.b16 %v7340
  %v9909 = vunpack.c.l.b16 %v7341
  %v9910 = vunpack.c.l.b16 %v7342
  %v9911 = vunpack.c.l.b16 %v7343
  %v9912 = vunpack.c.l.b16 %v7344
  %v9913 = vunpack.c.l.b16 %v7345
  %v9914 = vunpack.c.l.b16 %v7346
  %v9915 = vunpack.c.l.b16 %v7347
  %v9916 = vunpack.c.l.b16 %v7348
  %v9917 = vunpack.c.l.b16 %v7349
  %v9918 = vunpack.c.l.b16 %v7350
  %v9919 = vunpack.c.l.b16 %v7351
  %v9920 = vunpack.c.l.b16 %v7352
  %v9921 = vunpack.c.l.b16 %v7353
  %v9922 = vunpack.c.l.b16 %v7354
  %v9923 = vunpack.c.l.b16 %v7355
  %v9924 = vunpack.c.l.b16 %v7356
  %v9925 = vunpack.c.l.b16 %v7357
  %v9926 = vunpack.c.l.b16 %v7358
  %v9927 = vunpack.c.l.b16 %v7359
  %v9928 = vunpack.c.l.b16 %v7360
  %v9929 = vunpack.c.l.b16 %v7361
  %v9930 = vunpack.c.l.b16 %v7362
  %v9931 = vunpack.c.l.b16 %v7363
  %v9932 = vunpack.c.l.b16 %v7364
  %v9933 = vunpack.c.l.b16 %v7365
  %v9934 = vunpack.c.l.b16 %v7366
  %v9935 = vunpack.c.l.b16 %v7367
  %v9936 = vunpack.c.l.b16 %v7368
  %v9937 = vunpack.c.l.b16 %v7369
  %v9938 = vunpack.c.l.b16 %v7370
  %v9939 = vunpack.c.l.b16 %v7371
  %v9940 = vunpack.c.l.b16 %v7372
  %v9941 = vunpack.c.l.b16 %v7373
  %v9942 = vunpack.c.l.b16 %v7374
  %v9943 = vunpack.c.l.b16 %v7375
  %v9944 = vunpack.c.l.b16 %v7376
  %v9945 = vunpack.c.l.b16 %v7377
  %v9946 = vunpack.c.l.b16 %v7378
  %v9947 = vunpack.c.l.b16 %v7379
  %v9948 = vunpack.c.l.b16 %v7380
  %v9949 = vunpack.c.l.b16 %v7381
  %v9950 = vunpack.c.l.b16 %v7382
  %v9951 = vunpack.c.l.b16 %v7383
  %v9952 = vunpack.c.l.b16 %v7384
  %v9953 = vunpack.c.l.b16 %v7385
  %v9954 = vunpack.c.l.b16 %v7386
  %v9955 = vunpack.c.l.b16 %v7387
  %v9956 = vunpack.c.l.b16 %v7388
  %v9957 = vunpack.c.l.b16 %v7389
  %v9958 = vunpack.c.l.b16 %v7390
  %v9959 = vunpack.c.l.b16 %v7391
  %v9960 = vunpack.c.l.b16 %v7392
  %v9961 = vunpack.c.l.b16 %v7393
  %v9962 = vunpack.c.l.b16 %v7394
  %v9963 = vunpack.c.l.b16 %v7395
  %v9964 = vunpack.c.l.b16 %v7396
  %v9965 = vunpack.c.l.b16 %v7397
  %v9966 = vunpack.c.l.b16 %v7398
  %v9967 = vunpack.c.l.b16 %v7399
  %v9968 = vunpack.c.l.b16 %v7400
  %v9969 = vunpack.c.l.b16 %v7401
  %v9970 = vunpack.c.l.b16 %v7402
  %v9971 = vunpack.c.l.b16 %v7403
  %v9972 = vunpack.c.l.b16 %v7404
  %v9973 = vunpack.c.l.b16 %v7405
  %v9974 = vunpack.c.l.b16 %v7406
  %v9975 = vunpack.c.l.b16 %v7407
  %v9976 = vunpack.c.l.b16 %v7408
  %v9977 = vunpack.c.l.b16 %v7409
  %v9978 = vunpack.c.l.b16 %v7410
  %v9979 = vunpack.c.l.b16 %v7411
  %v9980 = vunpack.c.l.b16 %v7412
  %v9981 = vunpack.c.l.b16 %v7413
  %v9982 = vunpack.c.l.b16 %v7414
  %v9983 = vunpack.c.l.b16 %v7415
  %v9984 = vunpack.c.l.b16 %v7416
  %v9985 = vunpack.c.l.b16 %v7417
  %v9986 = vunpack.c.l.b16 %v7418
  %v9987 = vunpack.c.l.b16 %v7419
  %v9988 = vunpack.c.l.b16 %v7420
  %v9989 = vunpack.c.l.b16 %v7421
  %v9990 = vunpack.c.l.b16 %v7422
  %v9991 = vunpack.c.l.b16 %v7423
  %v9992 = vunpack.c.l.b16 %v7424
  %v9993 = vunpack.c.l.b16 %v7425
  %v9994 = vunpack.c.l.b16 %v7426
  %v9995 = vunpack.c.l.b16 %v7427
  %v9996 = vunpack.c.l.b16 %v7428
  %v9997 = vunpack.c.l.b16 %v7429
  %v9998 = vunpack.c.l.b16 %v7430
  %v9999 = vunpack.c.l.b16 %v7431
  %v10000 = vunpack.c.l.b16 %v7432
  %v10001 = vunpack.c.l.b16 %v7433
  %v10002 = vunpack.c.l.b16 %v7434
  %v10003 = vunpack.c.l.b16 %v7435
  %v10004 = vunpack.c.l.b16 %v7436
  %v10005 = vunpack.c.l.b16 %v7437
  %v10006 = vunpack.c.l.b16 %v7438
  %v10007 = vunpack.c.l.b16 %v7439
  %v10008 = vunpack.c.l.b16 %v7440
  %v10009 = vunpack.c.l.b16 %v7441
  %v10010 = vunpack.c.l.b16 %v7442
  %v10011 = vunpack.c.l.b16 %v7443
  %v10012 = vunpack.c.l.b16 %v7444
  %v10013 = vunpack.c.l.b16 %v7445
  %v10014 = vunpack.c.l.b16 %v7446
  %v10015 = vunpack.c.l.b16 %v7447
  %v10016 = vunpack.c.l.b16 %v7448
  %v10017 = vunpack.c.l.b16 %v7449
  %v10018 = vunpack.c.l.b16 %v7450
  %v10019 = vunpack.c.l.b16 %v7451
  %v10020 = vunpack.c.l.b16 %v7452
  %v10021 = vunpack.c.l.b16 %v7453
  %v10022 = vunpack.c.l.b16 %v7454
  %v10023 = vunpack.c.l.b16 %v7455
  %v10024 = vunpack.c.l.b16 %v7456
  %v10025 = vunpack.c.l.b16 %v7457
  %v10026 = vunpack.c.l.b16 %v7458
  %v10027 = vunpack.c.l.b16 %v7459
  %v10028 = vunpack.c.l.b16 %v7460
  %v10029 = vunpack.c.l.b16 %v7461
  %v10030 = vunpack.c.l.b16 %v7462
  %v10031 = vunpack.c.l.b16 %v7463
  %v10032 = vunpack.c.l.b16 %v7464
  %v10033 = vunpack.c.l.b16 %v7465
  %v10034 = vunpack.c.l.b16 %v7466
  %v10035 = vunpack.c.l.b16 %v7467
  %v10036 = vunpack.c.l.b16 %v7468
  %v10037 = vunpack.c.l.b16 %v7469
  %v10038 = vunpack.c.l.b16 %v7470
  %v10039 = vunpack.c.l.b16 %v7471
  %v10040 = vunpack.c.l.b16 %v7472
  %v10041 = vunpack.c.l.b16 %v7473
  %v10042 = vunpack.c.l.b16 %v7474
  %v10043 = vunpack.c.l.b16 %v7475
  %v10044 = vunpack.c.l.b16 %v7476
  %v10045 = vunpack.c.l.b16 %v7477
  %v10046 = vunpack.c.l.b16 %v7478
  %v10047 = vunpack.c.l.b16 %v7479
  %v10048 = vunpack.c.l.b16 %v7480
  %v10049 = vunpack.c.l.b16 %v7481
  %v10050 = vunpack.c.l.b16 %v7482
  %v10051 = vunpack.c.l.b16 %v7483
  %v10052 = vunpack.c.l.b16 %v7484
  %v10053 = vunpack.c.l.b16 %v7485
  %v10054 = vunpack.c.l.b16 %v7486
  %v10055 = vunpack.c.l.b16 %v7487
  %v10056 = vunpack.c.l.b16 %v7488
  %v10057 = vunpack.c.l.b16 %v7489
  %v10058 = vunpack.c.l.b16 %v7490
  %v10059 = vunpack.c.l.b16 %v7491
  %v10060 = vunpack.c.l.b16 %v7492
  %v10061 = vunpack.c.l.b16 %v7493
  %v10062 = vunpack.c.l.b16 %v7494
  %v10063 = vunpack.c.l.b16 %v7495
  %v10064 = vunpack.c.l.b16 %v7496
  %v10065 = vunpack.c.l.b16 %v7497
  %v10066 = vunpack.c.l.b16 %v7498
  %v10067 = vunpack.c.l.b16 %v7499
  %v10068 = vunpack.c.l.b16 %v7500
  %v10069 = vunpack.c.l.b16 %v7501
  %v10070 = vunpack.c.l.b16 %v7502
  %v10071 = vunpack.c.l.b16 %v7503
  %v10072 = vunpack.c.l.b16 %v7504
  %v10073 = vunpack.c.l.b16 %v7505
  %v10074 = vunpack.c.l.b16 %v7506
  %v10075 = vunpack.c.l.b16 %v7507
  %v10076 = vunpack.c.l.b16 %v7508
  %v10077 = vunpack.c.l.b16 %v7509
  %v10078 = vunpack.c.l.b16 %v7510
  %v10079 = vunpack.c.l.b16 %v7511
  %v10080 = vunpack.c.l.b16 %v7512
  %v10081 = vunpack.c.l.b16 %v7513
  %v10082 = vunpack.c.l.b16 %v7514
  %v10083 = vunpack.c.l.b16 %v7515
  %v10084 = vunpack.c.l.b16 %v7516
  %v10085 = vunpack.c.l.b16 %v7517
  %v10086 = vunpack.c.l.b16 %v7518
  %v10087 = vunpack.c.l.b16 %v7519
  %v10088 = vunpack.c.l.b16 %v7520
  %v10089 = vunpack.c.l.b16 %v7521
  %v10090 = vunpack.c.l.b16 %v7522
  %v10091 = vunpack.c.l.b16 %v7523
  %v10092 = vunpack.c.l.b16 %v7524
  %v10093 = vunpack.c.l.b16 %v7525
  %v10094 = vunpack.c.l.b16 %v7526
  %v10095 = vunpack.c.l.b16 %v7527
  %v10096 = vunpack.c.l.b16 %v7528
  %v10097 = vunpack.c.l.b16 %v7529
  %v10098 = vunpack.c.l.b16 %v7530
  %v10099 = vunpack.c.l.b16 %v7531
  %v10100 = vunpack.c.l.b16 %v7532
  %v10101 = vunpack.c.l.b16 %v7533
  %v10102 = vunpack.c.l.b16 %v7534
  %v10103 = vunpack.c.l.b16 %v7535
  %v10104 = vunpack.c.l.b16 %v7536
  %v10105 = vunpack.c.l.b16 %v7537
  %v10106 = vunpack.c.l.b16 %v7538
  %v10107 = vunpack.c.l.b16 %v7539
  %v10108 = vunpack.c.l.b16 %v7540
  %v10109 = vunpack.c.l.b16 %v7541
  %v10110 = vunpack.c.l.b16 %v7542
  %v10111 = vunpack.c.l.b16 %v7543
  %v10112 = vunpack.c.l.b16 %v7544
  %v10113 = vunpack.c.l.b16 %v7545
  %v10114 = vunpack.c.l.b16 %v7546
  %v10115 = vunpack.c.l.b16 %v7547
  %v10116 = vunpack.c.l.b16 %v7548
  %v10117 = vunpack.c.l.b16 %v7549
  %v10118 = vunpack.c.l.b16 %v7550
  %v10119 = vunpack.c.l.b16 %v7551
  %v10120 = vunpack.c.l.b16 %v7552
  %v10121 = vunpack.c.l.b16 %v7553
  %v10122 = vunpack.c.l.b16 %v7554
  %v10123 = vunpack.c.l.b16 %v7555
  %v10124 = vunpack.c.l.b16 %v7556
  %v10125 = vunpack.c.l.b16 %v7557
  %v10126 = vunpack.c.l.b16 %v7558
  %v10127 = vunpack.c.l.b16 %v7559
  %v10128 = vunpack.c.l.b16 %v7560
  %v10129 = vunpack.c.l.b16 %v7561
  %v10130 = vunpack.c.l.b16 %v7562
  %v10131 = vunpack.c.l.b16 %v7563
  %v10132 = vunpack.c.l.b16 %v7564
  %v10133 = vunpack.c.l.b16 %v7565
  %v10134 = vunpack.c.l.b16 %v7566
  %v10135 = vunpack.c.l.b16 %v7567
  %v10136 = vunpack.c.l.b16 %v7568
  %v10137 = vunpack.c.l.b16 %v7569
  %v10138 = vunpack.c.l.b16 %v7570
  %v10139 = vunpack.c.l.b16 %v7571
  %v10140 = vunpack.c.l.b16 %v7572
  %v10141 = vunpack.c.l.b16 %v7573
  %v10142 = vunpack.c.l.b16 %v7574
  %v10143 = vunpack.c.l.b16 %v7575
  %v10144 = vunpack.c.l.b16 %v7576
  %v10145 = vunpack.c.l.b16 %v7577
  %v10146 = vunpack.c.l.b16 %v7578
  %v10147 = vunpack.c.l.b16 %v7579
  %v10148 = vunpack.c.l.b16 %v7580
  %v10149 = vunpack.c.l.b16 %v7581
  %v10150 = vunpack.c.l.b16 %v7582
  %v10151 = vunpack.c.l.b16 %v7583
  %v10152 = vunpack.c.l.b16 %v7584
  %v10153 = vpack.c.b16 %v9898, %v9897
  %v10154 = vpack.c.b16 %v9900, %v9899
  %v10155 = vpack.c.b16 %v9902, %v9901
  %v10156 = vpack.c.b16 %v9904, %v9903
  %v10157 = vpack.c.b16 %v9906, %v9905
  %v10158 = vpack.c.b16 %v9908, %v9907
  %v10159 = vpack.c.b16 %v9910, %v9909
  %v10160 = vpack.c.b16 %v9912, %v9911
  %v10161 = vpack.c.b16 %v9914, %v9913
  %v10162 = vpack.c.b16 %v9916, %v9915
  %v10163 = vpack.c.b16 %v9918, %v9917
  %v10164 = vpack.c.b16 %v9920, %v9919
  %v10165 = vpack.c.b16 %v9922, %v9921
  %v10166 = vpack.c.b16 %v9924, %v9923
  %v10167 = vpack.c.b16 %v9926, %v9925
  %v10168 = vpack.c.b16 %v9928, %v9927
  %v10169 = vpack.c.b16 %v9930, %v9929
  %v10170 = vpack.c.b16 %v9932, %v9931
  %v10171 = vpack.c.b16 %v9934, %v9933
  %v10172 = vpack.c.b16 %v9936, %v9935
  %v10173 = vpack.c.b16 %v9938, %v9937
  %v10174 = vpack.c.b16 %v9940, %v9939
  %v10175 = vpack.c.b16 %v9942, %v9941
  %v10176 = vpack.c.b16 %v9944, %v9943
  %v10177 = vpack.c.b16 %v9946, %v9945
  %v10178 = vpack.c.b16 %v9948, %v9947
  %v10179 = vpack.c.b16 %v9950, %v9949
  %v10180 = vpack.c.b16 %v9952, %v9951
  %v10181 = vpack.c.b16 %v9954, %v9953
  %v10182 = vpack.c.b16 %v9956, %v9955
  %v10183 = vpack.c.b16 %v9958, %v9957
  %v10184 = vpack.c.b16 %v9960, %v9959
  %v10185 = vpack.c.b16 %v9962, %v9961
  %v10186 = vpack.c.b16 %v9964, %v9963
  %v10187 = vpack.c.b16 %v9966, %v9965
  %v10188 = vpack.c.b16 %v9968, %v9967
  %v10189 = vpack.c.b16 %v9970, %v9969
  %v10190 = vpack.c.b16 %v9972, %v9971
  %v10191 = vpack.c.b16 %v9974, %v9973
  %v10192 = vpack.c.b16 %v9976, %v9975
  %v10193 = vpack.c.b16 %v9978, %v9977
  %v10194 = vpack.c.b16 %v9980, %v9979
  %v10195 = vpack.c.b16 %v9982, %v9981
  %v10196 = vpack.c.b16 %v9984, %v9983
  %v10197 = vpack.c.b16 %v9986, %v9985
  %v10198 = vpack.c.b16 %v9988, %v9987
  %v10199 = vpack.c.b16 %v9990, %v9989
  %v10200 = vpack.c.b16 %v9992, %v9991
  %v10201 = vpack.c.b16 %v9994, %v9993
  %v10202 = vpack.c.b16 %v9996, %v9995
  %v10203 = vpack.c.b16 %v9998, %v9997
  %v10204 = vpack.c.b16 %v10000, %v9999
  %v10205 = vpack.c.b16 %v10002, %v10001
  %v10206 = vpack.c.b16 %v10004, %v10003
  %v10207 = vpack.c.b16 %v10006, %v10005
  %v10208 = vpack.c.b16 %v10008, %v10007
  %v10209 = vpack.c.b16 %v10010, %v10009
  %v10210 = vpack.c.b16 %v10012, %v10011
  %v10211 = vpack.c.b16 %v10014, %v10013
  %v10212 = vpack.c.b16 %v10016, %v10015
  %v10213 = vpack.c.b16 %v10018, %v10017
  %v10214 = vpack.c.b16 %v10020, %v10019
  %v10215 = vpack.c.b16 %v10022, %v10021
  %v10216 = vpack.c.b16 %v10024, %v10023
  %v10217 = vpack.c.b16 %v10026, %v10025
  %v10218 = vpack.c.b16 %v10028, %v10027
  %v10219 = vpack.c.b16 %v10030, %v10029
  %v10220 = vpack.c.b16 %v10032, %v10031
  %v10221 = vpack.c.b16 %v10034, %v10033
  %v10222 = vpack.c.b16 %v10036, %v10035
  %v10223 = vpack.c.b16 %v10038, %v10037
  %v10224 = vpack.c.b16 %v10040, %v10039
  %v10225 = vpack.c.b16 %v10042, %v10041
  %v10226 = vpack.c.b16 %v10044, %v10043
  %v10227 = vpack.c.b16 %v10046, %v10045
  %v10228 = vpack.c.b16 %v10048, %v10047
  %v10229 = vpack.c.b16 %v10050, %v10049
  %v10230 = vpack.c.b16 %v10052, %v10051
  %v10231 = vpack.c.b16 %v10054, %v10053
  %v10232 = vpack.c.b16 %v10056, %v10055
  %v10233 = vpack.c.b16 %v10058, %v10057
  %v10234 = vpack.c.b16 %v10060, %v10059
  %v10235 = vpack.c.b16 %v10062, %v10061
  %v10236 = vpack.c.b16 %v10064, %v10063
  %v10237 = vpack.c.b16 %v10066, %v10065
  %v10238 = vpack.c.b16 %v10068, %v10067
  %v10239 = vpack.c.b16 %v10070, %v10069
  %v10240 = vpack.c.b16 %v10072, %v10071
  %v10241 = vpack.c.b16 %v10074, %v10073
  %v10242 = vpack.c.b16 %v10076, %v10075
  %v10243 = vpack.c.b16 %v10078, %v10077
  %v10244 = vpack.c.b16 %v10080, %v10079
  %v10245 = vpack.c.b16 %v10082, %v10081
  %v10246 = vpack.c.b16 %v10084, %v10083
  %v10247 = vpack.c.b16 %v10086, %v10085
  %v10248 = vpack.c.b16 %v10088, %v10087
  %v10249 = vpack.c.b16 %v10090, %v10089
  %v10250 = vpack.c.b16 %v10092, %v10091
  %v10251 = vpack.c.b16 %v10094, %v10093
  %v10252 = vpack.c.b16 %v10096, %v10095
  %v10253 = vpack.c.b16 %v10098, %v10097
  %v10254 = vpack.c.b16 %v10100, %v10099
  %v10255 = vpack.c.b16 %v10102, %v10101
  %v10256 = vpack.c.b16 %v10104, %v10103
  %v10257 = vpack.c.b16 %v10106, %v10105
  %v10258 = vpack.c.b16 %v10108, %v10107
  %v10259 = vpack.c.b16 %v10110, %v10109
  %v10260 = vpack.c.b16 %v10112, %v10111
  %v10261 = vpack.c.b16 %v10114, %v10113
  %v10262 = vpack.c.b16 %v10116, %v10115
  %v10263 = vpack.c.b16 %v10118, %v10117
  %v10264 = vpack.c.b16 %v10120, %v10119
  %v10265 = vpack.c.b16 %v10122, %v10121
  %v10266 = vpack.c.b16 %v10124, %v10123
  %v10267 = vpack.c.b16 %v10126, %v10125
  %v10268 = vpack.c.b16 %v10128, %v10127
  %v10269 = vpack.c.b16 %v10130, %v10129
  %v10270 = vpack.c.b16 %v10132, %v10131
  %v10271 = vpack.c.b16 %v10134, %v10133
  %v10272 = vpack.c.b16 %v10136, %v10135
  %v10273 = vpack.c.b16 %v10138, %v10137
  %v10274 = vpack.c.b16 %v10140, %v10139
  %v10275 = vpack.c.b16 %v10142, %v10141
  %v10276 = vpack.c.b16 %v10144, %v10143
  %v10277 = vpack.c.b16 %v10146, %v10145
  %v10278 = vpack.c.b16 %v10148, %v10147
  %v10279 = vpack.c.b16 %v10150, %v10149
  %v10280 = vpack.c.b16 %v10152, %v10151
  %10409 = vmatprep.subr.bf16.mxu0 0
  %10410 = vmatpush1.bf16.msra.mxu0 %v10160
  %10411 = vmatprep.subr.bf16.mxu0 0
  %10412 = vmatpush1.bf16.msra.mxu0 %v10159
  %10413 = vmatprep.subr.bf16.mxu0 0
  %10414 = vmatpush1.bf16.msra.mxu0 %v10158
  %10415 = vmatprep.subr.bf16.mxu0 0
  %10416 = vmatpush1.bf16.msra.mxu0 %v10157
  %10417 = vmatprep.subr.bf16.mxu0 0
  %10418 = vmatpush1.bf16.msra.mxu0 %v10156
  %10419 = vmatprep.subr.bf16.mxu0 0
  %10420 = vmatpush1.bf16.msra.mxu0 %v10155
  %10421 = vmatprep.subr.bf16.mxu0 0
  %10422 = vmatpush1.bf16.msra.mxu0 %v10154
  %10423 = vmatprep.subr.bf16.mxu0 0
  %10424 = vmatpush1.bf16.msra.mxu0 %v10153
  %10425 = vmatprep.subr.bf16.mxu0 0
  %10426 = vmatpush2.bf16.msra.mxu0 %v10168
  %10427 = vmatprep.subr.bf16.mxu0 0
  %10428 = vmatpush2.bf16.msra.mxu0 %v10167
  %10429 = vmatprep.subr.bf16.mxu0 0
  %10430 = vmatpush2.bf16.msra.mxu0 %v10166
  %10431 = vmatprep.subr.bf16.mxu0 0
  %10432 = vmatpush2.bf16.msra.mxu0 %v10165
  %10433 = vmatprep.subr.bf16.mxu0 0
  %10434 = vmatpush2.bf16.msra.mxu0 %v10164
  %10435 = vmatprep.subr.bf16.mxu0 0
  %10436 = vmatpush2.bf16.msra.mxu0 %v10163
  %10437 = vmatprep.subr.bf16.mxu0 0
  %10438 = vmatpush2.bf16.msra.mxu0 %v10162
  %10439 = vmatprep.subr.bf16.mxu0 0
  %10440 = vmatpush2.bf16.msra.mxu0 %v10161
  %10441 = vmatprep.mubr.bf16.mxu0 %v9620
  %10442 = vmatmul.mubr.bf16.gmra.mxu0 %v9619
  %v10443 = vpop.f32.mrf.mxu0
  %v10444 = vadd.f32 %v9639, %v10443
  %v10445 = vpop.f32.mrf.mxu0
  %v10446 = vpop.f32.mrf.mxu0
  %v10447 = vadd.f32 %v9639, %v10446
  %v10448 = vpop.f32.mrf.mxu0
  %10449 = vdwg.mxu0
  %10450 = vmatprep.subr.bf16.mxu0 0
  %10451 = vmatpush1.bf16.msra.mxu0 %v10176
  %10452 = vmatprep.subr.bf16.mxu0 0
  %10453 = vmatpush1.bf16.msra.mxu0 %v10175
  %10454 = vmatprep.subr.bf16.mxu0 0
  %10455 = vmatpush1.bf16.msra.mxu0 %v10174
  %10456 = vmatprep.subr.bf16.mxu0 0
  %10457 = vmatpush1.bf16.msra.mxu0 %v10173
  %10458 = vmatprep.subr.bf16.mxu0 0
  %10459 = vmatpush1.bf16.msra.mxu0 %v10172
  %10460 = vmatprep.subr.bf16.mxu0 0
  %10461 = vmatpush1.bf16.msra.mxu0 %v10171
  %10462 = vmatprep.subr.bf16.mxu0 0
  %10463 = vmatpush1.bf16.msra.mxu0 %v10170
  %10464 = vmatprep.subr.bf16.mxu0 0
  %10465 = vmatpush1.bf16.msra.mxu0 %v10169
  %10466 = vmatprep.subr.bf16.mxu0 0
  %10467 = vmatpush2.bf16.msra.mxu0 %v10184
  %10468 = vmatprep.subr.bf16.mxu0 0
  %10469 = vmatpush2.bf16.msra.mxu0 %v10183
  %10470 = vmatprep.subr.bf16.mxu0 0
  %10471 = vmatpush2.bf16.msra.mxu0 %v10182
  %10472 = vmatprep.subr.bf16.mxu0 0
  %10473 = vmatpush2.bf16.msra.mxu0 %v10181
  %10474 = vmatprep.subr.bf16.mxu0 0
  %10475 = vmatpush2.bf16.msra.mxu0 %v10180
  %10476 = vmatprep.subr.bf16.mxu0 0
  %10477 = vmatpush2.bf16.msra.mxu0 %v10179
  %10478 = vmatprep.subr.bf16.mxu0 0
  %10479 = vmatpush2.bf16.msra.mxu0 %v10178
  %10480 = vmatprep.subr.bf16.mxu0 0
  %10481 = vmatpush2.bf16.msra.mxu0 %v10177
  %10482 = vmatprep.mubr.bf16.mxu0 %v9622
  %10483 = vmatmul.mubr.bf16.gmra.mxu0 %v9621
  %v10484 = vpop.f32.mrf.mxu0
  %v10485 = vadd.f32 %v10444, %v10484
  %v10486 = vpop.f32.mrf.mxu0
  %v10487 = vpop.f32.mrf.mxu0
  %v10488 = vadd.f32 %v10447, %v10487
  %v10489 = vpop.f32.mrf.mxu0
  %10490 = vdwg.mxu0
  %10491 = vmatprep.subr.bf16.mxu0 0
  %10492 = vmatpush1.bf16.msra.mxu0 %v10192
  %10493 = vmatprep.subr.bf16.mxu0 0
  %10494 = vmatpush1.bf16.msra.mxu0 %v10191
  %10495 = vmatprep.subr.bf16.mxu0 0
  %10496 = vmatpush1.bf16.msra.mxu0 %v10190
  %10497 = vmatprep.subr.bf16.mxu0 0
  %10498 = vmatpush1.bf16.msra.mxu0 %v10189
  %10499 = vmatprep.subr.bf16.mxu0 0
  %10500 = vmatpush1.bf16.msra.mxu0 %v10188
  %10501 = vmatprep.subr.bf16.mxu0 0
  %10502 = vmatpush1.bf16.msra.mxu0 %v10187
  %10503 = vmatprep.subr.bf16.mxu0 0
  %10504 = vmatpush1.bf16.msra.mxu0 %v10186
  %10505 = vmatprep.subr.bf16.mxu0 0
  %10506 = vmatpush1.bf16.msra.mxu0 %v10185
  %10507 = vmatprep.subr.bf16.mxu0 0
  %10508 = vmatpush2.bf16.msra.mxu0 %v10200
  %10509 = vmatprep.subr.bf16.mxu0 0
  %10510 = vmatpush2.bf16.msra.mxu0 %v10199
  %10511 = vmatprep.subr.bf16.mxu0 0
  %10512 = vmatpush2.bf16.msra.mxu0 %v10198
  %10513 = vmatprep.subr.bf16.mxu0 0
  %10514 = vmatpush2.bf16.msra.mxu0 %v10197
  %10515 = vmatprep.subr.bf16.mxu0 0
  %10516 = vmatpush2.bf16.msra.mxu0 %v10196
  %10517 = vmatprep.subr.bf16.mxu0 0
  %10518 = vmatpush2.bf16.msra.mxu0 %v10195
  %10519 = vmatprep.subr.bf16.mxu0 0
  %10520 = vmatpush2.bf16.msra.mxu0 %v10194
  %10521 = vmatprep.subr.bf16.mxu0 0
  %10522 = vmatpush2.bf16.msra.mxu0 %v10193
  %10523 = vmatprep.mubr.bf16.mxu0 %v9624
  %10524 = vmatmul.mubr.bf16.gmra.mxu0 %v9623
  %v10525 = vpop.f32.mrf.mxu0
  %v10526 = vadd.f32 %v10485, %v10525
  %v10527 = vpop.f32.mrf.mxu0
  %v10528 = vpop.f32.mrf.mxu0
  %v10529 = vadd.f32 %v10488, %v10528
  %v10530 = vpop.f32.mrf.mxu0
  %10531 = vdwg.mxu0
  %10532 = vmatprep.subr.bf16.mxu0 0
  %10533 = vmatpush1.bf16.msra.mxu0 %v10208
  %10534 = vmatprep.subr.bf16.mxu0 0
  %10535 = vmatpush1.bf16.msra.mxu0 %v10207
  %10536 = vmatprep.subr.bf16.mxu0 0
  %10537 = vmatpush1.bf16.msra.mxu0 %v10206
  %10538 = vmatprep.subr.bf16.mxu0 0
  %10539 = vmatpush1.bf16.msra.mxu0 %v10205
  %10540 = vmatprep.subr.bf16.mxu0 0
  %10541 = vmatpush1.bf16.msra.mxu0 %v10204
  %10542 = vmatprep.subr.bf16.mxu0 0
  %10543 = vmatpush1.bf16.msra.mxu0 %v10203
  %10544 = vmatprep.subr.bf16.mxu0 0
  %10545 = vmatpush1.bf16.msra.mxu0 %v10202
  %10546 = vmatprep.subr.bf16.mxu0 0
  %10547 = vmatpush1.bf16.msra.mxu0 %v10201
  %10548 = vmatprep.subr.bf16.mxu0 0
  %10549 = vmatpush2.bf16.msra.mxu0 %v10216
  %10550 = vmatprep.subr.bf16.mxu0 0
  %10551 = vmatpush2.bf16.msra.mxu0 %v10215
  %10552 = vmatprep.subr.bf16.mxu0 0
  %10553 = vmatpush2.bf16.msra.mxu0 %v10214
  %10554 = vmatprep.subr.bf16.mxu0 0
  %10555 = vmatpush2.bf16.msra.mxu0 %v10213
  %10556 = vmatprep.subr.bf16.mxu0 0
  %10557 = vmatpush2.bf16.msra.mxu0 %v10212
  %10558 = vmatprep.subr.bf16.mxu0 0
  %10559 = vmatpush2.bf16.msra.mxu0 %v10211
  %10560 = vmatprep.subr.bf16.mxu0 0
  %10561 = vmatpush2.bf16.msra.mxu0 %v10210
  %10562 = vmatprep.subr.bf16.mxu0 0
  %10563 = vmatpush2.bf16.msra.mxu0 %v10209
  %10564 = vmatprep.mubr.bf16.mxu0 %v9626
  %10565 = vmatmul.mubr.bf16.gmra.mxu0 %v9625
  %v10566 = vpop.f32.mrf.mxu0
  %v10567 = vadd.f32 %v10526, %v10566
  %v10568 = vpop.f32.mrf.mxu0
  %v10569 = vpop.f32.mrf.mxu0
  %v10570 = vadd.f32 %v10529, %v10569
  %v10571 = vpop.f32.mrf.mxu0
  %10572 = vdwg.mxu0
  %10573 = vmatprep.subr.bf16.mxu0 0
  %10574 = vmatpush1.bf16.msra.mxu0 %v10224
  %10575 = vmatprep.subr.bf16.mxu0 0
  %10576 = vmatpush1.bf16.msra.mxu0 %v10223
  %10577 = vmatprep.subr.bf16.mxu0 0
  %10578 = vmatpush1.bf16.msra.mxu0 %v10222
  %10579 = vmatprep.subr.bf16.mxu0 0
  %10580 = vmatpush1.bf16.msra.mxu0 %v10221
  %10581 = vmatprep.subr.bf16.mxu0 0
  %10582 = vmatpush1.bf16.msra.mxu0 %v10220
  %10583 = vmatprep.subr.bf16.mxu0 0
  %10584 = vmatpush1.bf16.msra.mxu0 %v10219
  %10585 = vmatprep.subr.bf16.mxu0 0
  %10586 = vmatpush1.bf16.msra.mxu0 %v10218
  %10587 = vmatprep.subr.bf16.mxu0 0
  %10588 = vmatpush1.bf16.msra.mxu0 %v10217
  %10589 = vmatprep.subr.bf16.mxu0 0
  %10590 = vmatpush2.bf16.msra.mxu0 %v10232
  %10591 = vmatprep.subr.bf16.mxu0 0
  %10592 = vmatpush2.bf16.msra.mxu0 %v10231
  %10593 = vmatprep.subr.bf16.mxu0 0
  %10594 = vmatpush2.bf16.msra.mxu0 %v10230
  %10595 = vmatprep.subr.bf16.mxu0 0
  %10596 = vmatpush2.bf16.msra.mxu0 %v10229
  %10597 = vmatprep.subr.bf16.mxu0 0
  %10598 = vmatpush2.bf16.msra.mxu0 %v10228
  %10599 = vmatprep.subr.bf16.mxu0 0
  %10600 = vmatpush2.bf16.msra.mxu0 %v10227
  %10601 = vmatprep.subr.bf16.mxu0 0
  %10602 = vmatpush2.bf16.msra.mxu0 %v10226
  %10603 = vmatprep.subr.bf16.mxu0 0
  %10604 = vmatpush2.bf16.msra.mxu0 %v10225
  %10605 = vmatprep.mubr.bf16.mxu0 %v9628
  %10606 = vmatmul.mubr.bf16.gmra.mxu0 %v9627
  %v10607 = vpop.f32.mrf.mxu0
  %v10608 = vadd.f32 %v10567, %v10607
  %v10609 = vpop.f32.mrf.mxu0
  %v10610 = vpop.f32.mrf.mxu0
  %v10611 = vadd.f32 %v10570, %v10610
  %v10612 = vpop.f32.mrf.mxu0
  %10613 = vdwg.mxu0
  %10614 = vmatprep.subr.bf16.mxu0 0
  %10615 = vmatpush1.bf16.msra.mxu0 %v10240
  %10616 = vmatprep.subr.bf16.mxu0 0
  %10617 = vmatpush1.bf16.msra.mxu0 %v10239
  %10618 = vmatprep.subr.bf16.mxu0 0
  %10619 = vmatpush1.bf16.msra.mxu0 %v10238
  %10620 = vmatprep.subr.bf16.mxu0 0
  %10621 = vmatpush1.bf16.msra.mxu0 %v10237
  %10622 = vmatprep.subr.bf16.mxu0 0
  %10623 = vmatpush1.bf16.msra.mxu0 %v10236
  %10624 = vmatprep.subr.bf16.mxu0 0
  %10625 = vmatpush1.bf16.msra.mxu0 %v10235
  %10626 = vmatprep.subr.bf16.mxu0 0
  %10627 = vmatpush1.bf16.msra.mxu0 %v10234
  %10628 = vmatprep.subr.bf16.mxu0 0
  %10629 = vmatpush1.bf16.msra.mxu0 %v10233
  %10630 = vmatprep.subr.bf16.mxu0 0
  %10631 = vmatpush2.bf16.msra.mxu0 %v10248
  %10632 = vmatprep.subr.bf16.mxu0 0
  %10633 = vmatpush2.bf16.msra.mxu0 %v10247
  %10634 = vmatprep.subr.bf16.mxu0 0
  %10635 = vmatpush2.bf16.msra.mxu0 %v10246
  %10636 = vmatprep.subr.bf16.mxu0 0
  %10637 = vmatpush2.bf16.msra.mxu0 %v10245
  %10638 = vmatprep.subr.bf16.mxu0 0
  %10639 = vmatpush2.bf16.msra.mxu0 %v10244
  %10640 = vmatprep.subr.bf16.mxu0 0
  %10641 = vmatpush2.bf16.msra.mxu0 %v10243
  %10642 = vmatprep.subr.bf16.mxu0 0
  %10643 = vmatpush2.bf16.msra.mxu0 %v10242
  %10644 = vmatprep.subr.bf16.mxu0 0
  %10645 = vmatpush2.bf16.msra.mxu0 %v10241
  %10646 = vmatprep.mubr.bf16.mxu0 %v9630
  %10647 = vmatmul.mubr.bf16.gmra.mxu0 %v9629
  %v10648 = vpop.f32.mrf.mxu0
  %v10649 = vadd.f32 %v10608, %v10648
  %v10650 = vpop.f32.mrf.mxu0
  %v10651 = vpop.f32.mrf.mxu0
  %v10652 = vadd.f32 %v10611, %v10651
  %v10653 = vpop.f32.mrf.mxu0
  %10654 = vdwg.mxu0
  %10655 = vmatprep.subr.bf16.mxu0 0
  %10656 = vmatpush1.bf16.msra.mxu0 %v10256
  %10657 = vmatprep.subr.bf16.mxu0 0
  %10658 = vmatpush1.bf16.msra.mxu0 %v10255
  %10659 = vmatprep.subr.bf16.mxu0 0
  %10660 = vmatpush1.bf16.msra.mxu0 %v10254
  %10661 = vmatprep.subr.bf16.mxu0 0
  %10662 = vmatpush1.bf16.msra.mxu0 %v10253
  %10663 = vmatprep.subr.bf16.mxu0 0
  %10664 = vmatpush1.bf16.msra.mxu0 %v10252
  %10665 = vmatprep.subr.bf16.mxu0 0
  %10666 = vmatpush1.bf16.msra.mxu0 %v10251
  %10667 = vmatprep.subr.bf16.mxu0 0
  %10668 = vmatpush1.bf16.msra.mxu0 %v10250
  %10669 = vmatprep.subr.bf16.mxu0 0
  %10670 = vmatpush1.bf16.msra.mxu0 %v10249
  %10671 = vmatprep.subr.bf16.mxu0 0
  %10672 = vmatpush2.bf16.msra.mxu0 %v10264
  %10673 = vmatprep.subr.bf16.mxu0 0
  %10674 = vmatpush2.bf16.msra.mxu0 %v10263
  %10675 = vmatprep.subr.bf16.mxu0 0
  %10676 = vmatpush2.bf16.msra.mxu0 %v10262
  %10677 = vmatprep.subr.bf16.mxu0 0
  %10678 = vmatpush2.bf16.msra.mxu0 %v10261
  %10679 = vmatprep.subr.bf16.mxu0 0
  %10680 = vmatpush2.bf16.msra.mxu0 %v10260
  %10681 = vmatprep.subr.bf16.mxu0 0
  %10682 = vmatpush2.bf16.msra.mxu0 %v10259
  %10683 = vmatprep.subr.bf16.mxu0 0
  %10684 = vmatpush2.bf16.msra.mxu0 %v10258
  %10685 = vmatprep.subr.bf16.mxu0 0
  %10686 = vmatpush2.bf16.msra.mxu0 %v10257
  %10687 = vmatprep.mubr.bf16.mxu0 %v9632
  %10688 = vmatmul.mubr.bf16.gmra.mxu0 %v9631
  %v10689 = vpop.f32.mrf.mxu0
  %v10690 = vadd.f32 %v10649, %v10689
  %v10691 = vpop.f32.mrf.mxu0
  %v10692 = vpop.f32.mrf.mxu0
  %v10693 = vadd.f32 %v10652, %v10692
  %v10694 = vpop.f32.mrf.mxu0
  %10695 = vdwg.mxu0
  %10696 = vmatprep.subr.bf16.mxu0 0
  %10697 = vmatpush1.bf16.msra.mxu0 %v10272
  %10698 = vmatprep.subr.bf16.mxu0 0
  %10699 = vmatpush1.bf16.msra.mxu0 %v10271
  %10700 = vmatprep.subr.bf16.mxu0 0
  %10701 = vmatpush1.bf16.msra.mxu0 %v10270
  %10702 = vmatprep.subr.bf16.mxu0 0
  %10703 = vmatpush1.bf16.msra.mxu0 %v10269
  %10704 = vmatprep.subr.bf16.mxu0 0
  %10705 = vmatpush1.bf16.msra.mxu0 %v10268
  %10706 = vmatprep.subr.bf16.mxu0 0
  %10707 = vmatpush1.bf16.msra.mxu0 %v10267
  %10708 = vmatprep.subr.bf16.mxu0 0
  %10709 = vmatpush1.bf16.msra.mxu0 %v10266
  %10710 = vmatprep.subr.bf16.mxu0 0
  %10711 = vmatpush1.bf16.msra.mxu0 %v10265
  %10712 = vmatprep.subr.bf16.mxu0 0
  %10713 = vmatpush2.bf16.msra.mxu0 %v10280
  %10714 = vmatprep.subr.bf16.mxu0 0
  %10715 = vmatpush2.bf16.msra.mxu0 %v10279
  %10716 = vmatprep.subr.bf16.mxu0 0
  %10717 = vmatpush2.bf16.msra.mxu0 %v10278
  %10718 = vmatprep.subr.bf16.mxu0 0
  %10719 = vmatpush2.bf16.msra.mxu0 %v10277
  %10720 = vmatprep.subr.bf16.mxu0 0
  %10721 = vmatpush2.bf16.msra.mxu0 %v10276
  %10722 = vmatprep.subr.bf16.mxu0 0
  %10723 = vmatpush2.bf16.msra.mxu0 %v10275
  %10724 = vmatprep.subr.bf16.mxu0 0
  %10725 = vmatpush2.bf16.msra.mxu0 %v10274
  %10726 = vmatprep.subr.bf16.mxu0 0
  %10727 = vmatpush2.bf16.msra.mxu0 %v10273
  %10728 = vmatprep.mubr.bf16.mxu0 %v9634
  %10729 = vmatmul.mubr.bf16.gmra.mxu0 %v9633
  %v10730 = vpop.f32.mrf.mxu0
  %v10731 = vadd.f32 %v10690, %v10730
  %v10732 = vpop.f32.mrf.mxu0
  %v10733 = vpop.f32.mrf.mxu0
  %v10734 = vadd.f32 %v10693, %v10733
  %v10735 = vpop.f32.mrf.mxu0
  %10736 = vdwg.mxu0
  %v10737 = vadd.f32 %v8835, %v10731
  %v10738 = vadd.f32 %v8836, %v10734
  %v10739 = vsel %vm545, %v10737, 0.0
  %10740 = vadd.xlane.f32.xlu0 %v10739
  %v10741 = vpop.xlane.xlu0 %10740
  %v10742 = vsel %vm545, %v10738, 0.0
  %10743 = vadd.xlane.f32.xlu0 %v10742
  %v10744 = vpop.xlane.xlu0 %10743
  %v10745 = vmul.f32 %v10741, %v1706
  %v10746 = vmul.f32 %v10744, %v1706
  %v10747 = vsub.f32 %v10737, %v10745
  %v10748 = vsub.f32 %v10738, %v10746
  %v10749 = vmul.f32 %v10747, %v10747
  %v10750 = vmul.f32 %v10748, %v10748
  %v10751 = vsel %vm545, %v10749, 0.0
  %10752 = vadd.xlane.f32.xlu0 %v10751
  %v10753 = vpop.xlane.xlu0 %10752
  %v10754 = vsel %vm545, %v10750, 0.0
  %10755 = vadd.xlane.f32.xlu0 %v10754
  %v10756 = vpop.xlane.xlu0 %10755
  %v10757 = vmul.f32 %v10753, %v1706
  %v10758 = vmul.f32 %v10756, %v1706
  %v10759 = vadd.f32 %v10757, 1e-05
  %v10760 = vadd.f32 %v10758, 1e-05
  %v10761 = vrsqrt.pop %v10759
  %v10762 = vrsqrt.pop %v10760
  %v10763 = vmul.f32 %v10747, %v10761
  %v10764 = vmul.f32 %v10748, %v10762
  %v10766 = vlaneseq
  %v10767 = vshrl.u32 %v10766, 7
  %v10768 = vsub.s32 0, %v10767
  %v10769 = vrot.slane %v7588, %v10768
  %v10771 = vmul.f32 %v10763, %v10769
  %v10772 = vmul.f32 %v10764, %v10769
  %v10774 = vlaneseq
  %v10775 = vshrl.u32 %v10774, 7
  %v10776 = vsub.s32 0, %v10775
  %v10777 = vrot.slane %v7590, %v10776
  %v10779 = vadd.f32 %v10771, %v10777
  %v10780 = vadd.f32 %v10772, %v10777
  %v10781 = vld [vmem:[%s16] sm:$0x1]
  %v10782 = vld [vmem:[#allocation2] sm:$0x1]
  %v10784 = vlaneseq
  %v10785 = vshrl.u32 %v10784, 7
  %v10786 = vsub.s32 0, %v10785
  %v10787 = vrot.slane %v10781, %v10786
  %v10789 = vmul.f32 %v10779, %v10787
  %v10790 = vmul.f32 %v10780, %v10787
  %v10791 = vsel %vm545, %v10789, 0.0
  %10792 = vadd.xlane.f32.xlu0 %v10791
  %v10793 = vpop.xlane.xlu0 %10792
  %v10794 = vsel %vm545, %v10790, 0.0
  %10795 = vadd.xlane.f32.xlu0 %v10794
  %v10796 = vpop.xlane.xlu0 %10795
  %v10798 = vlaneseq
  %v10799 = vshrl.u32 %v10798, 7
  %v10800 = vsub.s32 0, %v10799
  %v10801 = vrot.slane %v10782, %v10800
  %v10803 = vadd.f32 %v10793, %v10801
  %v10804 = vadd.f32 %v10796, %v10801
  %vm10805 = vcmask 7168
  %v10806 = vsel %vm10805, %v10803, -inf
  %v10807 = vrot.slane %v10806, 4
  %v10808 = vmax.f32 %v10806, %v10807
  %v10809 = vrot.slane %v10808, 2
  %v10810 = vmax.f32 %v10808, %v10809
  %v10811 = vrot.slane %v10810, 1
  %v10812 = vmax.f32 %v10810, %v10811
  %v10813 = vsel %vm10805, %v10804, -inf
  %v10814 = vrot.slane %v10813, 4
  %v10815 = vmax.f32 %v10813, %v10814
  %v10816 = vrot.slane %v10815, 2
  %v10817 = vmax.f32 %v10815, %v10816
  %v10818 = vrot.slane %v10817, 1
  %v10819 = vmax.f32 %v10817, %v10818
  %v10820 = vsub.f32 %v10803, %v10812
  %v10821 = vsub.f32 %v10804, %v10819
  %v10822 = vmul.f32 %v10820, 1.442695
  %v10823 = vpow.pop %v10822
  %v10824 = vmul.f32 %v10821, 1.442695
  %v10825 = vpow.pop %v10824
  %v10826 = vsel %vm10805, %v10823, 0.0
  %v10827 = vrot.slane %v10826, 4
  %v10828 = vadd.f32 %v10826, %v10827
  %v10829 = vrot.slane %v10828, 2
  %v10830 = vadd.f32 %v10828, %v10829
  %v10831 = vrot.slane %v10830, 1
  %v10832 = vadd.f32 %v10830, %v10831
  %v10833 = vsel %vm10805, %v10825, 0.0
  %v10834 = vrot.slane %v10833, 4
  %v10835 = vadd.f32 %v10833, %v10834
  %v10836 = vrot.slane %v10835, 2
  %v10837 = vadd.f32 %v10835, %v10836
  %v10838 = vrot.slane %v10837, 1
  %v10839 = vadd.f32 %v10837, %v10838
  %v10840 = vrcp.pop %v10832
  %v10841 = vmul.f32 %v10823, %v10840
  %v10842 = vrcp.pop %v10839
  %v10843 = vmul.f32 %v10825, %v10842
  %10845 = vset.pattern.permute.xlu0 0
  %10846 = vperm.xlu0 %10845, %v10841
  %v10847 = vpop.permute.xlu0 %10846
  %10850 = vset.pattern.permute.xlu0 0
  %10851 = vperm.xlu0 %10850, %v10843
  %v10852 = vpop.permute.xlu0 %10851
  %v10854 = vmul.f32 %v10847, %v10779
  %v10855 = vmul.f32 %v10852, %v10780
  %v10856 = vsel %vm545, %v10854, 0.0
  %v10857 = vrot.slane %v10856, 4
  %v10858 = vadd.f32 %v10856, %v10857
  %v10859 = vrot.slane %v10858, 2
  %v10860 = vadd.f32 %v10858, %v10859
  %v10861 = vrot.slane %v10860, 1
  %v10862 = vadd.f32 %v10860, %v10861
  %v10863 = vsel %vm545, %v10855, 0.0
  %v10864 = vrot.slane %v10863, 4
  %v10865 = vadd.f32 %v10863, %v10864
  %v10866 = vrot.slane %v10865, 2
  %v10867 = vadd.f32 %v10865, %v10866
  %v10868 = vrot.slane %v10867, 1
  %v10869 = vadd.f32 %v10867, %v10868
  %v10870 = vld [vmem:[%s1] sm:$0x3]
  %v10871 = vpack.c.bf16 %v10870, %v10870
  %v10872 = vpack.c.bf16 %v10862, %v10862
  %v10873 = vpack.c.bf16 %v10869, %v10869
  %v10874 = vld [vmem:[%s18] sm:$0xff]
  %v10875 = vld [vmem:[%s18 + $0x8] sm:$0xff]
  %v10876 = vld [vmem:[%s18 + $0x10] sm:$0xff]
  %v10877 = vld [vmem:[%s18 + $0x18] sm:$0xff]
  %v10878 = vld [vmem:[%s18 + $0x20] sm:$0xff]
  %v10879 = vld [vmem:[%s18 + $0x28] sm:$0xff]
  %v10880 = vld [vmem:[%s18 + $0x30] sm:$0xff]
  %v10881 = vld [vmem:[%s18 + $0x38] sm:$0xff]
  %v10882 = vld [vmem:[%s19] sm:$0xff]
  %v10884 = vunpack.c.l.b16 %v10882
  %v10885 = vunpack.c.h.b16 %v10882
  %v10886 = vpack.c.b16 %v10884, %v10884
  %v10887 = vpack.c.b16 %v10885, %v10885
  %v10889 = vsel %vm696, %v10871, 0
  %v10892 = vsel %vm724, %v10886, 0
  %v10895 = vsel %vm724, %v10887, 0
  %10897 = vmatprep.subr.bf16.mxu0 0
  %10898 = vmatpush1.bf16.msra.mxu0 0
  %10899 = vmatprep.subr.bf16.mxu0 0
  %10900 = vmatpush1.bf16.msra.mxu0 0
  %10901 = vmatprep.subr.bf16.mxu0 0
  %10902 = vmatpush1.bf16.msra.mxu0 0
  %10903 = vmatprep.subr.bf16.mxu0 0
  %10904 = vmatpush1.bf16.msra.mxu0 0
  %10905 = vmatprep.subr.bf16.mxu0 0
  %10906 = vmatpush1.bf16.msra.mxu0 0
  %10907 = vmatprep.subr.bf16.mxu0 0
  %10908 = vmatpush1.bf16.msra.mxu0 0
  %10909 = vmatprep.subr.bf16.mxu0 0
  %10910 = vmatpush1.bf16.msra.mxu0 0
  %10911 = vmatprep.subr.bf16.mxu0 %v10895
  %10912 = vmatpush1.bf16.msra.mxu0 %v10892
  %10913 = vmatprep.subr.bf16.mxu0 0
  %10914 = vmatpush2.bf16.msra.mxu0 0
  %10915 = vmatprep.subr.bf16.mxu0 0
  %10916 = vmatpush2.bf16.msra.mxu0 0
  %10917 = vmatprep.subr.bf16.mxu0 0
  %10918 = vmatpush2.bf16.msra.mxu0 0
  %10919 = vmatprep.subr.bf16.mxu0 0
  %10920 = vmatpush2.bf16.msra.mxu0 0
  %10921 = vmatprep.subr.bf16.mxu0 0
  %10922 = vmatpush2.bf16.msra.mxu0 0
  %10923 = vmatprep.subr.bf16.mxu0 0
  %10924 = vmatpush2.bf16.msra.mxu0 0
  %10925 = vmatprep.subr.bf16.mxu0 0
  %10926 = vmatpush2.bf16.msra.mxu0 0
  %10927 = vmatprep.subr.bf16.mxu0 0
  %10928 = vmatpush2.bf16.msra.mxu0 0
  %10929 = vmatprep.mubr.bf16.mxu0 0
  %10930 = vmatmul.mubr.bf16.gmra.mxu0 %v10889
  %v10931 = vpop.f32.mrf.mxu0
  %v10932 = vadd.f32 0.0, %v10931
  %v10933 = vpop.f32.mrf.mxu0
  %v10934 = vadd.f32 0.0, %v10933
  %v10935 = vpop.f32.mrf.mxu0
  %v10936 = vpop.f32.mrf.mxu0
  %10937 = vdwg.mxu0
  %v10940 = vunpack.c.l.b16 %v10872
  %v10941 = vunpack.c.l.b16 %v10873
  %vm10942 = vcmask 1041409
  %v10943 = vsel %vm10942, %v10941, %v10940
  %v10944 = vpack.c.b16 %v10943, %v10943
  %v10953 = vunpack.c.l.b16 %v10874
  %v10954 = vunpack.c.h.b16 %v10874
  %v10955 = vunpack.c.l.b16 %v10875
  %v10956 = vunpack.c.h.b16 %v10875
  %v10957 = vunpack.c.l.b16 %v10876
  %v10958 = vunpack.c.h.b16 %v10876
  %v10959 = vunpack.c.l.b16 %v10877
  %v10960 = vunpack.c.h.b16 %v10877
  %v10961 = vunpack.c.l.b16 %v10878
  %v10962 = vunpack.c.h.b16 %v10878
  %v10963 = vunpack.c.l.b16 %v10879
  %v10964 = vunpack.c.h.b16 %v10879
  %v10965 = vunpack.c.l.b16 %v10880
  %v10966 = vunpack.c.h.b16 %v10880
  %v10967 = vunpack.c.l.b16 %v10881
  %v10968 = vunpack.c.h.b16 %v10881
  %v10969 = vpack.c.b16 %v10955, %v10953
  %v10970 = vpack.c.b16 %v10956, %v10954
  %v10971 = vpack.c.b16 %v10959, %v10957
  %v10972 = vpack.c.b16 %v10960, %v10958
  %v10973 = vpack.c.b16 %v10963, %v10961
  %v10974 = vpack.c.b16 %v10964, %v10962
  %v10975 = vpack.c.b16 %v10967, %v10965
  %v10976 = vpack.c.b16 %v10968, %v10966
  %v10986 = vsel %vm545, %v10944, 0
  %10988 = vmatprep.subr.bf16.mxu0 0
  %10989 = vmatpush1.bf16.msra.mxu0 0
  %10990 = vmatprep.subr.bf16.mxu0 0
  %10991 = vmatpush1.bf16.msra.mxu0 0
  %10992 = vmatprep.subr.bf16.mxu0 0
  %10993 = vmatpush1.bf16.msra.mxu0 0
  %10994 = vmatprep.subr.bf16.mxu0 0
  %10995 = vmatpush1.bf16.msra.mxu0 0
  %10996 = vmatprep.subr.bf16.mxu0 %v10976
  %10997 = vmatpush1.bf16.msra.mxu0 %v10975
  %10998 = vmatprep.subr.bf16.mxu0 %v10974
  %10999 = vmatpush1.bf16.msra.mxu0 %v10973
  %11000 = vmatprep.subr.bf16.mxu0 %v10972
  %11001 = vmatpush1.bf16.msra.mxu0 %v10971
  %11002 = vmatprep.subr.bf16.mxu0 %v10970
  %11003 = vmatpush1.bf16.msra.mxu0 %v10969
  %11004 = vmatprep.subr.bf16.mxu0 0
  %11005 = vmatpush2.bf16.msra.mxu0 0
  %11006 = vmatprep.subr.bf16.mxu0 0
  %11007 = vmatpush2.bf16.msra.mxu0 0
  %11008 = vmatprep.subr.bf16.mxu0 0
  %11009 = vmatpush2.bf16.msra.mxu0 0
  %11010 = vmatprep.subr.bf16.mxu0 0
  %11011 = vmatpush2.bf16.msra.mxu0 0
  %11012 = vmatprep.subr.bf16.mxu0 0
  %11013 = vmatpush2.bf16.msra.mxu0 0
  %11014 = vmatprep.subr.bf16.mxu0 0
  %11015 = vmatpush2.bf16.msra.mxu0 0
  %11016 = vmatprep.subr.bf16.mxu0 0
  %11017 = vmatpush2.bf16.msra.mxu0 0
  %11018 = vmatprep.subr.bf16.mxu0 0
  %11019 = vmatpush2.bf16.msra.mxu0 0
  %11020 = vmatprep.mubr.bf16.mxu0 0
  %11021 = vmatmul.mubr.bf16.gmra.mxu0 %v10986
  %v11022 = vpop.f32.mrf.mxu0
  %v11023 = vadd.f32 %v10932, %v11022
  %v11024 = vpop.f32.mrf.mxu0
  %v11025 = vadd.f32 %v10934, %v11024
  %v11026 = vpop.f32.mrf.mxu0
  %v11027 = vpop.f32.mrf.mxu0
  %11028 = vdwg.mxu0
  %v11029 = vld [vmem:[%s20] sm:$0x3]
  %v11031 = vlaneseq
  %v11032 = vshrl.u32 %v11031, 7
  %v11033 = vsub.s32 0, %v11032
  %v11034 = vrot.slane %v11029, %v11033
  %v11035 = vlaneseq
  %v11036 = vshrl.u32 %v11035, 7
  %v11037 = vsub.s32 1, %v11036
  %v11038 = vrot.slane %v11029, %v11037
  %v11041 = vadd.f32 %v11023, %v11034
  %v11042 = vadd.f32 %v11025, %v11038
  %v11043 = vmax.f32 %v11041, 0.0
  %v11044 = vmax.f32 %v11042, 0.0
  %v11045 = vpack.c.bf16 %v11043, %v11043
  %v11046 = vpack.c.bf16 %v11044, %v11044
  %v11047 = vld [vmem:[%s21] sm:$0xf]
  %v11048 = vld [vmem:[%s21 + $0x4] sm:$0xf]
  %v11049 = vld [vmem:[%s21 + $0x8] sm:$0xf]
  %v11050 = vld [vmem:[%s21 + $0xc] sm:$0xf]
  %v11051 = vld [vmem:[%s21 + $0x10] sm:$0xf]
  %v11052 = vld [vmem:[%s21 + $0x14] sm:$0xf]
  %v11053 = vld [vmem:[%s21 + $0x18] sm:$0xf]
  %v11054 = vld [vmem:[%s21 + $0x1c] sm:$0xf]
  %v11055 = vld [vmem:[%s21 + $0x20] sm:$0xf]
  %v11056 = vld [vmem:[%s21 + $0x24] sm:$0xf]
  %v11057 = vld [vmem:[%s21 + $0x28] sm:$0xf]
  %v11058 = vld [vmem:[%s21 + $0x2c] sm:$0xf]
  %v11059 = vld [vmem:[%s21 + $0x30] sm:$0xf]
  %v11060 = vld [vmem:[%s21 + $0x34] sm:$0xf]
  %v11061 = vld [vmem:[%s21 + $0x38] sm:$0xf]
  %v11062 = vld [vmem:[%s21 + $0x3c] sm:$0xf]
  %v11063 = vld [vmem:[%s21 + $0x40] sm:$0xf]
  %v11064 = vld [vmem:[%s21 + $0x44] sm:$0xf]
  %v11065 = vld [vmem:[%s21 + $0x48] sm:$0xf]
  %v11066 = vld [vmem:[%s21 + $0x4c] sm:$0xf]
  %v11067 = vld [vmem:[%s21 + $0x50] sm:$0xf]
  %v11068 = vld [vmem:[%s21 + $0x54] sm:$0xf]
  %v11069 = vld [vmem:[%s21 + $0x58] sm:$0xf]
  %v11070 = vld [vmem:[%s21 + $0x5c] sm:$0xf]
  %v11071 = vld [vmem:[%s21 + $0x60] sm:$0xf]
  %v11072 = vld [vmem:[%s21 + $0x64] sm:$0xf]
  %v11073 = vld [vmem:[%s21 + $0x68] sm:$0xf]
  %v11074 = vld [vmem:[%s21 + $0x6c] sm:$0xf]
  %v11075 = vld [vmem:[%s21 + $0x70] sm:$0xf]
  %v11076 = vld [vmem:[%s21 + $0x74] sm:$0xf]
  %v11077 = vld [vmem:[%s21 + $0x78] sm:$0xf]
  %v11078 = vld [vmem:[%s21 + $0x7c] sm:$0xf]
  %v11079 = vld [vmem:[%s22] sm:$0x1]
  %v11081 = vlaneseq
  %v11082 = vshrl.u32 %v11081, 7
  %v11083 = vsub.s32 0, %v11082
  %v11084 = vrot.slane %v11079, %v11083
  %v11118 = vunpack.c.l.b16 %v11047
  %v11119 = vunpack.c.l.b16 %v11048
  %v11120 = vunpack.c.l.b16 %v11049
  %v11121 = vunpack.c.l.b16 %v11050
  %v11122 = vunpack.c.l.b16 %v11051
  %v11123 = vunpack.c.l.b16 %v11052
  %v11124 = vunpack.c.l.b16 %v11053
  %v11125 = vunpack.c.l.b16 %v11054
  %v11126 = vunpack.c.l.b16 %v11055
  %v11127 = vunpack.c.l.b16 %v11056
  %v11128 = vunpack.c.l.b16 %v11057
  %v11129 = vunpack.c.l.b16 %v11058
  %v11130 = vunpack.c.l.b16 %v11059
  %v11131 = vunpack.c.l.b16 %v11060
  %v11132 = vunpack.c.l.b16 %v11061
  %v11133 = vunpack.c.l.b16 %v11062
  %v11134 = vunpack.c.l.b16 %v11063
  %v11135 = vunpack.c.l.b16 %v11064
  %v11136 = vunpack.c.l.b16 %v11065
  %v11137 = vunpack.c.l.b16 %v11066
  %v11138 = vunpack.c.l.b16 %v11067
  %v11139 = vunpack.c.l.b16 %v11068
  %v11140 = vunpack.c.l.b16 %v11069
  %v11141 = vunpack.c.l.b16 %v11070
  %v11142 = vunpack.c.l.b16 %v11071
  %v11143 = vunpack.c.l.b16 %v11072
  %v11144 = vunpack.c.l.b16 %v11073
  %v11145 = vunpack.c.l.b16 %v11074
  %v11146 = vunpack.c.l.b16 %v11075
  %v11147 = vunpack.c.l.b16 %v11076
  %v11148 = vunpack.c.l.b16 %v11077
  %v11149 = vunpack.c.l.b16 %v11078
  %v11150 = vpack.c.b16 %v11119, %v11118
  %v11151 = vpack.c.b16 %v11121, %v11120
  %v11152 = vpack.c.b16 %v11123, %v11122
  %v11153 = vpack.c.b16 %v11125, %v11124
  %v11154 = vpack.c.b16 %v11127, %v11126
  %v11155 = vpack.c.b16 %v11129, %v11128
  %v11156 = vpack.c.b16 %v11131, %v11130
  %v11157 = vpack.c.b16 %v11133, %v11132
  %v11158 = vpack.c.b16 %v11135, %v11134
  %v11159 = vpack.c.b16 %v11137, %v11136
  %v11160 = vpack.c.b16 %v11139, %v11138
  %v11161 = vpack.c.b16 %v11141, %v11140
  %v11162 = vpack.c.b16 %v11143, %v11142
  %v11163 = vpack.c.b16 %v11145, %v11144
  %v11164 = vpack.c.b16 %v11147, %v11146
  %v11165 = vpack.c.b16 %v11149, %v11148
  %11182 = vmatprep.subr.bf16.mxu0 0
  %11183 = vmatpush1.bf16.msra.mxu0 %v11157
  %11184 = vmatprep.subr.bf16.mxu0 0
  %11185 = vmatpush1.bf16.msra.mxu0 %v11156
  %11186 = vmatprep.subr.bf16.mxu0 0
  %11187 = vmatpush1.bf16.msra.mxu0 %v11155
  %11188 = vmatprep.subr.bf16.mxu0 0
  %11189 = vmatpush1.bf16.msra.mxu0 %v11154
  %11190 = vmatprep.subr.bf16.mxu0 0
  %11191 = vmatpush1.bf16.msra.mxu0 %v11153
  %11192 = vmatprep.subr.bf16.mxu0 0
  %11193 = vmatpush1.bf16.msra.mxu0 %v11152
  %11194 = vmatprep.subr.bf16.mxu0 0
  %11195 = vmatpush1.bf16.msra.mxu0 %v11151
  %11196 = vmatprep.subr.bf16.mxu0 0
  %11197 = vmatpush1.bf16.msra.mxu0 %v11150
  %11198 = vmatprep.subr.bf16.mxu0 0
  %11199 = vmatpush2.bf16.msra.mxu0 %v11165
  %11200 = vmatprep.subr.bf16.mxu0 0
  %11201 = vmatpush2.bf16.msra.mxu0 %v11164
  %11202 = vmatprep.subr.bf16.mxu0 0
  %11203 = vmatpush2.bf16.msra.mxu0 %v11163
  %11204 = vmatprep.subr.bf16.mxu0 0
  %11205 = vmatpush2.bf16.msra.mxu0 %v11162
  %11206 = vmatprep.subr.bf16.mxu0 0
  %11207 = vmatpush2.bf16.msra.mxu0 %v11161
  %11208 = vmatprep.subr.bf16.mxu0 0
  %11209 = vmatpush2.bf16.msra.mxu0 %v11160
  %11210 = vmatprep.subr.bf16.mxu0 0
  %11211 = vmatpush2.bf16.msra.mxu0 %v11159
  %11212 = vmatprep.subr.bf16.mxu0 0
  %11213 = vmatpush2.bf16.msra.mxu0 %v11158
  %11214 = vmatprep.mubr.bf16.mxu0 %v11046
  %11215 = vmatmul.mubr.bf16.gmra.mxu0 %v11045
  %v11216 = vpop.f32.mrf.mxu0
  %v11217 = vadd.f32 %v11084, %v11216
  %v11218 = vpop.f32.mrf.mxu0
  %v11219 = vpop.f32.mrf.mxu0
  %v11220 = vpop.f32.mrf.mxu0
  %11221 = vdwg.mxu0
  %v11222 = vmax.f32 %v11217, 0.0
  %v11223 = vld [vmem:[%s23] sm:$0x1]
  %v11225 = vlaneseq
  %v11226 = vshrl.u32 %v11225, 7
  %v11227 = vsub.s32 0, %v11226
  %v11228 = vrot.slane %v11223, %v11227
  %v11230 = vmul.f32 %v11222, %v11228
  %vm11231 = vcmask 1041408
  %v11232 = vsel %vm11231, %v11230, 0.0
  %11233 = vadd.xlane.f32.xlu0 %v11232
  %v11234 = vpop.xlane.xlu0 %11233
  %v11235 = vld [vmem:[#allocation3] sm:$0x1]
  %v11237 = vlaneseq
  %v11238 = vshrl.u32 %v11237, 7
  %v11239 = vsub.s32 0, %v11238
  %v11240 = vrot.slane %v11235, %v11239
  %v11242 = vadd.f32 %v11234, %v11240
  %vm11243 = vcmask 1024
  %11244 = vst.msk [vmem:[%s25] sm:$0x3] %vm11243, %v11242
  // Predicated region
  $region102: #{tpu_custom_call.1} parent=0 // pred_check
    _
  $region103: #{tpu_custom_call.1} parent=0 // pred_check_branch
    %11246 = sbr.rel (0) target = $region105
  $region104: #{tpu_custom_call.1} parent=0 // pred_region
    _
  $region105: #{tpu_custom_call.1} parent=0 // pred_fallthru
    _
  // Predicated region
  $region106: #{tpu_custom_call.1} parent=0 // pred_check
    _
  $region107: #{tpu_custom_call.1} parent=0 // pred_check_branch
    %11248 = sbr.rel (0) target = $region109
  $region108: #{tpu_custom_call.1} parent=0 // pred_region
    _
  $region109: #{tpu_custom_call.1} parent=0 // pred_fallthru
    _

</llo_original>
